<compile_context>
chip_gen: v7x
topology: tpu7x:2x2x1
jax: 0.10.0
libtpu: 0.0.40
codegen_flags: <defaults>
</compile_context>

<pallas_src>
import functools
import math

import jax
import jax.numpy as jnp
from jax import lax
from jax.experimental import pallas as pl
from jax.experimental.pallas import tpu as pltpu


def _fused_forward_kernel(x_ref, mask_ref,
                          w3a_ref, t1a_ref, w1a_ref, b1a_ref,
                          w3b_ref, t1b_ref, w1b_ref, b1b_ref, s2b_ref, t2b_ref,
                          w3c_ref, t1c_ref, w1c_ref, b1c_ref,
                          xout_ref, xtt_ref, *, row_stride):
    """One batch element.  Activations are (C, P) f32; P = padded-flat spatial (lane dim)."""
    mask = mask_ref[...]                               # (1, P): 1.0 interior, 0.0 pad ring
    p_len = mask.shape[-1]

    def conv3x3_bn_relu(act, w3_ref, t1_ref):
        # act:    (cin, P) f32 with a zeroed padding ring.
        # w3_ref: (9, cmid, cin) bf16 (BN scale folded in).  t1_ref: (cmid, 1) f32 (BN shift).
        cmid = w3_ref.shape[1]
        acc = jnp.zeros((cmid, p_len), jnp.float32)
        for k in range(9):
            off = (k // 3 - 1) * row_stride + (k % 3 - 1)
            shifted = act if off == 0 else pltpu.roll(act, (-off) % p_len, axis=1)
            # Wrap-around only affects ring positions, which are masked before reuse.
            acc = acc + jnp.dot(w3_ref[k], shifted.astype(jnp.bfloat16),
                                preferred_element_type=jnp.float32)
        return jnp.maximum(acc + t1_ref[...], 0.0)

    def conv1x1(act, w1_ref, b1_ref):
        return jnp.dot(w1_ref[...], act.astype(jnp.bfloat16),
                       preferred_element_type=jnp.float32) + b1_ref[...]

    # Block A: l1, then bn1(.)*std3d + mean3d (trailing affine folded into w1a / b1a).
    xa = conv1x1(conv3x3_bn_relu(x_ref[...], w3a_ref, t1a_ref), w1a_ref, b1a_ref)
    xa = xa * mask                                     # re-zero the padding ring

    # Block B: l2 -> x_to_train; bn2(.)*std2d + mean2d feeds block C.
    xtt = jnp.maximum(
        conv1x1(conv3x3_bn_relu(xa, w3b_ref, t1b_ref), w1b_ref, b1b_ref), 0.0)
    xtt_ref[...] = xtt
    xb = (xtt * s2b_ref[...] + t2b_ref[...]) * mask

    # Block C: l3 (trailing affine is identity, final ReLU).
    xout_ref[...] = jnp.maximum(
        conv1x1(conv3x3_bn_relu(xb, w3c_ref, t1c_ref), w1c_ref, b1c_ref), 0.0)


def _next_pow2(n):
    return 1 << max(n - 1, 1).bit_length()


def _fold_w3(w3_hwio, bn_scale):
    # (3, 3, cin, cout) HWIO -> (9, cout, cin) with the BN scale folded in, bf16.
    kh, kw, cin, cout = w3_hwio.shape
    w3t = jnp.transpose(w3_hwio.reshape(kh * kw, cin, cout), (0, 2, 1))
    return (w3t * bn_scale[None, :, None]).astype(jnp.bfloat16)


def _fold_w1(w1, b1, scale=None, shift=None):
    # (cin, cout), (cout,) -> transposed (cout, cin) bf16 and (cout, 1) f32 bias,
    # with an optional trailing per-channel affine (y*scale + shift) folded in.
    w1t = w1.T
    if scale is not None:
        w1t = w1t * scale[:, None]
        b1 = b1 * scale + shift
    return w1t.astype(jnp.bfloat16), b1.reshape(-1, 1).astype(jnp.float32)


def simulated_module_forward(x_nchw, params, stats):
    """x_nchw: (B, feature_dim, H, W) -> (x_out, x_to_train), both NCHW like PyTorch."""
    mean3d, std3d, mean2d, std2d = stats
    B, cin, H, W = x_nchw.shape

    # Padded-flat spatial layout: row stride CP (pow2 >= W+2), RP rows, P = RP*CP % 128 == 0.
    CP = max(_next_pow2(W + 2), 8)
    step = 128 // math.gcd(CP, 128)
    RP = -(-(H + 2) // step) * step
    P = RP * CP

    x_pad = jnp.zeros((B, cin, RP, CP), jnp.float32)
    x_pad = x_pad.at[:, :, 1:H + 1, 1:W + 1].set(x_nchw.astype(jnp.float32))
    x_pad = x_pad.reshape(B, cin, P)
    mask = jnp.zeros((RP, CP), jnp.float32).at[1:H + 1, 1:W + 1].set(1.0).reshape(1, P)

    # Fold BN / trailing affines into the conv weights (pure JAX, constant-folded once).
    s1a, t1a = params['l1_bn']
    sbn1, tbn1 = params['bn1']
    w3a = _fold_w3(params['l1_w3'], s1a)
    w1a, b1a = _fold_w1(params['l1_w1'], params['l1_b1'],
                        sbn1 * std3d, tbn1 * std3d + mean3d)

    s1b, t1b = params['l2_bn']
    sbn2, tbn2 = params['bn2']
    w3b = _fold_w3(params['l2_w3'], s1b)
    w1b, b1b = _fold_w1(params['l2_w1'], params['l2_b1'])
    s2b = (sbn2 * std2d).reshape(-1, 1).astype(jnp.float32)
    t2b = (tbn2 * std2d + mean2d).reshape(-1, 1).astype(jnp.float32)

    s1c, t1c = params['l3_bn']
    w3c = _fold_w3(params['l3_w3'], s1c)
    w1c, b1c = _fold_w1(params['l3_w1'], params['l3_b1'])

    t1a = t1a.reshape(-1, 1).astype(jnp.float32)
    t1b = t1b.reshape(-1, 1).astype(jnp.float32)
    t1c = t1c.reshape(-1, 1).astype(jnp.float32)

    c_out, c_tt = w1c.shape[0], w1b.shape[0]

    def full(arr):
        return pl.BlockSpec(arr.shape, lambda b, _nd=arr.ndim: (0,) * _nd)

    kernel = functools.partial(_fused_forward_kernel, row_stride=CP)
    x_out_pad, x_tt_pad = pl.pallas_call(
        kernel,
        out_shape=(jax.ShapeDtypeStruct((B, c_out, P), jnp.float32),
                   jax.ShapeDtypeStruct((B, c_tt, P), jnp.float32)),
        grid=(B,),
        in_specs=[
            pl.BlockSpec((None, cin, P), lambda b: (b, 0, 0)),
            full(mask),
            full(w3a), full(t1a), full(w1a), full(b1a),
            full(w3b), full(t1b), full(w1b), full(b1b), full(s2b), full(t2b),
            full(w3c), full(t1c), full(w1c), full(b1c),
        ],
        out_specs=(pl.BlockSpec((None, c_out, P), lambda b: (b, 0, 0)),
                   pl.BlockSpec((None, c_tt, P), lambda b: (b, 0, 0))),
        compiler_params=pltpu.CompilerParams(dimension_semantics=("parallel",)),
    )(x_pad, mask, w3a, t1a, w1a, b1a,
      w3b, t1b, w1b, b1b, s2b, t2b,
      w3c, t1c, w1c, b1c)

    x_out = x_out_pad.reshape(B, c_out, RP, CP)[:, :, 1:H + 1, 1:W + 1]
    x_to_train = x_tt_pad.reshape(B, c_tt, RP, CP)[:, :, 1:H + 1, 1:W + 1]
    return x_out, x_to_train


def _bn_fold(gamma, beta, rmean, rvar, eps=1e-5):
    scale = gamma / jnp.sqrt(rvar + eps)
    return scale, beta - rmean * scale


def init_params(key, feature_dim, distill_dim):
    ks = iter(jax.random.split(key, 32))

    def conv3(cin, cout):
        return jax.random.normal(next(ks), (3, 3, cin, cout), jnp.float32) * 0.1

    def conv1(cin, cout):
        w = jax.random.normal(next(ks), (cin, cout), jnp.float32) * 0.1
        b = jax.random.normal(next(ks), (cout,), jnp.float32) * 0.1
        return w, b

    def bn(c):
        gamma = jax.random.uniform(next(ks), (c,), jnp.float32, 0.5, 1.5)
        beta = jax.random.normal(next(ks), (c,), jnp.float32) * 0.1
        rmean = jax.random.normal(next(ks), (c,), jnp.float32) * 0.1
        rvar = jax.random.uniform(next(ks), (c,), jnp.float32, 0.5, 1.5)
        return _bn_fold(gamma, beta, rmean, rvar)

    p = {}
    p['l1_w3'] = conv3(feature_dim, 64)
    p['l1_bn'] = bn(64)
    p['l1_w1'], p['l1_b1'] = conv1(64, 48)
    p['bn1'] = bn(48)
    p['l2_w3'] = conv3(48, 48)
    p['l2_bn'] = bn(48)
    p['l2_w1'], p['l2_b1'] = conv1(48, distill_dim)
    p['bn2'] = bn(distill_dim)
    p['l3_w3'] = conv3(distill_dim, 48)
    p['l3_bn'] = bn(48)
    p['l3_w1'], p['l3_b1'] = conv1(48, 48)
    return p


def ref_forward(x_nchw, p, stats):
    """Pure-JAX f32 reference (lax.conv) for validation; NCHW in/out."""
    mean3d, std3d, mean2d, std2d = stats
    dn = ('NCHW', 'HWIO', 'NCHW')
    relu = lambda v: jnp.maximum(v, 0.0)

    def conv3(x, w):
        return lax.conv_general_dilated(x, w, (1, 1), 'SAME', dimension_numbers=dn)

    def conv1(x, w, b):
        return jnp.einsum('bchw,cd->bdhw', x, w) + b[None, :, None, None]

    def affine(x, s, t):
        return x * s[None, :, None, None] + t[None, :, None, None]

    s, t = p['l1_bn']
    h = relu(affine(conv3(x_nchw, p['l1_w3']), s, t))
    h = conv1(h, p['l1_w1'], p['l1_b1'])
    s, t = p['bn1']
    xa = affine(h, s, t) * std3d + mean3d

    s, t = p['l2_bn']
    h = relu(affine(conv3(xa, p['l2_w3']), s, t))
    x_to_train = relu(conv1(h, p['l2_w1'], p['l2_b1']))
    s, t = p['bn2']
    xb = affine(x_to_train, s, t) * std2d + mean2d

    s, t = p['l3_bn']
    h = relu(affine(conv3(xb, p['l3_w3']), s, t))
    x_out = relu(conv1(h, p['l3_w1'], p['l3_b1']))
    return x_out, x_to_train


if __name__ == "__main__":
    B, feature_dim, H, W = 2, 4, 16, 16
    distill_dim = 32
    stats = (0.1, 1.5, -0.2, 0.8)      # (mean3d, std3d, mean2d, std2d)

    key = jax.random.PRNGKey(0)
    kx, kp = jax.random.split(key)
    x_nchw = jax.random.normal(kx, (B, feature_dim, H, W), jnp.float32)
    params = init_params(kp, feature_dim, distill_dim)

    fwd = jax.jit(simulated_module_forward)
    x_out, x_to_train = fwd(x_nchw, params, stats)
    jax.block_until_ready((x_out, x_to_train))

    # Correctness check against the pure-JAX f32 reference.  Tolerance accounts for the
    # bf16 MXU operands (f32 accumulation) used inside the fused kernel.
    r_out, r_tt = ref_forward(x_nchw, params, stats)
    assert x_out.shape == (B, 48, H, W)
    assert x_to_train.shape == (B, distill_dim, H, W)
    assert jnp.allclose(x_out, r_out, atol=3e-2, rtol=3e-2), \
        float(jnp.max(jnp.abs(x_out - r_out)))
    assert jnp.allclose(x_to_train, r_tt, atol=3e-2, rtol=3e-2), \
        float(jnp.max(jnp.abs(x_to_train - r_tt)))
    print("KERNEL_OK")
</pallas_src>

<mosaic_0001>
module attributes {stable_mosaic.version = 11 : i64} {
  func.func @_fused_forward_kernel(%arg0: i32, %arg1: memref<1x4x640xf32, #tpu.memory_space<vmem>>, %arg2: memref<1x640xf32, #tpu.memory_space<vmem>>, %arg3: memref<9x64x4xbf16, #tpu.memory_space<vmem>>, %arg4: memref<64x1xf32, #tpu.memory_space<vmem>>, %arg5: memref<48x64xbf16, #tpu.memory_space<vmem>>, %arg6: memref<48x1xf32, #tpu.memory_space<vmem>>, %arg7: memref<9x48x48xbf16, #tpu.memory_space<vmem>>, %arg8: memref<48x1xf32, #tpu.memory_space<vmem>>, %arg9: memref<32x48xbf16, #tpu.memory_space<vmem>>, %arg10: memref<32x1xf32, #tpu.memory_space<vmem>>, %arg11: memref<32x1xf32, #tpu.memory_space<vmem>>, %arg12: memref<32x1xf32, #tpu.memory_space<vmem>>, %arg13: memref<9x48x32xbf16, #tpu.memory_space<vmem>>, %arg14: memref<48x1xf32, #tpu.memory_space<vmem>>, %arg15: memref<48x48xbf16, #tpu.memory_space<vmem>>, %arg16: memref<48x1xf32, #tpu.memory_space<vmem>>, %arg17: memref<1x48x640xf32, #tpu.memory_space<vmem>>, %arg18: memref<1x32x640xf32, #tpu.memory_space<vmem>>) attributes {dimension_semantics = [#tpu.dimension_semantics<parallel>], iteration_bounds = array<i64: 2>, scalar_prefetch = 0 : i64, scratch_operands = 0 : i64, tpu.core_type = #tpu.core_type<tc>, window_params = [{transform_indices = @transform_0, window_bounds = array<i64: 1, 4, 640>}, {pipeline_mode = #tpu.pipeline_mode<synchronous>, transform_indices = @transform_1, window_bounds = array<i64: 1, 640>}, {pipeline_mode = #tpu.pipeline_mode<synchronous>, transform_indices = @transform_2, window_bounds = array<i64: 9, 64, 4>}, {pipeline_mode = #tpu.pipeline_mode<synchronous>, transform_indices = @transform_3, window_bounds = array<i64: 64, 1>}, {pipeline_mode = #tpu.pipeline_mode<synchronous>, transform_indices = @transform_4, window_bounds = array<i64: 48, 64>}, {pipeline_mode = #tpu.pipeline_mode<synchronous>, transform_indices = @transform_5, window_bounds = array<i64: 48, 1>}, {pipeline_mode = #tpu.pipeline_mode<synchronous>, transform_indices = @transform_6, window_bounds = array<i64: 9, 48, 48>}, {pipeline_mode = #tpu.pipeline_mode<synchronous>, transform_indices = @transform_7, window_bounds = array<i64: 48, 1>}, {pipeline_mode = #tpu.pipeline_mode<synchronous>, transform_indices = @transform_8, window_bounds = array<i64: 32, 48>}, {pipeline_mode = #tpu.pipeline_mode<synchronous>, transform_indices = @transform_9, window_bounds = array<i64: 32, 1>}, {pipeline_mode = #tpu.pipeline_mode<synchronous>, transform_indices = @transform_10, window_bounds = array<i64: 32, 1>}, {pipeline_mode = #tpu.pipeline_mode<synchronous>, transform_indices = @transform_11, window_bounds = array<i64: 32, 1>}, {pipeline_mode = #tpu.pipeline_mode<synchronous>, transform_indices = @transform_12, window_bounds = array<i64: 9, 48, 32>}, {pipeline_mode = #tpu.pipeline_mode<synchronous>, transform_indices = @transform_13, window_bounds = array<i64: 48, 1>}, {pipeline_mode = #tpu.pipeline_mode<synchronous>, transform_indices = @transform_14, window_bounds = array<i64: 48, 48>}, {pipeline_mode = #tpu.pipeline_mode<synchronous>, transform_indices = @transform_15, window_bounds = array<i64: 48, 1>}, {transform_indices = @transform_16, window_bounds = array<i64: 1, 48, 640>}, {transform_indices = @transform_17, window_bounds = array<i64: 1, 32, 640>}]} {
    %c0 = arith.constant 0 : index
    %c0_0 = arith.constant 0 : index
    %0 = vector.load %arg2[%c0, %c0_0] : memref<1x640xf32, #tpu.memory_space<vmem>>, vector<1x640xf32>
    %c0_1 = arith.constant 0 : index
    %c0_2 = arith.constant 0 : index
    %c0_3 = arith.constant 0 : index
    %1 = vector.load %arg1[%c0_1, %c0_2, %c0_3] : memref<1x4x640xf32, #tpu.memory_space<vmem>>, vector<1x4x640xf32>
    %2 = vector.shape_cast %1 : vector<1x4x640xf32> to vector<4x640xf32>
    %cst = arith.constant 0.000000e+00 : f32
    %3 = vector.broadcast %cst : f32 to vector<64x640xf32>
    %c33_i32 = arith.constant 33 : i32
    %4 = tpu.dynamic_rotate %2 by %c33_i32 dim 1 : vector<4x640xf32>, i32 -> vector<4x640xf32>
    %c0_4 = arith.constant 0 : index
    %c0_5 = arith.constant 0 : index
    %c0_6 = arith.constant 0 : index
    %5 = vector.load %arg3[%c0_4, %c0_5, %c0_6] : memref<9x64x4xbf16, #tpu.memory_space<vmem>>, vector<1x64x4xbf16>
    %6 = vector.shape_cast %5 : vector<1x64x4xbf16> to vector<64x4xbf16>
    %7 = arith.truncf %4 : vector<4x640xf32> to vector<4x640xbf16>
    %cst_7 = arith.constant dense<0.000000e+00> : vector<64x640xf32>
    %8 = tpu.matmul %6, %7, %cst_7 {dimension_numbers = #tpu.dot_dimension_numbers<[1], [0], [0], [1], [0, 0, 1, 1], [], []>} : vector<64x4xbf16>, vector<4x640xbf16>, vector<64x640xf32> -> vector<64x640xf32>
    %9 = arith.addf %3, %8 : vector<64x640xf32>
    %c32_i32 = arith.constant 32 : i32
    %10 = tpu.dynamic_rotate %2 by %c32_i32 dim 1 : vector<4x640xf32>, i32 -> vector<4x640xf32>
    %c1 = arith.constant 1 : index
    %c0_8 = arith.constant 0 : index
    %c0_9 = arith.constant 0 : index
    %11 = vector.load %arg3[%c1, %c0_8, %c0_9] : memref<9x64x4xbf16, #tpu.memory_space<vmem>>, vector<1x64x4xbf16>
    %12 = vector.shape_cast %11 : vector<1x64x4xbf16> to vector<64x4xbf16>
    %13 = arith.truncf %10 : vector<4x640xf32> to vector<4x640xbf16>
    %cst_10 = arith.constant dense<0.000000e+00> : vector<64x640xf32>
    %14 = tpu.matmul %12, %13, %cst_10 {dimension_numbers = #tpu.dot_dimension_numbers<[1], [0], [0], [1], [0, 0, 1, 1], [], []>} : vector<64x4xbf16>, vector<4x640xbf16>, vector<64x640xf32> -> vector<64x640xf32>
    %15 = arith.addf %9, %14 : vector<64x640xf32>
    %c31_i32 = arith.constant 31 : i32
    %16 = tpu.dynamic_rotate %2 by %c31_i32 dim 1 : vector<4x640xf32>, i32 -> vector<4x640xf32>
    %c2 = arith.constant 2 : index
    %c0_11 = arith.constant 0 : index
    %c0_12 = arith.constant 0 : index
    %17 = vector.load %arg3[%c2, %c0_11, %c0_12] : memref<9x64x4xbf16, #tpu.memory_space<vmem>>, vector<1x64x4xbf16>
    %18 = vector.shape_cast %17 : vector<1x64x4xbf16> to vector<64x4xbf16>
    %19 = arith.truncf %16 : vector<4x640xf32> to vector<4x640xbf16>
    %cst_13 = arith.constant dense<0.000000e+00> : vector<64x640xf32>
    %20 = tpu.matmul %18, %19, %cst_13 {dimension_numbers = #tpu.dot_dimension_numbers<[1], [0], [0], [1], [0, 0, 1, 1], [], []>} : vector<64x4xbf16>, vector<4x640xbf16>, vector<64x640xf32> -> vector<64x640xf32>
    %21 = arith.addf %15, %20 : vector<64x640xf32>
    %c1_i32 = arith.constant 1 : i32
    %22 = tpu.dynamic_rotate %2 by %c1_i32 dim 1 : vector<4x640xf32>, i32 -> vector<4x640xf32>
    %c3 = arith.constant 3 : index
    %c0_14 = arith.constant 0 : index
    %c0_15 = arith.constant 0 : index
    %23 = vector.load %arg3[%c3, %c0_14, %c0_15] : memref<9x64x4xbf16, #tpu.memory_space<vmem>>, vector<1x64x4xbf16>
    %24 = vector.shape_cast %23 : vector<1x64x4xbf16> to vector<64x4xbf16>
    %25 = arith.truncf %22 : vector<4x640xf32> to vector<4x640xbf16>
    %cst_16 = arith.constant dense<0.000000e+00> : vector<64x640xf32>
    %26 = tpu.matmul %24, %25, %cst_16 {dimension_numbers = #tpu.dot_dimension_numbers<[1], [0], [0], [1], [0, 0, 1, 1], [], []>} : vector<64x4xbf16>, vector<4x640xbf16>, vector<64x640xf32> -> vector<64x640xf32>
    %27 = arith.addf %21, %26 : vector<64x640xf32>
    %c4 = arith.constant 4 : index
    %c0_17 = arith.constant 0 : index
    %c0_18 = arith.constant 0 : index
    %28 = vector.load %arg3[%c4, %c0_17, %c0_18] : memref<9x64x4xbf16, #tpu.memory_space<vmem>>, vector<1x64x4xbf16>
    %29 = vector.shape_cast %28 : vector<1x64x4xbf16> to vector<64x4xbf16>
    %30 = arith.truncf %2 : vector<4x640xf32> to vector<4x640xbf16>
    %cst_19 = arith.constant dense<0.000000e+00> : vector<64x640xf32>
    %31 = tpu.matmul %29, %30, %cst_19 {dimension_numbers = #tpu.dot_dimension_numbers<[1], [0], [0], [1], [0, 0, 1, 1], [], []>} : vector<64x4xbf16>, vector<4x640xbf16>, vector<64x640xf32> -> vector<64x640xf32>
    %32 = arith.addf %27, %31 : vector<64x640xf32>
    %c639_i32 = arith.constant 639 : i32
    %33 = tpu.dynamic_rotate %2 by %c639_i32 dim 1 : vector<4x640xf32>, i32 -> vector<4x640xf32>
    %c5 = arith.constant 5 : index
    %c0_20 = arith.constant 0 : index
    %c0_21 = arith.constant 0 : index
    %34 = vector.load %arg3[%c5, %c0_20, %c0_21] : memref<9x64x4xbf16, #tpu.memory_space<vmem>>, vector<1x64x4xbf16>
    %35 = vector.shape_cast %34 : vector<1x64x4xbf16> to vector<64x4xbf16>
    %36 = arith.truncf %33 : vector<4x640xf32> to vector<4x640xbf16>
    %cst_22 = arith.constant dense<0.000000e+00> : vector<64x640xf32>
    %37 = tpu.matmul %35, %36, %cst_22 {dimension_numbers = #tpu.dot_dimension_numbers<[1], [0], [0], [1], [0, 0, 1, 1], [], []>} : vector<64x4xbf16>, vector<4x640xbf16>, vector<64x640xf32> -> vector<64x640xf32>
    %38 = arith.addf %32, %37 : vector<64x640xf32>
    %c609_i32 = arith.constant 609 : i32
    %39 = tpu.dynamic_rotate %2 by %c609_i32 dim 1 : vector<4x640xf32>, i32 -> vector<4x640xf32>
    %c6 = arith.constant 6 : index
    %c0_23 = arith.constant 0 : index
    %c0_24 = arith.constant 0 : index
    %40 = vector.load %arg3[%c6, %c0_23, %c0_24] : memref<9x64x4xbf16, #tpu.memory_space<vmem>>, vector<1x64x4xbf16>
    %41 = vector.shape_cast %40 : vector<1x64x4xbf16> to vector<64x4xbf16>
    %42 = arith.truncf %39 : vector<4x640xf32> to vector<4x640xbf16>
    %cst_25 = arith.constant dense<0.000000e+00> : vector<64x640xf32>
    %43 = tpu.matmul %41, %42, %cst_25 {dimension_numbers = #tpu.dot_dimension_numbers<[1], [0], [0], [1], [0, 0, 1, 1], [], []>} : vector<64x4xbf16>, vector<4x640xbf16>, vector<64x640xf32> -> vector<64x640xf32>
    %44 = arith.addf %38, %43 : vector<64x640xf32>
    %c608_i32 = arith.constant 608 : i32
    %45 = tpu.dynamic_rotate %2 by %c608_i32 dim 1 : vector<4x640xf32>, i32 -> vector<4x640xf32>
    %c7 = arith.constant 7 : index
    %c0_26 = arith.constant 0 : index
    %c0_27 = arith.constant 0 : index
    %46 = vector.load %arg3[%c7, %c0_26, %c0_27] : memref<9x64x4xbf16, #tpu.memory_space<vmem>>, vector<1x64x4xbf16>
    %47 = vector.shape_cast %46 : vector<1x64x4xbf16> to vector<64x4xbf16>
    %48 = arith.truncf %45 : vector<4x640xf32> to vector<4x640xbf16>
    %cst_28 = arith.constant dense<0.000000e+00> : vector<64x640xf32>
    %49 = tpu.matmul %47, %48, %cst_28 {dimension_numbers = #tpu.dot_dimension_numbers<[1], [0], [0], [1], [0, 0, 1, 1], [], []>} : vector<64x4xbf16>, vector<4x640xbf16>, vector<64x640xf32> -> vector<64x640xf32>
    %50 = arith.addf %44, %49 : vector<64x640xf32>
    %c607_i32 = arith.constant 607 : i32
    %51 = tpu.dynamic_rotate %2 by %c607_i32 dim 1 : vector<4x640xf32>, i32 -> vector<4x640xf32>
    %c8 = arith.constant 8 : index
    %c0_29 = arith.constant 0 : index
    %c0_30 = arith.constant 0 : index
    %52 = vector.load %arg3[%c8, %c0_29, %c0_30] : memref<9x64x4xbf16, #tpu.memory_space<vmem>>, vector<1x64x4xbf16>
    %53 = vector.shape_cast %52 : vector<1x64x4xbf16> to vector<64x4xbf16>
    %54 = arith.truncf %51 : vector<4x640xf32> to vector<4x640xbf16>
    %cst_31 = arith.constant dense<0.000000e+00> : vector<64x640xf32>
    %55 = tpu.matmul %53, %54, %cst_31 {dimension_numbers = #tpu.dot_dimension_numbers<[1], [0], [0], [1], [0, 0, 1, 1], [], []>} : vector<64x4xbf16>, vector<4x640xbf16>, vector<64x640xf32> -> vector<64x640xf32>
    %56 = arith.addf %50, %55 : vector<64x640xf32>
    %c0_32 = arith.constant 0 : index
    %c0_33 = arith.constant 0 : index
    %57 = vector.load %arg4[%c0_32, %c0_33] : memref<64x1xf32, #tpu.memory_space<vmem>>, vector<64x1xf32>
    %58 = vector.broadcast %57 : vector<64x1xf32> to vector<64x640xf32>
    %59 = arith.addf %56, %58 : vector<64x640xf32>
    %cst_34 = arith.constant 0.000000e+00 : f32
    %60 = vector.broadcast %cst_34 : f32 to vector<64x640xf32>
    %61 = arith.maximumf %59, %60 : vector<64x640xf32>
    %c0_35 = arith.constant 0 : index
    %c0_36 = arith.constant 0 : index
    %62 = vector.load %arg5[%c0_35, %c0_36] : memref<48x64xbf16, #tpu.memory_space<vmem>>, vector<48x64xbf16>
    %63 = arith.truncf %61 : vector<64x640xf32> to vector<64x640xbf16>
    %cst_37 = arith.constant dense<0.000000e+00> : vector<48x640xf32>
    %64 = tpu.matmul %62, %63, %cst_37 {dimension_numbers = #tpu.dot_dimension_numbers<[1], [0], [0], [1], [0, 0, 1, 1], [], []>} : vector<48x64xbf16>, vector<64x640xbf16>, vector<48x640xf32> -> vector<48x640xf32>
    %c0_38 = arith.constant 0 : index
    %c0_39 = arith.constant 0 : index
    %65 = vector.load %arg6[%c0_38, %c0_39] : memref<48x1xf32, #tpu.memory_space<vmem>>, vector<48x1xf32>
    %66 = vector.broadcast %65 : vector<48x1xf32> to vector<48x640xf32>
    %67 = arith.addf %64, %66 : vector<48x640xf32>
    %68 = vector.broadcast %0 : vector<1x640xf32> to vector<48x640xf32>
    %69 = arith.mulf %67, %68 : vector<48x640xf32>
    %cst_40 = arith.constant 0.000000e+00 : f32
    %70 = vector.broadcast %cst_40 : f32 to vector<48x640xf32>
    %c33_i32_41 = arith.constant 33 : i32
    %71 = tpu.dynamic_rotate %69 by %c33_i32_41 dim 1 : vector<48x640xf32>, i32 -> vector<48x640xf32>
    %c0_42 = arith.constant 0 : index
    %c0_43 = arith.constant 0 : index
    %c0_44 = arith.constant 0 : index
    %72 = vector.load %arg7[%c0_42, %c0_43, %c0_44] : memref<9x48x48xbf16, #tpu.memory_space<vmem>>, vector<1x48x48xbf16>
    %73 = vector.shape_cast %72 : vector<1x48x48xbf16> to vector<48x48xbf16>
    %74 = arith.truncf %71 : vector<48x640xf32> to vector<48x640xbf16>
    %cst_45 = arith.constant dense<0.000000e+00> : vector<48x640xf32>
    %75 = tpu.matmul %73, %74, %cst_45 {dimension_numbers = #tpu.dot_dimension_numbers<[1], [0], [0], [1], [0, 0, 1, 1], [], []>} : vector<48x48xbf16>, vector<48x640xbf16>, vector<48x640xf32> -> vector<48x640xf32>
    %76 = arith.addf %70, %75 : vector<48x640xf32>
    %c32_i32_46 = arith.constant 32 : i32
    %77 = tpu.dynamic_rotate %69 by %c32_i32_46 dim 1 : vector<48x640xf32>, i32 -> vector<48x640xf32>
    %c1_47 = arith.constant 1 : index
    %c0_48 = arith.constant 0 : index
    %c0_49 = arith.constant 0 : index
    %78 = vector.load %arg7[%c1_47, %c0_48, %c0_49] : memref<9x48x48xbf16, #tpu.memory_space<vmem>>, vector<1x48x48xbf16>
    %79 = vector.shape_cast %78 : vector<1x48x48xbf16> to vector<48x48xbf16>
    %80 = arith.truncf %77 : vector<48x640xf32> to vector<48x640xbf16>
    %cst_50 = arith.constant dense<0.000000e+00> : vector<48x640xf32>
    %81 = tpu.matmul %79, %80, %cst_50 {dimension_numbers = #tpu.dot_dimension_numbers<[1], [0], [0], [1], [0, 0, 1, 1], [], []>} : vector<48x48xbf16>, vector<48x640xbf16>, vector<48x640xf32> -> vector<48x640xf32>
    %82 = arith.addf %76, %81 : vector<48x640xf32>
    %c31_i32_51 = arith.constant 31 : i32
    %83 = tpu.dynamic_rotate %69 by %c31_i32_51 dim 1 : vector<48x640xf32>, i32 -> vector<48x640xf32>
    %c2_52 = arith.constant 2 : index
    %c0_53 = arith.constant 0 : index
    %c0_54 = arith.constant 0 : index
    %84 = vector.load %arg7[%c2_52, %c0_53, %c0_54] : memref<9x48x48xbf16, #tpu.memory_space<vmem>>, vector<1x48x48xbf16>
    %85 = vector.shape_cast %84 : vector<1x48x48xbf16> to vector<48x48xbf16>
    %86 = arith.truncf %83 : vector<48x640xf32> to vector<48x640xbf16>
    %cst_55 = arith.constant dense<0.000000e+00> : vector<48x640xf32>
    %87 = tpu.matmul %85, %86, %cst_55 {dimension_numbers = #tpu.dot_dimension_numbers<[1], [0], [0], [1], [0, 0, 1, 1], [], []>} : vector<48x48xbf16>, vector<48x640xbf16>, vector<48x640xf32> -> vector<48x640xf32>
    %88 = arith.addf %82, %87 : vector<48x640xf32>
    %c1_i32_56 = arith.constant 1 : i32
    %89 = tpu.dynamic_rotate %69 by %c1_i32_56 dim 1 : vector<48x640xf32>, i32 -> vector<48x640xf32>
    %c3_57 = arith.constant 3 : index
    %c0_58 = arith.constant 0 : index
    %c0_59 = arith.constant 0 : index
    %90 = vector.load %arg7[%c3_57, %c0_58, %c0_59] : memref<9x48x48xbf16, #tpu.memory_space<vmem>>, vector<1x48x48xbf16>
    %91 = vector.shape_cast %90 : vector<1x48x48xbf16> to vector<48x48xbf16>
    %92 = arith.truncf %89 : vector<48x640xf32> to vector<48x640xbf16>
    %cst_60 = arith.constant dense<0.000000e+00> : vector<48x640xf32>
    %93 = tpu.matmul %91, %92, %cst_60 {dimension_numbers = #tpu.dot_dimension_numbers<[1], [0], [0], [1], [0, 0, 1, 1], [], []>} : vector<48x48xbf16>, vector<48x640xbf16>, vector<48x640xf32> -> vector<48x640xf32>
    %94 = arith.addf %88, %93 : vector<48x640xf32>
    %c4_61 = arith.constant 4 : index
    %c0_62 = arith.constant 0 : index
    %c0_63 = arith.constant 0 : index
    %95 = vector.load %arg7[%c4_61, %c0_62, %c0_63] : memref<9x48x48xbf16, #tpu.memory_space<vmem>>, vector<1x48x48xbf16>
    %96 = vector.shape_cast %95 : vector<1x48x48xbf16> to vector<48x48xbf16>
    %97 = arith.truncf %69 : vector<48x640xf32> to vector<48x640xbf16>
    %cst_64 = arith.constant dense<0.000000e+00> : vector<48x640xf32>
    %98 = tpu.matmul %96, %97, %cst_64 {dimension_numbers = #tpu.dot_dimension_numbers<[1], [0], [0], [1], [0, 0, 1, 1], [], []>} : vector<48x48xbf16>, vector<48x640xbf16>, vector<48x640xf32> -> vector<48x640xf32>
    %99 = arith.addf %94, %98 : vector<48x640xf32>
    %c639_i32_65 = arith.constant 639 : i32
    %100 = tpu.dynamic_rotate %69 by %c639_i32_65 dim 1 : vector<48x640xf32>, i32 -> vector<48x640xf32>
    %c5_66 = arith.constant 5 : index
    %c0_67 = arith.constant 0 : index
    %c0_68 = arith.constant 0 : index
    %101 = vector.load %arg7[%c5_66, %c0_67, %c0_68] : memref<9x48x48xbf16, #tpu.memory_space<vmem>>, vector<1x48x48xbf16>
    %102 = vector.shape_cast %101 : vector<1x48x48xbf16> to vector<48x48xbf16>
    %103 = arith.truncf %100 : vector<48x640xf32> to vector<48x640xbf16>
    %cst_69 = arith.constant dense<0.000000e+00> : vector<48x640xf32>
    %104 = tpu.matmul %102, %103, %cst_69 {dimension_numbers = #tpu.dot_dimension_numbers<[1], [0], [0], [1], [0, 0, 1, 1], [], []>} : vector<48x48xbf16>, vector<48x640xbf16>, vector<48x640xf32> -> vector<48x640xf32>
    %105 = arith.addf %99, %104 : vector<48x640xf32>
    %c609_i32_70 = arith.constant 609 : i32
    %106 = tpu.dynamic_rotate %69 by %c609_i32_70 dim 1 : vector<48x640xf32>, i32 -> vector<48x640xf32>
    %c6_71 = arith.constant 6 : index
    %c0_72 = arith.constant 0 : index
    %c0_73 = arith.constant 0 : index
    %107 = vector.load %arg7[%c6_71, %c0_72, %c0_73] : memref<9x48x48xbf16, #tpu.memory_space<vmem>>, vector<1x48x48xbf16>
    %108 = vector.shape_cast %107 : vector<1x48x48xbf16> to vector<48x48xbf16>
    %109 = arith.truncf %106 : vector<48x640xf32> to vector<48x640xbf16>
    %cst_74 = arith.constant dense<0.000000e+00> : vector<48x640xf32>
    %110 = tpu.matmul %108, %109, %cst_74 {dimension_numbers = #tpu.dot_dimension_numbers<[1], [0], [0], [1], [0, 0, 1, 1], [], []>} : vector<48x48xbf16>, vector<48x640xbf16>, vector<48x640xf32> -> vector<48x640xf32>
    %111 = arith.addf %105, %110 : vector<48x640xf32>
    %c608_i32_75 = arith.constant 608 : i32
    %112 = tpu.dynamic_rotate %69 by %c608_i32_75 dim 1 : vector<48x640xf32>, i32 -> vector<48x640xf32>
    %c7_76 = arith.constant 7 : index
    %c0_77 = arith.constant 0 : index
    %c0_78 = arith.constant 0 : index
    %113 = vector.load %arg7[%c7_76, %c0_77, %c0_78] : memref<9x48x48xbf16, #tpu.memory_space<vmem>>, vector<1x48x48xbf16>
    %114 = vector.shape_cast %113 : vector<1x48x48xbf16> to vector<48x48xbf16>
    %115 = arith.truncf %112 : vector<48x640xf32> to vector<48x640xbf16>
    %cst_79 = arith.constant dense<0.000000e+00> : vector<48x640xf32>
    %116 = tpu.matmul %114, %115, %cst_79 {dimension_numbers = #tpu.dot_dimension_numbers<[1], [0], [0], [1], [0, 0, 1, 1], [], []>} : vector<48x48xbf16>, vector<48x640xbf16>, vector<48x640xf32> -> vector<48x640xf32>
    %117 = arith.addf %111, %116 : vector<48x640xf32>
    %c607_i32_80 = arith.constant 607 : i32
    %118 = tpu.dynamic_rotate %69 by %c607_i32_80 dim 1 : vector<48x640xf32>, i32 -> vector<48x640xf32>
    %c8_81 = arith.constant 8 : index
    %c0_82 = arith.constant 0 : index
    %c0_83 = arith.constant 0 : index
    %119 = vector.load %arg7[%c8_81, %c0_82, %c0_83] : memref<9x48x48xbf16, #tpu.memory_space<vmem>>, vector<1x48x48xbf16>
    %120 = vector.shape_cast %119 : vector<1x48x48xbf16> to vector<48x48xbf16>
    %121 = arith.truncf %118 : vector<48x640xf32> to vector<48x640xbf16>
    %cst_84 = arith.constant dense<0.000000e+00> : vector<48x640xf32>
    %122 = tpu.matmul %120, %121, %cst_84 {dimension_numbers = #tpu.dot_dimension_numbers<[1], [0], [0], [1], [0, 0, 1, 1], [], []>} : vector<48x48xbf16>, vector<48x640xbf16>, vector<48x640xf32> -> vector<48x640xf32>
    %123 = arith.addf %117, %122 : vector<48x640xf32>
    %c0_85 = arith.constant 0 : index
    %c0_86 = arith.constant 0 : index
    %124 = vector.load %arg8[%c0_85, %c0_86] : memref<48x1xf32, #tpu.memory_space<vmem>>, vector<48x1xf32>
    %125 = vector.broadcast %124 : vector<48x1xf32> to vector<48x640xf32>
    %126 = arith.addf %123, %125 : vector<48x640xf32>
    %cst_87 = arith.constant 0.000000e+00 : f32
    %127 = vector.broadcast %cst_87 : f32 to vector<48x640xf32>
    %128 = arith.maximumf %126, %127 : vector<48x640xf32>
    %c0_88 = arith.constant 0 : index
    %c0_89 = arith.constant 0 : index
    %129 = vector.load %arg9[%c0_88, %c0_89] : memref<32x48xbf16, #tpu.memory_space<vmem>>, vector<32x48xbf16>
    %130 = arith.truncf %128 : vector<48x640xf32> to vector<48x640xbf16>
    %cst_90 = arith.constant dense<0.000000e+00> : vector<32x640xf32>
    %131 = tpu.matmul %129, %130, %cst_90 {dimension_numbers = #tpu.dot_dimension_numbers<[1], [0], [0], [1], [0, 0, 1, 1], [], []>} : vector<32x48xbf16>, vector<48x640xbf16>, vector<32x640xf32> -> vector<32x640xf32>
    %c0_91 = arith.constant 0 : index
    %c0_92 = arith.constant 0 : index
    %132 = vector.load %arg10[%c0_91, %c0_92] : memref<32x1xf32, #tpu.memory_space<vmem>>, vector<32x1xf32>
    %133 = vector.broadcast %132 : vector<32x1xf32> to vector<32x640xf32>
    %134 = arith.addf %131, %133 : vector<32x640xf32>
    %cst_93 = arith.constant 0.000000e+00 : f32
    %135 = vector.broadcast %cst_93 : f32 to vector<32x640xf32>
    %136 = arith.maximumf %134, %135 : vector<32x640xf32>
    %c0_94 = arith.constant 0 : index
    %c0_95 = arith.constant 0 : index
    %c0_96 = arith.constant 0 : index
    %137 = vector.load %arg18[%c0_94, %c0_95, %c0_96] : memref<1x32x640xf32, #tpu.memory_space<vmem>>, vector<1x32x640xf32>
    %138 = vector.shape_cast %137 : vector<1x32x640xf32> to vector<32x640xf32>
    %139 = vector.shape_cast %136 : vector<32x640xf32> to vector<1x32x640xf32>
    tpu.vector_store %arg18[%c0_94, %c0_95, %c0_96], %139 {strides = array<i32>} : memref<1x32x640xf32, #tpu.memory_space<vmem>>, vector<1x32x640xf32>,
    %c0_97 = arith.constant 0 : index
    %c0_98 = arith.constant 0 : index
    %140 = vector.load %arg11[%c0_97, %c0_98] : memref<32x1xf32, #tpu.memory_space<vmem>>, vector<32x1xf32>
    %141 = vector.broadcast %140 : vector<32x1xf32> to vector<32x640xf32>
    %142 = arith.mulf %136, %141 : vector<32x640xf32>
    %c0_99 = arith.constant 0 : index
    %c0_100 = arith.constant 0 : index
    %143 = vector.load %arg12[%c0_99, %c0_100] : memref<32x1xf32, #tpu.memory_space<vmem>>, vector<32x1xf32>
    %144 = vector.broadcast %143 : vector<32x1xf32> to vector<32x640xf32>
    %145 = arith.addf %142, %144 : vector<32x640xf32>
    %146 = vector.broadcast %0 : vector<1x640xf32> to vector<32x640xf32>
    %147 = arith.mulf %145, %146 : vector<32x640xf32>
    %cst_101 = arith.constant 0.000000e+00 : f32
    %148 = vector.broadcast %cst_101 : f32 to vector<48x640xf32>
    %c33_i32_102 = arith.constant 33 : i32
    %149 = tpu.dynamic_rotate %147 by %c33_i32_102 dim 1 : vector<32x640xf32>, i32 -> vector<32x640xf32>
    %c0_103 = arith.constant 0 : index
    %c0_104 = arith.constant 0 : index
    %c0_105 = arith.constant 0 : index
    %150 = vector.load %arg13[%c0_103, %c0_104, %c0_105] : memref<9x48x32xbf16, #tpu.memory_space<vmem>>, vector<1x48x32xbf16>
    %151 = vector.shape_cast %150 : vector<1x48x32xbf16> to vector<48x32xbf16>
    %152 = arith.truncf %149 : vector<32x640xf32> to vector<32x640xbf16>
    %cst_106 = arith.constant dense<0.000000e+00> : vector<48x640xf32>
    %153 = tpu.matmul %151, %152, %cst_106 {dimension_numbers = #tpu.dot_dimension_numbers<[1], [0], [0], [1], [0, 0, 1, 1], [], []>} : vector<48x32xbf16>, vector<32x640xbf16>, vector<48x640xf32> -> vector<48x640xf32>
    %154 = arith.addf %148, %153 : vector<48x640xf32>
    %c32_i32_107 = arith.constant 32 : i32
    %155 = tpu.dynamic_rotate %147 by %c32_i32_107 dim 1 : vector<32x640xf32>, i32 -> vector<32x640xf32>
    %c1_108 = arith.constant 1 : index
    %c0_109 = arith.constant 0 : index
    %c0_110 = arith.constant 0 : index
    %156 = vector.load %arg13[%c1_108, %c0_109, %c0_110] : memref<9x48x32xbf16, #tpu.memory_space<vmem>>, vector<1x48x32xbf16>
    %157 = vector.shape_cast %156 : vector<1x48x32xbf16> to vector<48x32xbf16>
    %158 = arith.truncf %155 : vector<32x640xf32> to vector<32x640xbf16>
    %cst_111 = arith.constant dense<0.000000e+00> : vector<48x640xf32>
    %159 = tpu.matmul %157, %158, %cst_111 {dimension_numbers = #tpu.dot_dimension_numbers<[1], [0], [0], [1], [0, 0, 1, 1], [], []>} : vector<48x32xbf16>, vector<32x640xbf16>, vector<48x640xf32> -> vector<48x640xf32>
    %160 = arith.addf %154, %159 : vector<48x640xf32>
    %c31_i32_112 = arith.constant 31 : i32
    %161 = tpu.dynamic_rotate %147 by %c31_i32_112 dim 1 : vector<32x640xf32>, i32 -> vector<32x640xf32>
    %c2_113 = arith.constant 2 : index
    %c0_114 = arith.constant 0 : index
    %c0_115 = arith.constant 0 : index
    %162 = vector.load %arg13[%c2_113, %c0_114, %c0_115] : memref<9x48x32xbf16, #tpu.memory_space<vmem>>, vector<1x48x32xbf16>
    %163 = vector.shape_cast %162 : vector<1x48x32xbf16> to vector<48x32xbf16>
    %164 = arith.truncf %161 : vector<32x640xf32> to vector<32x640xbf16>
    %cst_116 = arith.constant dense<0.000000e+00> : vector<48x640xf32>
    %165 = tpu.matmul %163, %164, %cst_116 {dimension_numbers = #tpu.dot_dimension_numbers<[1], [0], [0], [1], [0, 0, 1, 1], [], []>} : vector<48x32xbf16>, vector<32x640xbf16>, vector<48x640xf32> -> vector<48x640xf32>
    %166 = arith.addf %160, %165 : vector<48x640xf32>
    %c1_i32_117 = arith.constant 1 : i32
    %167 = tpu.dynamic_rotate %147 by %c1_i32_117 dim 1 : vector<32x640xf32>, i32 -> vector<32x640xf32>
    %c3_118 = arith.constant 3 : index
    %c0_119 = arith.constant 0 : index
    %c0_120 = arith.constant 0 : index
    %168 = vector.load %arg13[%c3_118, %c0_119, %c0_120] : memref<9x48x32xbf16, #tpu.memory_space<vmem>>, vector<1x48x32xbf16>
    %169 = vector.shape_cast %168 : vector<1x48x32xbf16> to vector<48x32xbf16>
    %170 = arith.truncf %167 : vector<32x640xf32> to vector<32x640xbf16>
    %cst_121 = arith.constant dense<0.000000e+00> : vector<48x640xf32>
    %171 = tpu.matmul %169, %170, %cst_121 {dimension_numbers = #tpu.dot_dimension_numbers<[1], [0], [0], [1], [0, 0, 1, 1], [], []>} : vector<48x32xbf16>, vector<32x640xbf16>, vector<48x640xf32> -> vector<48x640xf32>
    %172 = arith.addf %166, %171 : vector<48x640xf32>
    %c4_122 = arith.constant 4 : index
    %c0_123 = arith.constant 0 : index
    %c0_124 = arith.constant 0 : index
    %173 = vector.load %arg13[%c4_122, %c0_123, %c0_124] : memref<9x48x32xbf16, #tpu.memory_space<vmem>>, vector<1x48x32xbf16>
    %174 = vector.shape_cast %173 : vector<1x48x32xbf16> to vector<48x32xbf16>
    %175 = arith.truncf %147 : vector<32x640xf32> to vector<32x640xbf16>
    %cst_125 = arith.constant dense<0.000000e+00> : vector<48x640xf32>
    %176 = tpu.matmul %174, %175, %cst_125 {dimension_numbers = #tpu.dot_dimension_numbers<[1], [0], [0], [1], [0, 0, 1, 1], [], []>} : vector<48x32xbf16>, vector<32x640xbf16>, vector<48x640xf32> -> vector<48x640xf32>
    %177 = arith.addf %172, %176 : vector<48x640xf32>
    %c639_i32_126 = arith.constant 639 : i32
    %178 = tpu.dynamic_rotate %147 by %c639_i32_126 dim 1 : vector<32x640xf32>, i32 -> vector<32x640xf32>
    %c5_127 = arith.constant 5 : index
    %c0_128 = arith.constant 0 : index
    %c0_129 = arith.constant 0 : index
    %179 = vector.load %arg13[%c5_127, %c0_128, %c0_129] : memref<9x48x32xbf16, #tpu.memory_space<vmem>>, vector<1x48x32xbf16>
    %180 = vector.shape_cast %179 : vector<1x48x32xbf16> to vector<48x32xbf16>
    %181 = arith.truncf %178 : vector<32x640xf32> to vector<32x640xbf16>
    %cst_130 = arith.constant dense<0.000000e+00> : vector<48x640xf32>
    %182 = tpu.matmul %180, %181, %cst_130 {dimension_numbers = #tpu.dot_dimension_numbers<[1], [0], [0], [1], [0, 0, 1, 1], [], []>} : vector<48x32xbf16>, vector<32x640xbf16>, vector<48x640xf32> -> vector<48x640xf32>
    %183 = arith.addf %177, %182 : vector<48x640xf32>
    %c609_i32_131 = arith.constant 609 : i32
    %184 = tpu.dynamic_rotate %147 by %c609_i32_131 dim 1 : vector<32x640xf32>, i32 -> vector<32x640xf32>
    %c6_132 = arith.constant 6 : index
    %c0_133 = arith.constant 0 : index
    %c0_134 = arith.constant 0 : index
    %185 = vector.load %arg13[%c6_132, %c0_133, %c0_134] : memref<9x48x32xbf16, #tpu.memory_space<vmem>>, vector<1x48x32xbf16>
    %186 = vector.shape_cast %185 : vector<1x48x32xbf16> to vector<48x32xbf16>
    %187 = arith.truncf %184 : vector<32x640xf32> to vector<32x640xbf16>
    %cst_135 = arith.constant dense<0.000000e+00> : vector<48x640xf32>
    %188 = tpu.matmul %186, %187, %cst_135 {dimension_numbers = #tpu.dot_dimension_numbers<[1], [0], [0], [1], [0, 0, 1, 1], [], []>} : vector<48x32xbf16>, vector<32x640xbf16>, vector<48x640xf32> -> vector<48x640xf32>
    %189 = arith.addf %183, %188 : vector<48x640xf32>
    %c608_i32_136 = arith.constant 608 : i32
    %190 = tpu.dynamic_rotate %147 by %c608_i32_136 dim 1 : vector<32x640xf32>, i32 -> vector<32x640xf32>
    %c7_137 = arith.constant 7 : index
    %c0_138 = arith.constant 0 : index
    %c0_139 = arith.constant 0 : index
    %191 = vector.load %arg13[%c7_137, %c0_138, %c0_139] : memref<9x48x32xbf16, #tpu.memory_space<vmem>>, vector<1x48x32xbf16>
    %192 = vector.shape_cast %191 : vector<1x48x32xbf16> to vector<48x32xbf16>
    %193 = arith.truncf %190 : vector<32x640xf32> to vector<32x640xbf16>
    %cst_140 = arith.constant dense<0.000000e+00> : vector<48x640xf32>
    %194 = tpu.matmul %192, %193, %cst_140 {dimension_numbers = #tpu.dot_dimension_numbers<[1], [0], [0], [1], [0, 0, 1, 1], [], []>} : vector<48x32xbf16>, vector<32x640xbf16>, vector<48x640xf32> -> vector<48x640xf32>
    %195 = arith.addf %189, %194 : vector<48x640xf32>
    %c607_i32_141 = arith.constant 607 : i32
    %196 = tpu.dynamic_rotate %147 by %c607_i32_141 dim 1 : vector<32x640xf32>, i32 -> vector<32x640xf32>
    %c8_142 = arith.constant 8 : index
    %c0_143 = arith.constant 0 : index
    %c0_144 = arith.constant 0 : index
    %197 = vector.load %arg13[%c8_142, %c0_143, %c0_144] : memref<9x48x32xbf16, #tpu.memory_space<vmem>>, vector<1x48x32xbf16>
    %198 = vector.shape_cast %197 : vector<1x48x32xbf16> to vector<48x32xbf16>
    %199 = arith.truncf %196 : vector<32x640xf32> to vector<32x640xbf16>
    %cst_145 = arith.constant dense<0.000000e+00> : vector<48x640xf32>
    %200 = tpu.matmul %198, %199, %cst_145 {dimension_numbers = #tpu.dot_dimension_numbers<[1], [0], [0], [1], [0, 0, 1, 1], [], []>} : vector<48x32xbf16>, vector<32x640xbf16>, vector<48x640xf32> -> vector<48x640xf32>
    %201 = arith.addf %195, %200 : vector<48x640xf32>
    %c0_146 = arith.constant 0 : index
    %c0_147 = arith.constant 0 : index
    %202 = vector.load %arg14[%c0_146, %c0_147] : memref<48x1xf32, #tpu.memory_space<vmem>>, vector<48x1xf32>
    %203 = vector.broadcast %202 : vector<48x1xf32> to vector<48x640xf32>
    %204 = arith.addf %201, %203 : vector<48x640xf32>
    %cst_148 = arith.constant 0.000000e+00 : f32
    %205 = vector.broadcast %cst_148 : f32 to vector<48x640xf32>
    %206 = arith.maximumf %204, %205 : vector<48x640xf32>
    %c0_149 = arith.constant 0 : index
    %c0_150 = arith.constant 0 : index
    %207 = vector.load %arg15[%c0_149, %c0_150] : memref<48x48xbf16, #tpu.memory_space<vmem>>, vector<48x48xbf16>
    %208 = arith.truncf %206 : vector<48x640xf32> to vector<48x640xbf16>
    %cst_151 = arith.constant dense<0.000000e+00> : vector<48x640xf32>
    %209 = tpu.matmul %207, %208, %cst_151 {dimension_numbers = #tpu.dot_dimension_numbers<[1], [0], [0], [1], [0, 0, 1, 1], [], []>} : vector<48x48xbf16>, vector<48x640xbf16>, vector<48x640xf32> -> vector<48x640xf32>
    %c0_152 = arith.constant 0 : index
    %c0_153 = arith.constant 0 : index
    %210 = vector.load %arg16[%c0_152, %c0_153] : memref<48x1xf32, #tpu.memory_space<vmem>>, vector<48x1xf32>
    %211 = vector.broadcast %210 : vector<48x1xf32> to vector<48x640xf32>
    %212 = arith.addf %209, %211 : vector<48x640xf32>
    %cst_154 = arith.constant 0.000000e+00 : f32
    %213 = vector.broadcast %cst_154 : f32 to vector<48x640xf32>
    %214 = arith.maximumf %212, %213 : vector<48x640xf32>
    %c0_155 = arith.constant 0 : index
    %c0_156 = arith.constant 0 : index
    %c0_157 = arith.constant 0 : index
    %215 = vector.load %arg17[%c0_155, %c0_156, %c0_157] : memref<1x48x640xf32, #tpu.memory_space<vmem>>, vector<1x48x640xf32>
    %216 = vector.shape_cast %215 : vector<1x48x640xf32> to vector<48x640xf32>
    %217 = vector.shape_cast %214 : vector<48x640xf32> to vector<1x48x640xf32>
    tpu.vector_store %arg17[%c0_155, %c0_156, %c0_157], %217 {strides = array<i32>} : memref<1x48x640xf32, #tpu.memory_space<vmem>>, vector<1x48x640xf32>,
    return
  }
  func.func @transform_0(%arg0: i32) -> (i32, i32, i32) {
    %c0_i32 = arith.constant 0 : i32
    %c0_i32_0 = arith.constant 0 : i32
    %c0_i32_1 = arith.constant 0 : i32
    return %arg0, %c0_i32, %c0_i32_0 : i32, i32, i32
  }
  func.func @transform_1(%arg0: i32) -> (i32, i32) {
    %c0_i32 = arith.constant 0 : i32
    %c0_i32_0 = arith.constant 0 : i32
    %c0_i32_1 = arith.constant 0 : i32
    return %c0_i32, %c0_i32_0 : i32, i32
  }
  func.func @transform_2(%arg0: i32) -> (i32, i32, i32) {
    %c0_i32 = arith.constant 0 : i32
    %c0_i32_0 = arith.constant 0 : i32
    %c0_i32_1 = arith.constant 0 : i32
    %c0_i32_2 = arith.constant 0 : i32
    return %c0_i32, %c0_i32_0, %c0_i32_1 : i32, i32, i32
  }
  func.func @transform_3(%arg0: i32) -> (i32, i32) {
    %c0_i32 = arith.constant 0 : i32
    %c0_i32_0 = arith.constant 0 : i32
    %c0_i32_1 = arith.constant 0 : i32
    return %c0_i32, %c0_i32_0 : i32, i32
  }
  func.func @transform_4(%arg0: i32) -> (i32, i32) {
    %c0_i32 = arith.constant 0 : i32
    %c0_i32_0 = arith.constant 0 : i32
    %c0_i32_1 = arith.constant 0 : i32
    return %c0_i32, %c0_i32_0 : i32, i32
  }
  func.func @transform_5(%arg0: i32) -> (i32, i32) {
    %c0_i32 = arith.constant 0 : i32
    %c0_i32_0 = arith.constant 0 : i32
    %c0_i32_1 = arith.constant 0 : i32
    return %c0_i32, %c0_i32_0 : i32, i32
  }
  func.func @transform_6(%arg0: i32) -> (i32, i32, i32) {
    %c0_i32 = arith.constant 0 : i32
    %c0_i32_0 = arith.constant 0 : i32
    %c0_i32_1 = arith.constant 0 : i32
    %c0_i32_2 = arith.constant 0 : i32
    return %c0_i32, %c0_i32_0, %c0_i32_1 : i32, i32, i32
  }
  func.func @transform_7(%arg0: i32) -> (i32, i32) {
    %c0_i32 = arith.constant 0 : i32
    %c0_i32_0 = arith.constant 0 : i32
    %c0_i32_1 = arith.constant 0 : i32
    return %c0_i32, %c0_i32_0 : i32, i32
  }
  func.func @transform_8(%arg0: i32) -> (i32, i32) {
    %c0_i32 = arith.constant 0 : i32
    %c0_i32_0 = arith.constant 0 : i32
    %c0_i32_1 = arith.constant 0 : i32
    return %c0_i32, %c0_i32_0 : i32, i32
  }
  func.func @transform_9(%arg0: i32) -> (i32, i32) {
    %c0_i32 = arith.constant 0 : i32
    %c0_i32_0 = arith.constant 0 : i32
    %c0_i32_1 = arith.constant 0 : i32
    return %c0_i32, %c0_i32_0 : i32, i32
  }
  func.func @transform_10(%arg0: i32) -> (i32, i32) {
    %c0_i32 = arith.constant 0 : i32
    %c0_i32_0 = arith.constant 0 : i32
    %c0_i32_1 = arith.constant 0 : i32
    return %c0_i32, %c0_i32_0 : i32, i32
  }
  func.func @transform_11(%arg0: i32) -> (i32, i32) {
    %c0_i32 = arith.constant 0 : i32
    %c0_i32_0 = arith.constant 0 : i32
    %c0_i32_1 = arith.constant 0 : i32
    return %c0_i32, %c0_i32_0 : i32, i32
  }
  func.func @transform_12(%arg0: i32) -> (i32, i32, i32) {
    %c0_i32 = arith.constant 0 : i32
    %c0_i32_0 = arith.constant 0 : i32
    %c0_i32_1 = arith.constant 0 : i32
    %c0_i32_2 = arith.constant 0 : i32
    return %c0_i32, %c0_i32_0, %c0_i32_1 : i32, i32, i32
  }
  func.func @transform_13(%arg0: i32) -> (i32, i32) {
    %c0_i32 = arith.constant 0 : i32
    %c0_i32_0 = arith.constant 0 : i32
    %c0_i32_1 = arith.constant 0 : i32
    return %c0_i32, %c0_i32_0 : i32, i32
  }
  func.func @transform_14(%arg0: i32) -> (i32, i32) {
    %c0_i32 = arith.constant 0 : i32
    %c0_i32_0 = arith.constant 0 : i32
    %c0_i32_1 = arith.constant 0 : i32
    return %c0_i32, %c0_i32_0 : i32, i32
  }
  func.func @transform_15(%arg0: i32) -> (i32, i32) {
    %c0_i32 = arith.constant 0 : i32
    %c0_i32_0 = arith.constant 0 : i32
    %c0_i32_1 = arith.constant 0 : i32
    return %c0_i32, %c0_i32_0 : i32, i32
  }
  func.func @transform_16(%arg0: i32) -> (i32, i32, i32) {
    %c0_i32 = arith.constant 0 : i32
    %c0_i32_0 = arith.constant 0 : i32
    %c0_i32_1 = arith.constant 0 : i32
    return %arg0, %c0_i32, %c0_i32_0 : i32, i32, i32
  }
  func.func @transform_17(%arg0: i32) -> (i32, i32, i32) {
    %c0_i32 = arith.constant 0 : i32
    %c0_i32_0 = arith.constant 0 : i32
    %c0_i32_1 = arith.constant 0 : i32
    return %arg0, %c0_i32, %c0_i32_0 : i32, i32, i32
  }
}

</mosaic_0001>

<llo_original>
// kernel: simulated_module_forward.1
$region0: #{simulated_module_forward.1}
  #allocation0 [shape = 'u32[]', space=smem, size = 0x4, offset = 0x4, fixed_abs, tag = 'smem constant byte address 0x4 - core index']
  #allocation1 [shape = 'u32[144,128]{1,0:T(1,128)}', space=vmem, size = 0x12000, scoped, tag = 'internal scratch']
  %s0 = inlined_call_operand.vmem [shape: f32[2,4,640], index: 0, kind: input, shape index: {}]
  %s1 = inlined_call_operand.vmem [shape: f32[1,640], index: 1, kind: input, shape index: {}]
  %s2 = inlined_call_operand.vmem [shape: bf16[9,64,4], index: 2, kind: input, shape index: {}]
  %s3 = inlined_call_operand.vmem [shape: f32[64,1], index: 3, kind: input, shape index: {}]
  %s4 = inlined_call_operand.vmem [shape: bf16[48,64], index: 4, kind: input, shape index: {}]
  %s5 = inlined_call_operand.vmem [shape: f32[48,1], index: 5, kind: input, shape index: {}]
  %s6 = inlined_call_operand.vmem [shape: bf16[9,48,48], index: 6, kind: input, shape index: {}]
  %s7 = inlined_call_operand.vmem [shape: f32[48,1], index: 7, kind: input, shape index: {}]
  %s8 = inlined_call_operand.vmem [shape: bf16[32,48], index: 8, kind: input, shape index: {}]
  %s9 = inlined_call_operand.vmem [shape: f32[32,1], index: 9, kind: input, shape index: {}]
  %s10 = inlined_call_operand.vmem [shape: f32[32,1], index: 10, kind: input, shape index: {}]
  %s11 = inlined_call_operand.vmem [shape: f32[32,1], index: 11, kind: input, shape index: {}]
  %s12 = inlined_call_operand.vmem [shape: bf16[9,48,32], index: 12, kind: input, shape index: {}]
  %s13 = inlined_call_operand.vmem [shape: f32[48,1], index: 13, kind: input, shape index: {}]
  %s14 = inlined_call_operand.vmem [shape: bf16[48,48], index: 14, kind: input, shape index: {}]
  %s15 = inlined_call_operand.vmem [shape: f32[48,1], index: 15, kind: input, shape index: {}]
  %s16 = inlined_call_operand.vmem [shape: f32[2,48,640], index: 16, kind: output, shape index: {0}]
  %s17 = inlined_call_operand.vmem [shape: f32[2,32,640], index: 17, kind: output, shape index: {1}]
  %18 = xla_tuple %s16, %s17
  %s19 = sld [smem:[#allocation0]]
  $region105: #{simulated_module_forward.1} parent=0
    _
  %s21 = ssub.s32 1, %s19
  %s22 = scalar_select 0, %s21, %s19
  loop: start=0, step=1, limit=4
  $region2: #{simulated_module_forward.1} parent=0 // loop_pre_header
    _
  $region3: #{simulated_module_forward.1} parent=0 // loop_header
    %s24 = sphi 0, %s28
    %p25 = scmp.ge.s32.totalorder %s24, 4
    %s34 = sphi 0, %s36
    %s37 = sphi 0, %s34
    %s38 = sphi 0, %s37
    %s54 = sphi 0, %s38
    %s58 = sphi 0, %s58
    %s60 = sphi 0, %s58
    %s61 = sphi 0, %s60
    %s75 = sphi 0, %s61
    %s79 = sphi 0, %s79
    %s81 = sphi 0, %s79
    %s82 = sphi 0, %s81
    %s96 = sphi 0, %s82
    %s100 = sphi 0, %s100
    %s102 = sphi 0, %s100
    %s103 = sphi 0, %s102
    %s117 = sphi 0, %s103
    %s121 = sphi 0, %s121
    %s123 = sphi 0, %s121
    %s124 = sphi 0, %s123
    %s138 = sphi 0, %s124
    %s142 = sphi 0, %s142
    %s144 = sphi 0, %s142
    %s145 = sphi 0, %s144
    %s159 = sphi 0, %s145
    %s163 = sphi 0, %s163
    %s165 = sphi 0, %s163
    %s166 = sphi 0, %s165
    %s180 = sphi 0, %s166
    %s184 = sphi 0, %s184
    %s186 = sphi 0, %s184
    %s187 = sphi 0, %s186
    %s201 = sphi 0, %s187
    %s205 = sphi 0, %s205
    %s207 = sphi 0, %s205
    %s208 = sphi 0, %s207
    %s222 = sphi 0, %s208
    %s226 = sphi 0, %s226
    %s228 = sphi 0, %s226
    %s229 = sphi 0, %s228
    %s243 = sphi 0, %s229
    %s247 = sphi 0, %s247
    %s249 = sphi 0, %s247
    %s250 = sphi 0, %s249
    %s264 = sphi 0, %s250
    %s268 = sphi 0, %s268
    %s270 = sphi 0, %s268
    %s271 = sphi 0, %s270
    %s285 = sphi 0, %s271
    %s289 = sphi 0, %s289
    %s291 = sphi 0, %s289
    %s292 = sphi 0, %s291
    %s306 = sphi 0, %s292
    %s310 = sphi 0, %s310
    %s312 = sphi 0, %s310
    %s313 = sphi 0, %s312
    %s327 = sphi 0, %s313
    %s331 = sphi 0, %s331
    %s333 = sphi 0, %s331
    %s334 = sphi 0, %s333
    %s348 = sphi 0, %s334
    %s352 = sphi 0, %s352
    %s354 = sphi 0, %s352
    %s355 = sphi 0, %s354
    %s369 = sphi 0, %s355
    %s375 = sphi 0, %s377
    %s378 = sphi 0, %s375
    %s379 = sphi 0, %s378
    %s395 = sphi 0, %s379
    %s401 = sphi 0, %s403
    %s404 = sphi 0, %s401
    %s405 = sphi 0, %s404
    %s421 = sphi 0, %s405
  $region4: #{simulated_module_forward.1} parent=0 // loop_header_branch
    %27 = sbr.rel (%p25) target = $region8
  $region5: #{simulated_module_forward.1} parent=0 // loop_body
    %s29 = ssub.s32 %s24, 1
    %s30 = ssub.s32 %s24, 2
    %s31 = sadd.s32 %s24, 1
    %s32 = ssub.s32 %s24, %s31
    %p33 = scmp.eq.s32.totalorder %s32, 0
    %s35 = sadd.s32 %s34, 1
    %s36 = scalar_select %p33, %s34, %s35
    %p39 = pneg %p33
    %p40 = scmp.eq.s32.totalorder %s24, 1
    %p41 = por %p39, %p40
    %p42 = scmp.ne.s32.totalorder %s34, %s37
    %p43 = scmp.eq.s32.totalorder %s24, 0
    %p44 = por %p42, %p43
    %p45 = scmp.ne.s32.totalorder %s34, %s37
    %p46 = scmp.eq.s32.totalorder %s29, 1
    %p47 = por %p45, %p46
    %p48 = scmp.ne.s32.totalorder %s37, %s38
    %p49 = scmp.eq.s32.totalorder %s29, 0
    %p50 = por %p48, %p49
    %p51 = scmp.ne.s32.totalorder %s37, %s38
    %p52 = scmp.eq.s32.totalorder %s30, 1
    %p53 = por %p51, %p52
    %p55 = scmp.ne.s32.totalorder %s38, %s54
    %p56 = scmp.eq.s32.totalorder %s30, 0
    %p57 = por %p55, %p56
    %s59 = sadd.s32 %s58, 1
    %p62 = scmp.eq.s32.totalorder %s24, 1
    %p63 = scmp.ne.s32.totalorder %s58, %s60
    %p64 = scmp.eq.s32.totalorder %s24, 0
    %p65 = por %p63, %p64
    %p66 = scmp.ne.s32.totalorder %s58, %s60
    %p67 = scmp.eq.s32.totalorder %s29, 1
    %p68 = por %p66, %p67
    %p69 = scmp.ne.s32.totalorder %s60, %s61
    %p70 = scmp.eq.s32.totalorder %s29, 0
    %p71 = por %p69, %p70
    %p72 = scmp.ne.s32.totalorder %s60, %s61
    %p73 = scmp.eq.s32.totalorder %s30, 1
    %p74 = por %p72, %p73
    %p76 = scmp.ne.s32.totalorder %s61, %s75
    %p77 = scmp.eq.s32.totalorder %s30, 0
    %p78 = por %p76, %p77
    %s80 = sadd.s32 %s79, 1
    %p83 = scmp.eq.s32.totalorder %s24, 1
    %p84 = scmp.ne.s32.totalorder %s79, %s81
    %p85 = scmp.eq.s32.totalorder %s24, 0
    %p86 = por %p84, %p85
    %p87 = scmp.ne.s32.totalorder %s79, %s81
    %p88 = scmp.eq.s32.totalorder %s29, 1
    %p89 = por %p87, %p88
    %p90 = scmp.ne.s32.totalorder %s81, %s82
    %p91 = scmp.eq.s32.totalorder %s29, 0
    %p92 = por %p90, %p91
    %p93 = scmp.ne.s32.totalorder %s81, %s82
    %p94 = scmp.eq.s32.totalorder %s30, 1
    %p95 = por %p93, %p94
    %p97 = scmp.ne.s32.totalorder %s82, %s96
    %p98 = scmp.eq.s32.totalorder %s30, 0
    %p99 = por %p97, %p98
    %s101 = sadd.s32 %s100, 1
    %p104 = scmp.eq.s32.totalorder %s24, 1
    %p105 = scmp.ne.s32.totalorder %s100, %s102
    %p106 = scmp.eq.s32.totalorder %s24, 0
    %p107 = por %p105, %p106
    %p108 = scmp.ne.s32.totalorder %s100, %s102
    %p109 = scmp.eq.s32.totalorder %s29, 1
    %p110 = por %p108, %p109
    %p111 = scmp.ne.s32.totalorder %s102, %s103
    %p112 = scmp.eq.s32.totalorder %s29, 0
    %p113 = por %p111, %p112
    %p114 = scmp.ne.s32.totalorder %s102, %s103
    %p115 = scmp.eq.s32.totalorder %s30, 1
    %p116 = por %p114, %p115
    %p118 = scmp.ne.s32.totalorder %s103, %s117
    %p119 = scmp.eq.s32.totalorder %s30, 0
    %p120 = por %p118, %p119
    %s122 = sadd.s32 %s121, 1
    %p125 = scmp.eq.s32.totalorder %s24, 1
    %p126 = scmp.ne.s32.totalorder %s121, %s123
    %p127 = scmp.eq.s32.totalorder %s24, 0
    %p128 = por %p126, %p127
    %p129 = scmp.ne.s32.totalorder %s121, %s123
    %p130 = scmp.eq.s32.totalorder %s29, 1
    %p131 = por %p129, %p130
    %p132 = scmp.ne.s32.totalorder %s123, %s124
    %p133 = scmp.eq.s32.totalorder %s29, 0
    %p134 = por %p132, %p133
    %p135 = scmp.ne.s32.totalorder %s123, %s124
    %p136 = scmp.eq.s32.totalorder %s30, 1
    %p137 = por %p135, %p136
    %p139 = scmp.ne.s32.totalorder %s124, %s138
    %p140 = scmp.eq.s32.totalorder %s30, 0
    %p141 = por %p139, %p140
    %s143 = sadd.s32 %s142, 1
    %p146 = scmp.eq.s32.totalorder %s24, 1
    %p147 = scmp.ne.s32.totalorder %s142, %s144
    %p148 = scmp.eq.s32.totalorder %s24, 0
    %p149 = por %p147, %p148
    %p150 = scmp.ne.s32.totalorder %s142, %s144
    %p151 = scmp.eq.s32.totalorder %s29, 1
    %p152 = por %p150, %p151
    %p153 = scmp.ne.s32.totalorder %s144, %s145
    %p154 = scmp.eq.s32.totalorder %s29, 0
    %p155 = por %p153, %p154
    %p156 = scmp.ne.s32.totalorder %s144, %s145
    %p157 = scmp.eq.s32.totalorder %s30, 1
    %p158 = por %p156, %p157
    %p160 = scmp.ne.s32.totalorder %s145, %s159
    %p161 = scmp.eq.s32.totalorder %s30, 0
    %p162 = por %p160, %p161
    %s164 = sadd.s32 %s163, 1
    %p167 = scmp.eq.s32.totalorder %s24, 1
    %p168 = scmp.ne.s32.totalorder %s163, %s165
    %p169 = scmp.eq.s32.totalorder %s24, 0
    %p170 = por %p168, %p169
    %p171 = scmp.ne.s32.totalorder %s163, %s165
    %p172 = scmp.eq.s32.totalorder %s29, 1
    %p173 = por %p171, %p172
    %p174 = scmp.ne.s32.totalorder %s165, %s166
    %p175 = scmp.eq.s32.totalorder %s29, 0
    %p176 = por %p174, %p175
    %p177 = scmp.ne.s32.totalorder %s165, %s166
    %p178 = scmp.eq.s32.totalorder %s30, 1
    %p179 = por %p177, %p178
    %p181 = scmp.ne.s32.totalorder %s166, %s180
    %p182 = scmp.eq.s32.totalorder %s30, 0
    %p183 = por %p181, %p182
    %s185 = sadd.s32 %s184, 1
    %p188 = scmp.eq.s32.totalorder %s24, 1
    %p189 = scmp.ne.s32.totalorder %s184, %s186
    %p190 = scmp.eq.s32.totalorder %s24, 0
    %p191 = por %p189, %p190
    %p192 = scmp.ne.s32.totalorder %s184, %s186
    %p193 = scmp.eq.s32.totalorder %s29, 1
    %p194 = por %p192, %p193
    %p195 = scmp.ne.s32.totalorder %s186, %s187
    %p196 = scmp.eq.s32.totalorder %s29, 0
    %p197 = por %p195, %p196
    %p198 = scmp.ne.s32.totalorder %s186, %s187
    %p199 = scmp.eq.s32.totalorder %s30, 1
    %p200 = por %p198, %p199
    %p202 = scmp.ne.s32.totalorder %s187, %s201
    %p203 = scmp.eq.s32.totalorder %s30, 0
    %p204 = por %p202, %p203
    %s206 = sadd.s32 %s205, 1
    %p209 = scmp.eq.s32.totalorder %s24, 1
    %p210 = scmp.ne.s32.totalorder %s205, %s207
    %p211 = scmp.eq.s32.totalorder %s24, 0
    %p212 = por %p210, %p211
    %p213 = scmp.ne.s32.totalorder %s205, %s207
    %p214 = scmp.eq.s32.totalorder %s29, 1
    %p215 = por %p213, %p214
    %p216 = scmp.ne.s32.totalorder %s207, %s208
    %p217 = scmp.eq.s32.totalorder %s29, 0
    %p218 = por %p216, %p217
    %p219 = scmp.ne.s32.totalorder %s207, %s208
    %p220 = scmp.eq.s32.totalorder %s30, 1
    %p221 = por %p219, %p220
    %p223 = scmp.ne.s32.totalorder %s208, %s222
    %p224 = scmp.eq.s32.totalorder %s30, 0
    %p225 = por %p223, %p224
    %s227 = sadd.s32 %s226, 1
    %p230 = scmp.eq.s32.totalorder %s24, 1
    %p231 = scmp.ne.s32.totalorder %s226, %s228
    %p232 = scmp.eq.s32.totalorder %s24, 0
    %p233 = por %p231, %p232
    %p234 = scmp.ne.s32.totalorder %s226, %s228
    %p235 = scmp.eq.s32.totalorder %s29, 1
    %p236 = por %p234, %p235
    %p237 = scmp.ne.s32.totalorder %s228, %s229
    %p238 = scmp.eq.s32.totalorder %s29, 0
    %p239 = por %p237, %p238
    %p240 = scmp.ne.s32.totalorder %s228, %s229
    %p241 = scmp.eq.s32.totalorder %s30, 1
    %p242 = por %p240, %p241
    %p244 = scmp.ne.s32.totalorder %s229, %s243
    %p245 = scmp.eq.s32.totalorder %s30, 0
    %p246 = por %p244, %p245
    %s248 = sadd.s32 %s247, 1
    %p251 = scmp.eq.s32.totalorder %s24, 1
    %p252 = scmp.ne.s32.totalorder %s247, %s249
    %p253 = scmp.eq.s32.totalorder %s24, 0
    %p254 = por %p252, %p253
    %p255 = scmp.ne.s32.totalorder %s247, %s249
    %p256 = scmp.eq.s32.totalorder %s29, 1
    %p257 = por %p255, %p256
    %p258 = scmp.ne.s32.totalorder %s249, %s250
    %p259 = scmp.eq.s32.totalorder %s29, 0
    %p260 = por %p258, %p259
    %p261 = scmp.ne.s32.totalorder %s249, %s250
    %p262 = scmp.eq.s32.totalorder %s30, 1
    %p263 = por %p261, %p262
    %p265 = scmp.ne.s32.totalorder %s250, %s264
    %p266 = scmp.eq.s32.totalorder %s30, 0
    %p267 = por %p265, %p266
    %s269 = sadd.s32 %s268, 1
    %p272 = scmp.eq.s32.totalorder %s24, 1
    %p273 = scmp.ne.s32.totalorder %s268, %s270
    %p274 = scmp.eq.s32.totalorder %s24, 0
    %p275 = por %p273, %p274
    %p276 = scmp.ne.s32.totalorder %s268, %s270
    %p277 = scmp.eq.s32.totalorder %s29, 1
    %p278 = por %p276, %p277
    %p279 = scmp.ne.s32.totalorder %s270, %s271
    %p280 = scmp.eq.s32.totalorder %s29, 0
    %p281 = por %p279, %p280
    %p282 = scmp.ne.s32.totalorder %s270, %s271
    %p283 = scmp.eq.s32.totalorder %s30, 1
    %p284 = por %p282, %p283
    %p286 = scmp.ne.s32.totalorder %s271, %s285
    %p287 = scmp.eq.s32.totalorder %s30, 0
    %p288 = por %p286, %p287
    %s290 = sadd.s32 %s289, 1
    %p293 = scmp.eq.s32.totalorder %s24, 1
    %p294 = scmp.ne.s32.totalorder %s289, %s291
    %p295 = scmp.eq.s32.totalorder %s24, 0
    %p296 = por %p294, %p295
    %p297 = scmp.ne.s32.totalorder %s289, %s291
    %p298 = scmp.eq.s32.totalorder %s29, 1
    %p299 = por %p297, %p298
    %p300 = scmp.ne.s32.totalorder %s291, %s292
    %p301 = scmp.eq.s32.totalorder %s29, 0
    %p302 = por %p300, %p301
    %p303 = scmp.ne.s32.totalorder %s291, %s292
    %p304 = scmp.eq.s32.totalorder %s30, 1
    %p305 = por %p303, %p304
    %p307 = scmp.ne.s32.totalorder %s292, %s306
    %p308 = scmp.eq.s32.totalorder %s30, 0
    %p309 = por %p307, %p308
    %s311 = sadd.s32 %s310, 1
    %p314 = scmp.eq.s32.totalorder %s24, 1
    %p315 = scmp.ne.s32.totalorder %s310, %s312
    %p316 = scmp.eq.s32.totalorder %s24, 0
    %p317 = por %p315, %p316
    %p318 = scmp.ne.s32.totalorder %s310, %s312
    %p319 = scmp.eq.s32.totalorder %s29, 1
    %p320 = por %p318, %p319
    %p321 = scmp.ne.s32.totalorder %s312, %s313
    %p322 = scmp.eq.s32.totalorder %s29, 0
    %p323 = por %p321, %p322
    %p324 = scmp.ne.s32.totalorder %s312, %s313
    %p325 = scmp.eq.s32.totalorder %s30, 1
    %p326 = por %p324, %p325
    %p328 = scmp.ne.s32.totalorder %s313, %s327
    %p329 = scmp.eq.s32.totalorder %s30, 0
    %p330 = por %p328, %p329
    %s332 = sadd.s32 %s331, 1
    %p335 = scmp.eq.s32.totalorder %s24, 1
    %p336 = scmp.ne.s32.totalorder %s331, %s333
    %p337 = scmp.eq.s32.totalorder %s24, 0
    %p338 = por %p336, %p337
    %p339 = scmp.ne.s32.totalorder %s331, %s333
    %p340 = scmp.eq.s32.totalorder %s29, 1
    %p341 = por %p339, %p340
    %p342 = scmp.ne.s32.totalorder %s333, %s334
    %p343 = scmp.eq.s32.totalorder %s29, 0
    %p344 = por %p342, %p343
    %p345 = scmp.ne.s32.totalorder %s333, %s334
    %p346 = scmp.eq.s32.totalorder %s30, 1
    %p347 = por %p345, %p346
    %p349 = scmp.ne.s32.totalorder %s334, %s348
    %p350 = scmp.eq.s32.totalorder %s30, 0
    %p351 = por %p349, %p350
    %s353 = sadd.s32 %s352, 1
    %p356 = scmp.eq.s32.totalorder %s24, 1
    %p357 = scmp.ne.s32.totalorder %s352, %s354
    %p358 = scmp.eq.s32.totalorder %s24, 0
    %p359 = por %p357, %p358
    %p360 = scmp.ne.s32.totalorder %s352, %s354
    %p361 = scmp.eq.s32.totalorder %s29, 1
    %p362 = por %p360, %p361
    %p363 = scmp.ne.s32.totalorder %s354, %s355
    %p364 = scmp.eq.s32.totalorder %s29, 0
    %p365 = por %p363, %p364
    %p366 = scmp.ne.s32.totalorder %s354, %s355
    %p367 = scmp.eq.s32.totalorder %s30, 1
    %p368 = por %p366, %p367
    %p370 = scmp.ne.s32.totalorder %s355, %s369
    %p371 = scmp.eq.s32.totalorder %s30, 0
    %p372 = por %p370, %p371
    %s373 = ssub.s32 %s24, %s31
    %p374 = scmp.eq.s32.totalorder %s373, 0
    %s376 = sadd.s32 %s375, 1
    %s377 = scalar_select %p374, %s375, %s376
    %p380 = pneg %p374
    %p381 = scmp.eq.s32.totalorder %s24, 1
    %p382 = por %p380, %p381
    %p383 = scmp.ne.s32.totalorder %s375, %s378
    %p384 = scmp.eq.s32.totalorder %s24, 0
    %p385 = por %p383, %p384
    %p386 = scmp.ne.s32.totalorder %s375, %s378
    %p387 = scmp.eq.s32.totalorder %s29, 1
    %p388 = por %p386, %p387
    %p389 = scmp.ne.s32.totalorder %s378, %s379
    %p390 = scmp.eq.s32.totalorder %s29, 0
    %p391 = por %p389, %p390
    %p392 = scmp.ne.s32.totalorder %s378, %s379
    %p393 = scmp.eq.s32.totalorder %s30, 1
    %p394 = por %p392, %p393
    %p396 = scmp.ne.s32.totalorder %s379, %s395
    %p397 = scmp.eq.s32.totalorder %s30, 0
    %p398 = por %p396, %p397
    %s399 = ssub.s32 %s24, %s31
    %p400 = scmp.eq.s32.totalorder %s399, 0
    %s402 = sadd.s32 %s401, 1
    %s403 = scalar_select %p400, %s401, %s402
    %p406 = pneg %p400
    %p407 = scmp.eq.s32.totalorder %s24, 1
    %p408 = por %p406, %p407
    %p409 = scmp.ne.s32.totalorder %s401, %s404
    %p410 = scmp.eq.s32.totalorder %s24, 0
    %p411 = por %p409, %p410
    %p412 = scmp.ne.s32.totalorder %s401, %s404
    %p413 = scmp.eq.s32.totalorder %s29, 1
    %p414 = por %p412, %p413
    %p415 = scmp.ne.s32.totalorder %s404, %s405
    %p416 = scmp.eq.s32.totalorder %s29, 0
    %p417 = por %p415, %p416
    %p418 = scmp.ne.s32.totalorder %s404, %s405
    %p419 = scmp.eq.s32.totalorder %s30, 1
    %p420 = por %p418, %p419
    %p422 = scmp.ne.s32.totalorder %s405, %s421
    %p423 = scmp.eq.s32.totalorder %s30, 0
    %p424 = por %p422, %p423
    %p425 = scmp.le.s32.totalorder 1, %s24
    %p426 = scmp.lt.s32.totalorder %s24, 3
    %p427 = pnand %p425, %p426
    %p428 = pneg %p427
    // Predicated region
    $region9: #{simulated_module_forward.1} parent=5 // pred_check
      _
    $region10: #{simulated_module_forward.1} parent=5 // pred_check_branch
      %430 = sbr.rel (%p427) target = $region12
    $region11: #{simulated_module_forward.1} parent=5 // pred_region
      %s431 = ssub.s32 %s24, 1
      // Predicated region
      $region13: #{simulated_module_forward.1} parent=11 // pred_check
        %p432 = pneg %p71
      $region14: #{simulated_module_forward.1} parent=11 // pred_check_branch
        %434 = sbr.rel (%p432) target = $region16
      $region15: #{simulated_module_forward.1} parent=11 // pred_region
        _
      $region16: #{simulated_module_forward.1} parent=11 // pred_fallthru
        _
      // Predicated region
      $region17: #{simulated_module_forward.1} parent=11 // pred_check
        %p435 = pneg %p92
      $region18: #{simulated_module_forward.1} parent=11 // pred_check_branch
        %437 = sbr.rel (%p435) target = $region20
      $region19: #{simulated_module_forward.1} parent=11 // pred_region
        _
      $region20: #{simulated_module_forward.1} parent=11 // pred_fallthru
        _
      // Predicated region
      $region21: #{simulated_module_forward.1} parent=11 // pred_check
        %p438 = pneg %p113
      $region22: #{simulated_module_forward.1} parent=11 // pred_check_branch
        %440 = sbr.rel (%p438) target = $region24
      $region23: #{simulated_module_forward.1} parent=11 // pred_region
        _
      $region24: #{simulated_module_forward.1} parent=11 // pred_fallthru
        _
      // Predicated region
      $region25: #{simulated_module_forward.1} parent=11 // pred_check
        %p441 = pneg %p134
      $region26: #{simulated_module_forward.1} parent=11 // pred_check_branch
        %443 = sbr.rel (%p441) target = $region28
      $region27: #{simulated_module_forward.1} parent=11 // pred_region
        _
      $region28: #{simulated_module_forward.1} parent=11 // pred_fallthru
        _
      // Predicated region
      $region29: #{simulated_module_forward.1} parent=11 // pred_check
        %p444 = pneg %p155
      $region30: #{simulated_module_forward.1} parent=11 // pred_check_branch
        %446 = sbr.rel (%p444) target = $region32
      $region31: #{simulated_module_forward.1} parent=11 // pred_region
        _
      $region32: #{simulated_module_forward.1} parent=11 // pred_fallthru
        _
      // Predicated region
      $region33: #{simulated_module_forward.1} parent=11 // pred_check
        %p447 = pneg %p176
      $region34: #{simulated_module_forward.1} parent=11 // pred_check_branch
        %449 = sbr.rel (%p447) target = $region36
      $region35: #{simulated_module_forward.1} parent=11 // pred_region
        _
      $region36: #{simulated_module_forward.1} parent=11 // pred_fallthru
        _
      // Predicated region
      $region37: #{simulated_module_forward.1} parent=11 // pred_check
        %p450 = pneg %p197
      $region38: #{simulated_module_forward.1} parent=11 // pred_check_branch
        %452 = sbr.rel (%p450) target = $region40
      $region39: #{simulated_module_forward.1} parent=11 // pred_region
        _
      $region40: #{simulated_module_forward.1} parent=11 // pred_fallthru
        _
      // Predicated region
      $region41: #{simulated_module_forward.1} parent=11 // pred_check
        %p453 = pneg %p218
      $region42: #{simulated_module_forward.1} parent=11 // pred_check_branch
        %455 = sbr.rel (%p453) target = $region44
      $region43: #{simulated_module_forward.1} parent=11 // pred_region
        _
      $region44: #{simulated_module_forward.1} parent=11 // pred_fallthru
        _
      // Predicated region
      $region45: #{simulated_module_forward.1} parent=11 // pred_check
        %p456 = pneg %p239
      $region46: #{simulated_module_forward.1} parent=11 // pred_check_branch
        %458 = sbr.rel (%p456) target = $region48
      $region47: #{simulated_module_forward.1} parent=11 // pred_region
        _
      $region48: #{simulated_module_forward.1} parent=11 // pred_fallthru
        _
      // Predicated region
      $region49: #{simulated_module_forward.1} parent=11 // pred_check
        %p459 = pneg %p260
      $region50: #{simulated_module_forward.1} parent=11 // pred_check_branch
        %461 = sbr.rel (%p459) target = $region52
      $region51: #{simulated_module_forward.1} parent=11 // pred_region
        _
      $region52: #{simulated_module_forward.1} parent=11 // pred_fallthru
        _
      // Predicated region
      $region53: #{simulated_module_forward.1} parent=11 // pred_check
        %p462 = pneg %p281
      $region54: #{simulated_module_forward.1} parent=11 // pred_check_branch
        %464 = sbr.rel (%p462) target = $region56
      $region55: #{simulated_module_forward.1} parent=11 // pred_region
        _
      $region56: #{simulated_module_forward.1} parent=11 // pred_fallthru
        _
      // Predicated region
      $region57: #{simulated_module_forward.1} parent=11 // pred_check
        %p465 = pneg %p302
      $region58: #{simulated_module_forward.1} parent=11 // pred_check_branch
        %467 = sbr.rel (%p465) target = $region60
      $region59: #{simulated_module_forward.1} parent=11 // pred_region
        _
      $region60: #{simulated_module_forward.1} parent=11 // pred_fallthru
        _
      // Predicated region
      $region61: #{simulated_module_forward.1} parent=11 // pred_check
        %p468 = pneg %p323
      $region62: #{simulated_module_forward.1} parent=11 // pred_check_branch
        %470 = sbr.rel (%p468) target = $region64
      $region63: #{simulated_module_forward.1} parent=11 // pred_region
        _
      $region64: #{simulated_module_forward.1} parent=11 // pred_fallthru
        _
      // Predicated region
      $region65: #{simulated_module_forward.1} parent=11 // pred_check
        %p471 = pneg %p344
      $region66: #{simulated_module_forward.1} parent=11 // pred_check_branch
        %473 = sbr.rel (%p471) target = $region68
      $region67: #{simulated_module_forward.1} parent=11 // pred_region
        _
      $region68: #{simulated_module_forward.1} parent=11 // pred_fallthru
        _
      // Predicated region
      $region69: #{simulated_module_forward.1} parent=11 // pred_check
        %p474 = pneg %p365
      $region70: #{simulated_module_forward.1} parent=11 // pred_check_branch
        %476 = sbr.rel (%p474) target = $region72
      $region71: #{simulated_module_forward.1} parent=11 // pred_region
        _
      $region72: #{simulated_module_forward.1} parent=11 // pred_fallthru
        _
    $region12: #{simulated_module_forward.1} parent=5 // pred_fallthru
      _
    %p477 = scmp.lt.s32.totalorder %s24, 2
    // Predicated region
    $region73: #{simulated_module_forward.1} parent=5 // pred_check
      %p478 = pneg %p477
    $region74: #{simulated_module_forward.1} parent=5 // pred_check_branch
      %480 = sbr.rel (%p478) target = $region76
    $region75: #{simulated_module_forward.1} parent=5 // pred_region
      // Predicated region
      $region77: #{simulated_module_forward.1} parent=75 // pred_check
        %p481 = pneg %p44
      $region78: #{simulated_module_forward.1} parent=75 // pred_check_branch
        %483 = sbr.rel (%p481) target = $region80
      $region79: #{simulated_module_forward.1} parent=75 // pred_region
        %p484 = scmp.lt.s32.totalorder %s24, 1
        %s485 = scalar_select %p484, %s24, 1
        %s486 = smul.addr %s485, 5
        %s487 = smul.addr %s486, 4
        %s488 = scalar_lea.vmem %s0, %s487
      $region80: #{simulated_module_forward.1} parent=75 // pred_fallthru
        _
    $region76: #{simulated_module_forward.1} parent=5 // pred_fallthru
      _
    %p489 = scmp.le.s32.totalorder 1, %s24
    %p490 = scmp.lt.s32.totalorder %s24, 3
    %p491 = pnand %p489, %p490
    %p492 = pneg %p491
    // Predicated region
    $region81: #{simulated_module_forward.1} parent=5 // pred_check
      _
    $region82: #{simulated_module_forward.1} parent=5 // pred_check_branch
      %494 = sbr.rel (%p491) target = $region84
    $region83: #{simulated_module_forward.1} parent=5 // pred_region
      %s495 = ssub.s32 %s24, 1
      %p496 = scmp.lt.s32.totalorder %s29, 1
      %s497 = scalar_select %p496, %s29, 1
      %s498 = smul.addr %s497, 5
      %s499 = smul.addr %s498, 4
      %s500 = scalar_lea.vmem %s0, %s499
      %p501 = pneg %p50
      %p502 = pneg %p47
      %p503 = pneg %p71
      %p504 = pneg %p68
      %p505 = pneg %p92
      %p506 = pneg %p89
      %p507 = pneg %p113
      %p508 = pneg %p110
      %p509 = pneg %p134
      %p510 = pneg %p131
      %p511 = pneg %p155
      %p512 = pneg %p152
      %p513 = pneg %p176
      %p514 = pneg %p173
      %p515 = pneg %p197
      %p516 = pneg %p194
      %p517 = pneg %p218
      %p518 = pneg %p215
      %p519 = pneg %p239
      %p520 = pneg %p236
      %p521 = pneg %p260
      %p522 = pneg %p257
      %p523 = pneg %p281
      %p524 = pneg %p278
      %p525 = pneg %p302
      %p526 = pneg %p299
      %p527 = pneg %p323
      %p528 = pneg %p320
      %p529 = pneg %p344
      %p530 = pneg %p341
      %p531 = pneg %p365
      %p532 = pneg %p362
      %p533 = pneg %p391
      %p534 = pneg %p388
      %p535 = scmp.lt.s32.totalorder %s29, 1
      %s536 = scalar_select %p535, %s29, 1
      %s537 = smul.addr %s536, 30
      %s538 = smul.addr %s537, 8
      %s539 = scalar_lea.vmem %s16, %s538
      %p540 = pneg %p417
      %p541 = pneg %p414
      %p542 = scmp.lt.s32.totalorder %s29, 1
      %s543 = scalar_select %p542, %s29, 1
      %s544 = smul.addr %s543, 20
      %s545 = smul.addr %s544, 8
      %s546 = scalar_lea.vmem %s17, %s545
      %p547 = scmp.lt.s32.totalorder %s29, 1
      %s548 = scalar_select %p547, %s29, 1
      %s549 = smul.addr %s548, 5
      %s550 = smul.addr %s549, 4
      %s551 = scalar_lea.vmem %s0, %s550
      %p552 = scmp.lt.s32.totalorder %s29, 1
      %s553 = scalar_select %p552, %s29, 1
      %s554 = smul.addr %s553, 30
      %s555 = smul.addr %s554, 8
      %s556 = scalar_lea.vmem %s16, %s555
      %p557 = scmp.lt.s32.totalorder %s29, 1
      %s558 = scalar_select %p557, %s29, 1
      %s559 = smul.addr %s558, 20
      %s560 = smul.addr %s559, 8
      %s561 = scalar_lea.vmem %s17, %s560
      %v563 = vld [vmem:[%s1] sm:$0x1f]
      %v564 = vld [vmem:[%s551] sm:$0xff]
      %v565 = vld [vmem:[%s551 + $0x8] sm:$0xff]
      %v566 = vld [vmem:[%s551 + $0x10] sm:$0xf]
      %v569 = vcombine.high %v564, %v564
      %v570 = vcombine.high %v565, %v565
      %573 = vrot.lane.b32.xlu0 %v564, 33
      %v574 = vpop.permute.xlu0 %573
      %575 = vrot.lane.b32.xlu0 %v569, 33
      %v576 = vpop.permute.xlu0 %575
      %577 = vrot.lane.b32.xlu0 %v565, 33
      %v578 = vpop.permute.xlu0 %577
      %579 = vrot.lane.b32.xlu0 %v570, 33
      %v580 = vpop.permute.xlu0 %579
      %581 = vrot.lane.b32.xlu0 %v566, 33
      %v582 = vpop.permute.xlu0 %581
      %v583 = vlaneseq
      %v584 = vand.u32 %v583, 127
      %vm585 = vcmp.lt.s32.totalorder %v584, 33
      %v586 = vsel %vm585, %v580, %v582
      %v587 = vsel %vm585, %v578, %v580
      %v588 = vsel %vm585, %v576, %v578
      %v589 = vsel %vm585, %v574, %v576
      %v590 = vsel %vm585, %v582, %v574
      %v591 = vld [vmem:[%s2] sm:$0xf]
      %v592 = vld [vmem:[%s2 + $0x4] sm:$0xf]
      %v593 = vld [vmem:[%s2 + $0x8] sm:$0xf]
      %v594 = vld [vmem:[%s2 + $0xc] sm:$0xf]
      %v595 = vld [vmem:[%s2 + $0x10] sm:$0xf]
      %v596 = vld [vmem:[%s2 + $0x14] sm:$0xf]
      %v597 = vld [vmem:[%s2 + $0x18] sm:$0xf]
      %v598 = vld [vmem:[%s2 + $0x1c] sm:$0xf]
      %v599 = vpack.c.bf16 %v590, %v590
      %v600 = vpack.c.bf16 %v589, %v589
      %v601 = vpack.c.bf16 %v588, %v588
      %v602 = vpack.c.bf16 %v587, %v587
      %v603 = vpack.c.bf16 %v586, %v586
      %604 = vrot.lane.b32.xlu0 %v564, 32
      %v605 = vpop.permute.xlu0 %604
      %606 = vrot.lane.b32.xlu0 %v569, 32
      %v607 = vpop.permute.xlu0 %606
      %608 = vrot.lane.b32.xlu0 %v565, 32
      %v609 = vpop.permute.xlu0 %608
      %610 = vrot.lane.b32.xlu0 %v570, 32
      %v611 = vpop.permute.xlu0 %610
      %612 = vrot.lane.b32.xlu0 %v566, 32
      %v613 = vpop.permute.xlu0 %612
      %vm614 = vcmp.lt.s32.totalorder %v584, 32
      %v615 = vsel %vm614, %v611, %v613
      %v616 = vsel %vm614, %v609, %v611
      %v617 = vsel %vm614, %v607, %v609
      %v618 = vsel %vm614, %v605, %v607
      %v619 = vsel %vm614, %v613, %v605
      %s620 = scalar_lea.vmem %s2, 32
      %v621 = vld [vmem:[%s620] sm:$0xf]
      %v622 = vld [vmem:[%s620 + $0x4] sm:$0xf]
      %v623 = vld [vmem:[%s620 + $0x8] sm:$0xf]
      %v624 = vld [vmem:[%s620 + $0xc] sm:$0xf]
      %v625 = vld [vmem:[%s620 + $0x10] sm:$0xf]
      %v626 = vld [vmem:[%s620 + $0x14] sm:$0xf]
      %v627 = vld [vmem:[%s620 + $0x18] sm:$0xf]
      %v628 = vld [vmem:[%s620 + $0x1c] sm:$0xf]
      %v629 = vpack.c.bf16 %v619, %v619
      %v630 = vpack.c.bf16 %v618, %v618
      %v631 = vpack.c.bf16 %v617, %v617
      %v632 = vpack.c.bf16 %v616, %v616
      %v633 = vpack.c.bf16 %v615, %v615
      %v642 = vunpack.c.l.b16 %v621
      %v643 = vunpack.c.l.b16 %v622
      %v644 = vunpack.c.l.b16 %v623
      %v645 = vunpack.c.l.b16 %v624
      %v646 = vunpack.c.l.b16 %v625
      %v647 = vunpack.c.l.b16 %v626
      %v648 = vunpack.c.l.b16 %v627
      %v649 = vunpack.c.l.b16 %v628
      %v650 = vpack.c.b16 %v643, %v642
      %v651 = vpack.c.b16 %v645, %v644
      %v652 = vpack.c.b16 %v647, %v646
      %v653 = vpack.c.b16 %v649, %v648
      %vm654 = vcmask 31744
      %v656 = vsel %vm654, %v650, 0
      %v659 = vsel %vm654, %v651, 0
      %v662 = vsel %vm654, %v652, 0
      %v665 = vsel %vm654, %v653, 0
      %vm667 = vcmask 1041408
      %v669 = vsel %vm667, %v629, 0
      %v672 = vsel %vm667, %v630, 0
      %v675 = vsel %vm667, %v631, 0
      %v678 = vsel %vm667, %v632, 0
      %v681 = vsel %vm667, %v633, 0
      %683 = vmatprep.subr.bf16.mxu0 %v672
      %684 = vmatpush1.bf16.msra.mxu0 %v669
      %685 = vmatprep.subr.bf16.mxu0 0
      %686 = vmatpush1.bf16.msra.mxu0 0
      %687 = vmatprep.subr.bf16.mxu0 0
      %688 = vmatpush1.bf16.msra.mxu0 0
      %689 = vmatprep.subr.bf16.mxu0 0
      %690 = vmatpush1.bf16.msra.mxu0 0
      %691 = vmatprep.subr.bf16.mxu0 0
      %692 = vmatpush1.bf16.msra.mxu0 0
      %693 = vmatprep.subr.bf16.mxu0 0
      %694 = vmatpush1.bf16.msra.mxu0 0
      %695 = vmatprep.subr.bf16.mxu0 0
      %696 = vmatpush1.bf16.msra.mxu0 0
      %697 = vmatprep.subr.bf16.mxu0 0
      %698 = vmatpush1.bf16.msra.mxu0 0
      %699 = vmatprep.subr.bf16.mxu0 0
      %700 = vmatpush1.bf16.msra.mxu0 0
      %701 = vmatprep.subr.bf16.mxu0 0
      %702 = vmatpush1.bf16.msra.mxu0 0
      %703 = vmatprep.subr.bf16.mxu0 0
      %704 = vmatpush1.bf16.msra.mxu0 0
      %705 = vmatprep.subr.bf16.mxu0 0
      %706 = vmatpush1.bf16.msra.mxu0 0
      %707 = vmatprep.subr.bf16.mxu0 0
      %708 = vmatpush1.bf16.msra.mxu0 0
      %709 = vmatprep.subr.bf16.mxu0 0
      %710 = vmatpush1.bf16.msra.mxu0 0
      %711 = vmatprep.subr.bf16.mxu0 0
      %712 = vmatpush1.bf16.msra.mxu0 0
      %713 = vmatprep.subr.bf16.mxu0 0
      %714 = vmatpush1.bf16.msra.mxu0 0
      %715 = vmatprep.mubr.bf16.mxu0 0
      %716 = vmatmul.mubr.bf16.gmra.mrb[0].mxu0 %v656
      %v717 = vpop.f32.mrb[0].mxu0
      %v718 = vadd.f32 0.0, %v717
      %v719 = vpop.f32.mrb[0].mxu0
      %v720 = vadd.f32 0.0, %v719
      %v721 = vpop.f32.mrb[0].mxu0
      %v722 = vadd.f32 0.0, %v721
      %v723 = vpop.f32.mrb[0].mxu0
      %v724 = vadd.f32 0.0, %v723
      %725 = vmatprep.mubr.bf16.mxu0 0
      %726 = vmatmul.mubr.bf16.gmra.mrb[0].mxu0 %v659
      %v727 = vpop.f32.mrb[0].mxu0
      %v728 = vadd.f32 0.0, %v727
      %v729 = vpop.f32.mrb[0].mxu0
      %v730 = vadd.f32 0.0, %v729
      %v731 = vpop.f32.mrb[0].mxu0
      %v732 = vadd.f32 0.0, %v731
      %v733 = vpop.f32.mrb[0].mxu0
      %v734 = vadd.f32 0.0, %v733
      %735 = vmatprep.mubr.bf16.mxu0 0
      %736 = vmatmul.mubr.bf16.gmra.mrb[0].mxu0 %v662
      %v737 = vpop.f32.mrb[0].mxu0
      %v738 = vadd.f32 0.0, %v737
      %v739 = vpop.f32.mrb[0].mxu0
      %v740 = vadd.f32 0.0, %v739
      %v741 = vpop.f32.mrb[0].mxu0
      %v742 = vadd.f32 0.0, %v741
      %v743 = vpop.f32.mrb[0].mxu0
      %v744 = vadd.f32 0.0, %v743
      %745 = vmatprep.mubr.bf16.mxu0 0
      %746 = vmatmul.mubr.bf16.gmra.mrb[0].mxu0 %v665
      %v747 = vpop.f32.mrb[0].mxu0
      %v748 = vadd.f32 0.0, %v747
      %v749 = vpop.f32.mrb[0].mxu0
      %v750 = vadd.f32 0.0, %v749
      %v751 = vpop.f32.mrb[0].mxu0
      %v752 = vadd.f32 0.0, %v751
      %v753 = vpop.f32.mrb[0].mxu0
      %v754 = vadd.f32 0.0, %v753
      %755 = vdwg.mxu0
      %756 = vmatprep.subr.bf16.mxu0 %v678
      %757 = vmatpush1.bf16.msra.mxu0 %v675
      %758 = vmatprep.subr.bf16.mxu0 0
      %759 = vmatpush1.bf16.msra.mxu0 0
      %760 = vmatprep.subr.bf16.mxu0 0
      %761 = vmatpush1.bf16.msra.mxu0 0
      %762 = vmatprep.subr.bf16.mxu0 0
      %763 = vmatpush1.bf16.msra.mxu0 0
      %764 = vmatprep.subr.bf16.mxu0 0
      %765 = vmatpush1.bf16.msra.mxu0 0
      %766 = vmatprep.subr.bf16.mxu0 0
      %767 = vmatpush1.bf16.msra.mxu0 0
      %768 = vmatprep.subr.bf16.mxu0 0
      %769 = vmatpush1.bf16.msra.mxu0 0
      %770 = vmatprep.subr.bf16.mxu0 0
      %771 = vmatpush1.bf16.msra.mxu0 0
      %772 = vmatprep.subr.bf16.mxu0 0
      %773 = vmatpush1.bf16.msra.mxu0 0
      %774 = vmatprep.subr.bf16.mxu0 0
      %775 = vmatpush1.bf16.msra.mxu0 0
      %776 = vmatprep.subr.bf16.mxu0 0
      %777 = vmatpush1.bf16.msra.mxu0 0
      %778 = vmatprep.subr.bf16.mxu0 0
      %779 = vmatpush1.bf16.msra.mxu0 0
      %780 = vmatprep.subr.bf16.mxu0 0
      %781 = vmatpush1.bf16.msra.mxu0 0
      %782 = vmatprep.subr.bf16.mxu0 0
      %783 = vmatpush1.bf16.msra.mxu0 0
      %784 = vmatprep.subr.bf16.mxu0 0
      %785 = vmatpush1.bf16.msra.mxu0 0
      %786 = vmatprep.subr.bf16.mxu0 0
      %787 = vmatpush1.bf16.msra.mxu0 0
      %788 = vmatprep.mubr.bf16.mxu0 0
      %789 = vmatmul.mubr.bf16.gmra.mrb[0].mxu0 %v656
      %v790 = vpop.f32.mrb[0].mxu0
      %v791 = vadd.f32 0.0, %v790
      %v792 = vpop.f32.mrb[0].mxu0
      %v793 = vadd.f32 0.0, %v792
      %v794 = vpop.f32.mrb[0].mxu0
      %v795 = vadd.f32 0.0, %v794
      %v796 = vpop.f32.mrb[0].mxu0
      %v797 = vadd.f32 0.0, %v796
      %798 = vmatprep.mubr.bf16.mxu0 0
      %799 = vmatmul.mubr.bf16.gmra.mrb[0].mxu0 %v659
      %v800 = vpop.f32.mrb[0].mxu0
      %v801 = vadd.f32 0.0, %v800
      %v802 = vpop.f32.mrb[0].mxu0
      %v803 = vadd.f32 0.0, %v802
      %v804 = vpop.f32.mrb[0].mxu0
      %v805 = vadd.f32 0.0, %v804
      %v806 = vpop.f32.mrb[0].mxu0
      %v807 = vadd.f32 0.0, %v806
      %808 = vmatprep.mubr.bf16.mxu0 0
      %809 = vmatmul.mubr.bf16.gmra.mrb[0].mxu0 %v662
      %v810 = vpop.f32.mrb[0].mxu0
      %v811 = vadd.f32 0.0, %v810
      %v812 = vpop.f32.mrb[0].mxu0
      %v813 = vadd.f32 0.0, %v812
      %v814 = vpop.f32.mrb[0].mxu0
      %v815 = vadd.f32 0.0, %v814
      %v816 = vpop.f32.mrb[0].mxu0
      %v817 = vadd.f32 0.0, %v816
      %818 = vmatprep.mubr.bf16.mxu0 0
      %819 = vmatmul.mubr.bf16.gmra.mrb[0].mxu0 %v665
      %v820 = vpop.f32.mrb[0].mxu0
      %v821 = vadd.f32 0.0, %v820
      %v822 = vpop.f32.mrb[0].mxu0
      %v823 = vadd.f32 0.0, %v822
      %v824 = vpop.f32.mrb[0].mxu0
      %v825 = vadd.f32 0.0, %v824
      %v826 = vpop.f32.mrb[0].mxu0
      %v827 = vadd.f32 0.0, %v826
      %828 = vdwg.mxu0
      %829 = vmatprep.subr.bf16.mxu0 0
      %830 = vmatpush1.bf16.msra.mxu0 %v681
      %831 = vmatprep.subr.bf16.mxu0 0
      %832 = vmatpush1.bf16.msra.mxu0 0
      %833 = vmatprep.subr.bf16.mxu0 0
      %834 = vmatpush1.bf16.msra.mxu0 0
      %835 = vmatprep.subr.bf16.mxu0 0
      %836 = vmatpush1.bf16.msra.mxu0 0
      %837 = vmatprep.subr.bf16.mxu0 0
      %838 = vmatpush1.bf16.msra.mxu0 0
      %839 = vmatprep.subr.bf16.mxu0 0
      %840 = vmatpush1.bf16.msra.mxu0 0
      %841 = vmatprep.subr.bf16.mxu0 0
      %842 = vmatpush1.bf16.msra.mxu0 0
      %843 = vmatprep.subr.bf16.mxu0 0
      %844 = vmatpush1.bf16.msra.mxu0 0
      %845 = vmatprep.subr.bf16.mxu0 0
      %846 = vmatpush1.bf16.msra.mxu0 0
      %847 = vmatprep.subr.bf16.mxu0 0
      %848 = vmatpush1.bf16.msra.mxu0 0
      %849 = vmatprep.subr.bf16.mxu0 0
      %850 = vmatpush1.bf16.msra.mxu0 0
      %851 = vmatprep.subr.bf16.mxu0 0
      %852 = vmatpush1.bf16.msra.mxu0 0
      %853 = vmatprep.subr.bf16.mxu0 0
      %854 = vmatpush1.bf16.msra.mxu0 0
      %855 = vmatprep.subr.bf16.mxu0 0
      %856 = vmatpush1.bf16.msra.mxu0 0
      %857 = vmatprep.subr.bf16.mxu0 0
      %858 = vmatpush1.bf16.msra.mxu0 0
      %859 = vmatprep.subr.bf16.mxu0 0
      %860 = vmatpush1.bf16.msra.mxu0 0
      %861 = vmatprep.mubr.bf16.mxu0 0
      %862 = vmatmul.mubr.bf16.gmra.mrb[0].mxu0 %v656
      %v863 = vpop.f32.mrb[0].mxu0
      %v864 = vadd.f32 0.0, %v863
      %v865 = vpop.f32.mrb[0].mxu0
      %v866 = vpop.f32.mrb[0].mxu0
      %v867 = vadd.f32 0.0, %v866
      %v868 = vpop.f32.mrb[0].mxu0
      %869 = vmatprep.mubr.bf16.mxu0 0
      %870 = vmatmul.mubr.bf16.gmra.mrb[0].mxu0 %v659
      %v871 = vpop.f32.mrb[0].mxu0
      %v872 = vadd.f32 0.0, %v871
      %v873 = vpop.f32.mrb[0].mxu0
      %v874 = vpop.f32.mrb[0].mxu0
      %v875 = vadd.f32 0.0, %v874
      %v876 = vpop.f32.mrb[0].mxu0
      %877 = vmatprep.mubr.bf16.mxu0 0
      %878 = vmatmul.mubr.bf16.gmra.mrb[0].mxu0 %v662
      %v879 = vpop.f32.mrb[0].mxu0
      %v880 = vadd.f32 0.0, %v879
      %v881 = vpop.f32.mrb[0].mxu0
      %v882 = vpop.f32.mrb[0].mxu0
      %v883 = vadd.f32 0.0, %v882
      %v884 = vpop.f32.mrb[0].mxu0
      %885 = vmatprep.mubr.bf16.mxu0 0
      %886 = vmatmul.mubr.bf16.gmra.mrb[0].mxu0 %v665
      %v887 = vpop.f32.mrb[0].mxu0
      %v888 = vadd.f32 0.0, %v887
      %v889 = vpop.f32.mrb[0].mxu0
      %v890 = vpop.f32.mrb[0].mxu0
      %v891 = vadd.f32 0.0, %v890
      %v892 = vpop.f32.mrb[0].mxu0
      %893 = vdwg.mxu0
      %v902 = vunpack.c.l.b16 %v591
      %v903 = vunpack.c.l.b16 %v592
      %v904 = vunpack.c.l.b16 %v593
      %v905 = vunpack.c.l.b16 %v594
      %v906 = vunpack.c.l.b16 %v595
      %v907 = vunpack.c.l.b16 %v596
      %v908 = vunpack.c.l.b16 %v597
      %v909 = vunpack.c.l.b16 %v598
      %v910 = vpack.c.b16 %v903, %v902
      %v911 = vpack.c.b16 %v905, %v904
      %v912 = vpack.c.b16 %v907, %v906
      %v913 = vpack.c.b16 %v909, %v908
      %v915 = vsel %vm654, %v910, 0
      %v918 = vsel %vm654, %v911, 0
      %v921 = vsel %vm654, %v912, 0
      %v924 = vsel %vm654, %v913, 0
      %v927 = vsel %vm667, %v599, 0
      %v930 = vsel %vm667, %v600, 0
      %v933 = vsel %vm667, %v601, 0
      %v936 = vsel %vm667, %v602, 0
      %v939 = vsel %vm667, %v603, 0
      %941 = vmatprep.subr.bf16.mxu0 %v930
      %942 = vmatpush1.bf16.msra.mxu0 %v927
      %943 = vmatprep.subr.bf16.mxu0 0
      %944 = vmatpush1.bf16.msra.mxu0 0
      %945 = vmatprep.subr.bf16.mxu0 0
      %946 = vmatpush1.bf16.msra.mxu0 0
      %947 = vmatprep.subr.bf16.mxu0 0
      %948 = vmatpush1.bf16.msra.mxu0 0
      %949 = vmatprep.subr.bf16.mxu0 0
      %950 = vmatpush1.bf16.msra.mxu0 0
      %951 = vmatprep.subr.bf16.mxu0 0
      %952 = vmatpush1.bf16.msra.mxu0 0
      %953 = vmatprep.subr.bf16.mxu0 0
      %954 = vmatpush1.bf16.msra.mxu0 0
      %955 = vmatprep.subr.bf16.mxu0 0
      %956 = vmatpush1.bf16.msra.mxu0 0
      %957 = vmatprep.subr.bf16.mxu0 0
      %958 = vmatpush1.bf16.msra.mxu0 0
      %959 = vmatprep.subr.bf16.mxu0 0
      %960 = vmatpush1.bf16.msra.mxu0 0
      %961 = vmatprep.subr.bf16.mxu0 0
      %962 = vmatpush1.bf16.msra.mxu0 0
      %963 = vmatprep.subr.bf16.mxu0 0
      %964 = vmatpush1.bf16.msra.mxu0 0
      %965 = vmatprep.subr.bf16.mxu0 0
      %966 = vmatpush1.bf16.msra.mxu0 0
      %967 = vmatprep.subr.bf16.mxu0 0
      %968 = vmatpush1.bf16.msra.mxu0 0
      %969 = vmatprep.subr.bf16.mxu0 0
      %970 = vmatpush1.bf16.msra.mxu0 0
      %971 = vmatprep.subr.bf16.mxu0 0
      %972 = vmatpush1.bf16.msra.mxu0 0
      %973 = vmatprep.mubr.bf16.mxu0 0
      %974 = vmatmul.mubr.bf16.gmra.mrb[0].mxu0 %v915
      %v975 = vpop.f32.mrb[0].mxu0
      %v976 = vadd.f32 %v718, %v975
      %v977 = vpop.f32.mrb[0].mxu0
      %v978 = vadd.f32 %v720, %v977
      %v979 = vpop.f32.mrb[0].mxu0
      %v980 = vadd.f32 %v722, %v979
      %v981 = vpop.f32.mrb[0].mxu0
      %v982 = vadd.f32 %v724, %v981
      %983 = vmatprep.mubr.bf16.mxu0 0
      %984 = vmatmul.mubr.bf16.gmra.mrb[0].mxu0 %v918
      %v985 = vpop.f32.mrb[0].mxu0
      %v986 = vadd.f32 %v728, %v985
      %v987 = vpop.f32.mrb[0].mxu0
      %v988 = vadd.f32 %v730, %v987
      %v989 = vpop.f32.mrb[0].mxu0
      %v990 = vadd.f32 %v732, %v989
      %v991 = vpop.f32.mrb[0].mxu0
      %v992 = vadd.f32 %v734, %v991
      %993 = vmatprep.mubr.bf16.mxu0 0
      %994 = vmatmul.mubr.bf16.gmra.mrb[0].mxu0 %v921
      %v995 = vpop.f32.mrb[0].mxu0
      %v996 = vadd.f32 %v738, %v995
      %v997 = vpop.f32.mrb[0].mxu0
      %v998 = vadd.f32 %v740, %v997
      %v999 = vpop.f32.mrb[0].mxu0
      %v1000 = vadd.f32 %v742, %v999
      %v1001 = vpop.f32.mrb[0].mxu0
      %v1002 = vadd.f32 %v744, %v1001
      %1003 = vmatprep.mubr.bf16.mxu0 0
      %1004 = vmatmul.mubr.bf16.gmra.mrb[0].mxu0 %v924
      %v1005 = vpop.f32.mrb[0].mxu0
      %v1006 = vadd.f32 %v748, %v1005
      %v1007 = vpop.f32.mrb[0].mxu0
      %v1008 = vadd.f32 %v750, %v1007
      %v1009 = vpop.f32.mrb[0].mxu0
      %v1010 = vadd.f32 %v752, %v1009
      %v1011 = vpop.f32.mrb[0].mxu0
      %v1012 = vadd.f32 %v754, %v1011
      %1013 = vdwg.mxu0
      %1014 = vmatprep.subr.bf16.mxu0 %v936
      %1015 = vmatpush1.bf16.msra.mxu0 %v933
      %1016 = vmatprep.subr.bf16.mxu0 0
      %1017 = vmatpush1.bf16.msra.mxu0 0
      %1018 = vmatprep.subr.bf16.mxu0 0
      %1019 = vmatpush1.bf16.msra.mxu0 0
      %1020 = vmatprep.subr.bf16.mxu0 0
      %1021 = vmatpush1.bf16.msra.mxu0 0
      %1022 = vmatprep.subr.bf16.mxu0 0
      %1023 = vmatpush1.bf16.msra.mxu0 0
      %1024 = vmatprep.subr.bf16.mxu0 0
      %1025 = vmatpush1.bf16.msra.mxu0 0
      %1026 = vmatprep.subr.bf16.mxu0 0
      %1027 = vmatpush1.bf16.msra.mxu0 0
      %1028 = vmatprep.subr.bf16.mxu0 0
      %1029 = vmatpush1.bf16.msra.mxu0 0
      %1030 = vmatprep.subr.bf16.mxu0 0
      %1031 = vmatpush1.bf16.msra.mxu0 0
      %1032 = vmatprep.subr.bf16.mxu0 0
      %1033 = vmatpush1.bf16.msra.mxu0 0
      %1034 = vmatprep.subr.bf16.mxu0 0
      %1035 = vmatpush1.bf16.msra.mxu0 0
      %1036 = vmatprep.subr.bf16.mxu0 0
      %1037 = vmatpush1.bf16.msra.mxu0 0
      %1038 = vmatprep.subr.bf16.mxu0 0
      %1039 = vmatpush1.bf16.msra.mxu0 0
      %1040 = vmatprep.subr.bf16.mxu0 0
      %1041 = vmatpush1.bf16.msra.mxu0 0
      %1042 = vmatprep.subr.bf16.mxu0 0
      %1043 = vmatpush1.bf16.msra.mxu0 0
      %1044 = vmatprep.subr.bf16.mxu0 0
      %1045 = vmatpush1.bf16.msra.mxu0 0
      %1046 = vmatprep.mubr.bf16.mxu0 0
      %1047 = vmatmul.mubr.bf16.gmra.mrb[0].mxu0 %v915
      %v1048 = vpop.f32.mrb[0].mxu0
      %v1049 = vadd.f32 %v791, %v1048
      %v1050 = vpop.f32.mrb[0].mxu0
      %v1051 = vadd.f32 %v793, %v1050
      %v1052 = vpop.f32.mrb[0].mxu0
      %v1053 = vadd.f32 %v795, %v1052
      %v1054 = vpop.f32.mrb[0].mxu0
      %v1055 = vadd.f32 %v797, %v1054
      %1056 = vmatprep.mubr.bf16.mxu0 0
      %1057 = vmatmul.mubr.bf16.gmra.mrb[0].mxu0 %v918
      %v1058 = vpop.f32.mrb[0].mxu0
      %v1059 = vadd.f32 %v801, %v1058
      %v1060 = vpop.f32.mrb[0].mxu0
      %v1061 = vadd.f32 %v803, %v1060
      %v1062 = vpop.f32.mrb[0].mxu0
      %v1063 = vadd.f32 %v805, %v1062
      %v1064 = vpop.f32.mrb[0].mxu0
      %v1065 = vadd.f32 %v807, %v1064
      %1066 = vmatprep.mubr.bf16.mxu0 0
      %1067 = vmatmul.mubr.bf16.gmra.mrb[0].mxu0 %v921
      %v1068 = vpop.f32.mrb[0].mxu0
      %v1069 = vadd.f32 %v811, %v1068
      %v1070 = vpop.f32.mrb[0].mxu0
      %v1071 = vadd.f32 %v813, %v1070
      %v1072 = vpop.f32.mrb[0].mxu0
      %v1073 = vadd.f32 %v815, %v1072
      %v1074 = vpop.f32.mrb[0].mxu0
      %v1075 = vadd.f32 %v817, %v1074
      %1076 = vmatprep.mubr.bf16.mxu0 0
      %1077 = vmatmul.mubr.bf16.gmra.mrb[0].mxu0 %v924
      %v1078 = vpop.f32.mrb[0].mxu0
      %v1079 = vadd.f32 %v821, %v1078
      %v1080 = vpop.f32.mrb[0].mxu0
      %v1081 = vadd.f32 %v823, %v1080
      %v1082 = vpop.f32.mrb[0].mxu0
      %v1083 = vadd.f32 %v825, %v1082
      %v1084 = vpop.f32.mrb[0].mxu0
      %v1085 = vadd.f32 %v827, %v1084
      %1086 = vdwg.mxu0
      %1087 = vmatprep.subr.bf16.mxu0 0
      %1088 = vmatpush1.bf16.msra.mxu0 %v939
      %1089 = vmatprep.subr.bf16.mxu0 0
      %1090 = vmatpush1.bf16.msra.mxu0 0
      %1091 = vmatprep.subr.bf16.mxu0 0
      %1092 = vmatpush1.bf16.msra.mxu0 0
      %1093 = vmatprep.subr.bf16.mxu0 0
      %1094 = vmatpush1.bf16.msra.mxu0 0
      %1095 = vmatprep.subr.bf16.mxu0 0
      %1096 = vmatpush1.bf16.msra.mxu0 0
      %1097 = vmatprep.subr.bf16.mxu0 0
      %1098 = vmatpush1.bf16.msra.mxu0 0
      %1099 = vmatprep.subr.bf16.mxu0 0
      %1100 = vmatpush1.bf16.msra.mxu0 0
      %1101 = vmatprep.subr.bf16.mxu0 0
      %1102 = vmatpush1.bf16.msra.mxu0 0
      %1103 = vmatprep.subr.bf16.mxu0 0
      %1104 = vmatpush1.bf16.msra.mxu0 0
      %1105 = vmatprep.subr.bf16.mxu0 0
      %1106 = vmatpush1.bf16.msra.mxu0 0
      %1107 = vmatprep.subr.bf16.mxu0 0
      %1108 = vmatpush1.bf16.msra.mxu0 0
      %1109 = vmatprep.subr.bf16.mxu0 0
      %1110 = vmatpush1.bf16.msra.mxu0 0
      %1111 = vmatprep.subr.bf16.mxu0 0
      %1112 = vmatpush1.bf16.msra.mxu0 0
      %1113 = vmatprep.subr.bf16.mxu0 0
      %1114 = vmatpush1.bf16.msra.mxu0 0
      %1115 = vmatprep.subr.bf16.mxu0 0
      %1116 = vmatpush1.bf16.msra.mxu0 0
      %1117 = vmatprep.subr.bf16.mxu0 0
      %1118 = vmatpush1.bf16.msra.mxu0 0
      %1119 = vmatprep.mubr.bf16.mxu0 0
      %1120 = vmatmul.mubr.bf16.gmra.mrb[0].mxu0 %v915
      %v1121 = vpop.f32.mrb[0].mxu0
      %v1122 = vadd.f32 %v864, %v1121
      %v1123 = vpop.f32.mrb[0].mxu0
      %v1124 = vpop.f32.mrb[0].mxu0
      %v1125 = vadd.f32 %v867, %v1124
      %v1126 = vpop.f32.mrb[0].mxu0
      %1127 = vmatprep.mubr.bf16.mxu0 0
      %1128 = vmatmul.mubr.bf16.gmra.mrb[0].mxu0 %v918
      %v1129 = vpop.f32.mrb[0].mxu0
      %v1130 = vadd.f32 %v872, %v1129
      %v1131 = vpop.f32.mrb[0].mxu0
      %v1132 = vpop.f32.mrb[0].mxu0
      %v1133 = vadd.f32 %v875, %v1132
      %v1134 = vpop.f32.mrb[0].mxu0
      %1135 = vmatprep.mubr.bf16.mxu0 0
      %1136 = vmatmul.mubr.bf16.gmra.mrb[0].mxu0 %v921
      %v1137 = vpop.f32.mrb[0].mxu0
      %v1138 = vadd.f32 %v880, %v1137
      %v1139 = vpop.f32.mrb[0].mxu0
      %v1140 = vpop.f32.mrb[0].mxu0
      %v1141 = vadd.f32 %v883, %v1140
      %v1142 = vpop.f32.mrb[0].mxu0
      %1143 = vmatprep.mubr.bf16.mxu0 0
      %1144 = vmatmul.mubr.bf16.gmra.mrb[0].mxu0 %v924
      %v1145 = vpop.f32.mrb[0].mxu0
      %v1146 = vadd.f32 %v888, %v1145
      %v1147 = vpop.f32.mrb[0].mxu0
      %v1148 = vpop.f32.mrb[0].mxu0
      %v1149 = vadd.f32 %v891, %v1148
      %v1150 = vpop.f32.mrb[0].mxu0
      %1151 = vdwg.mxu0
      %1152 = vrot.lane.b32.xlu0 %v564, 31
      %v1153 = vpop.permute.xlu0 %1152
      %1154 = vrot.lane.b32.xlu0 %v569, 31
      %v1155 = vpop.permute.xlu0 %1154
      %1156 = vrot.lane.b32.xlu0 %v565, 31
      %v1157 = vpop.permute.xlu0 %1156
      %1158 = vrot.lane.b32.xlu0 %v570, 31
      %v1159 = vpop.permute.xlu0 %1158
      %1160 = vrot.lane.b32.xlu0 %v566, 31
      %v1161 = vpop.permute.xlu0 %1160
      %vm1162 = vcmp.lt.s32.totalorder %v584, 31
      %v1163 = vsel %vm1162, %v1159, %v1161
      %v1164 = vsel %vm1162, %v1157, %v1159
      %v1165 = vsel %vm1162, %v1155, %v1157
      %v1166 = vsel %vm1162, %v1153, %v1155
      %v1167 = vsel %vm1162, %v1161, %v1153
      %s1168 = scalar_lea.vmem %s2, 64
      %v1169 = vld [vmem:[%s1168] sm:$0xf]
      %v1170 = vld [vmem:[%s1168 + $0x4] sm:$0xf]
      %v1171 = vld [vmem:[%s1168 + $0x8] sm:$0xf]
      %v1172 = vld [vmem:[%s1168 + $0xc] sm:$0xf]
      %v1173 = vld [vmem:[%s1168 + $0x10] sm:$0xf]
      %v1174 = vld [vmem:[%s1168 + $0x14] sm:$0xf]
      %v1175 = vld [vmem:[%s1168 + $0x18] sm:$0xf]
      %v1176 = vld [vmem:[%s1168 + $0x1c] sm:$0xf]
      %v1177 = vpack.c.bf16 %v1167, %v1167
      %v1178 = vpack.c.bf16 %v1166, %v1166
      %v1179 = vpack.c.bf16 %v1165, %v1165
      %v1180 = vpack.c.bf16 %v1164, %v1164
      %v1181 = vpack.c.bf16 %v1163, %v1163
      %v1190 = vunpack.c.l.b16 %v1169
      %v1191 = vunpack.c.l.b16 %v1170
      %v1192 = vunpack.c.l.b16 %v1171
      %v1193 = vunpack.c.l.b16 %v1172
      %v1194 = vunpack.c.l.b16 %v1173
      %v1195 = vunpack.c.l.b16 %v1174
      %v1196 = vunpack.c.l.b16 %v1175
      %v1197 = vunpack.c.l.b16 %v1176
      %v1198 = vpack.c.b16 %v1191, %v1190
      %v1199 = vpack.c.b16 %v1193, %v1192
      %v1200 = vpack.c.b16 %v1195, %v1194
      %v1201 = vpack.c.b16 %v1197, %v1196
      %v1203 = vsel %vm654, %v1198, 0
      %v1206 = vsel %vm654, %v1199, 0
      %v1209 = vsel %vm654, %v1200, 0
      %v1212 = vsel %vm654, %v1201, 0
      %v1215 = vsel %vm667, %v1177, 0
      %v1218 = vsel %vm667, %v1178, 0
      %v1221 = vsel %vm667, %v1179, 0
      %v1224 = vsel %vm667, %v1180, 0
      %v1227 = vsel %vm667, %v1181, 0
      %1229 = vmatprep.subr.bf16.mxu0 %v1218
      %1230 = vmatpush1.bf16.msra.mxu0 %v1215
      %1231 = vmatprep.subr.bf16.mxu0 0
      %1232 = vmatpush1.bf16.msra.mxu0 0
      %1233 = vmatprep.subr.bf16.mxu0 0
      %1234 = vmatpush1.bf16.msra.mxu0 0
      %1235 = vmatprep.subr.bf16.mxu0 0
      %1236 = vmatpush1.bf16.msra.mxu0 0
      %1237 = vmatprep.subr.bf16.mxu0 0
      %1238 = vmatpush1.bf16.msra.mxu0 0
      %1239 = vmatprep.subr.bf16.mxu0 0
      %1240 = vmatpush1.bf16.msra.mxu0 0
      %1241 = vmatprep.subr.bf16.mxu0 0
      %1242 = vmatpush1.bf16.msra.mxu0 0
      %1243 = vmatprep.subr.bf16.mxu0 0
      %1244 = vmatpush1.bf16.msra.mxu0 0
      %1245 = vmatprep.subr.bf16.mxu0 0
      %1246 = vmatpush1.bf16.msra.mxu0 0
      %1247 = vmatprep.subr.bf16.mxu0 0
      %1248 = vmatpush1.bf16.msra.mxu0 0
      %1249 = vmatprep.subr.bf16.mxu0 0
      %1250 = vmatpush1.bf16.msra.mxu0 0
      %1251 = vmatprep.subr.bf16.mxu0 0
      %1252 = vmatpush1.bf16.msra.mxu0 0
      %1253 = vmatprep.subr.bf16.mxu0 0
      %1254 = vmatpush1.bf16.msra.mxu0 0
      %1255 = vmatprep.subr.bf16.mxu0 0
      %1256 = vmatpush1.bf16.msra.mxu0 0
      %1257 = vmatprep.subr.bf16.mxu0 0
      %1258 = vmatpush1.bf16.msra.mxu0 0
      %1259 = vmatprep.subr.bf16.mxu0 0
      %1260 = vmatpush1.bf16.msra.mxu0 0
      %1261 = vmatprep.mubr.bf16.mxu0 0
      %1262 = vmatmul.mubr.bf16.gmra.mrb[0].mxu0 %v1203
      %v1263 = vpop.f32.mrb[0].mxu0
      %v1264 = vadd.f32 0.0, %v1263
      %v1265 = vpop.f32.mrb[0].mxu0
      %v1266 = vadd.f32 0.0, %v1265
      %v1267 = vpop.f32.mrb[0].mxu0
      %v1268 = vadd.f32 0.0, %v1267
      %v1269 = vpop.f32.mrb[0].mxu0
      %v1270 = vadd.f32 0.0, %v1269
      %1271 = vmatprep.mubr.bf16.mxu0 0
      %1272 = vmatmul.mubr.bf16.gmra.mrb[0].mxu0 %v1206
      %v1273 = vpop.f32.mrb[0].mxu0
      %v1274 = vadd.f32 0.0, %v1273
      %v1275 = vpop.f32.mrb[0].mxu0
      %v1276 = vadd.f32 0.0, %v1275
      %v1277 = vpop.f32.mrb[0].mxu0
      %v1278 = vadd.f32 0.0, %v1277
      %v1279 = vpop.f32.mrb[0].mxu0
      %v1280 = vadd.f32 0.0, %v1279
      %1281 = vmatprep.mubr.bf16.mxu0 0
      %1282 = vmatmul.mubr.bf16.gmra.mrb[0].mxu0 %v1209
      %v1283 = vpop.f32.mrb[0].mxu0
      %v1284 = vadd.f32 0.0, %v1283
      %v1285 = vpop.f32.mrb[0].mxu0
      %v1286 = vadd.f32 0.0, %v1285
      %v1287 = vpop.f32.mrb[0].mxu0
      %v1288 = vadd.f32 0.0, %v1287
      %v1289 = vpop.f32.mrb[0].mxu0
      %v1290 = vadd.f32 0.0, %v1289
      %1291 = vmatprep.mubr.bf16.mxu0 0
      %1292 = vmatmul.mubr.bf16.gmra.mrb[0].mxu0 %v1212
      %v1293 = vpop.f32.mrb[0].mxu0
      %v1294 = vadd.f32 0.0, %v1293
      %v1295 = vpop.f32.mrb[0].mxu0
      %v1296 = vadd.f32 0.0, %v1295
      %v1297 = vpop.f32.mrb[0].mxu0
      %v1298 = vadd.f32 0.0, %v1297
      %v1299 = vpop.f32.mrb[0].mxu0
      %v1300 = vadd.f32 0.0, %v1299
      %1301 = vdwg.mxu0
      %1302 = vmatprep.subr.bf16.mxu0 %v1224
      %1303 = vmatpush1.bf16.msra.mxu0 %v1221
      %1304 = vmatprep.subr.bf16.mxu0 0
      %1305 = vmatpush1.bf16.msra.mxu0 0
      %1306 = vmatprep.subr.bf16.mxu0 0
      %1307 = vmatpush1.bf16.msra.mxu0 0
      %1308 = vmatprep.subr.bf16.mxu0 0
      %1309 = vmatpush1.bf16.msra.mxu0 0
      %1310 = vmatprep.subr.bf16.mxu0 0
      %1311 = vmatpush1.bf16.msra.mxu0 0
      %1312 = vmatprep.subr.bf16.mxu0 0
      %1313 = vmatpush1.bf16.msra.mxu0 0
      %1314 = vmatprep.subr.bf16.mxu0 0
      %1315 = vmatpush1.bf16.msra.mxu0 0
      %1316 = vmatprep.subr.bf16.mxu0 0
      %1317 = vmatpush1.bf16.msra.mxu0 0
      %1318 = vmatprep.subr.bf16.mxu0 0
      %1319 = vmatpush1.bf16.msra.mxu0 0
      %1320 = vmatprep.subr.bf16.mxu0 0
      %1321 = vmatpush1.bf16.msra.mxu0 0
      %1322 = vmatprep.subr.bf16.mxu0 0
      %1323 = vmatpush1.bf16.msra.mxu0 0
      %1324 = vmatprep.subr.bf16.mxu0 0
      %1325 = vmatpush1.bf16.msra.mxu0 0
      %1326 = vmatprep.subr.bf16.mxu0 0
      %1327 = vmatpush1.bf16.msra.mxu0 0
      %1328 = vmatprep.subr.bf16.mxu0 0
      %1329 = vmatpush1.bf16.msra.mxu0 0
      %1330 = vmatprep.subr.bf16.mxu0 0
      %1331 = vmatpush1.bf16.msra.mxu0 0
      %1332 = vmatprep.subr.bf16.mxu0 0
      %1333 = vmatpush1.bf16.msra.mxu0 0
      %1334 = vmatprep.mubr.bf16.mxu0 0
      %1335 = vmatmul.mubr.bf16.gmra.mrb[0].mxu0 %v1203
      %v1336 = vpop.f32.mrb[0].mxu0
      %v1337 = vadd.f32 0.0, %v1336
      %v1338 = vpop.f32.mrb[0].mxu0
      %v1339 = vadd.f32 0.0, %v1338
      %v1340 = vpop.f32.mrb[0].mxu0
      %v1341 = vadd.f32 0.0, %v1340
      %v1342 = vpop.f32.mrb[0].mxu0
      %v1343 = vadd.f32 0.0, %v1342
      %1344 = vmatprep.mubr.bf16.mxu0 0
      %1345 = vmatmul.mubr.bf16.gmra.mrb[0].mxu0 %v1206
      %v1346 = vpop.f32.mrb[0].mxu0
      %v1347 = vadd.f32 0.0, %v1346
      %v1348 = vpop.f32.mrb[0].mxu0
      %v1349 = vadd.f32 0.0, %v1348
      %v1350 = vpop.f32.mrb[0].mxu0
      %v1351 = vadd.f32 0.0, %v1350
      %v1352 = vpop.f32.mrb[0].mxu0
      %v1353 = vadd.f32 0.0, %v1352
      %1354 = vmatprep.mubr.bf16.mxu0 0
      %1355 = vmatmul.mubr.bf16.gmra.mrb[0].mxu0 %v1209
      %v1356 = vpop.f32.mrb[0].mxu0
      %v1357 = vadd.f32 0.0, %v1356
      %v1358 = vpop.f32.mrb[0].mxu0
      %v1359 = vadd.f32 0.0, %v1358
      %v1360 = vpop.f32.mrb[0].mxu0
      %v1361 = vadd.f32 0.0, %v1360
      %v1362 = vpop.f32.mrb[0].mxu0
      %v1363 = vadd.f32 0.0, %v1362
      %1364 = vmatprep.mubr.bf16.mxu0 0
      %1365 = vmatmul.mubr.bf16.gmra.mrb[0].mxu0 %v1212
      %v1366 = vpop.f32.mrb[0].mxu0
      %v1367 = vadd.f32 0.0, %v1366
      %v1368 = vpop.f32.mrb[0].mxu0
      %v1369 = vadd.f32 0.0, %v1368
      %v1370 = vpop.f32.mrb[0].mxu0
      %v1371 = vadd.f32 0.0, %v1370
      %v1372 = vpop.f32.mrb[0].mxu0
      %v1373 = vadd.f32 0.0, %v1372
      %1374 = vdwg.mxu0
      %1375 = vmatprep.subr.bf16.mxu0 0
      %1376 = vmatpush1.bf16.msra.mxu0 %v1227
      %1377 = vmatprep.subr.bf16.mxu0 0
      %1378 = vmatpush1.bf16.msra.mxu0 0
      %1379 = vmatprep.subr.bf16.mxu0 0
      %1380 = vmatpush1.bf16.msra.mxu0 0
      %1381 = vmatprep.subr.bf16.mxu0 0
      %1382 = vmatpush1.bf16.msra.mxu0 0
      %1383 = vmatprep.subr.bf16.mxu0 0
      %1384 = vmatpush1.bf16.msra.mxu0 0
      %1385 = vmatprep.subr.bf16.mxu0 0
      %1386 = vmatpush1.bf16.msra.mxu0 0
      %1387 = vmatprep.subr.bf16.mxu0 0
      %1388 = vmatpush1.bf16.msra.mxu0 0
      %1389 = vmatprep.subr.bf16.mxu0 0
      %1390 = vmatpush1.bf16.msra.mxu0 0
      %1391 = vmatprep.subr.bf16.mxu0 0
      %1392 = vmatpush1.bf16.msra.mxu0 0
      %1393 = vmatprep.subr.bf16.mxu0 0
      %1394 = vmatpush1.bf16.msra.mxu0 0
      %1395 = vmatprep.subr.bf16.mxu0 0
      %1396 = vmatpush1.bf16.msra.mxu0 0
      %1397 = vmatprep.subr.bf16.mxu0 0
      %1398 = vmatpush1.bf16.msra.mxu0 0
      %1399 = vmatprep.subr.bf16.mxu0 0
      %1400 = vmatpush1.bf16.msra.mxu0 0
      %1401 = vmatprep.subr.bf16.mxu0 0
      %1402 = vmatpush1.bf16.msra.mxu0 0
      %1403 = vmatprep.subr.bf16.mxu0 0
      %1404 = vmatpush1.bf16.msra.mxu0 0
      %1405 = vmatprep.subr.bf16.mxu0 0
      %1406 = vmatpush1.bf16.msra.mxu0 0
      %1407 = vmatprep.mubr.bf16.mxu0 0
      %1408 = vmatmul.mubr.bf16.gmra.mrb[0].mxu0 %v1203
      %v1409 = vpop.f32.mrb[0].mxu0
      %v1410 = vadd.f32 0.0, %v1409
      %v1411 = vpop.f32.mrb[0].mxu0
      %v1412 = vpop.f32.mrb[0].mxu0
      %v1413 = vadd.f32 0.0, %v1412
      %v1414 = vpop.f32.mrb[0].mxu0
      %1415 = vmatprep.mubr.bf16.mxu0 0
      %1416 = vmatmul.mubr.bf16.gmra.mrb[0].mxu0 %v1206
      %v1417 = vpop.f32.mrb[0].mxu0
      %v1418 = vadd.f32 0.0, %v1417
      %v1419 = vpop.f32.mrb[0].mxu0
      %v1420 = vpop.f32.mrb[0].mxu0
      %v1421 = vadd.f32 0.0, %v1420
      %v1422 = vpop.f32.mrb[0].mxu0
      %1423 = vmatprep.mubr.bf16.mxu0 0
      %1424 = vmatmul.mubr.bf16.gmra.mrb[0].mxu0 %v1209
      %v1425 = vpop.f32.mrb[0].mxu0
      %v1426 = vadd.f32 0.0, %v1425
      %v1427 = vpop.f32.mrb[0].mxu0
      %v1428 = vpop.f32.mrb[0].mxu0
      %v1429 = vadd.f32 0.0, %v1428
      %v1430 = vpop.f32.mrb[0].mxu0
      %1431 = vmatprep.mubr.bf16.mxu0 0
      %1432 = vmatmul.mubr.bf16.gmra.mrb[0].mxu0 %v1212
      %v1433 = vpop.f32.mrb[0].mxu0
      %v1434 = vadd.f32 0.0, %v1433
      %v1435 = vpop.f32.mrb[0].mxu0
      %v1436 = vpop.f32.mrb[0].mxu0
      %v1437 = vadd.f32 0.0, %v1436
      %v1438 = vpop.f32.mrb[0].mxu0
      %1439 = vdwg.mxu0
      %v1440 = vadd.f32 %v976, %v1264
      %v1441 = vadd.f32 %v978, %v1266
      %v1442 = vadd.f32 %v1049, %v1337
      %v1443 = vadd.f32 %v1051, %v1339
      %v1444 = vadd.f32 %v1122, %v1410
      %v1445 = vadd.f32 %v980, %v1268
      %v1446 = vadd.f32 %v982, %v1270
      %v1447 = vadd.f32 %v1053, %v1341
      %v1448 = vadd.f32 %v1055, %v1343
      %v1449 = vadd.f32 %v1125, %v1413
      %v1450 = vadd.f32 %v986, %v1274
      %v1451 = vadd.f32 %v988, %v1276
      %v1452 = vadd.f32 %v1059, %v1347
      %v1453 = vadd.f32 %v1061, %v1349
      %v1454 = vadd.f32 %v1130, %v1418
      %v1455 = vadd.f32 %v990, %v1278
      %v1456 = vadd.f32 %v992, %v1280
      %v1457 = vadd.f32 %v1063, %v1351
      %v1458 = vadd.f32 %v1065, %v1353
      %v1459 = vadd.f32 %v1133, %v1421
      %v1460 = vadd.f32 %v996, %v1284
      %v1461 = vadd.f32 %v998, %v1286
      %v1462 = vadd.f32 %v1069, %v1357
      %v1463 = vadd.f32 %v1071, %v1359
      %v1464 = vadd.f32 %v1138, %v1426
      %v1465 = vadd.f32 %v1000, %v1288
      %v1466 = vadd.f32 %v1002, %v1290
      %v1467 = vadd.f32 %v1073, %v1361
      %v1468 = vadd.f32 %v1075, %v1363
      %v1469 = vadd.f32 %v1141, %v1429
      %v1470 = vadd.f32 %v1006, %v1294
      %v1471 = vadd.f32 %v1008, %v1296
      %v1472 = vadd.f32 %v1079, %v1367
      %v1473 = vadd.f32 %v1081, %v1369
      %v1474 = vadd.f32 %v1146, %v1434
      %v1475 = vadd.f32 %v1010, %v1298
      %v1476 = vadd.f32 %v1012, %v1300
      %v1477 = vadd.f32 %v1083, %v1371
      %v1478 = vadd.f32 %v1085, %v1373
      %v1479 = vadd.f32 %v1149, %v1437
      %1480 = vrot.lane.b32.xlu0 %v564, 1
      %v1481 = vpop.permute.xlu0 %1480
      %1482 = vrot.lane.b32.xlu0 %v569, 1
      %v1483 = vpop.permute.xlu0 %1482
      %1484 = vrot.lane.b32.xlu0 %v565, 1
      %v1485 = vpop.permute.xlu0 %1484
      %1486 = vrot.lane.b32.xlu0 %v570, 1
      %v1487 = vpop.permute.xlu0 %1486
      %1488 = vrot.lane.b32.xlu0 %v566, 1
      %v1489 = vpop.permute.xlu0 %1488
      %vm1490 = vcmp.lt.s32.totalorder %v584, 1
      %v1491 = vsel %vm1490, %v1487, %v1489
      %v1492 = vsel %vm1490, %v1485, %v1487
      %v1493 = vsel %vm1490, %v1483, %v1485
      %v1494 = vsel %vm1490, %v1481, %v1483
      %v1495 = vsel %vm1490, %v1489, %v1481
      %s1496 = scalar_lea.vmem %s2, 96
      %v1497 = vld [vmem:[%s1496] sm:$0xf]
      %v1498 = vld [vmem:[%s1496 + $0x4] sm:$0xf]
      %v1499 = vld [vmem:[%s1496 + $0x8] sm:$0xf]
      %v1500 = vld [vmem:[%s1496 + $0xc] sm:$0xf]
      %v1501 = vld [vmem:[%s1496 + $0x10] sm:$0xf]
      %v1502 = vld [vmem:[%s1496 + $0x14] sm:$0xf]
      %v1503 = vld [vmem:[%s1496 + $0x18] sm:$0xf]
      %v1504 = vld [vmem:[%s1496 + $0x1c] sm:$0xf]
      %v1505 = vpack.c.bf16 %v1495, %v1495
      %v1506 = vpack.c.bf16 %v1494, %v1494
      %v1507 = vpack.c.bf16 %v1493, %v1493
      %v1508 = vpack.c.bf16 %v1492, %v1492
      %v1509 = vpack.c.bf16 %v1491, %v1491
      %v1518 = vunpack.c.l.b16 %v1497
      %v1519 = vunpack.c.l.b16 %v1498
      %v1520 = vunpack.c.l.b16 %v1499
      %v1521 = vunpack.c.l.b16 %v1500
      %v1522 = vunpack.c.l.b16 %v1501
      %v1523 = vunpack.c.l.b16 %v1502
      %v1524 = vunpack.c.l.b16 %v1503
      %v1525 = vunpack.c.l.b16 %v1504
      %v1526 = vpack.c.b16 %v1519, %v1518
      %v1527 = vpack.c.b16 %v1521, %v1520
      %v1528 = vpack.c.b16 %v1523, %v1522
      %v1529 = vpack.c.b16 %v1525, %v1524
      %v1531 = vsel %vm654, %v1526, 0
      %v1534 = vsel %vm654, %v1527, 0
      %v1537 = vsel %vm654, %v1528, 0
      %v1540 = vsel %vm654, %v1529, 0
      %v1543 = vsel %vm667, %v1505, 0
      %v1546 = vsel %vm667, %v1506, 0
      %v1549 = vsel %vm667, %v1507, 0
      %v1552 = vsel %vm667, %v1508, 0
      %v1555 = vsel %vm667, %v1509, 0
      %1557 = vmatprep.subr.bf16.mxu0 %v1546
      %1558 = vmatpush1.bf16.msra.mxu0 %v1543
      %1559 = vmatprep.subr.bf16.mxu0 0
      %1560 = vmatpush1.bf16.msra.mxu0 0
      %1561 = vmatprep.subr.bf16.mxu0 0
      %1562 = vmatpush1.bf16.msra.mxu0 0
      %1563 = vmatprep.subr.bf16.mxu0 0
      %1564 = vmatpush1.bf16.msra.mxu0 0
      %1565 = vmatprep.subr.bf16.mxu0 0
      %1566 = vmatpush1.bf16.msra.mxu0 0
      %1567 = vmatprep.subr.bf16.mxu0 0
      %1568 = vmatpush1.bf16.msra.mxu0 0
      %1569 = vmatprep.subr.bf16.mxu0 0
      %1570 = vmatpush1.bf16.msra.mxu0 0
      %1571 = vmatprep.subr.bf16.mxu0 0
      %1572 = vmatpush1.bf16.msra.mxu0 0
      %1573 = vmatprep.subr.bf16.mxu0 0
      %1574 = vmatpush1.bf16.msra.mxu0 0
      %1575 = vmatprep.subr.bf16.mxu0 0
      %1576 = vmatpush1.bf16.msra.mxu0 0
      %1577 = vmatprep.subr.bf16.mxu0 0
      %1578 = vmatpush1.bf16.msra.mxu0 0
      %1579 = vmatprep.subr.bf16.mxu0 0
      %1580 = vmatpush1.bf16.msra.mxu0 0
      %1581 = vmatprep.subr.bf16.mxu0 0
      %1582 = vmatpush1.bf16.msra.mxu0 0
      %1583 = vmatprep.subr.bf16.mxu0 0
      %1584 = vmatpush1.bf16.msra.mxu0 0
      %1585 = vmatprep.subr.bf16.mxu0 0
      %1586 = vmatpush1.bf16.msra.mxu0 0
      %1587 = vmatprep.subr.bf16.mxu0 0
      %1588 = vmatpush1.bf16.msra.mxu0 0
      %1589 = vmatprep.mubr.bf16.mxu0 0
      %1590 = vmatmul.mubr.bf16.gmra.mrb[0].mxu0 %v1531
      %v1591 = vpop.f32.mrb[0].mxu0
      %v1592 = vadd.f32 0.0, %v1591
      %v1593 = vpop.f32.mrb[0].mxu0
      %v1594 = vadd.f32 0.0, %v1593
      %v1595 = vpop.f32.mrb[0].mxu0
      %v1596 = vadd.f32 0.0, %v1595
      %v1597 = vpop.f32.mrb[0].mxu0
      %v1598 = vadd.f32 0.0, %v1597
      %1599 = vmatprep.mubr.bf16.mxu0 0
      %1600 = vmatmul.mubr.bf16.gmra.mrb[0].mxu0 %v1534
      %v1601 = vpop.f32.mrb[0].mxu0
      %v1602 = vadd.f32 0.0, %v1601
      %v1603 = vpop.f32.mrb[0].mxu0
      %v1604 = vadd.f32 0.0, %v1603
      %v1605 = vpop.f32.mrb[0].mxu0
      %v1606 = vadd.f32 0.0, %v1605
      %v1607 = vpop.f32.mrb[0].mxu0
      %v1608 = vadd.f32 0.0, %v1607
      %1609 = vmatprep.mubr.bf16.mxu0 0
      %1610 = vmatmul.mubr.bf16.gmra.mrb[0].mxu0 %v1537
      %v1611 = vpop.f32.mrb[0].mxu0
      %v1612 = vadd.f32 0.0, %v1611
      %v1613 = vpop.f32.mrb[0].mxu0
      %v1614 = vadd.f32 0.0, %v1613
      %v1615 = vpop.f32.mrb[0].mxu0
      %v1616 = vadd.f32 0.0, %v1615
      %v1617 = vpop.f32.mrb[0].mxu0
      %v1618 = vadd.f32 0.0, %v1617
      %1619 = vmatprep.mubr.bf16.mxu0 0
      %1620 = vmatmul.mubr.bf16.gmra.mrb[0].mxu0 %v1540
      %v1621 = vpop.f32.mrb[0].mxu0
      %v1622 = vadd.f32 0.0, %v1621
      %v1623 = vpop.f32.mrb[0].mxu0
      %v1624 = vadd.f32 0.0, %v1623
      %v1625 = vpop.f32.mrb[0].mxu0
      %v1626 = vadd.f32 0.0, %v1625
      %v1627 = vpop.f32.mrb[0].mxu0
      %v1628 = vadd.f32 0.0, %v1627
      %1629 = vdwg.mxu0
      %1630 = vmatprep.subr.bf16.mxu0 %v1552
      %1631 = vmatpush1.bf16.msra.mxu0 %v1549
      %1632 = vmatprep.subr.bf16.mxu0 0
      %1633 = vmatpush1.bf16.msra.mxu0 0
      %1634 = vmatprep.subr.bf16.mxu0 0
      %1635 = vmatpush1.bf16.msra.mxu0 0
      %1636 = vmatprep.subr.bf16.mxu0 0
      %1637 = vmatpush1.bf16.msra.mxu0 0
      %1638 = vmatprep.subr.bf16.mxu0 0
      %1639 = vmatpush1.bf16.msra.mxu0 0
      %1640 = vmatprep.subr.bf16.mxu0 0
      %1641 = vmatpush1.bf16.msra.mxu0 0
      %1642 = vmatprep.subr.bf16.mxu0 0
      %1643 = vmatpush1.bf16.msra.mxu0 0
      %1644 = vmatprep.subr.bf16.mxu0 0
      %1645 = vmatpush1.bf16.msra.mxu0 0
      %1646 = vmatprep.subr.bf16.mxu0 0
      %1647 = vmatpush1.bf16.msra.mxu0 0
      %1648 = vmatprep.subr.bf16.mxu0 0
      %1649 = vmatpush1.bf16.msra.mxu0 0
      %1650 = vmatprep.subr.bf16.mxu0 0
      %1651 = vmatpush1.bf16.msra.mxu0 0
      %1652 = vmatprep.subr.bf16.mxu0 0
      %1653 = vmatpush1.bf16.msra.mxu0 0
      %1654 = vmatprep.subr.bf16.mxu0 0
      %1655 = vmatpush1.bf16.msra.mxu0 0
      %1656 = vmatprep.subr.bf16.mxu0 0
      %1657 = vmatpush1.bf16.msra.mxu0 0
      %1658 = vmatprep.subr.bf16.mxu0 0
      %1659 = vmatpush1.bf16.msra.mxu0 0
      %1660 = vmatprep.subr.bf16.mxu0 0
      %1661 = vmatpush1.bf16.msra.mxu0 0
      %1662 = vmatprep.mubr.bf16.mxu0 0
      %1663 = vmatmul.mubr.bf16.gmra.mrb[0].mxu0 %v1531
      %v1664 = vpop.f32.mrb[0].mxu0
      %v1665 = vadd.f32 0.0, %v1664
      %v1666 = vpop.f32.mrb[0].mxu0
      %v1667 = vadd.f32 0.0, %v1666
      %v1668 = vpop.f32.mrb[0].mxu0
      %v1669 = vadd.f32 0.0, %v1668
      %v1670 = vpop.f32.mrb[0].mxu0
      %v1671 = vadd.f32 0.0, %v1670
      %1672 = vmatprep.mubr.bf16.mxu0 0
      %1673 = vmatmul.mubr.bf16.gmra.mrb[0].mxu0 %v1534
      %v1674 = vpop.f32.mrb[0].mxu0
      %v1675 = vadd.f32 0.0, %v1674
      %v1676 = vpop.f32.mrb[0].mxu0
      %v1677 = vadd.f32 0.0, %v1676
      %v1678 = vpop.f32.mrb[0].mxu0
      %v1679 = vadd.f32 0.0, %v1678
      %v1680 = vpop.f32.mrb[0].mxu0
      %v1681 = vadd.f32 0.0, %v1680
      %1682 = vmatprep.mubr.bf16.mxu0 0
      %1683 = vmatmul.mubr.bf16.gmra.mrb[0].mxu0 %v1537
      %v1684 = vpop.f32.mrb[0].mxu0
      %v1685 = vadd.f32 0.0, %v1684
      %v1686 = vpop.f32.mrb[0].mxu0
      %v1687 = vadd.f32 0.0, %v1686
      %v1688 = vpop.f32.mrb[0].mxu0
      %v1689 = vadd.f32 0.0, %v1688
      %v1690 = vpop.f32.mrb[0].mxu0
      %v1691 = vadd.f32 0.0, %v1690
      %1692 = vmatprep.mubr.bf16.mxu0 0
      %1693 = vmatmul.mubr.bf16.gmra.mrb[0].mxu0 %v1540
      %v1694 = vpop.f32.mrb[0].mxu0
      %v1695 = vadd.f32 0.0, %v1694
      %v1696 = vpop.f32.mrb[0].mxu0
      %v1697 = vadd.f32 0.0, %v1696
      %v1698 = vpop.f32.mrb[0].mxu0
      %v1699 = vadd.f32 0.0, %v1698
      %v1700 = vpop.f32.mrb[0].mxu0
      %v1701 = vadd.f32 0.0, %v1700
      %1702 = vdwg.mxu0
      %1703 = vmatprep.subr.bf16.mxu0 0
      %1704 = vmatpush1.bf16.msra.mxu0 %v1555
      %1705 = vmatprep.subr.bf16.mxu0 0
      %1706 = vmatpush1.bf16.msra.mxu0 0
      %1707 = vmatprep.subr.bf16.mxu0 0
      %1708 = vmatpush1.bf16.msra.mxu0 0
      %1709 = vmatprep.subr.bf16.mxu0 0
      %1710 = vmatpush1.bf16.msra.mxu0 0
      %1711 = vmatprep.subr.bf16.mxu0 0
      %1712 = vmatpush1.bf16.msra.mxu0 0
      %1713 = vmatprep.subr.bf16.mxu0 0
      %1714 = vmatpush1.bf16.msra.mxu0 0
      %1715 = vmatprep.subr.bf16.mxu0 0
      %1716 = vmatpush1.bf16.msra.mxu0 0
      %1717 = vmatprep.subr.bf16.mxu0 0
      %1718 = vmatpush1.bf16.msra.mxu0 0
      %1719 = vmatprep.subr.bf16.mxu0 0
      %1720 = vmatpush1.bf16.msra.mxu0 0
      %1721 = vmatprep.subr.bf16.mxu0 0
      %1722 = vmatpush1.bf16.msra.mxu0 0
      %1723 = vmatprep.subr.bf16.mxu0 0
      %1724 = vmatpush1.bf16.msra.mxu0 0
      %1725 = vmatprep.subr.bf16.mxu0 0
      %1726 = vmatpush1.bf16.msra.mxu0 0
      %1727 = vmatprep.subr.bf16.mxu0 0
      %1728 = vmatpush1.bf16.msra.mxu0 0
      %1729 = vmatprep.subr.bf16.mxu0 0
      %1730 = vmatpush1.bf16.msra.mxu0 0
      %1731 = vmatprep.subr.bf16.mxu0 0
      %1732 = vmatpush1.bf16.msra.mxu0 0
      %1733 = vmatprep.subr.bf16.mxu0 0
      %1734 = vmatpush1.bf16.msra.mxu0 0
      %1735 = vmatprep.mubr.bf16.mxu0 0
      %1736 = vmatmul.mubr.bf16.gmra.mrb[0].mxu0 %v1531
      %v1737 = vpop.f32.mrb[0].mxu0
      %v1738 = vadd.f32 0.0, %v1737
      %v1739 = vpop.f32.mrb[0].mxu0
      %v1740 = vpop.f32.mrb[0].mxu0
      %v1741 = vadd.f32 0.0, %v1740
      %v1742 = vpop.f32.mrb[0].mxu0
      %1743 = vmatprep.mubr.bf16.mxu0 0
      %1744 = vmatmul.mubr.bf16.gmra.mrb[0].mxu0 %v1534
      %v1745 = vpop.f32.mrb[0].mxu0
      %v1746 = vadd.f32 0.0, %v1745
      %v1747 = vpop.f32.mrb[0].mxu0
      %v1748 = vpop.f32.mrb[0].mxu0
      %v1749 = vadd.f32 0.0, %v1748
      %v1750 = vpop.f32.mrb[0].mxu0
      %1751 = vmatprep.mubr.bf16.mxu0 0
      %1752 = vmatmul.mubr.bf16.gmra.mrb[0].mxu0 %v1537
      %v1753 = vpop.f32.mrb[0].mxu0
      %v1754 = vadd.f32 0.0, %v1753
      %v1755 = vpop.f32.mrb[0].mxu0
      %v1756 = vpop.f32.mrb[0].mxu0
      %v1757 = vadd.f32 0.0, %v1756
      %v1758 = vpop.f32.mrb[0].mxu0
      %1759 = vmatprep.mubr.bf16.mxu0 0
      %1760 = vmatmul.mubr.bf16.gmra.mrb[0].mxu0 %v1540
      %v1761 = vpop.f32.mrb[0].mxu0
      %v1762 = vadd.f32 0.0, %v1761
      %v1763 = vpop.f32.mrb[0].mxu0
      %v1764 = vpop.f32.mrb[0].mxu0
      %v1765 = vadd.f32 0.0, %v1764
      %v1766 = vpop.f32.mrb[0].mxu0
      %1767 = vdwg.mxu0
      %v1768 = vadd.f32 %v1440, %v1592
      %v1769 = vadd.f32 %v1441, %v1594
      %v1770 = vadd.f32 %v1442, %v1665
      %v1771 = vadd.f32 %v1443, %v1667
      %v1772 = vadd.f32 %v1444, %v1738
      %v1773 = vadd.f32 %v1445, %v1596
      %v1774 = vadd.f32 %v1446, %v1598
      %v1775 = vadd.f32 %v1447, %v1669
      %v1776 = vadd.f32 %v1448, %v1671
      %v1777 = vadd.f32 %v1449, %v1741
      %v1778 = vadd.f32 %v1450, %v1602
      %v1779 = vadd.f32 %v1451, %v1604
      %v1780 = vadd.f32 %v1452, %v1675
      %v1781 = vadd.f32 %v1453, %v1677
      %v1782 = vadd.f32 %v1454, %v1746
      %v1783 = vadd.f32 %v1455, %v1606
      %v1784 = vadd.f32 %v1456, %v1608
      %v1785 = vadd.f32 %v1457, %v1679
      %v1786 = vadd.f32 %v1458, %v1681
      %v1787 = vadd.f32 %v1459, %v1749
      %v1788 = vadd.f32 %v1460, %v1612
      %v1789 = vadd.f32 %v1461, %v1614
      %v1790 = vadd.f32 %v1462, %v1685
      %v1791 = vadd.f32 %v1463, %v1687
      %v1792 = vadd.f32 %v1464, %v1754
      %v1793 = vadd.f32 %v1465, %v1616
      %v1794 = vadd.f32 %v1466, %v1618
      %v1795 = vadd.f32 %v1467, %v1689
      %v1796 = vadd.f32 %v1468, %v1691
      %v1797 = vadd.f32 %v1469, %v1757
      %v1798 = vadd.f32 %v1470, %v1622
      %v1799 = vadd.f32 %v1471, %v1624
      %v1800 = vadd.f32 %v1472, %v1695
      %v1801 = vadd.f32 %v1473, %v1697
      %v1802 = vadd.f32 %v1474, %v1762
      %v1803 = vadd.f32 %v1475, %v1626
      %v1804 = vadd.f32 %v1476, %v1628
      %v1805 = vadd.f32 %v1477, %v1699
      %v1806 = vadd.f32 %v1478, %v1701
      %v1807 = vadd.f32 %v1479, %v1765
      %s1808 = scalar_lea.vmem %s2, 128
      %v1809 = vld [vmem:[%s1808] sm:$0xf]
      %v1810 = vld [vmem:[%s1808 + $0x4] sm:$0xf]
      %v1811 = vld [vmem:[%s1808 + $0x8] sm:$0xf]
      %v1812 = vld [vmem:[%s1808 + $0xc] sm:$0xf]
      %v1813 = vld [vmem:[%s1808 + $0x10] sm:$0xf]
      %v1814 = vld [vmem:[%s1808 + $0x14] sm:$0xf]
      %v1815 = vld [vmem:[%s1808 + $0x18] sm:$0xf]
      %v1816 = vld [vmem:[%s1808 + $0x1c] sm:$0xf]
      %v1817 = vpack.c.bf16 %v564, %v564
      %v1818 = vpack.c.bf16 %v569, %v569
      %v1819 = vpack.c.bf16 %v565, %v565
      %v1820 = vpack.c.bf16 %v570, %v570
      %v1821 = vpack.c.bf16 %v566, %v566
      %v1830 = vunpack.c.l.b16 %v1809
      %v1831 = vunpack.c.l.b16 %v1810
      %v1832 = vunpack.c.l.b16 %v1811
      %v1833 = vunpack.c.l.b16 %v1812
      %v1834 = vunpack.c.l.b16 %v1813
      %v1835 = vunpack.c.l.b16 %v1814
      %v1836 = vunpack.c.l.b16 %v1815
      %v1837 = vunpack.c.l.b16 %v1816
      %v1838 = vpack.c.b16 %v1831, %v1830
      %v1839 = vpack.c.b16 %v1833, %v1832
      %v1840 = vpack.c.b16 %v1835, %v1834
      %v1841 = vpack.c.b16 %v1837, %v1836
      %v1843 = vsel %vm654, %v1838, 0
      %v1846 = vsel %vm654, %v1839, 0
      %v1849 = vsel %vm654, %v1840, 0
      %v1852 = vsel %vm654, %v1841, 0
      %v1855 = vsel %vm667, %v1817, 0
      %v1858 = vsel %vm667, %v1818, 0
      %v1861 = vsel %vm667, %v1819, 0
      %v1864 = vsel %vm667, %v1820, 0
      %v1867 = vsel %vm667, %v1821, 0
      %1869 = vmatprep.subr.bf16.mxu0 %v1858
      %1870 = vmatpush1.bf16.msra.mxu0 %v1855
      %1871 = vmatprep.subr.bf16.mxu0 0
      %1872 = vmatpush1.bf16.msra.mxu0 0
      %1873 = vmatprep.subr.bf16.mxu0 0
      %1874 = vmatpush1.bf16.msra.mxu0 0
      %1875 = vmatprep.subr.bf16.mxu0 0
      %1876 = vmatpush1.bf16.msra.mxu0 0
      %1877 = vmatprep.subr.bf16.mxu0 0
      %1878 = vmatpush1.bf16.msra.mxu0 0
      %1879 = vmatprep.subr.bf16.mxu0 0
      %1880 = vmatpush1.bf16.msra.mxu0 0
      %1881 = vmatprep.subr.bf16.mxu0 0
      %1882 = vmatpush1.bf16.msra.mxu0 0
      %1883 = vmatprep.subr.bf16.mxu0 0
      %1884 = vmatpush1.bf16.msra.mxu0 0
      %1885 = vmatprep.subr.bf16.mxu0 0
      %1886 = vmatpush1.bf16.msra.mxu0 0
      %1887 = vmatprep.subr.bf16.mxu0 0
      %1888 = vmatpush1.bf16.msra.mxu0 0
      %1889 = vmatprep.subr.bf16.mxu0 0
      %1890 = vmatpush1.bf16.msra.mxu0 0
      %1891 = vmatprep.subr.bf16.mxu0 0
      %1892 = vmatpush1.bf16.msra.mxu0 0
      %1893 = vmatprep.subr.bf16.mxu0 0
      %1894 = vmatpush1.bf16.msra.mxu0 0
      %1895 = vmatprep.subr.bf16.mxu0 0
      %1896 = vmatpush1.bf16.msra.mxu0 0
      %1897 = vmatprep.subr.bf16.mxu0 0
      %1898 = vmatpush1.bf16.msra.mxu0 0
      %1899 = vmatprep.subr.bf16.mxu0 0
      %1900 = vmatpush1.bf16.msra.mxu0 0
      %1901 = vmatprep.mubr.bf16.mxu0 0
      %1902 = vmatmul.mubr.bf16.gmra.mrb[0].mxu0 %v1843
      %v1903 = vpop.f32.mrb[0].mxu0
      %v1904 = vadd.f32 0.0, %v1903
      %v1905 = vpop.f32.mrb[0].mxu0
      %v1906 = vadd.f32 0.0, %v1905
      %v1907 = vpop.f32.mrb[0].mxu0
      %v1908 = vadd.f32 0.0, %v1907
      %v1909 = vpop.f32.mrb[0].mxu0
      %v1910 = vadd.f32 0.0, %v1909
      %1911 = vmatprep.mubr.bf16.mxu0 0
      %1912 = vmatmul.mubr.bf16.gmra.mrb[0].mxu0 %v1846
      %v1913 = vpop.f32.mrb[0].mxu0
      %v1914 = vadd.f32 0.0, %v1913
      %v1915 = vpop.f32.mrb[0].mxu0
      %v1916 = vadd.f32 0.0, %v1915
      %v1917 = vpop.f32.mrb[0].mxu0
      %v1918 = vadd.f32 0.0, %v1917
      %v1919 = vpop.f32.mrb[0].mxu0
      %v1920 = vadd.f32 0.0, %v1919
      %1921 = vmatprep.mubr.bf16.mxu0 0
      %1922 = vmatmul.mubr.bf16.gmra.mrb[0].mxu0 %v1849
      %v1923 = vpop.f32.mrb[0].mxu0
      %v1924 = vadd.f32 0.0, %v1923
      %v1925 = vpop.f32.mrb[0].mxu0
      %v1926 = vadd.f32 0.0, %v1925
      %v1927 = vpop.f32.mrb[0].mxu0
      %v1928 = vadd.f32 0.0, %v1927
      %v1929 = vpop.f32.mrb[0].mxu0
      %v1930 = vadd.f32 0.0, %v1929
      %1931 = vmatprep.mubr.bf16.mxu0 0
      %1932 = vmatmul.mubr.bf16.gmra.mrb[0].mxu0 %v1852
      %v1933 = vpop.f32.mrb[0].mxu0
      %v1934 = vadd.f32 0.0, %v1933
      %v1935 = vpop.f32.mrb[0].mxu0
      %v1936 = vadd.f32 0.0, %v1935
      %v1937 = vpop.f32.mrb[0].mxu0
      %v1938 = vadd.f32 0.0, %v1937
      %v1939 = vpop.f32.mrb[0].mxu0
      %v1940 = vadd.f32 0.0, %v1939
      %1941 = vdwg.mxu0
      %1942 = vmatprep.subr.bf16.mxu0 %v1864
      %1943 = vmatpush1.bf16.msra.mxu0 %v1861
      %1944 = vmatprep.subr.bf16.mxu0 0
      %1945 = vmatpush1.bf16.msra.mxu0 0
      %1946 = vmatprep.subr.bf16.mxu0 0
      %1947 = vmatpush1.bf16.msra.mxu0 0
      %1948 = vmatprep.subr.bf16.mxu0 0
      %1949 = vmatpush1.bf16.msra.mxu0 0
      %1950 = vmatprep.subr.bf16.mxu0 0
      %1951 = vmatpush1.bf16.msra.mxu0 0
      %1952 = vmatprep.subr.bf16.mxu0 0
      %1953 = vmatpush1.bf16.msra.mxu0 0
      %1954 = vmatprep.subr.bf16.mxu0 0
      %1955 = vmatpush1.bf16.msra.mxu0 0
      %1956 = vmatprep.subr.bf16.mxu0 0
      %1957 = vmatpush1.bf16.msra.mxu0 0
      %1958 = vmatprep.subr.bf16.mxu0 0
      %1959 = vmatpush1.bf16.msra.mxu0 0
      %1960 = vmatprep.subr.bf16.mxu0 0
      %1961 = vmatpush1.bf16.msra.mxu0 0
      %1962 = vmatprep.subr.bf16.mxu0 0
      %1963 = vmatpush1.bf16.msra.mxu0 0
      %1964 = vmatprep.subr.bf16.mxu0 0
      %1965 = vmatpush1.bf16.msra.mxu0 0
      %1966 = vmatprep.subr.bf16.mxu0 0
      %1967 = vmatpush1.bf16.msra.mxu0 0
      %1968 = vmatprep.subr.bf16.mxu0 0
      %1969 = vmatpush1.bf16.msra.mxu0 0
      %1970 = vmatprep.subr.bf16.mxu0 0
      %1971 = vmatpush1.bf16.msra.mxu0 0
      %1972 = vmatprep.subr.bf16.mxu0 0
      %1973 = vmatpush1.bf16.msra.mxu0 0
      %1974 = vmatprep.mubr.bf16.mxu0 0
      %1975 = vmatmul.mubr.bf16.gmra.mrb[0].mxu0 %v1843
      %v1976 = vpop.f32.mrb[0].mxu0
      %v1977 = vadd.f32 0.0, %v1976
      %v1978 = vpop.f32.mrb[0].mxu0
      %v1979 = vadd.f32 0.0, %v1978
      %v1980 = vpop.f32.mrb[0].mxu0
      %v1981 = vadd.f32 0.0, %v1980
      %v1982 = vpop.f32.mrb[0].mxu0
      %v1983 = vadd.f32 0.0, %v1982
      %1984 = vmatprep.mubr.bf16.mxu0 0
      %1985 = vmatmul.mubr.bf16.gmra.mrb[0].mxu0 %v1846
      %v1986 = vpop.f32.mrb[0].mxu0
      %v1987 = vadd.f32 0.0, %v1986
      %v1988 = vpop.f32.mrb[0].mxu0
      %v1989 = vadd.f32 0.0, %v1988
      %v1990 = vpop.f32.mrb[0].mxu0
      %v1991 = vadd.f32 0.0, %v1990
      %v1992 = vpop.f32.mrb[0].mxu0
      %v1993 = vadd.f32 0.0, %v1992
      %1994 = vmatprep.mubr.bf16.mxu0 0
      %1995 = vmatmul.mubr.bf16.gmra.mrb[0].mxu0 %v1849
      %v1996 = vpop.f32.mrb[0].mxu0
      %v1997 = vadd.f32 0.0, %v1996
      %v1998 = vpop.f32.mrb[0].mxu0
      %v1999 = vadd.f32 0.0, %v1998
      %v2000 = vpop.f32.mrb[0].mxu0
      %v2001 = vadd.f32 0.0, %v2000
      %v2002 = vpop.f32.mrb[0].mxu0
      %v2003 = vadd.f32 0.0, %v2002
      %2004 = vmatprep.mubr.bf16.mxu0 0
      %2005 = vmatmul.mubr.bf16.gmra.mrb[0].mxu0 %v1852
      %v2006 = vpop.f32.mrb[0].mxu0
      %v2007 = vadd.f32 0.0, %v2006
      %v2008 = vpop.f32.mrb[0].mxu0
      %v2009 = vadd.f32 0.0, %v2008
      %v2010 = vpop.f32.mrb[0].mxu0
      %v2011 = vadd.f32 0.0, %v2010
      %v2012 = vpop.f32.mrb[0].mxu0
      %v2013 = vadd.f32 0.0, %v2012
      %2014 = vdwg.mxu0
      %2015 = vmatprep.subr.bf16.mxu0 0
      %2016 = vmatpush1.bf16.msra.mxu0 %v1867
      %2017 = vmatprep.subr.bf16.mxu0 0
      %2018 = vmatpush1.bf16.msra.mxu0 0
      %2019 = vmatprep.subr.bf16.mxu0 0
      %2020 = vmatpush1.bf16.msra.mxu0 0
      %2021 = vmatprep.subr.bf16.mxu0 0
      %2022 = vmatpush1.bf16.msra.mxu0 0
      %2023 = vmatprep.subr.bf16.mxu0 0
      %2024 = vmatpush1.bf16.msra.mxu0 0
      %2025 = vmatprep.subr.bf16.mxu0 0
      %2026 = vmatpush1.bf16.msra.mxu0 0
      %2027 = vmatprep.subr.bf16.mxu0 0
      %2028 = vmatpush1.bf16.msra.mxu0 0
      %2029 = vmatprep.subr.bf16.mxu0 0
      %2030 = vmatpush1.bf16.msra.mxu0 0
      %2031 = vmatprep.subr.bf16.mxu0 0
      %2032 = vmatpush1.bf16.msra.mxu0 0
      %2033 = vmatprep.subr.bf16.mxu0 0
      %2034 = vmatpush1.bf16.msra.mxu0 0
      %2035 = vmatprep.subr.bf16.mxu0 0
      %2036 = vmatpush1.bf16.msra.mxu0 0
      %2037 = vmatprep.subr.bf16.mxu0 0
      %2038 = vmatpush1.bf16.msra.mxu0 0
      %2039 = vmatprep.subr.bf16.mxu0 0
      %2040 = vmatpush1.bf16.msra.mxu0 0
      %2041 = vmatprep.subr.bf16.mxu0 0
      %2042 = vmatpush1.bf16.msra.mxu0 0
      %2043 = vmatprep.subr.bf16.mxu0 0
      %2044 = vmatpush1.bf16.msra.mxu0 0
      %2045 = vmatprep.subr.bf16.mxu0 0
      %2046 = vmatpush1.bf16.msra.mxu0 0
      %2047 = vmatprep.mubr.bf16.mxu0 0
      %2048 = vmatmul.mubr.bf16.gmra.mrb[0].mxu0 %v1843
      %v2049 = vpop.f32.mrb[0].mxu0
      %v2050 = vadd.f32 0.0, %v2049
      %v2051 = vpop.f32.mrb[0].mxu0
      %v2052 = vpop.f32.mrb[0].mxu0
      %v2053 = vadd.f32 0.0, %v2052
      %v2054 = vpop.f32.mrb[0].mxu0
      %2055 = vmatprep.mubr.bf16.mxu0 0
      %2056 = vmatmul.mubr.bf16.gmra.mrb[0].mxu0 %v1846
      %v2057 = vpop.f32.mrb[0].mxu0
      %v2058 = vadd.f32 0.0, %v2057
      %v2059 = vpop.f32.mrb[0].mxu0
      %v2060 = vpop.f32.mrb[0].mxu0
      %v2061 = vadd.f32 0.0, %v2060
      %v2062 = vpop.f32.mrb[0].mxu0
      %2063 = vmatprep.mubr.bf16.mxu0 0
      %2064 = vmatmul.mubr.bf16.gmra.mrb[0].mxu0 %v1849
      %v2065 = vpop.f32.mrb[0].mxu0
      %v2066 = vadd.f32 0.0, %v2065
      %v2067 = vpop.f32.mrb[0].mxu0
      %v2068 = vpop.f32.mrb[0].mxu0
      %v2069 = vadd.f32 0.0, %v2068
      %v2070 = vpop.f32.mrb[0].mxu0
      %2071 = vmatprep.mubr.bf16.mxu0 0
      %2072 = vmatmul.mubr.bf16.gmra.mrb[0].mxu0 %v1852
      %v2073 = vpop.f32.mrb[0].mxu0
      %v2074 = vadd.f32 0.0, %v2073
      %v2075 = vpop.f32.mrb[0].mxu0
      %v2076 = vpop.f32.mrb[0].mxu0
      %v2077 = vadd.f32 0.0, %v2076
      %v2078 = vpop.f32.mrb[0].mxu0
      %2079 = vdwg.mxu0
      %v2080 = vadd.f32 %v1768, %v1904
      %v2081 = vadd.f32 %v1769, %v1906
      %v2082 = vadd.f32 %v1770, %v1977
      %v2083 = vadd.f32 %v1771, %v1979
      %v2084 = vadd.f32 %v1772, %v2050
      %v2085 = vadd.f32 %v1773, %v1908
      %v2086 = vadd.f32 %v1774, %v1910
      %v2087 = vadd.f32 %v1775, %v1981
      %v2088 = vadd.f32 %v1776, %v1983
      %v2089 = vadd.f32 %v1777, %v2053
      %v2090 = vadd.f32 %v1778, %v1914
      %v2091 = vadd.f32 %v1779, %v1916
      %v2092 = vadd.f32 %v1780, %v1987
      %v2093 = vadd.f32 %v1781, %v1989
      %v2094 = vadd.f32 %v1782, %v2058
      %v2095 = vadd.f32 %v1783, %v1918
      %v2096 = vadd.f32 %v1784, %v1920
      %v2097 = vadd.f32 %v1785, %v1991
      %v2098 = vadd.f32 %v1786, %v1993
      %v2099 = vadd.f32 %v1787, %v2061
      %v2100 = vadd.f32 %v1788, %v1924
      %v2101 = vadd.f32 %v1789, %v1926
      %v2102 = vadd.f32 %v1790, %v1997
      %v2103 = vadd.f32 %v1791, %v1999
      %v2104 = vadd.f32 %v1792, %v2066
      %v2105 = vadd.f32 %v1793, %v1928
      %v2106 = vadd.f32 %v1794, %v1930
      %v2107 = vadd.f32 %v1795, %v2001
      %v2108 = vadd.f32 %v1796, %v2003
      %v2109 = vadd.f32 %v1797, %v2069
      %v2110 = vadd.f32 %v1798, %v1934
      %v2111 = vadd.f32 %v1799, %v1936
      %v2112 = vadd.f32 %v1800, %v2007
      %v2113 = vadd.f32 %v1801, %v2009
      %v2114 = vadd.f32 %v1802, %v2074
      %v2115 = vadd.f32 %v1803, %v1938
      %v2116 = vadd.f32 %v1804, %v1940
      %v2117 = vadd.f32 %v1805, %v2011
      %v2118 = vadd.f32 %v1806, %v2013
      %v2119 = vadd.f32 %v1807, %v2077
      %2120 = vrot.lane.b32.xlu0 %v564, 127
      %v2121 = vpop.permute.xlu0 %2120
      %2122 = vrot.lane.b32.xlu0 %v569, 127
      %v2123 = vpop.permute.xlu0 %2122
      %2124 = vrot.lane.b32.xlu0 %v565, 127
      %v2125 = vpop.permute.xlu0 %2124
      %2126 = vrot.lane.b32.xlu0 %v570, 127
      %v2127 = vpop.permute.xlu0 %2126
      %2128 = vrot.lane.b32.xlu0 %v566, 127
      %v2129 = vpop.permute.xlu0 %2128
      %vm2130 = vcmp.lt.s32.totalorder %v584, 127
      %v2131 = vsel %vm2130, %v2127, %v2129
      %v2132 = vsel %vm2130, %v2125, %v2127
      %v2133 = vsel %vm2130, %v2123, %v2125
      %v2134 = vsel %vm2130, %v2121, %v2123
      %v2135 = vsel %vm2130, %v2129, %v2121
      %s2136 = scalar_lea.vmem %s2, 160
      %v2137 = vld [vmem:[%s2136] sm:$0xf]
      %v2138 = vld [vmem:[%s2136 + $0x4] sm:$0xf]
      %v2139 = vld [vmem:[%s2136 + $0x8] sm:$0xf]
      %v2140 = vld [vmem:[%s2136 + $0xc] sm:$0xf]
      %v2141 = vld [vmem:[%s2136 + $0x10] sm:$0xf]
      %v2142 = vld [vmem:[%s2136 + $0x14] sm:$0xf]
      %v2143 = vld [vmem:[%s2136 + $0x18] sm:$0xf]
      %v2144 = vld [vmem:[%s2136 + $0x1c] sm:$0xf]
      %v2145 = vpack.c.bf16 %v2134, %v2134
      %v2146 = vpack.c.bf16 %v2133, %v2133
      %v2147 = vpack.c.bf16 %v2132, %v2132
      %v2148 = vpack.c.bf16 %v2131, %v2131
      %v2149 = vpack.c.bf16 %v2135, %v2135
      %v2158 = vunpack.c.l.b16 %v2137
      %v2159 = vunpack.c.l.b16 %v2138
      %v2160 = vunpack.c.l.b16 %v2139
      %v2161 = vunpack.c.l.b16 %v2140
      %v2162 = vunpack.c.l.b16 %v2141
      %v2163 = vunpack.c.l.b16 %v2142
      %v2164 = vunpack.c.l.b16 %v2143
      %v2165 = vunpack.c.l.b16 %v2144
      %v2166 = vpack.c.b16 %v2159, %v2158
      %v2167 = vpack.c.b16 %v2161, %v2160
      %v2168 = vpack.c.b16 %v2163, %v2162
      %v2169 = vpack.c.b16 %v2165, %v2164
      %v2171 = vsel %vm654, %v2166, 0
      %v2174 = vsel %vm654, %v2167, 0
      %v2177 = vsel %vm654, %v2168, 0
      %v2180 = vsel %vm654, %v2169, 0
      %v2183 = vsel %vm667, %v2145, 0
      %v2186 = vsel %vm667, %v2146, 0
      %v2189 = vsel %vm667, %v2147, 0
      %v2192 = vsel %vm667, %v2148, 0
      %v2195 = vsel %vm667, %v2149, 0
      %2197 = vmatprep.subr.bf16.mxu0 %v2186
      %2198 = vmatpush1.bf16.msra.mxu0 %v2183
      %2199 = vmatprep.subr.bf16.mxu0 0
      %2200 = vmatpush1.bf16.msra.mxu0 0
      %2201 = vmatprep.subr.bf16.mxu0 0
      %2202 = vmatpush1.bf16.msra.mxu0 0
      %2203 = vmatprep.subr.bf16.mxu0 0
      %2204 = vmatpush1.bf16.msra.mxu0 0
      %2205 = vmatprep.subr.bf16.mxu0 0
      %2206 = vmatpush1.bf16.msra.mxu0 0
      %2207 = vmatprep.subr.bf16.mxu0 0
      %2208 = vmatpush1.bf16.msra.mxu0 0
      %2209 = vmatprep.subr.bf16.mxu0 0
      %2210 = vmatpush1.bf16.msra.mxu0 0
      %2211 = vmatprep.subr.bf16.mxu0 0
      %2212 = vmatpush1.bf16.msra.mxu0 0
      %2213 = vmatprep.subr.bf16.mxu0 0
      %2214 = vmatpush1.bf16.msra.mxu0 0
      %2215 = vmatprep.subr.bf16.mxu0 0
      %2216 = vmatpush1.bf16.msra.mxu0 0
      %2217 = vmatprep.subr.bf16.mxu0 0
      %2218 = vmatpush1.bf16.msra.mxu0 0
      %2219 = vmatprep.subr.bf16.mxu0 0
      %2220 = vmatpush1.bf16.msra.mxu0 0
      %2221 = vmatprep.subr.bf16.mxu0 0
      %2222 = vmatpush1.bf16.msra.mxu0 0
      %2223 = vmatprep.subr.bf16.mxu0 0
      %2224 = vmatpush1.bf16.msra.mxu0 0
      %2225 = vmatprep.subr.bf16.mxu0 0
      %2226 = vmatpush1.bf16.msra.mxu0 0
      %2227 = vmatprep.subr.bf16.mxu0 0
      %2228 = vmatpush1.bf16.msra.mxu0 0
      %2229 = vmatprep.mubr.bf16.mxu0 0
      %2230 = vmatmul.mubr.bf16.gmra.mrb[0].mxu0 %v2171
      %v2231 = vpop.f32.mrb[0].mxu0
      %v2232 = vadd.f32 0.0, %v2231
      %v2233 = vpop.f32.mrb[0].mxu0
      %v2234 = vadd.f32 0.0, %v2233
      %v2235 = vpop.f32.mrb[0].mxu0
      %v2236 = vadd.f32 0.0, %v2235
      %v2237 = vpop.f32.mrb[0].mxu0
      %v2238 = vadd.f32 0.0, %v2237
      %2239 = vmatprep.mubr.bf16.mxu0 0
      %2240 = vmatmul.mubr.bf16.gmra.mrb[0].mxu0 %v2174
      %v2241 = vpop.f32.mrb[0].mxu0
      %v2242 = vadd.f32 0.0, %v2241
      %v2243 = vpop.f32.mrb[0].mxu0
      %v2244 = vadd.f32 0.0, %v2243
      %v2245 = vpop.f32.mrb[0].mxu0
      %v2246 = vadd.f32 0.0, %v2245
      %v2247 = vpop.f32.mrb[0].mxu0
      %v2248 = vadd.f32 0.0, %v2247
      %2249 = vmatprep.mubr.bf16.mxu0 0
      %2250 = vmatmul.mubr.bf16.gmra.mrb[0].mxu0 %v2177
      %v2251 = vpop.f32.mrb[0].mxu0
      %v2252 = vadd.f32 0.0, %v2251
      %v2253 = vpop.f32.mrb[0].mxu0
      %v2254 = vadd.f32 0.0, %v2253
      %v2255 = vpop.f32.mrb[0].mxu0
      %v2256 = vadd.f32 0.0, %v2255
      %v2257 = vpop.f32.mrb[0].mxu0
      %v2258 = vadd.f32 0.0, %v2257
      %2259 = vmatprep.mubr.bf16.mxu0 0
      %2260 = vmatmul.mubr.bf16.gmra.mrb[0].mxu0 %v2180
      %v2261 = vpop.f32.mrb[0].mxu0
      %v2262 = vadd.f32 0.0, %v2261
      %v2263 = vpop.f32.mrb[0].mxu0
      %v2264 = vadd.f32 0.0, %v2263
      %v2265 = vpop.f32.mrb[0].mxu0
      %v2266 = vadd.f32 0.0, %v2265
      %v2267 = vpop.f32.mrb[0].mxu0
      %v2268 = vadd.f32 0.0, %v2267
      %2269 = vdwg.mxu0
      %2270 = vmatprep.subr.bf16.mxu0 %v2192
      %2271 = vmatpush1.bf16.msra.mxu0 %v2189
      %2272 = vmatprep.subr.bf16.mxu0 0
      %2273 = vmatpush1.bf16.msra.mxu0 0
      %2274 = vmatprep.subr.bf16.mxu0 0
      %2275 = vmatpush1.bf16.msra.mxu0 0
      %2276 = vmatprep.subr.bf16.mxu0 0
      %2277 = vmatpush1.bf16.msra.mxu0 0
      %2278 = vmatprep.subr.bf16.mxu0 0
      %2279 = vmatpush1.bf16.msra.mxu0 0
      %2280 = vmatprep.subr.bf16.mxu0 0
      %2281 = vmatpush1.bf16.msra.mxu0 0
      %2282 = vmatprep.subr.bf16.mxu0 0
      %2283 = vmatpush1.bf16.msra.mxu0 0
      %2284 = vmatprep.subr.bf16.mxu0 0
      %2285 = vmatpush1.bf16.msra.mxu0 0
      %2286 = vmatprep.subr.bf16.mxu0 0
      %2287 = vmatpush1.bf16.msra.mxu0 0
      %2288 = vmatprep.subr.bf16.mxu0 0
      %2289 = vmatpush1.bf16.msra.mxu0 0
      %2290 = vmatprep.subr.bf16.mxu0 0
      %2291 = vmatpush1.bf16.msra.mxu0 0
      %2292 = vmatprep.subr.bf16.mxu0 0
      %2293 = vmatpush1.bf16.msra.mxu0 0
      %2294 = vmatprep.subr.bf16.mxu0 0
      %2295 = vmatpush1.bf16.msra.mxu0 0
      %2296 = vmatprep.subr.bf16.mxu0 0
      %2297 = vmatpush1.bf16.msra.mxu0 0
      %2298 = vmatprep.subr.bf16.mxu0 0
      %2299 = vmatpush1.bf16.msra.mxu0 0
      %2300 = vmatprep.subr.bf16.mxu0 0
      %2301 = vmatpush1.bf16.msra.mxu0 0
      %2302 = vmatprep.mubr.bf16.mxu0 0
      %2303 = vmatmul.mubr.bf16.gmra.mrb[0].mxu0 %v2171
      %v2304 = vpop.f32.mrb[0].mxu0
      %v2305 = vadd.f32 0.0, %v2304
      %v2306 = vpop.f32.mrb[0].mxu0
      %v2307 = vadd.f32 0.0, %v2306
      %v2308 = vpop.f32.mrb[0].mxu0
      %v2309 = vadd.f32 0.0, %v2308
      %v2310 = vpop.f32.mrb[0].mxu0
      %v2311 = vadd.f32 0.0, %v2310
      %2312 = vmatprep.mubr.bf16.mxu0 0
      %2313 = vmatmul.mubr.bf16.gmra.mrb[0].mxu0 %v2174
      %v2314 = vpop.f32.mrb[0].mxu0
      %v2315 = vadd.f32 0.0, %v2314
      %v2316 = vpop.f32.mrb[0].mxu0
      %v2317 = vadd.f32 0.0, %v2316
      %v2318 = vpop.f32.mrb[0].mxu0
      %v2319 = vadd.f32 0.0, %v2318
      %v2320 = vpop.f32.mrb[0].mxu0
      %v2321 = vadd.f32 0.0, %v2320
      %2322 = vmatprep.mubr.bf16.mxu0 0
      %2323 = vmatmul.mubr.bf16.gmra.mrb[0].mxu0 %v2177
      %v2324 = vpop.f32.mrb[0].mxu0
      %v2325 = vadd.f32 0.0, %v2324
      %v2326 = vpop.f32.mrb[0].mxu0
      %v2327 = vadd.f32 0.0, %v2326
      %v2328 = vpop.f32.mrb[0].mxu0
      %v2329 = vadd.f32 0.0, %v2328
      %v2330 = vpop.f32.mrb[0].mxu0
      %v2331 = vadd.f32 0.0, %v2330
      %2332 = vmatprep.mubr.bf16.mxu0 0
      %2333 = vmatmul.mubr.bf16.gmra.mrb[0].mxu0 %v2180
      %v2334 = vpop.f32.mrb[0].mxu0
      %v2335 = vadd.f32 0.0, %v2334
      %v2336 = vpop.f32.mrb[0].mxu0
      %v2337 = vadd.f32 0.0, %v2336
      %v2338 = vpop.f32.mrb[0].mxu0
      %v2339 = vadd.f32 0.0, %v2338
      %v2340 = vpop.f32.mrb[0].mxu0
      %v2341 = vadd.f32 0.0, %v2340
      %2342 = vdwg.mxu0
      %2343 = vmatprep.subr.bf16.mxu0 0
      %2344 = vmatpush1.bf16.msra.mxu0 %v2195
      %2345 = vmatprep.subr.bf16.mxu0 0
      %2346 = vmatpush1.bf16.msra.mxu0 0
      %2347 = vmatprep.subr.bf16.mxu0 0
      %2348 = vmatpush1.bf16.msra.mxu0 0
      %2349 = vmatprep.subr.bf16.mxu0 0
      %2350 = vmatpush1.bf16.msra.mxu0 0
      %2351 = vmatprep.subr.bf16.mxu0 0
      %2352 = vmatpush1.bf16.msra.mxu0 0
      %2353 = vmatprep.subr.bf16.mxu0 0
      %2354 = vmatpush1.bf16.msra.mxu0 0
      %2355 = vmatprep.subr.bf16.mxu0 0
      %2356 = vmatpush1.bf16.msra.mxu0 0
      %2357 = vmatprep.subr.bf16.mxu0 0
      %2358 = vmatpush1.bf16.msra.mxu0 0
      %2359 = vmatprep.subr.bf16.mxu0 0
      %2360 = vmatpush1.bf16.msra.mxu0 0
      %2361 = vmatprep.subr.bf16.mxu0 0
      %2362 = vmatpush1.bf16.msra.mxu0 0
      %2363 = vmatprep.subr.bf16.mxu0 0
      %2364 = vmatpush1.bf16.msra.mxu0 0
      %2365 = vmatprep.subr.bf16.mxu0 0
      %2366 = vmatpush1.bf16.msra.mxu0 0
      %2367 = vmatprep.subr.bf16.mxu0 0
      %2368 = vmatpush1.bf16.msra.mxu0 0
      %2369 = vmatprep.subr.bf16.mxu0 0
      %2370 = vmatpush1.bf16.msra.mxu0 0
      %2371 = vmatprep.subr.bf16.mxu0 0
      %2372 = vmatpush1.bf16.msra.mxu0 0
      %2373 = vmatprep.subr.bf16.mxu0 0
      %2374 = vmatpush1.bf16.msra.mxu0 0
      %2375 = vmatprep.mubr.bf16.mxu0 0
      %2376 = vmatmul.mubr.bf16.gmra.mrb[0].mxu0 %v2171
      %v2377 = vpop.f32.mrb[0].mxu0
      %v2378 = vadd.f32 0.0, %v2377
      %v2379 = vpop.f32.mrb[0].mxu0
      %v2380 = vpop.f32.mrb[0].mxu0
      %v2381 = vadd.f32 0.0, %v2380
      %v2382 = vpop.f32.mrb[0].mxu0
      %2383 = vmatprep.mubr.bf16.mxu0 0
      %2384 = vmatmul.mubr.bf16.gmra.mrb[0].mxu0 %v2174
      %v2385 = vpop.f32.mrb[0].mxu0
      %v2386 = vadd.f32 0.0, %v2385
      %v2387 = vpop.f32.mrb[0].mxu0
      %v2388 = vpop.f32.mrb[0].mxu0
      %v2389 = vadd.f32 0.0, %v2388
      %v2390 = vpop.f32.mrb[0].mxu0
      %2391 = vmatprep.mubr.bf16.mxu0 0
      %2392 = vmatmul.mubr.bf16.gmra.mrb[0].mxu0 %v2177
      %v2393 = vpop.f32.mrb[0].mxu0
      %v2394 = vadd.f32 0.0, %v2393
      %v2395 = vpop.f32.mrb[0].mxu0
      %v2396 = vpop.f32.mrb[0].mxu0
      %v2397 = vadd.f32 0.0, %v2396
      %v2398 = vpop.f32.mrb[0].mxu0
      %2399 = vmatprep.mubr.bf16.mxu0 0
      %2400 = vmatmul.mubr.bf16.gmra.mrb[0].mxu0 %v2180
      %v2401 = vpop.f32.mrb[0].mxu0
      %v2402 = vadd.f32 0.0, %v2401
      %v2403 = vpop.f32.mrb[0].mxu0
      %v2404 = vpop.f32.mrb[0].mxu0
      %v2405 = vadd.f32 0.0, %v2404
      %v2406 = vpop.f32.mrb[0].mxu0
      %2407 = vdwg.mxu0
      %v2408 = vadd.f32 %v2080, %v2232
      %v2409 = vadd.f32 %v2081, %v2234
      %v2410 = vadd.f32 %v2082, %v2305
      %v2411 = vadd.f32 %v2083, %v2307
      %v2412 = vadd.f32 %v2084, %v2378
      %v2413 = vadd.f32 %v2085, %v2236
      %v2414 = vadd.f32 %v2086, %v2238
      %v2415 = vadd.f32 %v2087, %v2309
      %v2416 = vadd.f32 %v2088, %v2311
      %v2417 = vadd.f32 %v2089, %v2381
      %v2418 = vadd.f32 %v2090, %v2242
      %v2419 = vadd.f32 %v2091, %v2244
      %v2420 = vadd.f32 %v2092, %v2315
      %v2421 = vadd.f32 %v2093, %v2317
      %v2422 = vadd.f32 %v2094, %v2386
      %v2423 = vadd.f32 %v2095, %v2246
      %v2424 = vadd.f32 %v2096, %v2248
      %v2425 = vadd.f32 %v2097, %v2319
      %v2426 = vadd.f32 %v2098, %v2321
      %v2427 = vadd.f32 %v2099, %v2389
      %v2428 = vadd.f32 %v2100, %v2252
      %v2429 = vadd.f32 %v2101, %v2254
      %v2430 = vadd.f32 %v2102, %v2325
      %v2431 = vadd.f32 %v2103, %v2327
      %v2432 = vadd.f32 %v2104, %v2394
      %v2433 = vadd.f32 %v2105, %v2256
      %v2434 = vadd.f32 %v2106, %v2258
      %v2435 = vadd.f32 %v2107, %v2329
      %v2436 = vadd.f32 %v2108, %v2331
      %v2437 = vadd.f32 %v2109, %v2397
      %v2438 = vadd.f32 %v2110, %v2262
      %v2439 = vadd.f32 %v2111, %v2264
      %v2440 = vadd.f32 %v2112, %v2335
      %v2441 = vadd.f32 %v2113, %v2337
      %v2442 = vadd.f32 %v2114, %v2402
      %v2443 = vadd.f32 %v2115, %v2266
      %v2444 = vadd.f32 %v2116, %v2268
      %v2445 = vadd.f32 %v2117, %v2339
      %v2446 = vadd.f32 %v2118, %v2341
      %v2447 = vadd.f32 %v2119, %v2405
      %2448 = vrot.lane.b32.xlu0 %v564, 97
      %v2449 = vpop.permute.xlu0 %2448
      %2450 = vrot.lane.b32.xlu0 %v569, 97
      %v2451 = vpop.permute.xlu0 %2450
      %2452 = vrot.lane.b32.xlu0 %v565, 97
      %v2453 = vpop.permute.xlu0 %2452
      %2454 = vrot.lane.b32.xlu0 %v570, 97
      %v2455 = vpop.permute.xlu0 %2454
      %2456 = vrot.lane.b32.xlu0 %v566, 97
      %v2457 = vpop.permute.xlu0 %2456
      %vm2458 = vcmp.lt.s32.totalorder %v584, 97
      %v2459 = vsel %vm2458, %v2455, %v2457
      %v2460 = vsel %vm2458, %v2453, %v2455
      %v2461 = vsel %vm2458, %v2451, %v2453
      %v2462 = vsel %vm2458, %v2449, %v2451
      %v2463 = vsel %vm2458, %v2457, %v2449
      %s2464 = scalar_lea.vmem %s2, 192
      %v2465 = vld [vmem:[%s2464] sm:$0xf]
      %v2466 = vld [vmem:[%s2464 + $0x4] sm:$0xf]
      %v2467 = vld [vmem:[%s2464 + $0x8] sm:$0xf]
      %v2468 = vld [vmem:[%s2464 + $0xc] sm:$0xf]
      %v2469 = vld [vmem:[%s2464 + $0x10] sm:$0xf]
      %v2470 = vld [vmem:[%s2464 + $0x14] sm:$0xf]
      %v2471 = vld [vmem:[%s2464 + $0x18] sm:$0xf]
      %v2472 = vld [vmem:[%s2464 + $0x1c] sm:$0xf]
      %v2473 = vpack.c.bf16 %v2462, %v2462
      %v2474 = vpack.c.bf16 %v2461, %v2461
      %v2475 = vpack.c.bf16 %v2460, %v2460
      %v2476 = vpack.c.bf16 %v2459, %v2459
      %v2477 = vpack.c.bf16 %v2463, %v2463
      %v2486 = vunpack.c.l.b16 %v2465
      %v2487 = vunpack.c.l.b16 %v2466
      %v2488 = vunpack.c.l.b16 %v2467
      %v2489 = vunpack.c.l.b16 %v2468
      %v2490 = vunpack.c.l.b16 %v2469
      %v2491 = vunpack.c.l.b16 %v2470
      %v2492 = vunpack.c.l.b16 %v2471
      %v2493 = vunpack.c.l.b16 %v2472
      %v2494 = vpack.c.b16 %v2487, %v2486
      %v2495 = vpack.c.b16 %v2489, %v2488
      %v2496 = vpack.c.b16 %v2491, %v2490
      %v2497 = vpack.c.b16 %v2493, %v2492
      %v2499 = vsel %vm654, %v2494, 0
      %v2502 = vsel %vm654, %v2495, 0
      %v2505 = vsel %vm654, %v2496, 0
      %v2508 = vsel %vm654, %v2497, 0
      %v2511 = vsel %vm667, %v2473, 0
      %v2514 = vsel %vm667, %v2474, 0
      %v2517 = vsel %vm667, %v2475, 0
      %v2520 = vsel %vm667, %v2476, 0
      %v2523 = vsel %vm667, %v2477, 0
      %2525 = vmatprep.subr.bf16.mxu0 %v2514
      %2526 = vmatpush1.bf16.msra.mxu0 %v2511
      %2527 = vmatprep.subr.bf16.mxu0 0
      %2528 = vmatpush1.bf16.msra.mxu0 0
      %2529 = vmatprep.subr.bf16.mxu0 0
      %2530 = vmatpush1.bf16.msra.mxu0 0
      %2531 = vmatprep.subr.bf16.mxu0 0
      %2532 = vmatpush1.bf16.msra.mxu0 0
      %2533 = vmatprep.subr.bf16.mxu0 0
      %2534 = vmatpush1.bf16.msra.mxu0 0
      %2535 = vmatprep.subr.bf16.mxu0 0
      %2536 = vmatpush1.bf16.msra.mxu0 0
      %2537 = vmatprep.subr.bf16.mxu0 0
      %2538 = vmatpush1.bf16.msra.mxu0 0
      %2539 = vmatprep.subr.bf16.mxu0 0
      %2540 = vmatpush1.bf16.msra.mxu0 0
      %2541 = vmatprep.subr.bf16.mxu0 0
      %2542 = vmatpush1.bf16.msra.mxu0 0
      %2543 = vmatprep.subr.bf16.mxu0 0
      %2544 = vmatpush1.bf16.msra.mxu0 0
      %2545 = vmatprep.subr.bf16.mxu0 0
      %2546 = vmatpush1.bf16.msra.mxu0 0
      %2547 = vmatprep.subr.bf16.mxu0 0
      %2548 = vmatpush1.bf16.msra.mxu0 0
      %2549 = vmatprep.subr.bf16.mxu0 0
      %2550 = vmatpush1.bf16.msra.mxu0 0
      %2551 = vmatprep.subr.bf16.mxu0 0
      %2552 = vmatpush1.bf16.msra.mxu0 0
      %2553 = vmatprep.subr.bf16.mxu0 0
      %2554 = vmatpush1.bf16.msra.mxu0 0
      %2555 = vmatprep.subr.bf16.mxu0 0
      %2556 = vmatpush1.bf16.msra.mxu0 0
      %2557 = vmatprep.mubr.bf16.mxu0 0
      %2558 = vmatmul.mubr.bf16.gmra.mrb[0].mxu0 %v2499
      %v2559 = vpop.f32.mrb[0].mxu0
      %v2560 = vadd.f32 0.0, %v2559
      %v2561 = vpop.f32.mrb[0].mxu0
      %v2562 = vadd.f32 0.0, %v2561
      %v2563 = vpop.f32.mrb[0].mxu0
      %v2564 = vadd.f32 0.0, %v2563
      %v2565 = vpop.f32.mrb[0].mxu0
      %v2566 = vadd.f32 0.0, %v2565
      %2567 = vmatprep.mubr.bf16.mxu0 0
      %2568 = vmatmul.mubr.bf16.gmra.mrb[0].mxu0 %v2502
      %v2569 = vpop.f32.mrb[0].mxu0
      %v2570 = vadd.f32 0.0, %v2569
      %v2571 = vpop.f32.mrb[0].mxu0
      %v2572 = vadd.f32 0.0, %v2571
      %v2573 = vpop.f32.mrb[0].mxu0
      %v2574 = vadd.f32 0.0, %v2573
      %v2575 = vpop.f32.mrb[0].mxu0
      %v2576 = vadd.f32 0.0, %v2575
      %2577 = vmatprep.mubr.bf16.mxu0 0
      %2578 = vmatmul.mubr.bf16.gmra.mrb[0].mxu0 %v2505
      %v2579 = vpop.f32.mrb[0].mxu0
      %v2580 = vadd.f32 0.0, %v2579
      %v2581 = vpop.f32.mrb[0].mxu0
      %v2582 = vadd.f32 0.0, %v2581
      %v2583 = vpop.f32.mrb[0].mxu0
      %v2584 = vadd.f32 0.0, %v2583
      %v2585 = vpop.f32.mrb[0].mxu0
      %v2586 = vadd.f32 0.0, %v2585
      %2587 = vmatprep.mubr.bf16.mxu0 0
      %2588 = vmatmul.mubr.bf16.gmra.mrb[0].mxu0 %v2508
      %v2589 = vpop.f32.mrb[0].mxu0
      %v2590 = vadd.f32 0.0, %v2589
      %v2591 = vpop.f32.mrb[0].mxu0
      %v2592 = vadd.f32 0.0, %v2591
      %v2593 = vpop.f32.mrb[0].mxu0
      %v2594 = vadd.f32 0.0, %v2593
      %v2595 = vpop.f32.mrb[0].mxu0
      %v2596 = vadd.f32 0.0, %v2595
      %2597 = vdwg.mxu0
      %2598 = vmatprep.subr.bf16.mxu0 %v2520
      %2599 = vmatpush1.bf16.msra.mxu0 %v2517
      %2600 = vmatprep.subr.bf16.mxu0 0
      %2601 = vmatpush1.bf16.msra.mxu0 0
      %2602 = vmatprep.subr.bf16.mxu0 0
      %2603 = vmatpush1.bf16.msra.mxu0 0
      %2604 = vmatprep.subr.bf16.mxu0 0
      %2605 = vmatpush1.bf16.msra.mxu0 0
      %2606 = vmatprep.subr.bf16.mxu0 0
      %2607 = vmatpush1.bf16.msra.mxu0 0
      %2608 = vmatprep.subr.bf16.mxu0 0
      %2609 = vmatpush1.bf16.msra.mxu0 0
      %2610 = vmatprep.subr.bf16.mxu0 0
      %2611 = vmatpush1.bf16.msra.mxu0 0
      %2612 = vmatprep.subr.bf16.mxu0 0
      %2613 = vmatpush1.bf16.msra.mxu0 0
      %2614 = vmatprep.subr.bf16.mxu0 0
      %2615 = vmatpush1.bf16.msra.mxu0 0
      %2616 = vmatprep.subr.bf16.mxu0 0
      %2617 = vmatpush1.bf16.msra.mxu0 0
      %2618 = vmatprep.subr.bf16.mxu0 0
      %2619 = vmatpush1.bf16.msra.mxu0 0
      %2620 = vmatprep.subr.bf16.mxu0 0
      %2621 = vmatpush1.bf16.msra.mxu0 0
      %2622 = vmatprep.subr.bf16.mxu0 0
      %2623 = vmatpush1.bf16.msra.mxu0 0
      %2624 = vmatprep.subr.bf16.mxu0 0
      %2625 = vmatpush1.bf16.msra.mxu0 0
      %2626 = vmatprep.subr.bf16.mxu0 0
      %2627 = vmatpush1.bf16.msra.mxu0 0
      %2628 = vmatprep.subr.bf16.mxu0 0
      %2629 = vmatpush1.bf16.msra.mxu0 0
      %2630 = vmatprep.mubr.bf16.mxu0 0
      %2631 = vmatmul.mubr.bf16.gmra.mrb[0].mxu0 %v2499
      %v2632 = vpop.f32.mrb[0].mxu0
      %v2633 = vadd.f32 0.0, %v2632
      %v2634 = vpop.f32.mrb[0].mxu0
      %v2635 = vadd.f32 0.0, %v2634
      %v2636 = vpop.f32.mrb[0].mxu0
      %v2637 = vadd.f32 0.0, %v2636
      %v2638 = vpop.f32.mrb[0].mxu0
      %v2639 = vadd.f32 0.0, %v2638
      %2640 = vmatprep.mubr.bf16.mxu0 0
      %2641 = vmatmul.mubr.bf16.gmra.mrb[0].mxu0 %v2502
      %v2642 = vpop.f32.mrb[0].mxu0
      %v2643 = vadd.f32 0.0, %v2642
      %v2644 = vpop.f32.mrb[0].mxu0
      %v2645 = vadd.f32 0.0, %v2644
      %v2646 = vpop.f32.mrb[0].mxu0
      %v2647 = vadd.f32 0.0, %v2646
      %v2648 = vpop.f32.mrb[0].mxu0
      %v2649 = vadd.f32 0.0, %v2648
      %2650 = vmatprep.mubr.bf16.mxu0 0
      %2651 = vmatmul.mubr.bf16.gmra.mrb[0].mxu0 %v2505
      %v2652 = vpop.f32.mrb[0].mxu0
      %v2653 = vadd.f32 0.0, %v2652
      %v2654 = vpop.f32.mrb[0].mxu0
      %v2655 = vadd.f32 0.0, %v2654
      %v2656 = vpop.f32.mrb[0].mxu0
      %v2657 = vadd.f32 0.0, %v2656
      %v2658 = vpop.f32.mrb[0].mxu0
      %v2659 = vadd.f32 0.0, %v2658
      %2660 = vmatprep.mubr.bf16.mxu0 0
      %2661 = vmatmul.mubr.bf16.gmra.mrb[0].mxu0 %v2508
      %v2662 = vpop.f32.mrb[0].mxu0
      %v2663 = vadd.f32 0.0, %v2662
      %v2664 = vpop.f32.mrb[0].mxu0
      %v2665 = vadd.f32 0.0, %v2664
      %v2666 = vpop.f32.mrb[0].mxu0
      %v2667 = vadd.f32 0.0, %v2666
      %v2668 = vpop.f32.mrb[0].mxu0
      %v2669 = vadd.f32 0.0, %v2668
      %2670 = vdwg.mxu0
      %2671 = vmatprep.subr.bf16.mxu0 0
      %2672 = vmatpush1.bf16.msra.mxu0 %v2523
      %2673 = vmatprep.subr.bf16.mxu0 0
      %2674 = vmatpush1.bf16.msra.mxu0 0
      %2675 = vmatprep.subr.bf16.mxu0 0
      %2676 = vmatpush1.bf16.msra.mxu0 0
      %2677 = vmatprep.subr.bf16.mxu0 0
      %2678 = vmatpush1.bf16.msra.mxu0 0
      %2679 = vmatprep.subr.bf16.mxu0 0
      %2680 = vmatpush1.bf16.msra.mxu0 0
      %2681 = vmatprep.subr.bf16.mxu0 0
      %2682 = vmatpush1.bf16.msra.mxu0 0
      %2683 = vmatprep.subr.bf16.mxu0 0
      %2684 = vmatpush1.bf16.msra.mxu0 0
      %2685 = vmatprep.subr.bf16.mxu0 0
      %2686 = vmatpush1.bf16.msra.mxu0 0
      %2687 = vmatprep.subr.bf16.mxu0 0
      %2688 = vmatpush1.bf16.msra.mxu0 0
      %2689 = vmatprep.subr.bf16.mxu0 0
      %2690 = vmatpush1.bf16.msra.mxu0 0
      %2691 = vmatprep.subr.bf16.mxu0 0
      %2692 = vmatpush1.bf16.msra.mxu0 0
      %2693 = vmatprep.subr.bf16.mxu0 0
      %2694 = vmatpush1.bf16.msra.mxu0 0
      %2695 = vmatprep.subr.bf16.mxu0 0
      %2696 = vmatpush1.bf16.msra.mxu0 0
      %2697 = vmatprep.subr.bf16.mxu0 0
      %2698 = vmatpush1.bf16.msra.mxu0 0
      %2699 = vmatprep.subr.bf16.mxu0 0
      %2700 = vmatpush1.bf16.msra.mxu0 0
      %2701 = vmatprep.subr.bf16.mxu0 0
      %2702 = vmatpush1.bf16.msra.mxu0 0
      %2703 = vmatprep.mubr.bf16.mxu0 0
      %2704 = vmatmul.mubr.bf16.gmra.mrb[0].mxu0 %v2499
      %v2705 = vpop.f32.mrb[0].mxu0
      %v2706 = vadd.f32 0.0, %v2705
      %v2707 = vpop.f32.mrb[0].mxu0
      %v2708 = vpop.f32.mrb[0].mxu0
      %v2709 = vadd.f32 0.0, %v2708
      %v2710 = vpop.f32.mrb[0].mxu0
      %2711 = vmatprep.mubr.bf16.mxu0 0
      %2712 = vmatmul.mubr.bf16.gmra.mrb[0].mxu0 %v2502
      %v2713 = vpop.f32.mrb[0].mxu0
      %v2714 = vadd.f32 0.0, %v2713
      %v2715 = vpop.f32.mrb[0].mxu0
      %v2716 = vpop.f32.mrb[0].mxu0
      %v2717 = vadd.f32 0.0, %v2716
      %v2718 = vpop.f32.mrb[0].mxu0
      %2719 = vmatprep.mubr.bf16.mxu0 0
      %2720 = vmatmul.mubr.bf16.gmra.mrb[0].mxu0 %v2505
      %v2721 = vpop.f32.mrb[0].mxu0
      %v2722 = vadd.f32 0.0, %v2721
      %v2723 = vpop.f32.mrb[0].mxu0
      %v2724 = vpop.f32.mrb[0].mxu0
      %v2725 = vadd.f32 0.0, %v2724
      %v2726 = vpop.f32.mrb[0].mxu0
      %2727 = vmatprep.mubr.bf16.mxu0 0
      %2728 = vmatmul.mubr.bf16.gmra.mrb[0].mxu0 %v2508
      %v2729 = vpop.f32.mrb[0].mxu0
      %v2730 = vadd.f32 0.0, %v2729
      %v2731 = vpop.f32.mrb[0].mxu0
      %v2732 = vpop.f32.mrb[0].mxu0
      %v2733 = vadd.f32 0.0, %v2732
      %v2734 = vpop.f32.mrb[0].mxu0
      %2735 = vdwg.mxu0
      %v2736 = vadd.f32 %v2408, %v2560
      %v2737 = vadd.f32 %v2409, %v2562
      %v2738 = vadd.f32 %v2410, %v2633
      %v2739 = vadd.f32 %v2411, %v2635
      %v2740 = vadd.f32 %v2412, %v2706
      %v2741 = vadd.f32 %v2413, %v2564
      %v2742 = vadd.f32 %v2414, %v2566
      %v2743 = vadd.f32 %v2415, %v2637
      %v2744 = vadd.f32 %v2416, %v2639
      %v2745 = vadd.f32 %v2417, %v2709
      %v2746 = vadd.f32 %v2418, %v2570
      %v2747 = vadd.f32 %v2419, %v2572
      %v2748 = vadd.f32 %v2420, %v2643
      %v2749 = vadd.f32 %v2421, %v2645
      %v2750 = vadd.f32 %v2422, %v2714
      %v2751 = vadd.f32 %v2423, %v2574
      %v2752 = vadd.f32 %v2424, %v2576
      %v2753 = vadd.f32 %v2425, %v2647
      %v2754 = vadd.f32 %v2426, %v2649
      %v2755 = vadd.f32 %v2427, %v2717
      %v2756 = vadd.f32 %v2428, %v2580
      %v2757 = vadd.f32 %v2429, %v2582
      %v2758 = vadd.f32 %v2430, %v2653
      %v2759 = vadd.f32 %v2431, %v2655
      %v2760 = vadd.f32 %v2432, %v2722
      %v2761 = vadd.f32 %v2433, %v2584
      %v2762 = vadd.f32 %v2434, %v2586
      %v2763 = vadd.f32 %v2435, %v2657
      %v2764 = vadd.f32 %v2436, %v2659
      %v2765 = vadd.f32 %v2437, %v2725
      %v2766 = vadd.f32 %v2438, %v2590
      %v2767 = vadd.f32 %v2439, %v2592
      %v2768 = vadd.f32 %v2440, %v2663
      %v2769 = vadd.f32 %v2441, %v2665
      %v2770 = vadd.f32 %v2442, %v2730
      %v2771 = vadd.f32 %v2443, %v2594
      %v2772 = vadd.f32 %v2444, %v2596
      %v2773 = vadd.f32 %v2445, %v2667
      %v2774 = vadd.f32 %v2446, %v2669
      %v2775 = vadd.f32 %v2447, %v2733
      %2776 = vrot.lane.b32.xlu0 %v564, 96
      %v2777 = vpop.permute.xlu0 %2776
      %2778 = vrot.lane.b32.xlu0 %v569, 96
      %v2779 = vpop.permute.xlu0 %2778
      %2780 = vrot.lane.b32.xlu0 %v565, 96
      %v2781 = vpop.permute.xlu0 %2780
      %2782 = vrot.lane.b32.xlu0 %v570, 96
      %v2783 = vpop.permute.xlu0 %2782
      %2784 = vrot.lane.b32.xlu0 %v566, 96
      %v2785 = vpop.permute.xlu0 %2784
      %vm2786 = vcmp.lt.s32.totalorder %v584, 96
      %v2787 = vsel %vm2786, %v2783, %v2785
      %v2788 = vsel %vm2786, %v2781, %v2783
      %v2789 = vsel %vm2786, %v2779, %v2781
      %v2790 = vsel %vm2786, %v2777, %v2779
      %v2791 = vsel %vm2786, %v2785, %v2777
      %s2792 = scalar_lea.vmem %s2, 224
      %v2793 = vld [vmem:[%s2792] sm:$0xf]
      %v2794 = vld [vmem:[%s2792 + $0x4] sm:$0xf]
      %v2795 = vld [vmem:[%s2792 + $0x8] sm:$0xf]
      %v2796 = vld [vmem:[%s2792 + $0xc] sm:$0xf]
      %v2797 = vld [vmem:[%s2792 + $0x10] sm:$0xf]
      %v2798 = vld [vmem:[%s2792 + $0x14] sm:$0xf]
      %v2799 = vld [vmem:[%s2792 + $0x18] sm:$0xf]
      %v2800 = vld [vmem:[%s2792 + $0x1c] sm:$0xf]
      %v2801 = vpack.c.bf16 %v2790, %v2790
      %v2802 = vpack.c.bf16 %v2789, %v2789
      %v2803 = vpack.c.bf16 %v2788, %v2788
      %v2804 = vpack.c.bf16 %v2787, %v2787
      %v2805 = vpack.c.bf16 %v2791, %v2791
      %v2814 = vunpack.c.l.b16 %v2793
      %v2815 = vunpack.c.l.b16 %v2794
      %v2816 = vunpack.c.l.b16 %v2795
      %v2817 = vunpack.c.l.b16 %v2796
      %v2818 = vunpack.c.l.b16 %v2797
      %v2819 = vunpack.c.l.b16 %v2798
      %v2820 = vunpack.c.l.b16 %v2799
      %v2821 = vunpack.c.l.b16 %v2800
      %v2822 = vpack.c.b16 %v2815, %v2814
      %v2823 = vpack.c.b16 %v2817, %v2816
      %v2824 = vpack.c.b16 %v2819, %v2818
      %v2825 = vpack.c.b16 %v2821, %v2820
      %v2827 = vsel %vm654, %v2822, 0
      %v2830 = vsel %vm654, %v2823, 0
      %v2833 = vsel %vm654, %v2824, 0
      %v2836 = vsel %vm654, %v2825, 0
      %v2839 = vsel %vm667, %v2801, 0
      %v2842 = vsel %vm667, %v2802, 0
      %v2845 = vsel %vm667, %v2803, 0
      %v2848 = vsel %vm667, %v2804, 0
      %v2851 = vsel %vm667, %v2805, 0
      %2853 = vmatprep.subr.bf16.mxu0 %v2842
      %2854 = vmatpush1.bf16.msra.mxu0 %v2839
      %2855 = vmatprep.subr.bf16.mxu0 0
      %2856 = vmatpush1.bf16.msra.mxu0 0
      %2857 = vmatprep.subr.bf16.mxu0 0
      %2858 = vmatpush1.bf16.msra.mxu0 0
      %2859 = vmatprep.subr.bf16.mxu0 0
      %2860 = vmatpush1.bf16.msra.mxu0 0
      %2861 = vmatprep.subr.bf16.mxu0 0
      %2862 = vmatpush1.bf16.msra.mxu0 0
      %2863 = vmatprep.subr.bf16.mxu0 0
      %2864 = vmatpush1.bf16.msra.mxu0 0
      %2865 = vmatprep.subr.bf16.mxu0 0
      %2866 = vmatpush1.bf16.msra.mxu0 0
      %2867 = vmatprep.subr.bf16.mxu0 0
      %2868 = vmatpush1.bf16.msra.mxu0 0
      %2869 = vmatprep.subr.bf16.mxu0 0
      %2870 = vmatpush1.bf16.msra.mxu0 0
      %2871 = vmatprep.subr.bf16.mxu0 0
      %2872 = vmatpush1.bf16.msra.mxu0 0
      %2873 = vmatprep.subr.bf16.mxu0 0
      %2874 = vmatpush1.bf16.msra.mxu0 0
      %2875 = vmatprep.subr.bf16.mxu0 0
      %2876 = vmatpush1.bf16.msra.mxu0 0
      %2877 = vmatprep.subr.bf16.mxu0 0
      %2878 = vmatpush1.bf16.msra.mxu0 0
      %2879 = vmatprep.subr.bf16.mxu0 0
      %2880 = vmatpush1.bf16.msra.mxu0 0
      %2881 = vmatprep.subr.bf16.mxu0 0
      %2882 = vmatpush1.bf16.msra.mxu0 0
      %2883 = vmatprep.subr.bf16.mxu0 0
      %2884 = vmatpush1.bf16.msra.mxu0 0
      %2885 = vmatprep.mubr.bf16.mxu0 0
      %2886 = vmatmul.mubr.bf16.gmra.mrb[0].mxu0 %v2827
      %v2887 = vpop.f32.mrb[0].mxu0
      %v2888 = vadd.f32 0.0, %v2887
      %v2889 = vpop.f32.mrb[0].mxu0
      %v2890 = vadd.f32 0.0, %v2889
      %v2891 = vpop.f32.mrb[0].mxu0
      %v2892 = vadd.f32 0.0, %v2891
      %v2893 = vpop.f32.mrb[0].mxu0
      %v2894 = vadd.f32 0.0, %v2893
      %2895 = vmatprep.mubr.bf16.mxu0 0
      %2896 = vmatmul.mubr.bf16.gmra.mrb[0].mxu0 %v2830
      %v2897 = vpop.f32.mrb[0].mxu0
      %v2898 = vadd.f32 0.0, %v2897
      %v2899 = vpop.f32.mrb[0].mxu0
      %v2900 = vadd.f32 0.0, %v2899
      %v2901 = vpop.f32.mrb[0].mxu0
      %v2902 = vadd.f32 0.0, %v2901
      %v2903 = vpop.f32.mrb[0].mxu0
      %v2904 = vadd.f32 0.0, %v2903
      %2905 = vmatprep.mubr.bf16.mxu0 0
      %2906 = vmatmul.mubr.bf16.gmra.mrb[0].mxu0 %v2833
      %v2907 = vpop.f32.mrb[0].mxu0
      %v2908 = vadd.f32 0.0, %v2907
      %v2909 = vpop.f32.mrb[0].mxu0
      %v2910 = vadd.f32 0.0, %v2909
      %v2911 = vpop.f32.mrb[0].mxu0
      %v2912 = vadd.f32 0.0, %v2911
      %v2913 = vpop.f32.mrb[0].mxu0
      %v2914 = vadd.f32 0.0, %v2913
      %2915 = vmatprep.mubr.bf16.mxu0 0
      %2916 = vmatmul.mubr.bf16.gmra.mrb[0].mxu0 %v2836
      %v2917 = vpop.f32.mrb[0].mxu0
      %v2918 = vadd.f32 0.0, %v2917
      %v2919 = vpop.f32.mrb[0].mxu0
      %v2920 = vadd.f32 0.0, %v2919
      %v2921 = vpop.f32.mrb[0].mxu0
      %v2922 = vadd.f32 0.0, %v2921
      %v2923 = vpop.f32.mrb[0].mxu0
      %v2924 = vadd.f32 0.0, %v2923
      %2925 = vdwg.mxu0
      %2926 = vmatprep.subr.bf16.mxu0 %v2848
      %2927 = vmatpush1.bf16.msra.mxu0 %v2845
      %2928 = vmatprep.subr.bf16.mxu0 0
      %2929 = vmatpush1.bf16.msra.mxu0 0
      %2930 = vmatprep.subr.bf16.mxu0 0
      %2931 = vmatpush1.bf16.msra.mxu0 0
      %2932 = vmatprep.subr.bf16.mxu0 0
      %2933 = vmatpush1.bf16.msra.mxu0 0
      %2934 = vmatprep.subr.bf16.mxu0 0
      %2935 = vmatpush1.bf16.msra.mxu0 0
      %2936 = vmatprep.subr.bf16.mxu0 0
      %2937 = vmatpush1.bf16.msra.mxu0 0
      %2938 = vmatprep.subr.bf16.mxu0 0
      %2939 = vmatpush1.bf16.msra.mxu0 0
      %2940 = vmatprep.subr.bf16.mxu0 0
      %2941 = vmatpush1.bf16.msra.mxu0 0
      %2942 = vmatprep.subr.bf16.mxu0 0
      %2943 = vmatpush1.bf16.msra.mxu0 0
      %2944 = vmatprep.subr.bf16.mxu0 0
      %2945 = vmatpush1.bf16.msra.mxu0 0
      %2946 = vmatprep.subr.bf16.mxu0 0
      %2947 = vmatpush1.bf16.msra.mxu0 0
      %2948 = vmatprep.subr.bf16.mxu0 0
      %2949 = vmatpush1.bf16.msra.mxu0 0
      %2950 = vmatprep.subr.bf16.mxu0 0
      %2951 = vmatpush1.bf16.msra.mxu0 0
      %2952 = vmatprep.subr.bf16.mxu0 0
      %2953 = vmatpush1.bf16.msra.mxu0 0
      %2954 = vmatprep.subr.bf16.mxu0 0
      %2955 = vmatpush1.bf16.msra.mxu0 0
      %2956 = vmatprep.subr.bf16.mxu0 0
      %2957 = vmatpush1.bf16.msra.mxu0 0
      %2958 = vmatprep.mubr.bf16.mxu0 0
      %2959 = vmatmul.mubr.bf16.gmra.mrb[0].mxu0 %v2827
      %v2960 = vpop.f32.mrb[0].mxu0
      %v2961 = vadd.f32 0.0, %v2960
      %v2962 = vpop.f32.mrb[0].mxu0
      %v2963 = vadd.f32 0.0, %v2962
      %v2964 = vpop.f32.mrb[0].mxu0
      %v2965 = vadd.f32 0.0, %v2964
      %v2966 = vpop.f32.mrb[0].mxu0
      %v2967 = vadd.f32 0.0, %v2966
      %2968 = vmatprep.mubr.bf16.mxu0 0
      %2969 = vmatmul.mubr.bf16.gmra.mrb[0].mxu0 %v2830
      %v2970 = vpop.f32.mrb[0].mxu0
      %v2971 = vadd.f32 0.0, %v2970
      %v2972 = vpop.f32.mrb[0].mxu0
      %v2973 = vadd.f32 0.0, %v2972
      %v2974 = vpop.f32.mrb[0].mxu0
      %v2975 = vadd.f32 0.0, %v2974
      %v2976 = vpop.f32.mrb[0].mxu0
      %v2977 = vadd.f32 0.0, %v2976
      %2978 = vmatprep.mubr.bf16.mxu0 0
      %2979 = vmatmul.mubr.bf16.gmra.mrb[0].mxu0 %v2833
      %v2980 = vpop.f32.mrb[0].mxu0
      %v2981 = vadd.f32 0.0, %v2980
      %v2982 = vpop.f32.mrb[0].mxu0
      %v2983 = vadd.f32 0.0, %v2982
      %v2984 = vpop.f32.mrb[0].mxu0
      %v2985 = vadd.f32 0.0, %v2984
      %v2986 = vpop.f32.mrb[0].mxu0
      %v2987 = vadd.f32 0.0, %v2986
      %2988 = vmatprep.mubr.bf16.mxu0 0
      %2989 = vmatmul.mubr.bf16.gmra.mrb[0].mxu0 %v2836
      %v2990 = vpop.f32.mrb[0].mxu0
      %v2991 = vadd.f32 0.0, %v2990
      %v2992 = vpop.f32.mrb[0].mxu0
      %v2993 = vadd.f32 0.0, %v2992
      %v2994 = vpop.f32.mrb[0].mxu0
      %v2995 = vadd.f32 0.0, %v2994
      %v2996 = vpop.f32.mrb[0].mxu0
      %v2997 = vadd.f32 0.0, %v2996
      %2998 = vdwg.mxu0
      %2999 = vmatprep.subr.bf16.mxu0 0
      %3000 = vmatpush1.bf16.msra.mxu0 %v2851
      %3001 = vmatprep.subr.bf16.mxu0 0
      %3002 = vmatpush1.bf16.msra.mxu0 0
      %3003 = vmatprep.subr.bf16.mxu0 0
      %3004 = vmatpush1.bf16.msra.mxu0 0
      %3005 = vmatprep.subr.bf16.mxu0 0
      %3006 = vmatpush1.bf16.msra.mxu0 0
      %3007 = vmatprep.subr.bf16.mxu0 0
      %3008 = vmatpush1.bf16.msra.mxu0 0
      %3009 = vmatprep.subr.bf16.mxu0 0
      %3010 = vmatpush1.bf16.msra.mxu0 0
      %3011 = vmatprep.subr.bf16.mxu0 0
      %3012 = vmatpush1.bf16.msra.mxu0 0
      %3013 = vmatprep.subr.bf16.mxu0 0
      %3014 = vmatpush1.bf16.msra.mxu0 0
      %3015 = vmatprep.subr.bf16.mxu0 0
      %3016 = vmatpush1.bf16.msra.mxu0 0
      %3017 = vmatprep.subr.bf16.mxu0 0
      %3018 = vmatpush1.bf16.msra.mxu0 0
      %3019 = vmatprep.subr.bf16.mxu0 0
      %3020 = vmatpush1.bf16.msra.mxu0 0
      %3021 = vmatprep.subr.bf16.mxu0 0
      %3022 = vmatpush1.bf16.msra.mxu0 0
      %3023 = vmatprep.subr.bf16.mxu0 0
      %3024 = vmatpush1.bf16.msra.mxu0 0
      %3025 = vmatprep.subr.bf16.mxu0 0
      %3026 = vmatpush1.bf16.msra.mxu0 0
      %3027 = vmatprep.subr.bf16.mxu0 0
      %3028 = vmatpush1.bf16.msra.mxu0 0
      %3029 = vmatprep.subr.bf16.mxu0 0
      %3030 = vmatpush1.bf16.msra.mxu0 0
      %3031 = vmatprep.mubr.bf16.mxu0 0
      %3032 = vmatmul.mubr.bf16.gmra.mrb[0].mxu0 %v2827
      %v3033 = vpop.f32.mrb[0].mxu0
      %v3034 = vadd.f32 0.0, %v3033
      %v3035 = vpop.f32.mrb[0].mxu0
      %v3036 = vpop.f32.mrb[0].mxu0
      %v3037 = vadd.f32 0.0, %v3036
      %v3038 = vpop.f32.mrb[0].mxu0
      %3039 = vmatprep.mubr.bf16.mxu0 0
      %3040 = vmatmul.mubr.bf16.gmra.mrb[0].mxu0 %v2830
      %v3041 = vpop.f32.mrb[0].mxu0
      %v3042 = vadd.f32 0.0, %v3041
      %v3043 = vpop.f32.mrb[0].mxu0
      %v3044 = vpop.f32.mrb[0].mxu0
      %v3045 = vadd.f32 0.0, %v3044
      %v3046 = vpop.f32.mrb[0].mxu0
      %3047 = vmatprep.mubr.bf16.mxu0 0
      %3048 = vmatmul.mubr.bf16.gmra.mrb[0].mxu0 %v2833
      %v3049 = vpop.f32.mrb[0].mxu0
      %v3050 = vadd.f32 0.0, %v3049
      %v3051 = vpop.f32.mrb[0].mxu0
      %v3052 = vpop.f32.mrb[0].mxu0
      %v3053 = vadd.f32 0.0, %v3052
      %v3054 = vpop.f32.mrb[0].mxu0
      %3055 = vmatprep.mubr.bf16.mxu0 0
      %3056 = vmatmul.mubr.bf16.gmra.mrb[0].mxu0 %v2836
      %v3057 = vpop.f32.mrb[0].mxu0
      %v3058 = vadd.f32 0.0, %v3057
      %v3059 = vpop.f32.mrb[0].mxu0
      %v3060 = vpop.f32.mrb[0].mxu0
      %v3061 = vadd.f32 0.0, %v3060
      %v3062 = vpop.f32.mrb[0].mxu0
      %3063 = vdwg.mxu0
      %v3064 = vadd.f32 %v2736, %v2888
      %v3065 = vadd.f32 %v2737, %v2890
      %v3066 = vadd.f32 %v2738, %v2961
      %v3067 = vadd.f32 %v2739, %v2963
      %v3068 = vadd.f32 %v2740, %v3034
      %v3069 = vadd.f32 %v2741, %v2892
      %v3070 = vadd.f32 %v2742, %v2894
      %v3071 = vadd.f32 %v2743, %v2965
      %v3072 = vadd.f32 %v2744, %v2967
      %v3073 = vadd.f32 %v2745, %v3037
      %v3074 = vadd.f32 %v2746, %v2898
      %v3075 = vadd.f32 %v2747, %v2900
      %v3076 = vadd.f32 %v2748, %v2971
      %v3077 = vadd.f32 %v2749, %v2973
      %v3078 = vadd.f32 %v2750, %v3042
      %v3079 = vadd.f32 %v2751, %v2902
      %v3080 = vadd.f32 %v2752, %v2904
      %v3081 = vadd.f32 %v2753, %v2975
      %v3082 = vadd.f32 %v2754, %v2977
      %v3083 = vadd.f32 %v2755, %v3045
      %v3084 = vadd.f32 %v2756, %v2908
      %v3085 = vadd.f32 %v2757, %v2910
      %v3086 = vadd.f32 %v2758, %v2981
      %v3087 = vadd.f32 %v2759, %v2983
      %v3088 = vadd.f32 %v2760, %v3050
      %v3089 = vadd.f32 %v2761, %v2912
      %v3090 = vadd.f32 %v2762, %v2914
      %v3091 = vadd.f32 %v2763, %v2985
      %v3092 = vadd.f32 %v2764, %v2987
      %v3093 = vadd.f32 %v2765, %v3053
      %v3094 = vadd.f32 %v2766, %v2918
      %v3095 = vadd.f32 %v2767, %v2920
      %v3096 = vadd.f32 %v2768, %v2991
      %v3097 = vadd.f32 %v2769, %v2993
      %v3098 = vadd.f32 %v2770, %v3058
      %v3099 = vadd.f32 %v2771, %v2922
      %v3100 = vadd.f32 %v2772, %v2924
      %v3101 = vadd.f32 %v2773, %v2995
      %v3102 = vadd.f32 %v2774, %v2997
      %v3103 = vadd.f32 %v2775, %v3061
      %3104 = vrot.lane.b32.xlu0 %v564, 95
      %v3105 = vpop.permute.xlu0 %3104
      %3106 = vrot.lane.b32.xlu0 %v569, 95
      %v3107 = vpop.permute.xlu0 %3106
      %3108 = vrot.lane.b32.xlu0 %v565, 95
      %v3109 = vpop.permute.xlu0 %3108
      %3110 = vrot.lane.b32.xlu0 %v570, 95
      %v3111 = vpop.permute.xlu0 %3110
      %3112 = vrot.lane.b32.xlu0 %v566, 95
      %v3113 = vpop.permute.xlu0 %3112
      %vm3114 = vcmp.lt.s32.totalorder %v584, 95
      %v3115 = vsel %vm3114, %v3111, %v3113
      %v3116 = vsel %vm3114, %v3109, %v3111
      %v3117 = vsel %vm3114, %v3107, %v3109
      %v3118 = vsel %vm3114, %v3105, %v3107
      %v3119 = vsel %vm3114, %v3113, %v3105
      %s3120 = scalar_lea.vmem %s2, 256
      %v3121 = vld [vmem:[%s3120] sm:$0xf]
      %v3122 = vld [vmem:[%s3120 + $0x4] sm:$0xf]
      %v3123 = vld [vmem:[%s3120 + $0x8] sm:$0xf]
      %v3124 = vld [vmem:[%s3120 + $0xc] sm:$0xf]
      %v3125 = vld [vmem:[%s3120 + $0x10] sm:$0xf]
      %v3126 = vld [vmem:[%s3120 + $0x14] sm:$0xf]
      %v3127 = vld [vmem:[%s3120 + $0x18] sm:$0xf]
      %v3128 = vld [vmem:[%s3120 + $0x1c] sm:$0xf]
      %v3129 = vpack.c.bf16 %v3118, %v3118
      %v3130 = vpack.c.bf16 %v3117, %v3117
      %v3131 = vpack.c.bf16 %v3116, %v3116
      %v3132 = vpack.c.bf16 %v3115, %v3115
      %v3133 = vpack.c.bf16 %v3119, %v3119
      %v3142 = vunpack.c.l.b16 %v3121
      %v3143 = vunpack.c.l.b16 %v3122
      %v3144 = vunpack.c.l.b16 %v3123
      %v3145 = vunpack.c.l.b16 %v3124
      %v3146 = vunpack.c.l.b16 %v3125
      %v3147 = vunpack.c.l.b16 %v3126
      %v3148 = vunpack.c.l.b16 %v3127
      %v3149 = vunpack.c.l.b16 %v3128
      %v3150 = vpack.c.b16 %v3143, %v3142
      %v3151 = vpack.c.b16 %v3145, %v3144
      %v3152 = vpack.c.b16 %v3147, %v3146
      %v3153 = vpack.c.b16 %v3149, %v3148
      %v3155 = vsel %vm654, %v3150, 0
      %v3158 = vsel %vm654, %v3151, 0
      %v3161 = vsel %vm654, %v3152, 0
      %v3164 = vsel %vm654, %v3153, 0
      %v3167 = vsel %vm667, %v3129, 0
      %v3170 = vsel %vm667, %v3130, 0
      %v3173 = vsel %vm667, %v3131, 0
      %v3176 = vsel %vm667, %v3132, 0
      %v3179 = vsel %vm667, %v3133, 0
      %3181 = vmatprep.subr.bf16.mxu0 %v3170
      %3182 = vmatpush1.bf16.msra.mxu0 %v3167
      %3183 = vmatprep.subr.bf16.mxu0 0
      %3184 = vmatpush1.bf16.msra.mxu0 0
      %3185 = vmatprep.subr.bf16.mxu0 0
      %3186 = vmatpush1.bf16.msra.mxu0 0
      %3187 = vmatprep.subr.bf16.mxu0 0
      %3188 = vmatpush1.bf16.msra.mxu0 0
      %3189 = vmatprep.subr.bf16.mxu0 0
      %3190 = vmatpush1.bf16.msra.mxu0 0
      %3191 = vmatprep.subr.bf16.mxu0 0
      %3192 = vmatpush1.bf16.msra.mxu0 0
      %3193 = vmatprep.subr.bf16.mxu0 0
      %3194 = vmatpush1.bf16.msra.mxu0 0
      %3195 = vmatprep.subr.bf16.mxu0 0
      %3196 = vmatpush1.bf16.msra.mxu0 0
      %3197 = vmatprep.subr.bf16.mxu0 0
      %3198 = vmatpush1.bf16.msra.mxu0 0
      %3199 = vmatprep.subr.bf16.mxu0 0
      %3200 = vmatpush1.bf16.msra.mxu0 0
      %3201 = vmatprep.subr.bf16.mxu0 0
      %3202 = vmatpush1.bf16.msra.mxu0 0
      %3203 = vmatprep.subr.bf16.mxu0 0
      %3204 = vmatpush1.bf16.msra.mxu0 0
      %3205 = vmatprep.subr.bf16.mxu0 0
      %3206 = vmatpush1.bf16.msra.mxu0 0
      %3207 = vmatprep.subr.bf16.mxu0 0
      %3208 = vmatpush1.bf16.msra.mxu0 0
      %3209 = vmatprep.subr.bf16.mxu0 0
      %3210 = vmatpush1.bf16.msra.mxu0 0
      %3211 = vmatprep.subr.bf16.mxu0 0
      %3212 = vmatpush1.bf16.msra.mxu0 0
      %3213 = vmatprep.mubr.bf16.mxu0 0
      %3214 = vmatmul.mubr.bf16.gmra.mrb[0].mxu0 %v3155
      %v3215 = vpop.f32.mrb[0].mxu0
      %v3216 = vadd.f32 0.0, %v3215
      %v3217 = vpop.f32.mrb[0].mxu0
      %v3218 = vadd.f32 0.0, %v3217
      %v3219 = vpop.f32.mrb[0].mxu0
      %v3220 = vadd.f32 0.0, %v3219
      %v3221 = vpop.f32.mrb[0].mxu0
      %v3222 = vadd.f32 0.0, %v3221
      %3223 = vmatprep.mubr.bf16.mxu0 0
      %3224 = vmatmul.mubr.bf16.gmra.mrb[0].mxu0 %v3158
      %v3225 = vpop.f32.mrb[0].mxu0
      %v3226 = vadd.f32 0.0, %v3225
      %v3227 = vpop.f32.mrb[0].mxu0
      %v3228 = vadd.f32 0.0, %v3227
      %v3229 = vpop.f32.mrb[0].mxu0
      %v3230 = vadd.f32 0.0, %v3229
      %v3231 = vpop.f32.mrb[0].mxu0
      %v3232 = vadd.f32 0.0, %v3231
      %3233 = vmatprep.mubr.bf16.mxu0 0
      %3234 = vmatmul.mubr.bf16.gmra.mrb[0].mxu0 %v3161
      %v3235 = vpop.f32.mrb[0].mxu0
      %v3236 = vadd.f32 0.0, %v3235
      %v3237 = vpop.f32.mrb[0].mxu0
      %v3238 = vadd.f32 0.0, %v3237
      %v3239 = vpop.f32.mrb[0].mxu0
      %v3240 = vadd.f32 0.0, %v3239
      %v3241 = vpop.f32.mrb[0].mxu0
      %v3242 = vadd.f32 0.0, %v3241
      %3243 = vmatprep.mubr.bf16.mxu0 0
      %3244 = vmatmul.mubr.bf16.gmra.mrb[0].mxu0 %v3164
      %v3245 = vpop.f32.mrb[0].mxu0
      %v3246 = vadd.f32 0.0, %v3245
      %v3247 = vpop.f32.mrb[0].mxu0
      %v3248 = vadd.f32 0.0, %v3247
      %v3249 = vpop.f32.mrb[0].mxu0
      %v3250 = vadd.f32 0.0, %v3249
      %v3251 = vpop.f32.mrb[0].mxu0
      %v3252 = vadd.f32 0.0, %v3251
      %3253 = vdwg.mxu0
      %3254 = vmatprep.subr.bf16.mxu0 %v3176
      %3255 = vmatpush1.bf16.msra.mxu0 %v3173
      %3256 = vmatprep.subr.bf16.mxu0 0
      %3257 = vmatpush1.bf16.msra.mxu0 0
      %3258 = vmatprep.subr.bf16.mxu0 0
      %3259 = vmatpush1.bf16.msra.mxu0 0
      %3260 = vmatprep.subr.bf16.mxu0 0
      %3261 = vmatpush1.bf16.msra.mxu0 0
      %3262 = vmatprep.subr.bf16.mxu0 0
      %3263 = vmatpush1.bf16.msra.mxu0 0
      %3264 = vmatprep.subr.bf16.mxu0 0
      %3265 = vmatpush1.bf16.msra.mxu0 0
      %3266 = vmatprep.subr.bf16.mxu0 0
      %3267 = vmatpush1.bf16.msra.mxu0 0
      %3268 = vmatprep.subr.bf16.mxu0 0
      %3269 = vmatpush1.bf16.msra.mxu0 0
      %3270 = vmatprep.subr.bf16.mxu0 0
      %3271 = vmatpush1.bf16.msra.mxu0 0
      %3272 = vmatprep.subr.bf16.mxu0 0
      %3273 = vmatpush1.bf16.msra.mxu0 0
      %3274 = vmatprep.subr.bf16.mxu0 0
      %3275 = vmatpush1.bf16.msra.mxu0 0
      %3276 = vmatprep.subr.bf16.mxu0 0
      %3277 = vmatpush1.bf16.msra.mxu0 0
      %3278 = vmatprep.subr.bf16.mxu0 0
      %3279 = vmatpush1.bf16.msra.mxu0 0
      %3280 = vmatprep.subr.bf16.mxu0 0
      %3281 = vmatpush1.bf16.msra.mxu0 0
      %3282 = vmatprep.subr.bf16.mxu0 0
      %3283 = vmatpush1.bf16.msra.mxu0 0
      %3284 = vmatprep.subr.bf16.mxu0 0
      %3285 = vmatpush1.bf16.msra.mxu0 0
      %3286 = vmatprep.mubr.bf16.mxu0 0
      %3287 = vmatmul.mubr.bf16.gmra.mrb[0].mxu0 %v3155
      %v3288 = vpop.f32.mrb[0].mxu0
      %v3289 = vadd.f32 0.0, %v3288
      %v3290 = vpop.f32.mrb[0].mxu0
      %v3291 = vadd.f32 0.0, %v3290
      %v3292 = vpop.f32.mrb[0].mxu0
      %v3293 = vadd.f32 0.0, %v3292
      %v3294 = vpop.f32.mrb[0].mxu0
      %v3295 = vadd.f32 0.0, %v3294
      %3296 = vmatprep.mubr.bf16.mxu0 0
      %3297 = vmatmul.mubr.bf16.gmra.mrb[0].mxu0 %v3158
      %v3298 = vpop.f32.mrb[0].mxu0
      %v3299 = vadd.f32 0.0, %v3298
      %v3300 = vpop.f32.mrb[0].mxu0
      %v3301 = vadd.f32 0.0, %v3300
      %v3302 = vpop.f32.mrb[0].mxu0
      %v3303 = vadd.f32 0.0, %v3302
      %v3304 = vpop.f32.mrb[0].mxu0
      %v3305 = vadd.f32 0.0, %v3304
      %3306 = vmatprep.mubr.bf16.mxu0 0
      %3307 = vmatmul.mubr.bf16.gmra.mrb[0].mxu0 %v3161
      %v3308 = vpop.f32.mrb[0].mxu0
      %v3309 = vadd.f32 0.0, %v3308
      %v3310 = vpop.f32.mrb[0].mxu0
      %v3311 = vadd.f32 0.0, %v3310
      %v3312 = vpop.f32.mrb[0].mxu0
      %v3313 = vadd.f32 0.0, %v3312
      %v3314 = vpop.f32.mrb[0].mxu0
      %v3315 = vadd.f32 0.0, %v3314
      %3316 = vmatprep.mubr.bf16.mxu0 0
      %3317 = vmatmul.mubr.bf16.gmra.mrb[0].mxu0 %v3164
      %v3318 = vpop.f32.mrb[0].mxu0
      %v3319 = vadd.f32 0.0, %v3318
      %v3320 = vpop.f32.mrb[0].mxu0
      %v3321 = vadd.f32 0.0, %v3320
      %v3322 = vpop.f32.mrb[0].mxu0
      %v3323 = vadd.f32 0.0, %v3322
      %v3324 = vpop.f32.mrb[0].mxu0
      %v3325 = vadd.f32 0.0, %v3324
      %3326 = vdwg.mxu0
      %3327 = vmatprep.subr.bf16.mxu0 0
      %3328 = vmatpush1.bf16.msra.mxu0 %v3179
      %3329 = vmatprep.subr.bf16.mxu0 0
      %3330 = vmatpush1.bf16.msra.mxu0 0
      %3331 = vmatprep.subr.bf16.mxu0 0
      %3332 = vmatpush1.bf16.msra.mxu0 0
      %3333 = vmatprep.subr.bf16.mxu0 0
      %3334 = vmatpush1.bf16.msra.mxu0 0
      %3335 = vmatprep.subr.bf16.mxu0 0
      %3336 = vmatpush1.bf16.msra.mxu0 0
      %3337 = vmatprep.subr.bf16.mxu0 0
      %3338 = vmatpush1.bf16.msra.mxu0 0
      %3339 = vmatprep.subr.bf16.mxu0 0
      %3340 = vmatpush1.bf16.msra.mxu0 0
      %3341 = vmatprep.subr.bf16.mxu0 0
      %3342 = vmatpush1.bf16.msra.mxu0 0
      %3343 = vmatprep.subr.bf16.mxu0 0
      %3344 = vmatpush1.bf16.msra.mxu0 0
      %3345 = vmatprep.subr.bf16.mxu0 0
      %3346 = vmatpush1.bf16.msra.mxu0 0
      %3347 = vmatprep.subr.bf16.mxu0 0
      %3348 = vmatpush1.bf16.msra.mxu0 0
      %3349 = vmatprep.subr.bf16.mxu0 0
      %3350 = vmatpush1.bf16.msra.mxu0 0
      %3351 = vmatprep.subr.bf16.mxu0 0
      %3352 = vmatpush1.bf16.msra.mxu0 0
      %3353 = vmatprep.subr.bf16.mxu0 0
      %3354 = vmatpush1.bf16.msra.mxu0 0
      %3355 = vmatprep.subr.bf16.mxu0 0
      %3356 = vmatpush1.bf16.msra.mxu0 0
      %3357 = vmatprep.subr.bf16.mxu0 0
      %3358 = vmatpush1.bf16.msra.mxu0 0
      %3359 = vmatprep.mubr.bf16.mxu0 0
      %3360 = vmatmul.mubr.bf16.gmra.mrb[0].mxu0 %v3155
      %v3361 = vpop.f32.mrb[0].mxu0
      %v3362 = vadd.f32 0.0, %v3361
      %v3363 = vpop.f32.mrb[0].mxu0
      %v3364 = vpop.f32.mrb[0].mxu0
      %v3365 = vadd.f32 0.0, %v3364
      %v3366 = vpop.f32.mrb[0].mxu0
      %3367 = vmatprep.mubr.bf16.mxu0 0
      %3368 = vmatmul.mubr.bf16.gmra.mrb[0].mxu0 %v3158
      %v3369 = vpop.f32.mrb[0].mxu0
      %v3370 = vadd.f32 0.0, %v3369
      %v3371 = vpop.f32.mrb[0].mxu0
      %v3372 = vpop.f32.mrb[0].mxu0
      %v3373 = vadd.f32 0.0, %v3372
      %v3374 = vpop.f32.mrb[0].mxu0
      %3375 = vmatprep.mubr.bf16.mxu0 0
      %3376 = vmatmul.mubr.bf16.gmra.mrb[0].mxu0 %v3161
      %v3377 = vpop.f32.mrb[0].mxu0
      %v3378 = vadd.f32 0.0, %v3377
      %v3379 = vpop.f32.mrb[0].mxu0
      %v3380 = vpop.f32.mrb[0].mxu0
      %v3381 = vadd.f32 0.0, %v3380
      %v3382 = vpop.f32.mrb[0].mxu0
      %3383 = vmatprep.mubr.bf16.mxu0 0
      %3384 = vmatmul.mubr.bf16.gmra.mrb[0].mxu0 %v3164
      %v3385 = vpop.f32.mrb[0].mxu0
      %v3386 = vadd.f32 0.0, %v3385
      %v3387 = vpop.f32.mrb[0].mxu0
      %v3388 = vpop.f32.mrb[0].mxu0
      %v3389 = vadd.f32 0.0, %v3388
      %v3390 = vpop.f32.mrb[0].mxu0
      %3391 = vdwg.mxu0
      %v3392 = vadd.f32 %v3064, %v3216
      %v3393 = vadd.f32 %v3065, %v3218
      %v3394 = vadd.f32 %v3066, %v3289
      %v3395 = vadd.f32 %v3067, %v3291
      %v3396 = vadd.f32 %v3068, %v3362
      %v3397 = vadd.f32 %v3069, %v3220
      %v3398 = vadd.f32 %v3070, %v3222
      %v3399 = vadd.f32 %v3071, %v3293
      %v3400 = vadd.f32 %v3072, %v3295
      %v3401 = vadd.f32 %v3073, %v3365
      %v3402 = vadd.f32 %v3074, %v3226
      %v3403 = vadd.f32 %v3075, %v3228
      %v3404 = vadd.f32 %v3076, %v3299
      %v3405 = vadd.f32 %v3077, %v3301
      %v3406 = vadd.f32 %v3078, %v3370
      %v3407 = vadd.f32 %v3079, %v3230
      %v3408 = vadd.f32 %v3080, %v3232
      %v3409 = vadd.f32 %v3081, %v3303
      %v3410 = vadd.f32 %v3082, %v3305
      %v3411 = vadd.f32 %v3083, %v3373
      %v3412 = vadd.f32 %v3084, %v3236
      %v3413 = vadd.f32 %v3085, %v3238
      %v3414 = vadd.f32 %v3086, %v3309
      %v3415 = vadd.f32 %v3087, %v3311
      %v3416 = vadd.f32 %v3088, %v3378
      %v3417 = vadd.f32 %v3089, %v3240
      %v3418 = vadd.f32 %v3090, %v3242
      %v3419 = vadd.f32 %v3091, %v3313
      %v3420 = vadd.f32 %v3092, %v3315
      %v3421 = vadd.f32 %v3093, %v3381
      %v3422 = vadd.f32 %v3094, %v3246
      %v3423 = vadd.f32 %v3095, %v3248
      %v3424 = vadd.f32 %v3096, %v3319
      %v3425 = vadd.f32 %v3097, %v3321
      %v3426 = vadd.f32 %v3098, %v3386
      %v3427 = vadd.f32 %v3099, %v3250
      %v3428 = vadd.f32 %v3100, %v3252
      %v3429 = vadd.f32 %v3101, %v3323
      %v3430 = vadd.f32 %v3102, %v3325
      %v3431 = vadd.f32 %v3103, %v3389
      %v3432 = vld [vmem:[%s3] sm:$0xff]
      %v3433 = vld [vmem:[%s3 + $0x8] sm:$0xff]
      %v3434 = vld [vmem:[%s3 + $0x10] sm:$0xff]
      %v3435 = vld [vmem:[%s3 + $0x18] sm:$0xff]
      %v3436 = vld [vmem:[%s3 + $0x20] sm:$0xff]
      %v3437 = vld [vmem:[%s3 + $0x28] sm:$0xff]
      %v3438 = vld [vmem:[%s3 + $0x30] sm:$0xff]
      %v3439 = vld [vmem:[%s3 + $0x38] sm:$0xff]
      %3441 = vset.pattern.permute.xlu0 0
      %3442 = vperm.xlu0 %3441, %v3432
      %v3443 = vpop.permute.xlu0 %3442
      %3446 = vset.pattern.permute.xlu0 0
      %3447 = vperm.xlu0 %3446, %v3433
      %v3448 = vpop.permute.xlu0 %3447
      %3451 = vset.pattern.permute.xlu0 0
      %3452 = vperm.xlu0 %3451, %v3434
      %v3453 = vpop.permute.xlu0 %3452
      %3456 = vset.pattern.permute.xlu0 0
      %3457 = vperm.xlu0 %3456, %v3435
      %v3458 = vpop.permute.xlu0 %3457
      %3461 = vset.pattern.permute.xlu0 0
      %3462 = vperm.xlu0 %3461, %v3436
      %v3463 = vpop.permute.xlu0 %3462
      %3466 = vset.pattern.permute.xlu0 0
      %3467 = vperm.xlu0 %3466, %v3437
      %v3468 = vpop.permute.xlu0 %3467
      %3471 = vset.pattern.permute.xlu0 0
      %3472 = vperm.xlu0 %3471, %v3438
      %v3473 = vpop.permute.xlu0 %3472
      %3476 = vset.pattern.permute.xlu0 0
      %3477 = vperm.xlu0 %3476, %v3439
      %v3478 = vpop.permute.xlu0 %3477
      %v3480 = vadd.f32 %v3392, %v3443
      %v3481 = vadd.f32 %v3393, %v3443
      %v3482 = vadd.f32 %v3394, %v3443
      %v3483 = vadd.f32 %v3395, %v3443
      %v3484 = vadd.f32 %v3396, %v3443
      %v3485 = vadd.f32 %v3397, %v3448
      %v3486 = vadd.f32 %v3398, %v3448
      %v3487 = vadd.f32 %v3399, %v3448
      %v3488 = vadd.f32 %v3400, %v3448
      %v3489 = vadd.f32 %v3401, %v3448
      %v3490 = vadd.f32 %v3402, %v3453
      %v3491 = vadd.f32 %v3403, %v3453
      %v3492 = vadd.f32 %v3404, %v3453
      %v3493 = vadd.f32 %v3405, %v3453
      %v3494 = vadd.f32 %v3406, %v3453
      %v3495 = vadd.f32 %v3407, %v3458
      %v3496 = vadd.f32 %v3408, %v3458
      %v3497 = vadd.f32 %v3409, %v3458
      %v3498 = vadd.f32 %v3410, %v3458
      %v3499 = vadd.f32 %v3411, %v3458
      %v3500 = vadd.f32 %v3412, %v3463
      %v3501 = vadd.f32 %v3413, %v3463
      %v3502 = vadd.f32 %v3414, %v3463
      %v3503 = vadd.f32 %v3415, %v3463
      %v3504 = vadd.f32 %v3416, %v3463
      %v3505 = vadd.f32 %v3417, %v3468
      %v3506 = vadd.f32 %v3418, %v3468
      %v3507 = vadd.f32 %v3419, %v3468
      %v3508 = vadd.f32 %v3420, %v3468
      %v3509 = vadd.f32 %v3421, %v3468
      %v3510 = vadd.f32 %v3422, %v3473
      %v3511 = vadd.f32 %v3423, %v3473
      %v3512 = vadd.f32 %v3424, %v3473
      %v3513 = vadd.f32 %v3425, %v3473
      %v3514 = vadd.f32 %v3426, %v3473
      %v3515 = vadd.f32 %v3427, %v3478
      %v3516 = vadd.f32 %v3428, %v3478
      %v3517 = vadd.f32 %v3429, %v3478
      %v3518 = vadd.f32 %v3430, %v3478
      %v3519 = vadd.f32 %v3431, %v3478
      %v3520 = vmax.f32 %v3480, 0.0
      %v3521 = vmax.f32 %v3481, 0.0
      %v3522 = vmax.f32 %v3482, 0.0
      %v3523 = vmax.f32 %v3483, 0.0
      %v3524 = vmax.f32 %v3484, 0.0
      %v3525 = vmax.f32 %v3485, 0.0
      %v3526 = vmax.f32 %v3486, 0.0
      %v3527 = vmax.f32 %v3487, 0.0
      %v3528 = vmax.f32 %v3488, 0.0
      %v3529 = vmax.f32 %v3489, 0.0
      %v3530 = vmax.f32 %v3490, 0.0
      %v3531 = vmax.f32 %v3491, 0.0
      %v3532 = vmax.f32 %v3492, 0.0
      %v3533 = vmax.f32 %v3493, 0.0
      %v3534 = vmax.f32 %v3494, 0.0
      %v3535 = vmax.f32 %v3495, 0.0
      %v3536 = vmax.f32 %v3496, 0.0
      %v3537 = vmax.f32 %v3497, 0.0
      %v3538 = vmax.f32 %v3498, 0.0
      %v3539 = vmax.f32 %v3499, 0.0
      %v3540 = vmax.f32 %v3500, 0.0
      %v3541 = vmax.f32 %v3501, 0.0
      %v3542 = vmax.f32 %v3502, 0.0
      %v3543 = vmax.f32 %v3503, 0.0
      %v3544 = vmax.f32 %v3504, 0.0
      %v3545 = vmax.f32 %v3505, 0.0
      %v3546 = vmax.f32 %v3506, 0.0
      %v3547 = vmax.f32 %v3507, 0.0
      %v3548 = vmax.f32 %v3508, 0.0
      %v3549 = vmax.f32 %v3509, 0.0
      %v3550 = vmax.f32 %v3510, 0.0
      %v3551 = vmax.f32 %v3511, 0.0
      %v3552 = vmax.f32 %v3512, 0.0
      %v3553 = vmax.f32 %v3513, 0.0
      %v3554 = vmax.f32 %v3514, 0.0
      %v3555 = vmax.f32 %v3515, 0.0
      %v3556 = vmax.f32 %v3516, 0.0
      %v3557 = vmax.f32 %v3517, 0.0
      %v3558 = vmax.f32 %v3518, 0.0
      %v3559 = vmax.f32 %v3519, 0.0
      %v3560 = vld [vmem:[%s4] sm:$0xf]
      %v3561 = vld [vmem:[%s4 + $0x4] sm:$0xf]
      %v3562 = vld [vmem:[%s4 + $0x8] sm:$0xf]
      %v3563 = vld [vmem:[%s4 + $0xc] sm:$0xf]
      %v3564 = vld [vmem:[%s4 + $0x10] sm:$0xf]
      %v3565 = vld [vmem:[%s4 + $0x14] sm:$0xf]
      %v3566 = vpack.c.bf16 %v3525, %v3520
      %v3567 = vpack.c.bf16 %v3526, %v3521
      %v3568 = vpack.c.bf16 %v3527, %v3522
      %v3569 = vpack.c.bf16 %v3528, %v3523
      %v3570 = vpack.c.bf16 %v3529, %v3524
      %v3571 = vpack.c.bf16 %v3535, %v3530
      %v3572 = vpack.c.bf16 %v3536, %v3531
      %v3573 = vpack.c.bf16 %v3537, %v3532
      %v3574 = vpack.c.bf16 %v3538, %v3533
      %v3575 = vpack.c.bf16 %v3539, %v3534
      %v3576 = vpack.c.bf16 %v3545, %v3540
      %v3577 = vpack.c.bf16 %v3546, %v3541
      %v3578 = vpack.c.bf16 %v3547, %v3542
      %v3579 = vpack.c.bf16 %v3548, %v3543
      %v3580 = vpack.c.bf16 %v3549, %v3544
      %v3581 = vpack.c.bf16 %v3555, %v3550
      %v3582 = vpack.c.bf16 %v3556, %v3551
      %v3583 = vpack.c.bf16 %v3557, %v3552
      %v3584 = vpack.c.bf16 %v3558, %v3553
      %v3585 = vpack.c.bf16 %v3559, %v3554
      %v3586 = vld [vmem:[%s5] sm:$0xff]
      %v3587 = vld [vmem:[%s5 + $0x8] sm:$0xff]
      %v3588 = vld [vmem:[%s5 + $0x10] sm:$0xff]
      %v3589 = vld [vmem:[%s5 + $0x18] sm:$0xff]
      %v3590 = vld [vmem:[%s5 + $0x20] sm:$0xff]
      %v3591 = vld [vmem:[%s5 + $0x28] sm:$0xff]
      %3593 = vset.pattern.permute.xlu0 0
      %3594 = vperm.xlu0 %3593, %v3586
      %v3595 = vpop.permute.xlu0 %3594
      %3598 = vset.pattern.permute.xlu0 0
      %3599 = vperm.xlu0 %3598, %v3587
      %v3600 = vpop.permute.xlu0 %3599
      %3603 = vset.pattern.permute.xlu0 0
      %3604 = vperm.xlu0 %3603, %v3588
      %v3605 = vpop.permute.xlu0 %3604
      %3608 = vset.pattern.permute.xlu0 0
      %3609 = vperm.xlu0 %3608, %v3589
      %v3610 = vpop.permute.xlu0 %3609
      %3613 = vset.pattern.permute.xlu0 0
      %3614 = vperm.xlu0 %3613, %v3590
      %v3615 = vpop.permute.xlu0 %3614
      %3618 = vset.pattern.permute.xlu0 0
      %3619 = vperm.xlu0 %3618, %v3591
      %v3620 = vpop.permute.xlu0 %3619
      %v3628 = vunpack.c.l.b16 %v3560
      %v3629 = vunpack.c.l.b16 %v3561
      %v3630 = vunpack.c.l.b16 %v3562
      %v3631 = vunpack.c.l.b16 %v3563
      %v3632 = vunpack.c.l.b16 %v3564
      %v3633 = vunpack.c.l.b16 %v3565
      %v3634 = vpack.c.b16 %v3629, %v3628
      %v3635 = vpack.c.b16 %v3631, %v3630
      %v3636 = vpack.c.b16 %v3633, %v3632
      %vm3637 = vcmask 523264
      %v3639 = vsel %vm3637, %v3634, 0
      %v3642 = vsel %vm3637, %v3635, 0
      %v3645 = vsel %vm3637, %v3636, 0
      %3647 = vmatprep.subr.bf16.mxu0 %v3567
      %3648 = vmatpush1.bf16.msra.mxu0 %v3566
      %3649 = vmatprep.subr.bf16.mxu0 %v3572
      %3650 = vmatpush1.bf16.msra.mxu0 %v3571
      %3651 = vmatprep.subr.bf16.mxu0 %v3577
      %3652 = vmatpush1.bf16.msra.mxu0 %v3576
      %3653 = vmatprep.subr.bf16.mxu0 %v3582
      %3654 = vmatpush1.bf16.msra.mxu0 %v3581
      %3655 = vmatprep.subr.bf16.mxu0 0
      %3656 = vmatpush1.bf16.msra.mxu0 0
      %3657 = vmatprep.subr.bf16.mxu0 0
      %3658 = vmatpush1.bf16.msra.mxu0 0
      %3659 = vmatprep.subr.bf16.mxu0 0
      %3660 = vmatpush1.bf16.msra.mxu0 0
      %3661 = vmatprep.subr.bf16.mxu0 0
      %3662 = vmatpush1.bf16.msra.mxu0 0
      %3663 = vmatprep.subr.bf16.mxu0 0
      %3664 = vmatpush1.bf16.msra.mxu0 0
      %3665 = vmatprep.subr.bf16.mxu0 0
      %3666 = vmatpush1.bf16.msra.mxu0 0
      %3667 = vmatprep.subr.bf16.mxu0 0
      %3668 = vmatpush1.bf16.msra.mxu0 0
      %3669 = vmatprep.subr.bf16.mxu0 0
      %3670 = vmatpush1.bf16.msra.mxu0 0
      %3671 = vmatprep.subr.bf16.mxu0 0
      %3672 = vmatpush1.bf16.msra.mxu0 0
      %3673 = vmatprep.subr.bf16.mxu0 0
      %3674 = vmatpush1.bf16.msra.mxu0 0
      %3675 = vmatprep.subr.bf16.mxu0 0
      %3676 = vmatpush1.bf16.msra.mxu0 0
      %3677 = vmatprep.subr.bf16.mxu0 0
      %3678 = vmatpush1.bf16.msra.mxu0 0
      %3679 = vmatprep.mubr.bf16.mxu0 0
      %3680 = vmatmul.mubr.bf16.gmra.mrb[0].mxu0 %v3639
      %v3681 = vpop.f32.mrb[0].mxu0
      %v3682 = vadd.f32 %v3595, %v3681
      %v3683 = vpop.f32.mrb[0].mxu0
      %v3684 = vadd.f32 %v3595, %v3683
      %v3685 = vpop.f32.mrb[0].mxu0
      %v3686 = vadd.f32 %v3600, %v3685
      %v3687 = vpop.f32.mrb[0].mxu0
      %v3688 = vadd.f32 %v3600, %v3687
      %3689 = vmatprep.mubr.bf16.mxu0 0
      %3690 = vmatmul.mubr.bf16.gmra.mrb[0].mxu0 %v3642
      %v3691 = vpop.f32.mrb[0].mxu0
      %v3692 = vadd.f32 %v3605, %v3691
      %v3693 = vpop.f32.mrb[0].mxu0
      %v3694 = vadd.f32 %v3605, %v3693
      %v3695 = vpop.f32.mrb[0].mxu0
      %v3696 = vadd.f32 %v3610, %v3695
      %v3697 = vpop.f32.mrb[0].mxu0
      %v3698 = vadd.f32 %v3610, %v3697
      %3699 = vmatprep.mubr.bf16.mxu0 0
      %3700 = vmatmul.mubr.bf16.gmra.mrb[0].mxu0 %v3645
      %v3701 = vpop.f32.mrb[0].mxu0
      %v3702 = vadd.f32 %v3615, %v3701
      %v3703 = vpop.f32.mrb[0].mxu0
      %v3704 = vadd.f32 %v3615, %v3703
      %v3705 = vpop.f32.mrb[0].mxu0
      %v3706 = vadd.f32 %v3620, %v3705
      %v3707 = vpop.f32.mrb[0].mxu0
      %v3708 = vadd.f32 %v3620, %v3707
      %3709 = vdwg.mxu0
      %3710 = vmatprep.subr.bf16.mxu0 %v3569
      %3711 = vmatpush1.bf16.msra.mxu0 %v3568
      %3712 = vmatprep.subr.bf16.mxu0 %v3574
      %3713 = vmatpush1.bf16.msra.mxu0 %v3573
      %3714 = vmatprep.subr.bf16.mxu0 %v3579
      %3715 = vmatpush1.bf16.msra.mxu0 %v3578
      %3716 = vmatprep.subr.bf16.mxu0 %v3584
      %3717 = vmatpush1.bf16.msra.mxu0 %v3583
      %3718 = vmatprep.subr.bf16.mxu0 0
      %3719 = vmatpush1.bf16.msra.mxu0 0
      %3720 = vmatprep.subr.bf16.mxu0 0
      %3721 = vmatpush1.bf16.msra.mxu0 0
      %3722 = vmatprep.subr.bf16.mxu0 0
      %3723 = vmatpush1.bf16.msra.mxu0 0
      %3724 = vmatprep.subr.bf16.mxu0 0
      %3725 = vmatpush1.bf16.msra.mxu0 0
      %3726 = vmatprep.subr.bf16.mxu0 0
      %3727 = vmatpush1.bf16.msra.mxu0 0
      %3728 = vmatprep.subr.bf16.mxu0 0
      %3729 = vmatpush1.bf16.msra.mxu0 0
      %3730 = vmatprep.subr.bf16.mxu0 0
      %3731 = vmatpush1.bf16.msra.mxu0 0
      %3732 = vmatprep.subr.bf16.mxu0 0
      %3733 = vmatpush1.bf16.msra.mxu0 0
      %3734 = vmatprep.subr.bf16.mxu0 0
      %3735 = vmatpush1.bf16.msra.mxu0 0
      %3736 = vmatprep.subr.bf16.mxu0 0
      %3737 = vmatpush1.bf16.msra.mxu0 0
      %3738 = vmatprep.subr.bf16.mxu0 0
      %3739 = vmatpush1.bf16.msra.mxu0 0
      %3740 = vmatprep.subr.bf16.mxu0 0
      %3741 = vmatpush1.bf16.msra.mxu0 0
      %3742 = vmatprep.mubr.bf16.mxu0 0
      %3743 = vmatmul.mubr.bf16.gmra.mrb[0].mxu0 %v3639
      %v3744 = vpop.f32.mrb[0].mxu0
      %v3745 = vadd.f32 %v3595, %v3744
      %v3746 = vpop.f32.mrb[0].mxu0
      %v3747 = vadd.f32 %v3595, %v3746
      %v3748 = vpop.f32.mrb[0].mxu0
      %v3749 = vadd.f32 %v3600, %v3748
      %v3750 = vpop.f32.mrb[0].mxu0
      %v3751 = vadd.f32 %v3600, %v3750
      %3752 = vmatprep.mubr.bf16.mxu0 0
      %3753 = vmatmul.mubr.bf16.gmra.mrb[0].mxu0 %v3642
      %v3754 = vpop.f32.mrb[0].mxu0
      %v3755 = vadd.f32 %v3605, %v3754
      %v3756 = vpop.f32.mrb[0].mxu0
      %v3757 = vadd.f32 %v3605, %v3756
      %v3758 = vpop.f32.mrb[0].mxu0
      %v3759 = vadd.f32 %v3610, %v3758
      %v3760 = vpop.f32.mrb[0].mxu0
      %v3761 = vadd.f32 %v3610, %v3760
      %3762 = vmatprep.mubr.bf16.mxu0 0
      %3763 = vmatmul.mubr.bf16.gmra.mrb[0].mxu0 %v3645
      %v3764 = vpop.f32.mrb[0].mxu0
      %v3765 = vadd.f32 %v3615, %v3764
      %v3766 = vpop.f32.mrb[0].mxu0
      %v3767 = vadd.f32 %v3615, %v3766
      %v3768 = vpop.f32.mrb[0].mxu0
      %v3769 = vadd.f32 %v3620, %v3768
      %v3770 = vpop.f32.mrb[0].mxu0
      %v3771 = vadd.f32 %v3620, %v3770
      %3772 = vdwg.mxu0
      %3773 = vmatprep.subr.bf16.mxu0 0
      %3774 = vmatpush1.bf16.msra.mxu0 %v3570
      %3775 = vmatprep.subr.bf16.mxu0 0
      %3776 = vmatpush1.bf16.msra.mxu0 %v3575
      %3777 = vmatprep.subr.bf16.mxu0 0
      %3778 = vmatpush1.bf16.msra.mxu0 %v3580
      %3779 = vmatprep.subr.bf16.mxu0 0
      %3780 = vmatpush1.bf16.msra.mxu0 %v3585
      %3781 = vmatprep.subr.bf16.mxu0 0
      %3782 = vmatpush1.bf16.msra.mxu0 0
      %3783 = vmatprep.subr.bf16.mxu0 0
      %3784 = vmatpush1.bf16.msra.mxu0 0
      %3785 = vmatprep.subr.bf16.mxu0 0
      %3786 = vmatpush1.bf16.msra.mxu0 0
      %3787 = vmatprep.subr.bf16.mxu0 0
      %3788 = vmatpush1.bf16.msra.mxu0 0
      %3789 = vmatprep.subr.bf16.mxu0 0
      %3790 = vmatpush1.bf16.msra.mxu0 0
      %3791 = vmatprep.subr.bf16.mxu0 0
      %3792 = vmatpush1.bf16.msra.mxu0 0
      %3793 = vmatprep.subr.bf16.mxu0 0
      %3794 = vmatpush1.bf16.msra.mxu0 0
      %3795 = vmatprep.subr.bf16.mxu0 0
      %3796 = vmatpush1.bf16.msra.mxu0 0
      %3797 = vmatprep.subr.bf16.mxu0 0
      %3798 = vmatpush1.bf16.msra.mxu0 0
      %3799 = vmatprep.subr.bf16.mxu0 0
      %3800 = vmatpush1.bf16.msra.mxu0 0
      %3801 = vmatprep.subr.bf16.mxu0 0
      %3802 = vmatpush1.bf16.msra.mxu0 0
      %3803 = vmatprep.subr.bf16.mxu0 0
      %3804 = vmatpush1.bf16.msra.mxu0 0
      %3805 = vmatprep.mubr.bf16.mxu0 0
      %3806 = vmatmul.mubr.bf16.gmra.mrb[0].mxu0 %v3639
      %v3807 = vpop.f32.mrb[0].mxu0
      %v3808 = vadd.f32 %v3595, %v3807
      %v3809 = vpop.f32.mrb[0].mxu0
      %v3810 = vpop.f32.mrb[0].mxu0
      %v3811 = vadd.f32 %v3600, %v3810
      %v3812 = vpop.f32.mrb[0].mxu0
      %3813 = vmatprep.mubr.bf16.mxu0 0
      %3814 = vmatmul.mubr.bf16.gmra.mrb[0].mxu0 %v3642
      %v3815 = vpop.f32.mrb[0].mxu0
      %v3816 = vadd.f32 %v3605, %v3815
      %v3817 = vpop.f32.mrb[0].mxu0
      %v3818 = vpop.f32.mrb[0].mxu0
      %v3819 = vadd.f32 %v3610, %v3818
      %v3820 = vpop.f32.mrb[0].mxu0
      %3821 = vmatprep.mubr.bf16.mxu0 0
      %3822 = vmatmul.mubr.bf16.gmra.mrb[0].mxu0 %v3645
      %v3823 = vpop.f32.mrb[0].mxu0
      %v3824 = vadd.f32 %v3615, %v3823
      %v3825 = vpop.f32.mrb[0].mxu0
      %v3826 = vpop.f32.mrb[0].mxu0
      %v3827 = vadd.f32 %v3620, %v3826
      %v3828 = vpop.f32.mrb[0].mxu0
      %3829 = vdwg.mxu0
      %v3831 = vlaneseq
      %v3832 = vshrl.u32 %v3831, 7
      %v3833 = vsub.s32 0, %v3832
      %v3834 = vrot.slane %v563, %v3833
      %v3835 = vlaneseq
      %v3836 = vshrl.u32 %v3835, 7
      %v3837 = vsub.s32 1, %v3836
      %v3838 = vrot.slane %v563, %v3837
      %v3839 = vlaneseq
      %v3840 = vshrl.u32 %v3839, 7
      %v3841 = vsub.s32 2, %v3840
      %v3842 = vrot.slane %v563, %v3841
      %v3843 = vlaneseq
      %v3844 = vshrl.u32 %v3843, 7
      %v3845 = vsub.s32 3, %v3844
      %v3846 = vrot.slane %v563, %v3845
      %v3847 = vlaneseq
      %v3848 = vshrl.u32 %v3847, 7
      %v3849 = vsub.s32 4, %v3848
      %v3850 = vrot.slane %v563, %v3849
      %v3856 = vmul.f32 %v3682, %v3834
      %v3857 = vmul.f32 %v3684, %v3838
      %v3858 = vmul.f32 %v3745, %v3842
      %v3859 = vmul.f32 %v3747, %v3846
      %v3860 = vmul.f32 %v3808, %v3850
      %v3861 = vmul.f32 %v3686, %v3834
      %v3862 = vmul.f32 %v3688, %v3838
      %v3863 = vmul.f32 %v3749, %v3842
      %v3864 = vmul.f32 %v3751, %v3846
      %v3865 = vmul.f32 %v3811, %v3850
      %v3866 = vmul.f32 %v3692, %v3834
      %v3867 = vmul.f32 %v3694, %v3838
      %v3868 = vmul.f32 %v3755, %v3842
      %v3869 = vmul.f32 %v3757, %v3846
      %v3870 = vmul.f32 %v3816, %v3850
      %v3871 = vmul.f32 %v3696, %v3834
      %v3872 = vmul.f32 %v3698, %v3838
      %v3873 = vmul.f32 %v3759, %v3842
      %v3874 = vmul.f32 %v3761, %v3846
      %v3875 = vmul.f32 %v3819, %v3850
      %v3876 = vmul.f32 %v3702, %v3834
      %v3877 = vmul.f32 %v3704, %v3838
      %v3878 = vmul.f32 %v3765, %v3842
      %v3879 = vmul.f32 %v3767, %v3846
      %v3880 = vmul.f32 %v3824, %v3850
      %v3881 = vmul.f32 %v3706, %v3834
      %v3882 = vmul.f32 %v3708, %v3838
      %v3883 = vmul.f32 %v3769, %v3842
      %v3884 = vmul.f32 %v3771, %v3846
      %v3885 = vmul.f32 %v3827, %v3850
      %3886 = vrot.lane.b32.xlu0 %v3856, 33
      %v3887 = vpop.permute.xlu0 %3886
      %3888 = vrot.lane.b32.xlu0 %v3861, 33
      %v3889 = vpop.permute.xlu0 %3888
      %3890 = vrot.lane.b32.xlu0 %v3866, 33
      %v3891 = vpop.permute.xlu0 %3890
      %3892 = vrot.lane.b32.xlu0 %v3871, 33
      %v3893 = vpop.permute.xlu0 %3892
      %3894 = vrot.lane.b32.xlu0 %v3876, 33
      %v3895 = vpop.permute.xlu0 %3894
      %3896 = vrot.lane.b32.xlu0 %v3881, 33
      %v3897 = vpop.permute.xlu0 %3896
      %3898 = vrot.lane.b32.xlu0 %v3857, 33
      %v3899 = vpop.permute.xlu0 %3898
      %3900 = vrot.lane.b32.xlu0 %v3862, 33
      %v3901 = vpop.permute.xlu0 %3900
      %3902 = vrot.lane.b32.xlu0 %v3867, 33
      %v3903 = vpop.permute.xlu0 %3902
      %3904 = vrot.lane.b32.xlu0 %v3872, 33
      %v3905 = vpop.permute.xlu0 %3904
      %3906 = vrot.lane.b32.xlu0 %v3877, 33
      %v3907 = vpop.permute.xlu0 %3906
      %3908 = vrot.lane.b32.xlu0 %v3882, 33
      %v3909 = vpop.permute.xlu0 %3908
      %3910 = vrot.lane.b32.xlu0 %v3858, 33
      %v3911 = vpop.permute.xlu0 %3910
      %3912 = vrot.lane.b32.xlu0 %v3863, 33
      %v3913 = vpop.permute.xlu0 %3912
      %3914 = vrot.lane.b32.xlu0 %v3868, 33
      %v3915 = vpop.permute.xlu0 %3914
      %3916 = vrot.lane.b32.xlu0 %v3873, 33
      %v3917 = vpop.permute.xlu0 %3916
      %3918 = vrot.lane.b32.xlu0 %v3878, 33
      %v3919 = vpop.permute.xlu0 %3918
      %3920 = vrot.lane.b32.xlu0 %v3883, 33
      %v3921 = vpop.permute.xlu0 %3920
      %3922 = vrot.lane.b32.xlu0 %v3859, 33
      %v3923 = vpop.permute.xlu0 %3922
      %3924 = vrot.lane.b32.xlu0 %v3864, 33
      %v3925 = vpop.permute.xlu0 %3924
      %3926 = vrot.lane.b32.xlu0 %v3869, 33
      %v3927 = vpop.permute.xlu0 %3926
      %3928 = vrot.lane.b32.xlu0 %v3874, 33
      %v3929 = vpop.permute.xlu0 %3928
      %3930 = vrot.lane.b32.xlu0 %v3879, 33
      %v3931 = vpop.permute.xlu0 %3930
      %3932 = vrot.lane.b32.xlu0 %v3884, 33
      %v3933 = vpop.permute.xlu0 %3932
      %3934 = vrot.lane.b32.xlu0 %v3860, 33
      %v3935 = vpop.permute.xlu0 %3934
      %3936 = vrot.lane.b32.xlu0 %v3865, 33
      %v3937 = vpop.permute.xlu0 %3936
      %3938 = vrot.lane.b32.xlu0 %v3870, 33
      %v3939 = vpop.permute.xlu0 %3938
      %3940 = vrot.lane.b32.xlu0 %v3875, 33
      %v3941 = vpop.permute.xlu0 %3940
      %3942 = vrot.lane.b32.xlu0 %v3880, 33
      %v3943 = vpop.permute.xlu0 %3942
      %3944 = vrot.lane.b32.xlu0 %v3885, 33
      %v3945 = vpop.permute.xlu0 %3944
      %v3946 = vsel %vm585, %v3923, %v3935
      %v3947 = vsel %vm585, %v3925, %v3937
      %v3948 = vsel %vm585, %v3927, %v3939
      %v3949 = vsel %vm585, %v3929, %v3941
      %v3950 = vsel %vm585, %v3931, %v3943
      %v3951 = vsel %vm585, %v3933, %v3945
      %v3952 = vsel %vm585, %v3911, %v3923
      %v3953 = vsel %vm585, %v3913, %v3925
      %v3954 = vsel %vm585, %v3915, %v3927
      %v3955 = vsel %vm585, %v3917, %v3929
      %v3956 = vsel %vm585, %v3919, %v3931
      %v3957 = vsel %vm585, %v3921, %v3933
      %v3958 = vsel %vm585, %v3899, %v3911
      %v3959 = vsel %vm585, %v3901, %v3913
      %v3960 = vsel %vm585, %v3903, %v3915
      %v3961 = vsel %vm585, %v3905, %v3917
      %v3962 = vsel %vm585, %v3907, %v3919
      %v3963 = vsel %vm585, %v3909, %v3921
      %v3964 = vsel %vm585, %v3887, %v3899
      %v3965 = vsel %vm585, %v3889, %v3901
      %v3966 = vsel %vm585, %v3891, %v3903
      %v3967 = vsel %vm585, %v3893, %v3905
      %v3968 = vsel %vm585, %v3895, %v3907
      %v3969 = vsel %vm585, %v3897, %v3909
      %v3970 = vsel %vm585, %v3935, %v3887
      %v3971 = vsel %vm585, %v3937, %v3889
      %v3972 = vsel %vm585, %v3939, %v3891
      %v3973 = vsel %vm585, %v3941, %v3893
      %v3974 = vsel %vm585, %v3943, %v3895
      %v3975 = vsel %vm585, %v3945, %v3897
      %v3976 = vld [vmem:[%s6] sm:$0xf]
      %v3977 = vld [vmem:[%s6 + $0x4] sm:$0xf]
      %v3978 = vld [vmem:[%s6 + $0x8] sm:$0xf]
      %v3979 = vld [vmem:[%s6 + $0xc] sm:$0xf]
      %v3980 = vld [vmem:[%s6 + $0x10] sm:$0xf]
      %v3981 = vld [vmem:[%s6 + $0x14] sm:$0xf]
      %v3982 = vpack.c.bf16 %v3971, %v3970
      %v3983 = vpack.c.bf16 %v3965, %v3964
      %v3984 = vpack.c.bf16 %v3959, %v3958
      %v3985 = vpack.c.bf16 %v3953, %v3952
      %v3986 = vpack.c.bf16 %v3947, %v3946
      %v3987 = vpack.c.bf16 %v3973, %v3972
      %v3988 = vpack.c.bf16 %v3967, %v3966
      %v3989 = vpack.c.bf16 %v3961, %v3960
      %v3990 = vpack.c.bf16 %v3955, %v3954
      %v3991 = vpack.c.bf16 %v3949, %v3948
      %v3992 = vpack.c.bf16 %v3975, %v3974
      %v3993 = vpack.c.bf16 %v3969, %v3968
      %v3994 = vpack.c.bf16 %v3963, %v3962
      %v3995 = vpack.c.bf16 %v3957, %v3956
      %v3996 = vpack.c.bf16 %v3951, %v3950
      %3997 = vrot.lane.b32.xlu0 %v3856, 32
      %v3998 = vpop.permute.xlu0 %3997
      %3999 = vrot.lane.b32.xlu0 %v3861, 32
      %v4000 = vpop.permute.xlu0 %3999
      %4001 = vrot.lane.b32.xlu0 %v3866, 32
      %v4002 = vpop.permute.xlu0 %4001
      %4003 = vrot.lane.b32.xlu0 %v3871, 32
      %v4004 = vpop.permute.xlu0 %4003
      %4005 = vrot.lane.b32.xlu0 %v3876, 32
      %v4006 = vpop.permute.xlu0 %4005
      %4007 = vrot.lane.b32.xlu0 %v3881, 32
      %v4008 = vpop.permute.xlu0 %4007
      %4009 = vrot.lane.b32.xlu0 %v3857, 32
      %v4010 = vpop.permute.xlu0 %4009
      %4011 = vrot.lane.b32.xlu0 %v3862, 32
      %v4012 = vpop.permute.xlu0 %4011
      %4013 = vrot.lane.b32.xlu0 %v3867, 32
      %v4014 = vpop.permute.xlu0 %4013
      %4015 = vrot.lane.b32.xlu0 %v3872, 32
      %v4016 = vpop.permute.xlu0 %4015
      %4017 = vrot.lane.b32.xlu0 %v3877, 32
      %v4018 = vpop.permute.xlu0 %4017
      %4019 = vrot.lane.b32.xlu0 %v3882, 32
      %v4020 = vpop.permute.xlu0 %4019
      %4021 = vrot.lane.b32.xlu0 %v3858, 32
      %v4022 = vpop.permute.xlu0 %4021
      %4023 = vrot.lane.b32.xlu0 %v3863, 32
      %v4024 = vpop.permute.xlu0 %4023
      %4025 = vrot.lane.b32.xlu0 %v3868, 32
      %v4026 = vpop.permute.xlu0 %4025
      %4027 = vrot.lane.b32.xlu0 %v3873, 32
      %v4028 = vpop.permute.xlu0 %4027
      %4029 = vrot.lane.b32.xlu0 %v3878, 32
      %v4030 = vpop.permute.xlu0 %4029
      %4031 = vrot.lane.b32.xlu0 %v3883, 32
      %v4032 = vpop.permute.xlu0 %4031
      %4033 = vrot.lane.b32.xlu0 %v3859, 32
      %v4034 = vpop.permute.xlu0 %4033
      %4035 = vrot.lane.b32.xlu0 %v3864, 32
      %v4036 = vpop.permute.xlu0 %4035
      %4037 = vrot.lane.b32.xlu0 %v3869, 32
      %v4038 = vpop.permute.xlu0 %4037
      %4039 = vrot.lane.b32.xlu0 %v3874, 32
      %v4040 = vpop.permute.xlu0 %4039
      %4041 = vrot.lane.b32.xlu0 %v3879, 32
      %v4042 = vpop.permute.xlu0 %4041
      %4043 = vrot.lane.b32.xlu0 %v3884, 32
      %v4044 = vpop.permute.xlu0 %4043
      %4045 = vrot.lane.b32.xlu0 %v3860, 32
      %v4046 = vpop.permute.xlu0 %4045
      %4047 = vrot.lane.b32.xlu0 %v3865, 32
      %v4048 = vpop.permute.xlu0 %4047
      %4049 = vrot.lane.b32.xlu0 %v3870, 32
      %v4050 = vpop.permute.xlu0 %4049
      %4051 = vrot.lane.b32.xlu0 %v3875, 32
      %v4052 = vpop.permute.xlu0 %4051
      %4053 = vrot.lane.b32.xlu0 %v3880, 32
      %v4054 = vpop.permute.xlu0 %4053
      %4055 = vrot.lane.b32.xlu0 %v3885, 32
      %v4056 = vpop.permute.xlu0 %4055
      %v4057 = vsel %vm614, %v4034, %v4046
      %v4058 = vsel %vm614, %v4036, %v4048
      %v4059 = vsel %vm614, %v4038, %v4050
      %v4060 = vsel %vm614, %v4040, %v4052
      %v4061 = vsel %vm614, %v4042, %v4054
      %v4062 = vsel %vm614, %v4044, %v4056
      %v4063 = vsel %vm614, %v4022, %v4034
      %v4064 = vsel %vm614, %v4024, %v4036
      %v4065 = vsel %vm614, %v4026, %v4038
      %v4066 = vsel %vm614, %v4028, %v4040
      %v4067 = vsel %vm614, %v4030, %v4042
      %v4068 = vsel %vm614, %v4032, %v4044
      %v4069 = vsel %vm614, %v4010, %v4022
      %v4070 = vsel %vm614, %v4012, %v4024
      %v4071 = vsel %vm614, %v4014, %v4026
      %v4072 = vsel %vm614, %v4016, %v4028
      %v4073 = vsel %vm614, %v4018, %v4030
      %v4074 = vsel %vm614, %v4020, %v4032
      %v4075 = vsel %vm614, %v3998, %v4010
      %v4076 = vsel %vm614, %v4000, %v4012
      %v4077 = vsel %vm614, %v4002, %v4014
      %v4078 = vsel %vm614, %v4004, %v4016
      %v4079 = vsel %vm614, %v4006, %v4018
      %v4080 = vsel %vm614, %v4008, %v4020
      %v4081 = vsel %vm614, %v4046, %v3998
      %v4082 = vsel %vm614, %v4048, %v4000
      %v4083 = vsel %vm614, %v4050, %v4002
      %v4084 = vsel %vm614, %v4052, %v4004
      %v4085 = vsel %vm614, %v4054, %v4006
      %v4086 = vsel %vm614, %v4056, %v4008
      %s4087 = scalar_lea.vmem %s6, 24
      %v4088 = vld [vmem:[%s4087] sm:$0xf]
      %v4089 = vld [vmem:[%s4087 + $0x4] sm:$0xf]
      %v4090 = vld [vmem:[%s4087 + $0x8] sm:$0xf]
      %v4091 = vld [vmem:[%s4087 + $0xc] sm:$0xf]
      %v4092 = vld [vmem:[%s4087 + $0x10] sm:$0xf]
      %v4093 = vld [vmem:[%s4087 + $0x14] sm:$0xf]
      %v4094 = vpack.c.bf16 %v4082, %v4081
      %v4095 = vpack.c.bf16 %v4076, %v4075
      %v4096 = vpack.c.bf16 %v4070, %v4069
      %v4097 = vpack.c.bf16 %v4064, %v4063
      %v4098 = vpack.c.bf16 %v4058, %v4057
      %v4099 = vpack.c.bf16 %v4084, %v4083
      %v4100 = vpack.c.bf16 %v4078, %v4077
      %v4101 = vpack.c.bf16 %v4072, %v4071
      %v4102 = vpack.c.bf16 %v4066, %v4065
      %v4103 = vpack.c.bf16 %v4060, %v4059
      %v4104 = vpack.c.bf16 %v4086, %v4085
      %v4105 = vpack.c.bf16 %v4080, %v4079
      %v4106 = vpack.c.bf16 %v4074, %v4073
      %v4107 = vpack.c.bf16 %v4068, %v4067
      %v4108 = vpack.c.bf16 %v4062, %v4061
      %v4115 = vunpack.c.l.b16 %v4088
      %v4116 = vunpack.c.l.b16 %v4089
      %v4117 = vunpack.c.l.b16 %v4090
      %v4118 = vunpack.c.l.b16 %v4091
      %v4119 = vunpack.c.l.b16 %v4092
      %v4120 = vunpack.c.l.b16 %v4093
      %v4121 = vpack.c.b16 %v4116, %v4115
      %v4122 = vpack.c.b16 %v4118, %v4117
      %v4123 = vpack.c.b16 %v4120, %v4119
      %vm4124 = vcmask 392192
      %v4126 = vsel %vm4124, %v4121, 0
      %v4129 = vsel %vm4124, %v4122, 0
      %v4132 = vsel %vm4124, %v4123, 0
      %4134 = vmatprep.subr.bf16.mxu0 %v4095
      %4135 = vmatpush1.bf16.msra.mxu0 %v4094
      %4136 = vmatprep.subr.bf16.mxu0 %v4100
      %4137 = vmatpush1.bf16.msra.mxu0 %v4099
      %4138 = vmatprep.subr.bf16.mxu0 %v4105
      %4139 = vmatpush1.bf16.msra.mxu0 %v4104
      %4140 = vmatprep.subr.bf16.mxu0 0
      %4141 = vmatpush1.bf16.msra.mxu0 0
      %4142 = vmatprep.subr.bf16.mxu0 0
      %4143 = vmatpush1.bf16.msra.mxu0 0
      %4144 = vmatprep.subr.bf16.mxu0 0
      %4145 = vmatpush1.bf16.msra.mxu0 0
      %4146 = vmatprep.subr.bf16.mxu0 0
      %4147 = vmatpush1.bf16.msra.mxu0 0
      %4148 = vmatprep.subr.bf16.mxu0 0
      %4149 = vmatpush1.bf16.msra.mxu0 0
      %4150 = vmatprep.subr.bf16.mxu0 0
      %4151 = vmatpush1.bf16.msra.mxu0 0
      %4152 = vmatprep.subr.bf16.mxu0 0
      %4153 = vmatpush1.bf16.msra.mxu0 0
      %4154 = vmatprep.subr.bf16.mxu0 0
      %4155 = vmatpush1.bf16.msra.mxu0 0
      %4156 = vmatprep.subr.bf16.mxu0 0
      %4157 = vmatpush1.bf16.msra.mxu0 0
      %4158 = vmatprep.subr.bf16.mxu0 0
      %4159 = vmatpush1.bf16.msra.mxu0 0
      %4160 = vmatprep.subr.bf16.mxu0 0
      %4161 = vmatpush1.bf16.msra.mxu0 0
      %4162 = vmatprep.subr.bf16.mxu0 0
      %4163 = vmatpush1.bf16.msra.mxu0 0
      %4164 = vmatprep.subr.bf16.mxu0 0
      %4165 = vmatpush1.bf16.msra.mxu0 0
      %4166 = vmatprep.mubr.bf16.mxu0 0
      %4167 = vmatmul.mubr.bf16.gmra.mrb[0].mxu0 %v4126
      %v4168 = vpop.f32.mrb[0].mxu0
      %v4169 = vadd.f32 0.0, %v4168
      %v4170 = vpop.f32.mrb[0].mxu0
      %v4171 = vadd.f32 0.0, %v4170
      %v4172 = vpop.f32.mrb[0].mxu0
      %v4173 = vadd.f32 0.0, %v4172
      %v4174 = vpop.f32.mrb[0].mxu0
      %v4175 = vadd.f32 0.0, %v4174
      %4176 = vmatprep.mubr.bf16.mxu0 0
      %4177 = vmatmul.mubr.bf16.gmra.mrb[0].mxu0 %v4129
      %v4178 = vpop.f32.mrb[0].mxu0
      %v4179 = vadd.f32 0.0, %v4178
      %v4180 = vpop.f32.mrb[0].mxu0
      %v4181 = vadd.f32 0.0, %v4180
      %v4182 = vpop.f32.mrb[0].mxu0
      %v4183 = vadd.f32 0.0, %v4182
      %v4184 = vpop.f32.mrb[0].mxu0
      %v4185 = vadd.f32 0.0, %v4184
      %4186 = vmatprep.mubr.bf16.mxu0 0
      %4187 = vmatmul.mubr.bf16.gmra.mrb[0].mxu0 %v4132
      %v4188 = vpop.f32.mrb[0].mxu0
      %v4189 = vadd.f32 0.0, %v4188
      %v4190 = vpop.f32.mrb[0].mxu0
      %v4191 = vadd.f32 0.0, %v4190
      %v4192 = vpop.f32.mrb[0].mxu0
      %v4193 = vadd.f32 0.0, %v4192
      %v4194 = vpop.f32.mrb[0].mxu0
      %v4195 = vadd.f32 0.0, %v4194
      %4196 = vdwg.mxu0
      %4197 = vmatprep.subr.bf16.mxu0 %v4097
      %4198 = vmatpush1.bf16.msra.mxu0 %v4096
      %4199 = vmatprep.subr.bf16.mxu0 %v4102
      %4200 = vmatpush1.bf16.msra.mxu0 %v4101
      %4201 = vmatprep.subr.bf16.mxu0 %v4107
      %4202 = vmatpush1.bf16.msra.mxu0 %v4106
      %4203 = vmatprep.subr.bf16.mxu0 0
      %4204 = vmatpush1.bf16.msra.mxu0 0
      %4205 = vmatprep.subr.bf16.mxu0 0
      %4206 = vmatpush1.bf16.msra.mxu0 0
      %4207 = vmatprep.subr.bf16.mxu0 0
      %4208 = vmatpush1.bf16.msra.mxu0 0
      %4209 = vmatprep.subr.bf16.mxu0 0
      %4210 = vmatpush1.bf16.msra.mxu0 0
      %4211 = vmatprep.subr.bf16.mxu0 0
      %4212 = vmatpush1.bf16.msra.mxu0 0
      %4213 = vmatprep.subr.bf16.mxu0 0
      %4214 = vmatpush1.bf16.msra.mxu0 0
      %4215 = vmatprep.subr.bf16.mxu0 0
      %4216 = vmatpush1.bf16.msra.mxu0 0
      %4217 = vmatprep.subr.bf16.mxu0 0
      %4218 = vmatpush1.bf16.msra.mxu0 0
      %4219 = vmatprep.subr.bf16.mxu0 0
      %4220 = vmatpush1.bf16.msra.mxu0 0
      %4221 = vmatprep.subr.bf16.mxu0 0
      %4222 = vmatpush1.bf16.msra.mxu0 0
      %4223 = vmatprep.subr.bf16.mxu0 0
      %4224 = vmatpush1.bf16.msra.mxu0 0
      %4225 = vmatprep.subr.bf16.mxu0 0
      %4226 = vmatpush1.bf16.msra.mxu0 0
      %4227 = vmatprep.subr.bf16.mxu0 0
      %4228 = vmatpush1.bf16.msra.mxu0 0
      %4229 = vmatprep.mubr.bf16.mxu0 0
      %4230 = vmatmul.mubr.bf16.gmra.mrb[0].mxu0 %v4126
      %v4231 = vpop.f32.mrb[0].mxu0
      %v4232 = vadd.f32 0.0, %v4231
      %v4233 = vpop.f32.mrb[0].mxu0
      %v4234 = vadd.f32 0.0, %v4233
      %v4235 = vpop.f32.mrb[0].mxu0
      %v4236 = vadd.f32 0.0, %v4235
      %v4237 = vpop.f32.mrb[0].mxu0
      %v4238 = vadd.f32 0.0, %v4237
      %4239 = vmatprep.mubr.bf16.mxu0 0
      %4240 = vmatmul.mubr.bf16.gmra.mrb[0].mxu0 %v4129
      %v4241 = vpop.f32.mrb[0].mxu0
      %v4242 = vadd.f32 0.0, %v4241
      %v4243 = vpop.f32.mrb[0].mxu0
      %v4244 = vadd.f32 0.0, %v4243
      %v4245 = vpop.f32.mrb[0].mxu0
      %v4246 = vadd.f32 0.0, %v4245
      %v4247 = vpop.f32.mrb[0].mxu0
      %v4248 = vadd.f32 0.0, %v4247
      %4249 = vmatprep.mubr.bf16.mxu0 0
      %4250 = vmatmul.mubr.bf16.gmra.mrb[0].mxu0 %v4132
      %v4251 = vpop.f32.mrb[0].mxu0
      %v4252 = vadd.f32 0.0, %v4251
      %v4253 = vpop.f32.mrb[0].mxu0
      %v4254 = vadd.f32 0.0, %v4253
      %v4255 = vpop.f32.mrb[0].mxu0
      %v4256 = vadd.f32 0.0, %v4255
      %v4257 = vpop.f32.mrb[0].mxu0
      %v4258 = vadd.f32 0.0, %v4257
      %4259 = vdwg.mxu0
      %4260 = vmatprep.subr.bf16.mxu0 0
      %4261 = vmatpush1.bf16.msra.mxu0 %v4098
      %4262 = vmatprep.subr.bf16.mxu0 0
      %4263 = vmatpush1.bf16.msra.mxu0 %v4103
      %4264 = vmatprep.subr.bf16.mxu0 0
      %4265 = vmatpush1.bf16.msra.mxu0 %v4108
      %4266 = vmatprep.subr.bf16.mxu0 0
      %4267 = vmatpush1.bf16.msra.mxu0 0
      %4268 = vmatprep.subr.bf16.mxu0 0
      %4269 = vmatpush1.bf16.msra.mxu0 0
      %4270 = vmatprep.subr.bf16.mxu0 0
      %4271 = vmatpush1.bf16.msra.mxu0 0
      %4272 = vmatprep.subr.bf16.mxu0 0
      %4273 = vmatpush1.bf16.msra.mxu0 0
      %4274 = vmatprep.subr.bf16.mxu0 0
      %4275 = vmatpush1.bf16.msra.mxu0 0
      %4276 = vmatprep.subr.bf16.mxu0 0
      %4277 = vmatpush1.bf16.msra.mxu0 0
      %4278 = vmatprep.subr.bf16.mxu0 0
      %4279 = vmatpush1.bf16.msra.mxu0 0
      %4280 = vmatprep.subr.bf16.mxu0 0
      %4281 = vmatpush1.bf16.msra.mxu0 0
      %4282 = vmatprep.subr.bf16.mxu0 0
      %4283 = vmatpush1.bf16.msra.mxu0 0
      %4284 = vmatprep.subr.bf16.mxu0 0
      %4285 = vmatpush1.bf16.msra.mxu0 0
      %4286 = vmatprep.subr.bf16.mxu0 0
      %4287 = vmatpush1.bf16.msra.mxu0 0
      %4288 = vmatprep.subr.bf16.mxu0 0
      %4289 = vmatpush1.bf16.msra.mxu0 0
      %4290 = vmatprep.subr.bf16.mxu0 0
      %4291 = vmatpush1.bf16.msra.mxu0 0
      %4292 = vmatprep.mubr.bf16.mxu0 0
      %4293 = vmatmul.mubr.bf16.gmra.mrb[0].mxu0 %v4126
      %v4294 = vpop.f32.mrb[0].mxu0
      %v4295 = vadd.f32 0.0, %v4294
      %v4296 = vpop.f32.mrb[0].mxu0
      %v4297 = vpop.f32.mrb[0].mxu0
      %v4298 = vadd.f32 0.0, %v4297
      %v4299 = vpop.f32.mrb[0].mxu0
      %4300 = vmatprep.mubr.bf16.mxu0 0
      %4301 = vmatmul.mubr.bf16.gmra.mrb[0].mxu0 %v4129
      %v4302 = vpop.f32.mrb[0].mxu0
      %v4303 = vadd.f32 0.0, %v4302
      %v4304 = vpop.f32.mrb[0].mxu0
      %v4305 = vpop.f32.mrb[0].mxu0
      %v4306 = vadd.f32 0.0, %v4305
      %v4307 = vpop.f32.mrb[0].mxu0
      %4308 = vmatprep.mubr.bf16.mxu0 0
      %4309 = vmatmul.mubr.bf16.gmra.mrb[0].mxu0 %v4132
      %v4310 = vpop.f32.mrb[0].mxu0
      %v4311 = vadd.f32 0.0, %v4310
      %v4312 = vpop.f32.mrb[0].mxu0
      %v4313 = vpop.f32.mrb[0].mxu0
      %v4314 = vadd.f32 0.0, %v4313
      %v4315 = vpop.f32.mrb[0].mxu0
      %4316 = vdwg.mxu0
      %v4323 = vunpack.c.l.b16 %v3976
      %v4324 = vunpack.c.l.b16 %v3977
      %v4325 = vunpack.c.l.b16 %v3978
      %v4326 = vunpack.c.l.b16 %v3979
      %v4327 = vunpack.c.l.b16 %v3980
      %v4328 = vunpack.c.l.b16 %v3981
      %v4329 = vpack.c.b16 %v4324, %v4323
      %v4330 = vpack.c.b16 %v4326, %v4325
      %v4331 = vpack.c.b16 %v4328, %v4327
      %v4333 = vsel %vm4124, %v4329, 0
      %v4336 = vsel %vm4124, %v4330, 0
      %v4339 = vsel %vm4124, %v4331, 0
      %4341 = vmatprep.subr.bf16.mxu0 %v3983
      %4342 = vmatpush1.bf16.msra.mxu0 %v3982
      %4343 = vmatprep.subr.bf16.mxu0 %v3988
      %4344 = vmatpush1.bf16.msra.mxu0 %v3987
      %4345 = vmatprep.subr.bf16.mxu0 %v3993
      %4346 = vmatpush1.bf16.msra.mxu0 %v3992
      %4347 = vmatprep.subr.bf16.mxu0 0
      %4348 = vmatpush1.bf16.msra.mxu0 0
      %4349 = vmatprep.subr.bf16.mxu0 0
      %4350 = vmatpush1.bf16.msra.mxu0 0
      %4351 = vmatprep.subr.bf16.mxu0 0
      %4352 = vmatpush1.bf16.msra.mxu0 0
      %4353 = vmatprep.subr.bf16.mxu0 0
      %4354 = vmatpush1.bf16.msra.mxu0 0
      %4355 = vmatprep.subr.bf16.mxu0 0
      %4356 = vmatpush1.bf16.msra.mxu0 0
      %4357 = vmatprep.subr.bf16.mxu0 0
      %4358 = vmatpush1.bf16.msra.mxu0 0
      %4359 = vmatprep.subr.bf16.mxu0 0
      %4360 = vmatpush1.bf16.msra.mxu0 0
      %4361 = vmatprep.subr.bf16.mxu0 0
      %4362 = vmatpush1.bf16.msra.mxu0 0
      %4363 = vmatprep.subr.bf16.mxu0 0
      %4364 = vmatpush1.bf16.msra.mxu0 0
      %4365 = vmatprep.subr.bf16.mxu0 0
      %4366 = vmatpush1.bf16.msra.mxu0 0
      %4367 = vmatprep.subr.bf16.mxu0 0
      %4368 = vmatpush1.bf16.msra.mxu0 0
      %4369 = vmatprep.subr.bf16.mxu0 0
      %4370 = vmatpush1.bf16.msra.mxu0 0
      %4371 = vmatprep.subr.bf16.mxu0 0
      %4372 = vmatpush1.bf16.msra.mxu0 0
      %4373 = vmatprep.mubr.bf16.mxu0 0
      %4374 = vmatmul.mubr.bf16.gmra.mrb[0].mxu0 %v4333
      %v4375 = vpop.f32.mrb[0].mxu0
      %v4376 = vadd.f32 %v4169, %v4375
      %v4377 = vpop.f32.mrb[0].mxu0
      %v4378 = vadd.f32 %v4171, %v4377
      %v4379 = vpop.f32.mrb[0].mxu0
      %v4380 = vadd.f32 %v4173, %v4379
      %v4381 = vpop.f32.mrb[0].mxu0
      %v4382 = vadd.f32 %v4175, %v4381
      %4383 = vmatprep.mubr.bf16.mxu0 0
      %4384 = vmatmul.mubr.bf16.gmra.mrb[0].mxu0 %v4336
      %v4385 = vpop.f32.mrb[0].mxu0
      %v4386 = vadd.f32 %v4179, %v4385
      %v4387 = vpop.f32.mrb[0].mxu0
      %v4388 = vadd.f32 %v4181, %v4387
      %v4389 = vpop.f32.mrb[0].mxu0
      %v4390 = vadd.f32 %v4183, %v4389
      %v4391 = vpop.f32.mrb[0].mxu0
      %v4392 = vadd.f32 %v4185, %v4391
      %4393 = vmatprep.mubr.bf16.mxu0 0
      %4394 = vmatmul.mubr.bf16.gmra.mrb[0].mxu0 %v4339
      %v4395 = vpop.f32.mrb[0].mxu0
      %v4396 = vadd.f32 %v4189, %v4395
      %v4397 = vpop.f32.mrb[0].mxu0
      %v4398 = vadd.f32 %v4191, %v4397
      %v4399 = vpop.f32.mrb[0].mxu0
      %v4400 = vadd.f32 %v4193, %v4399
      %v4401 = vpop.f32.mrb[0].mxu0
      %v4402 = vadd.f32 %v4195, %v4401
      %4403 = vdwg.mxu0
      %4404 = vmatprep.subr.bf16.mxu0 %v3985
      %4405 = vmatpush1.bf16.msra.mxu0 %v3984
      %4406 = vmatprep.subr.bf16.mxu0 %v3990
      %4407 = vmatpush1.bf16.msra.mxu0 %v3989
      %4408 = vmatprep.subr.bf16.mxu0 %v3995
      %4409 = vmatpush1.bf16.msra.mxu0 %v3994
      %4410 = vmatprep.subr.bf16.mxu0 0
      %4411 = vmatpush1.bf16.msra.mxu0 0
      %4412 = vmatprep.subr.bf16.mxu0 0
      %4413 = vmatpush1.bf16.msra.mxu0 0
      %4414 = vmatprep.subr.bf16.mxu0 0
      %4415 = vmatpush1.bf16.msra.mxu0 0
      %4416 = vmatprep.subr.bf16.mxu0 0
      %4417 = vmatpush1.bf16.msra.mxu0 0
      %4418 = vmatprep.subr.bf16.mxu0 0
      %4419 = vmatpush1.bf16.msra.mxu0 0
      %4420 = vmatprep.subr.bf16.mxu0 0
      %4421 = vmatpush1.bf16.msra.mxu0 0
      %4422 = vmatprep.subr.bf16.mxu0 0
      %4423 = vmatpush1.bf16.msra.mxu0 0
      %4424 = vmatprep.subr.bf16.mxu0 0
      %4425 = vmatpush1.bf16.msra.mxu0 0
      %4426 = vmatprep.subr.bf16.mxu0 0
      %4427 = vmatpush1.bf16.msra.mxu0 0
      %4428 = vmatprep.subr.bf16.mxu0 0
      %4429 = vmatpush1.bf16.msra.mxu0 0
      %4430 = vmatprep.subr.bf16.mxu0 0
      %4431 = vmatpush1.bf16.msra.mxu0 0
      %4432 = vmatprep.subr.bf16.mxu0 0
      %4433 = vmatpush1.bf16.msra.mxu0 0
      %4434 = vmatprep.subr.bf16.mxu0 0
      %4435 = vmatpush1.bf16.msra.mxu0 0
      %4436 = vmatprep.mubr.bf16.mxu0 0
      %4437 = vmatmul.mubr.bf16.gmra.mrb[0].mxu0 %v4333
      %v4438 = vpop.f32.mrb[0].mxu0
      %v4439 = vadd.f32 %v4232, %v4438
      %v4440 = vpop.f32.mrb[0].mxu0
      %v4441 = vadd.f32 %v4234, %v4440
      %v4442 = vpop.f32.mrb[0].mxu0
      %v4443 = vadd.f32 %v4236, %v4442
      %v4444 = vpop.f32.mrb[0].mxu0
      %v4445 = vadd.f32 %v4238, %v4444
      %4446 = vmatprep.mubr.bf16.mxu0 0
      %4447 = vmatmul.mubr.bf16.gmra.mrb[0].mxu0 %v4336
      %v4448 = vpop.f32.mrb[0].mxu0
      %v4449 = vadd.f32 %v4242, %v4448
      %v4450 = vpop.f32.mrb[0].mxu0
      %v4451 = vadd.f32 %v4244, %v4450
      %v4452 = vpop.f32.mrb[0].mxu0
      %v4453 = vadd.f32 %v4246, %v4452
      %v4454 = vpop.f32.mrb[0].mxu0
      %v4455 = vadd.f32 %v4248, %v4454
      %4456 = vmatprep.mubr.bf16.mxu0 0
      %4457 = vmatmul.mubr.bf16.gmra.mrb[0].mxu0 %v4339
      %v4458 = vpop.f32.mrb[0].mxu0
      %v4459 = vadd.f32 %v4252, %v4458
      %v4460 = vpop.f32.mrb[0].mxu0
      %v4461 = vadd.f32 %v4254, %v4460
      %v4462 = vpop.f32.mrb[0].mxu0
      %v4463 = vadd.f32 %v4256, %v4462
      %v4464 = vpop.f32.mrb[0].mxu0
      %v4465 = vadd.f32 %v4258, %v4464
      %4466 = vdwg.mxu0
      %4467 = vmatprep.subr.bf16.mxu0 0
      %4468 = vmatpush1.bf16.msra.mxu0 %v3986
      %4469 = vmatprep.subr.bf16.mxu0 0
      %4470 = vmatpush1.bf16.msra.mxu0 %v3991
      %4471 = vmatprep.subr.bf16.mxu0 0
      %4472 = vmatpush1.bf16.msra.mxu0 %v3996
      %4473 = vmatprep.subr.bf16.mxu0 0
      %4474 = vmatpush1.bf16.msra.mxu0 0
      %4475 = vmatprep.subr.bf16.mxu0 0
      %4476 = vmatpush1.bf16.msra.mxu0 0
      %4477 = vmatprep.subr.bf16.mxu0 0
      %4478 = vmatpush1.bf16.msra.mxu0 0
      %4479 = vmatprep.subr.bf16.mxu0 0
      %4480 = vmatpush1.bf16.msra.mxu0 0
      %4481 = vmatprep.subr.bf16.mxu0 0
      %4482 = vmatpush1.bf16.msra.mxu0 0
      %4483 = vmatprep.subr.bf16.mxu0 0
      %4484 = vmatpush1.bf16.msra.mxu0 0
      %4485 = vmatprep.subr.bf16.mxu0 0
      %4486 = vmatpush1.bf16.msra.mxu0 0
      %4487 = vmatprep.subr.bf16.mxu0 0
      %4488 = vmatpush1.bf16.msra.mxu0 0
      %4489 = vmatprep.subr.bf16.mxu0 0
      %4490 = vmatpush1.bf16.msra.mxu0 0
      %4491 = vmatprep.subr.bf16.mxu0 0
      %4492 = vmatpush1.bf16.msra.mxu0 0
      %4493 = vmatprep.subr.bf16.mxu0 0
      %4494 = vmatpush1.bf16.msra.mxu0 0
      %4495 = vmatprep.subr.bf16.mxu0 0
      %4496 = vmatpush1.bf16.msra.mxu0 0
      %4497 = vmatprep.subr.bf16.mxu0 0
      %4498 = vmatpush1.bf16.msra.mxu0 0
      %4499 = vmatprep.mubr.bf16.mxu0 0
      %4500 = vmatmul.mubr.bf16.gmra.mrb[0].mxu0 %v4333
      %v4501 = vpop.f32.mrb[0].mxu0
      %v4502 = vadd.f32 %v4295, %v4501
      %v4503 = vpop.f32.mrb[0].mxu0
      %v4504 = vpop.f32.mrb[0].mxu0
      %v4505 = vadd.f32 %v4298, %v4504
      %v4506 = vpop.f32.mrb[0].mxu0
      %4507 = vmatprep.mubr.bf16.mxu0 0
      %4508 = vmatmul.mubr.bf16.gmra.mrb[0].mxu0 %v4336
      %v4509 = vpop.f32.mrb[0].mxu0
      %v4510 = vadd.f32 %v4303, %v4509
      %v4511 = vpop.f32.mrb[0].mxu0
      %v4512 = vpop.f32.mrb[0].mxu0
      %v4513 = vadd.f32 %v4306, %v4512
      %v4514 = vpop.f32.mrb[0].mxu0
      %4515 = vmatprep.mubr.bf16.mxu0 0
      %4516 = vmatmul.mubr.bf16.gmra.mrb[0].mxu0 %v4339
      %v4517 = vpop.f32.mrb[0].mxu0
      %v4518 = vadd.f32 %v4311, %v4517
      %v4519 = vpop.f32.mrb[0].mxu0
      %v4520 = vpop.f32.mrb[0].mxu0
      %v4521 = vadd.f32 %v4314, %v4520
      %v4522 = vpop.f32.mrb[0].mxu0
      %4523 = vdwg.mxu0
      %4524 = vrot.lane.b32.xlu0 %v3856, 31
      %v4525 = vpop.permute.xlu0 %4524
      %4526 = vrot.lane.b32.xlu0 %v3861, 31
      %v4527 = vpop.permute.xlu0 %4526
      %4528 = vrot.lane.b32.xlu0 %v3866, 31
      %v4529 = vpop.permute.xlu0 %4528
      %4530 = vrot.lane.b32.xlu0 %v3871, 31
      %v4531 = vpop.permute.xlu0 %4530
      %4532 = vrot.lane.b32.xlu0 %v3876, 31
      %v4533 = vpop.permute.xlu0 %4532
      %4534 = vrot.lane.b32.xlu0 %v3881, 31
      %v4535 = vpop.permute.xlu0 %4534
      %4536 = vrot.lane.b32.xlu0 %v3857, 31
      %v4537 = vpop.permute.xlu0 %4536
      %4538 = vrot.lane.b32.xlu0 %v3862, 31
      %v4539 = vpop.permute.xlu0 %4538
      %4540 = vrot.lane.b32.xlu0 %v3867, 31
      %v4541 = vpop.permute.xlu0 %4540
      %4542 = vrot.lane.b32.xlu0 %v3872, 31
      %v4543 = vpop.permute.xlu0 %4542
      %4544 = vrot.lane.b32.xlu0 %v3877, 31
      %v4545 = vpop.permute.xlu0 %4544
      %4546 = vrot.lane.b32.xlu0 %v3882, 31
      %v4547 = vpop.permute.xlu0 %4546
      %4548 = vrot.lane.b32.xlu0 %v3858, 31
      %v4549 = vpop.permute.xlu0 %4548
      %4550 = vrot.lane.b32.xlu0 %v3863, 31
      %v4551 = vpop.permute.xlu0 %4550
      %4552 = vrot.lane.b32.xlu0 %v3868, 31
      %v4553 = vpop.permute.xlu0 %4552
      %4554 = vrot.lane.b32.xlu0 %v3873, 31
      %v4555 = vpop.permute.xlu0 %4554
      %4556 = vrot.lane.b32.xlu0 %v3878, 31
      %v4557 = vpop.permute.xlu0 %4556
      %4558 = vrot.lane.b32.xlu0 %v3883, 31
      %v4559 = vpop.permute.xlu0 %4558
      %4560 = vrot.lane.b32.xlu0 %v3859, 31
      %v4561 = vpop.permute.xlu0 %4560
      %4562 = vrot.lane.b32.xlu0 %v3864, 31
      %v4563 = vpop.permute.xlu0 %4562
      %4564 = vrot.lane.b32.xlu0 %v3869, 31
      %v4565 = vpop.permute.xlu0 %4564
      %4566 = vrot.lane.b32.xlu0 %v3874, 31
      %v4567 = vpop.permute.xlu0 %4566
      %4568 = vrot.lane.b32.xlu0 %v3879, 31
      %v4569 = vpop.permute.xlu0 %4568
      %4570 = vrot.lane.b32.xlu0 %v3884, 31
      %v4571 = vpop.permute.xlu0 %4570
      %4572 = vrot.lane.b32.xlu0 %v3860, 31
      %v4573 = vpop.permute.xlu0 %4572
      %4574 = vrot.lane.b32.xlu0 %v3865, 31
      %v4575 = vpop.permute.xlu0 %4574
      %4576 = vrot.lane.b32.xlu0 %v3870, 31
      %v4577 = vpop.permute.xlu0 %4576
      %4578 = vrot.lane.b32.xlu0 %v3875, 31
      %v4579 = vpop.permute.xlu0 %4578
      %4580 = vrot.lane.b32.xlu0 %v3880, 31
      %v4581 = vpop.permute.xlu0 %4580
      %4582 = vrot.lane.b32.xlu0 %v3885, 31
      %v4583 = vpop.permute.xlu0 %4582
      %v4584 = vsel %vm1162, %v4561, %v4573
      %v4585 = vsel %vm1162, %v4563, %v4575
      %v4586 = vsel %vm1162, %v4565, %v4577
      %v4587 = vsel %vm1162, %v4567, %v4579
      %v4588 = vsel %vm1162, %v4569, %v4581
      %v4589 = vsel %vm1162, %v4571, %v4583
      %v4590 = vsel %vm1162, %v4549, %v4561
      %v4591 = vsel %vm1162, %v4551, %v4563
      %v4592 = vsel %vm1162, %v4553, %v4565
      %v4593 = vsel %vm1162, %v4555, %v4567
      %v4594 = vsel %vm1162, %v4557, %v4569
      %v4595 = vsel %vm1162, %v4559, %v4571
      %v4596 = vsel %vm1162, %v4537, %v4549
      %v4597 = vsel %vm1162, %v4539, %v4551
      %v4598 = vsel %vm1162, %v4541, %v4553
      %v4599 = vsel %vm1162, %v4543, %v4555
      %v4600 = vsel %vm1162, %v4545, %v4557
      %v4601 = vsel %vm1162, %v4547, %v4559
      %v4602 = vsel %vm1162, %v4525, %v4537
      %v4603 = vsel %vm1162, %v4527, %v4539
      %v4604 = vsel %vm1162, %v4529, %v4541
      %v4605 = vsel %vm1162, %v4531, %v4543
      %v4606 = vsel %vm1162, %v4533, %v4545
      %v4607 = vsel %vm1162, %v4535, %v4547
      %v4608 = vsel %vm1162, %v4573, %v4525
      %v4609 = vsel %vm1162, %v4575, %v4527
      %v4610 = vsel %vm1162, %v4577, %v4529
      %v4611 = vsel %vm1162, %v4579, %v4531
      %v4612 = vsel %vm1162, %v4581, %v4533
      %v4613 = vsel %vm1162, %v4583, %v4535
      %s4614 = scalar_lea.vmem %s6, 48
      %v4615 = vld [vmem:[%s4614] sm:$0xf]
      %v4616 = vld [vmem:[%s4614 + $0x4] sm:$0xf]
      %v4617 = vld [vmem:[%s4614 + $0x8] sm:$0xf]
      %v4618 = vld [vmem:[%s4614 + $0xc] sm:$0xf]
      %v4619 = vld [vmem:[%s4614 + $0x10] sm:$0xf]
      %v4620 = vld [vmem:[%s4614 + $0x14] sm:$0xf]
      %v4621 = vpack.c.bf16 %v4609, %v4608
      %v4622 = vpack.c.bf16 %v4603, %v4602
      %v4623 = vpack.c.bf16 %v4597, %v4596
      %v4624 = vpack.c.bf16 %v4591, %v4590
      %v4625 = vpack.c.bf16 %v4585, %v4584
      %v4626 = vpack.c.bf16 %v4611, %v4610
      %v4627 = vpack.c.bf16 %v4605, %v4604
      %v4628 = vpack.c.bf16 %v4599, %v4598
      %v4629 = vpack.c.bf16 %v4593, %v4592
      %v4630 = vpack.c.bf16 %v4587, %v4586
      %v4631 = vpack.c.bf16 %v4613, %v4612
      %v4632 = vpack.c.bf16 %v4607, %v4606
      %v4633 = vpack.c.bf16 %v4601, %v4600
      %v4634 = vpack.c.bf16 %v4595, %v4594
      %v4635 = vpack.c.bf16 %v4589, %v4588
      %v4642 = vunpack.c.l.b16 %v4615
      %v4643 = vunpack.c.l.b16 %v4616
      %v4644 = vunpack.c.l.b16 %v4617
      %v4645 = vunpack.c.l.b16 %v4618
      %v4646 = vunpack.c.l.b16 %v4619
      %v4647 = vunpack.c.l.b16 %v4620
      %v4648 = vpack.c.b16 %v4643, %v4642
      %v4649 = vpack.c.b16 %v4645, %v4644
      %v4650 = vpack.c.b16 %v4647, %v4646
      %v4652 = vsel %vm4124, %v4648, 0
      %v4655 = vsel %vm4124, %v4649, 0
      %v4658 = vsel %vm4124, %v4650, 0
      %4660 = vmatprep.subr.bf16.mxu0 %v4622
      %4661 = vmatpush1.bf16.msra.mxu0 %v4621
      %4662 = vmatprep.subr.bf16.mxu0 %v4627
      %4663 = vmatpush1.bf16.msra.mxu0 %v4626
      %4664 = vmatprep.subr.bf16.mxu0 %v4632
      %4665 = vmatpush1.bf16.msra.mxu0 %v4631
      %4666 = vmatprep.subr.bf16.mxu0 0
      %4667 = vmatpush1.bf16.msra.mxu0 0
      %4668 = vmatprep.subr.bf16.mxu0 0
      %4669 = vmatpush1.bf16.msra.mxu0 0
      %4670 = vmatprep.subr.bf16.mxu0 0
      %4671 = vmatpush1.bf16.msra.mxu0 0
      %4672 = vmatprep.subr.bf16.mxu0 0
      %4673 = vmatpush1.bf16.msra.mxu0 0
      %4674 = vmatprep.subr.bf16.mxu0 0
      %4675 = vmatpush1.bf16.msra.mxu0 0
      %4676 = vmatprep.subr.bf16.mxu0 0
      %4677 = vmatpush1.bf16.msra.mxu0 0
      %4678 = vmatprep.subr.bf16.mxu0 0
      %4679 = vmatpush1.bf16.msra.mxu0 0
      %4680 = vmatprep.subr.bf16.mxu0 0
      %4681 = vmatpush1.bf16.msra.mxu0 0
      %4682 = vmatprep.subr.bf16.mxu0 0
      %4683 = vmatpush1.bf16.msra.mxu0 0
      %4684 = vmatprep.subr.bf16.mxu0 0
      %4685 = vmatpush1.bf16.msra.mxu0 0
      %4686 = vmatprep.subr.bf16.mxu0 0
      %4687 = vmatpush1.bf16.msra.mxu0 0
      %4688 = vmatprep.subr.bf16.mxu0 0
      %4689 = vmatpush1.bf16.msra.mxu0 0
      %4690 = vmatprep.subr.bf16.mxu0 0
      %4691 = vmatpush1.bf16.msra.mxu0 0
      %4692 = vmatprep.mubr.bf16.mxu0 0
      %4693 = vmatmul.mubr.bf16.gmra.mrb[0].mxu0 %v4652
      %v4694 = vpop.f32.mrb[0].mxu0
      %v4695 = vadd.f32 0.0, %v4694
      %v4696 = vpop.f32.mrb[0].mxu0
      %v4697 = vadd.f32 0.0, %v4696
      %v4698 = vpop.f32.mrb[0].mxu0
      %v4699 = vadd.f32 0.0, %v4698
      %v4700 = vpop.f32.mrb[0].mxu0
      %v4701 = vadd.f32 0.0, %v4700
      %4702 = vmatprep.mubr.bf16.mxu0 0
      %4703 = vmatmul.mubr.bf16.gmra.mrb[0].mxu0 %v4655
      %v4704 = vpop.f32.mrb[0].mxu0
      %v4705 = vadd.f32 0.0, %v4704
      %v4706 = vpop.f32.mrb[0].mxu0
      %v4707 = vadd.f32 0.0, %v4706
      %v4708 = vpop.f32.mrb[0].mxu0
      %v4709 = vadd.f32 0.0, %v4708
      %v4710 = vpop.f32.mrb[0].mxu0
      %v4711 = vadd.f32 0.0, %v4710
      %4712 = vmatprep.mubr.bf16.mxu0 0
      %4713 = vmatmul.mubr.bf16.gmra.mrb[0].mxu0 %v4658
      %v4714 = vpop.f32.mrb[0].mxu0
      %v4715 = vadd.f32 0.0, %v4714
      %v4716 = vpop.f32.mrb[0].mxu0
      %v4717 = vadd.f32 0.0, %v4716
      %v4718 = vpop.f32.mrb[0].mxu0
      %v4719 = vadd.f32 0.0, %v4718
      %v4720 = vpop.f32.mrb[0].mxu0
      %v4721 = vadd.f32 0.0, %v4720
      %4722 = vdwg.mxu0
      %4723 = vmatprep.subr.bf16.mxu0 %v4624
      %4724 = vmatpush1.bf16.msra.mxu0 %v4623
      %4725 = vmatprep.subr.bf16.mxu0 %v4629
      %4726 = vmatpush1.bf16.msra.mxu0 %v4628
      %4727 = vmatprep.subr.bf16.mxu0 %v4634
      %4728 = vmatpush1.bf16.msra.mxu0 %v4633
      %4729 = vmatprep.subr.bf16.mxu0 0
      %4730 = vmatpush1.bf16.msra.mxu0 0
      %4731 = vmatprep.subr.bf16.mxu0 0
      %4732 = vmatpush1.bf16.msra.mxu0 0
      %4733 = vmatprep.subr.bf16.mxu0 0
      %4734 = vmatpush1.bf16.msra.mxu0 0
      %4735 = vmatprep.subr.bf16.mxu0 0
      %4736 = vmatpush1.bf16.msra.mxu0 0
      %4737 = vmatprep.subr.bf16.mxu0 0
      %4738 = vmatpush1.bf16.msra.mxu0 0
      %4739 = vmatprep.subr.bf16.mxu0 0
      %4740 = vmatpush1.bf16.msra.mxu0 0
      %4741 = vmatprep.subr.bf16.mxu0 0
      %4742 = vmatpush1.bf16.msra.mxu0 0
      %4743 = vmatprep.subr.bf16.mxu0 0
      %4744 = vmatpush1.bf16.msra.mxu0 0
      %4745 = vmatprep.subr.bf16.mxu0 0
      %4746 = vmatpush1.bf16.msra.mxu0 0
      %4747 = vmatprep.subr.bf16.mxu0 0
      %4748 = vmatpush1.bf16.msra.mxu0 0
      %4749 = vmatprep.subr.bf16.mxu0 0
      %4750 = vmatpush1.bf16.msra.mxu0 0
      %4751 = vmatprep.subr.bf16.mxu0 0
      %4752 = vmatpush1.bf16.msra.mxu0 0
      %4753 = vmatprep.subr.bf16.mxu0 0
      %4754 = vmatpush1.bf16.msra.mxu0 0
      %4755 = vmatprep.mubr.bf16.mxu0 0
      %4756 = vmatmul.mubr.bf16.gmra.mrb[0].mxu0 %v4652
      %v4757 = vpop.f32.mrb[0].mxu0
      %v4758 = vadd.f32 0.0, %v4757
      %v4759 = vpop.f32.mrb[0].mxu0
      %v4760 = vadd.f32 0.0, %v4759
      %v4761 = vpop.f32.mrb[0].mxu0
      %v4762 = vadd.f32 0.0, %v4761
      %v4763 = vpop.f32.mrb[0].mxu0
      %v4764 = vadd.f32 0.0, %v4763
      %4765 = vmatprep.mubr.bf16.mxu0 0
      %4766 = vmatmul.mubr.bf16.gmra.mrb[0].mxu0 %v4655
      %v4767 = vpop.f32.mrb[0].mxu0
      %v4768 = vadd.f32 0.0, %v4767
      %v4769 = vpop.f32.mrb[0].mxu0
      %v4770 = vadd.f32 0.0, %v4769
      %v4771 = vpop.f32.mrb[0].mxu0
      %v4772 = vadd.f32 0.0, %v4771
      %v4773 = vpop.f32.mrb[0].mxu0
      %v4774 = vadd.f32 0.0, %v4773
      %4775 = vmatprep.mubr.bf16.mxu0 0
      %4776 = vmatmul.mubr.bf16.gmra.mrb[0].mxu0 %v4658
      %v4777 = vpop.f32.mrb[0].mxu0
      %v4778 = vadd.f32 0.0, %v4777
      %v4779 = vpop.f32.mrb[0].mxu0
      %v4780 = vadd.f32 0.0, %v4779
      %v4781 = vpop.f32.mrb[0].mxu0
      %v4782 = vadd.f32 0.0, %v4781
      %v4783 = vpop.f32.mrb[0].mxu0
      %v4784 = vadd.f32 0.0, %v4783
      %4785 = vdwg.mxu0
      %4786 = vmatprep.subr.bf16.mxu0 0
      %4787 = vmatpush1.bf16.msra.mxu0 %v4625
      %4788 = vmatprep.subr.bf16.mxu0 0
      %4789 = vmatpush1.bf16.msra.mxu0 %v4630
      %4790 = vmatprep.subr.bf16.mxu0 0
      %4791 = vmatpush1.bf16.msra.mxu0 %v4635
      %4792 = vmatprep.subr.bf16.mxu0 0
      %4793 = vmatpush1.bf16.msra.mxu0 0
      %4794 = vmatprep.subr.bf16.mxu0 0
      %4795 = vmatpush1.bf16.msra.mxu0 0
      %4796 = vmatprep.subr.bf16.mxu0 0
      %4797 = vmatpush1.bf16.msra.mxu0 0
      %4798 = vmatprep.subr.bf16.mxu0 0
      %4799 = vmatpush1.bf16.msra.mxu0 0
      %4800 = vmatprep.subr.bf16.mxu0 0
      %4801 = vmatpush1.bf16.msra.mxu0 0
      %4802 = vmatprep.subr.bf16.mxu0 0
      %4803 = vmatpush1.bf16.msra.mxu0 0
      %4804 = vmatprep.subr.bf16.mxu0 0
      %4805 = vmatpush1.bf16.msra.mxu0 0
      %4806 = vmatprep.subr.bf16.mxu0 0
      %4807 = vmatpush1.bf16.msra.mxu0 0
      %4808 = vmatprep.subr.bf16.mxu0 0
      %4809 = vmatpush1.bf16.msra.mxu0 0
      %4810 = vmatprep.subr.bf16.mxu0 0
      %4811 = vmatpush1.bf16.msra.mxu0 0
      %4812 = vmatprep.subr.bf16.mxu0 0
      %4813 = vmatpush1.bf16.msra.mxu0 0
      %4814 = vmatprep.subr.bf16.mxu0 0
      %4815 = vmatpush1.bf16.msra.mxu0 0
      %4816 = vmatprep.subr.bf16.mxu0 0
      %4817 = vmatpush1.bf16.msra.mxu0 0
      %4818 = vmatprep.mubr.bf16.mxu0 0
      %4819 = vmatmul.mubr.bf16.gmra.mrb[0].mxu0 %v4652
      %v4820 = vpop.f32.mrb[0].mxu0
      %v4821 = vadd.f32 0.0, %v4820
      %v4822 = vpop.f32.mrb[0].mxu0
      %v4823 = vpop.f32.mrb[0].mxu0
      %v4824 = vadd.f32 0.0, %v4823
      %v4825 = vpop.f32.mrb[0].mxu0
      %4826 = vmatprep.mubr.bf16.mxu0 0
      %4827 = vmatmul.mubr.bf16.gmra.mrb[0].mxu0 %v4655
      %v4828 = vpop.f32.mrb[0].mxu0
      %v4829 = vadd.f32 0.0, %v4828
      %v4830 = vpop.f32.mrb[0].mxu0
      %v4831 = vpop.f32.mrb[0].mxu0
      %v4832 = vadd.f32 0.0, %v4831
      %v4833 = vpop.f32.mrb[0].mxu0
      %4834 = vmatprep.mubr.bf16.mxu0 0
      %4835 = vmatmul.mubr.bf16.gmra.mrb[0].mxu0 %v4658
      %v4836 = vpop.f32.mrb[0].mxu0
      %v4837 = vadd.f32 0.0, %v4836
      %v4838 = vpop.f32.mrb[0].mxu0
      %v4839 = vpop.f32.mrb[0].mxu0
      %v4840 = vadd.f32 0.0, %v4839
      %v4841 = vpop.f32.mrb[0].mxu0
      %4842 = vdwg.mxu0
      %v4843 = vadd.f32 %v4376, %v4695
      %v4844 = vadd.f32 %v4378, %v4697
      %v4845 = vadd.f32 %v4439, %v4758
      %v4846 = vadd.f32 %v4441, %v4760
      %v4847 = vadd.f32 %v4502, %v4821
      %v4848 = vadd.f32 %v4380, %v4699
      %v4849 = vadd.f32 %v4382, %v4701
      %v4850 = vadd.f32 %v4443, %v4762
      %v4851 = vadd.f32 %v4445, %v4764
      %v4852 = vadd.f32 %v4505, %v4824
      %v4853 = vadd.f32 %v4386, %v4705
      %v4854 = vadd.f32 %v4388, %v4707
      %v4855 = vadd.f32 %v4449, %v4768
      %v4856 = vadd.f32 %v4451, %v4770
      %v4857 = vadd.f32 %v4510, %v4829
      %v4858 = vadd.f32 %v4390, %v4709
      %v4859 = vadd.f32 %v4392, %v4711
      %v4860 = vadd.f32 %v4453, %v4772
      %v4861 = vadd.f32 %v4455, %v4774
      %v4862 = vadd.f32 %v4513, %v4832
      %v4863 = vadd.f32 %v4396, %v4715
      %v4864 = vadd.f32 %v4398, %v4717
      %v4865 = vadd.f32 %v4459, %v4778
      %v4866 = vadd.f32 %v4461, %v4780
      %v4867 = vadd.f32 %v4518, %v4837
      %v4868 = vadd.f32 %v4400, %v4719
      %v4869 = vadd.f32 %v4402, %v4721
      %v4870 = vadd.f32 %v4463, %v4782
      %v4871 = vadd.f32 %v4465, %v4784
      %v4872 = vadd.f32 %v4521, %v4840
      %4873 = vrot.lane.b32.xlu0 %v3856, 1
      %v4874 = vpop.permute.xlu0 %4873
      %4875 = vrot.lane.b32.xlu0 %v3861, 1
      %v4876 = vpop.permute.xlu0 %4875
      %4877 = vrot.lane.b32.xlu0 %v3866, 1
      %v4878 = vpop.permute.xlu0 %4877
      %4879 = vrot.lane.b32.xlu0 %v3871, 1
      %v4880 = vpop.permute.xlu0 %4879
      %4881 = vrot.lane.b32.xlu0 %v3876, 1
      %v4882 = vpop.permute.xlu0 %4881
      %4883 = vrot.lane.b32.xlu0 %v3881, 1
      %v4884 = vpop.permute.xlu0 %4883
      %4885 = vrot.lane.b32.xlu0 %v3857, 1
      %v4886 = vpop.permute.xlu0 %4885
      %4887 = vrot.lane.b32.xlu0 %v3862, 1
      %v4888 = vpop.permute.xlu0 %4887
      %4889 = vrot.lane.b32.xlu0 %v3867, 1
      %v4890 = vpop.permute.xlu0 %4889
      %4891 = vrot.lane.b32.xlu0 %v3872, 1
      %v4892 = vpop.permute.xlu0 %4891
      %4893 = vrot.lane.b32.xlu0 %v3877, 1
      %v4894 = vpop.permute.xlu0 %4893
      %4895 = vrot.lane.b32.xlu0 %v3882, 1
      %v4896 = vpop.permute.xlu0 %4895
      %4897 = vrot.lane.b32.xlu0 %v3858, 1
      %v4898 = vpop.permute.xlu0 %4897
      %4899 = vrot.lane.b32.xlu0 %v3863, 1
      %v4900 = vpop.permute.xlu0 %4899
      %4901 = vrot.lane.b32.xlu0 %v3868, 1
      %v4902 = vpop.permute.xlu0 %4901
      %4903 = vrot.lane.b32.xlu0 %v3873, 1
      %v4904 = vpop.permute.xlu0 %4903
      %4905 = vrot.lane.b32.xlu0 %v3878, 1
      %v4906 = vpop.permute.xlu0 %4905
      %4907 = vrot.lane.b32.xlu0 %v3883, 1
      %v4908 = vpop.permute.xlu0 %4907
      %4909 = vrot.lane.b32.xlu0 %v3859, 1
      %v4910 = vpop.permute.xlu0 %4909
      %4911 = vrot.lane.b32.xlu0 %v3864, 1
      %v4912 = vpop.permute.xlu0 %4911
      %4913 = vrot.lane.b32.xlu0 %v3869, 1
      %v4914 = vpop.permute.xlu0 %4913
      %4915 = vrot.lane.b32.xlu0 %v3874, 1
      %v4916 = vpop.permute.xlu0 %4915
      %4917 = vrot.lane.b32.xlu0 %v3879, 1
      %v4918 = vpop.permute.xlu0 %4917
      %4919 = vrot.lane.b32.xlu0 %v3884, 1
      %v4920 = vpop.permute.xlu0 %4919
      %4921 = vrot.lane.b32.xlu0 %v3860, 1
      %v4922 = vpop.permute.xlu0 %4921
      %4923 = vrot.lane.b32.xlu0 %v3865, 1
      %v4924 = vpop.permute.xlu0 %4923
      %4925 = vrot.lane.b32.xlu0 %v3870, 1
      %v4926 = vpop.permute.xlu0 %4925
      %4927 = vrot.lane.b32.xlu0 %v3875, 1
      %v4928 = vpop.permute.xlu0 %4927
      %4929 = vrot.lane.b32.xlu0 %v3880, 1
      %v4930 = vpop.permute.xlu0 %4929
      %4931 = vrot.lane.b32.xlu0 %v3885, 1
      %v4932 = vpop.permute.xlu0 %4931
      %v4933 = vsel %vm1490, %v4910, %v4922
      %v4934 = vsel %vm1490, %v4912, %v4924
      %v4935 = vsel %vm1490, %v4914, %v4926
      %v4936 = vsel %vm1490, %v4916, %v4928
      %v4937 = vsel %vm1490, %v4918, %v4930
      %v4938 = vsel %vm1490, %v4920, %v4932
      %v4939 = vsel %vm1490, %v4898, %v4910
      %v4940 = vsel %vm1490, %v4900, %v4912
      %v4941 = vsel %vm1490, %v4902, %v4914
      %v4942 = vsel %vm1490, %v4904, %v4916
      %v4943 = vsel %vm1490, %v4906, %v4918
      %v4944 = vsel %vm1490, %v4908, %v4920
      %v4945 = vsel %vm1490, %v4886, %v4898
      %v4946 = vsel %vm1490, %v4888, %v4900
      %v4947 = vsel %vm1490, %v4890, %v4902
      %v4948 = vsel %vm1490, %v4892, %v4904
      %v4949 = vsel %vm1490, %v4894, %v4906
      %v4950 = vsel %vm1490, %v4896, %v4908
      %v4951 = vsel %vm1490, %v4874, %v4886
      %v4952 = vsel %vm1490, %v4876, %v4888
      %v4953 = vsel %vm1490, %v4878, %v4890
      %v4954 = vsel %vm1490, %v4880, %v4892
      %v4955 = vsel %vm1490, %v4882, %v4894
      %v4956 = vsel %vm1490, %v4884, %v4896
      %v4957 = vsel %vm1490, %v4922, %v4874
      %v4958 = vsel %vm1490, %v4924, %v4876
      %v4959 = vsel %vm1490, %v4926, %v4878
      %v4960 = vsel %vm1490, %v4928, %v4880
      %v4961 = vsel %vm1490, %v4930, %v4882
      %v4962 = vsel %vm1490, %v4932, %v4884
      %s4963 = scalar_lea.vmem %s6, 72
      %v4964 = vld [vmem:[%s4963] sm:$0xf]
      %v4965 = vld [vmem:[%s4963 + $0x4] sm:$0xf]
      %v4966 = vld [vmem:[%s4963 + $0x8] sm:$0xf]
      %v4967 = vld [vmem:[%s4963 + $0xc] sm:$0xf]
      %v4968 = vld [vmem:[%s4963 + $0x10] sm:$0xf]
      %v4969 = vld [vmem:[%s4963 + $0x14] sm:$0xf]
      %v4970 = vpack.c.bf16 %v4958, %v4957
      %v4971 = vpack.c.bf16 %v4952, %v4951
      %v4972 = vpack.c.bf16 %v4946, %v4945
      %v4973 = vpack.c.bf16 %v4940, %v4939
      %v4974 = vpack.c.bf16 %v4934, %v4933
      %v4975 = vpack.c.bf16 %v4960, %v4959
      %v4976 = vpack.c.bf16 %v4954, %v4953
      %v4977 = vpack.c.bf16 %v4948, %v4947
      %v4978 = vpack.c.bf16 %v4942, %v4941
      %v4979 = vpack.c.bf16 %v4936, %v4935
      %v4980 = vpack.c.bf16 %v4962, %v4961
      %v4981 = vpack.c.bf16 %v4956, %v4955
      %v4982 = vpack.c.bf16 %v4950, %v4949
      %v4983 = vpack.c.bf16 %v4944, %v4943
      %v4984 = vpack.c.bf16 %v4938, %v4937
      %v4991 = vunpack.c.l.b16 %v4964
      %v4992 = vunpack.c.l.b16 %v4965
      %v4993 = vunpack.c.l.b16 %v4966
      %v4994 = vunpack.c.l.b16 %v4967
      %v4995 = vunpack.c.l.b16 %v4968
      %v4996 = vunpack.c.l.b16 %v4969
      %v4997 = vpack.c.b16 %v4992, %v4991
      %v4998 = vpack.c.b16 %v4994, %v4993
      %v4999 = vpack.c.b16 %v4996, %v4995
      %v5001 = vsel %vm4124, %v4997, 0
      %v5004 = vsel %vm4124, %v4998, 0
      %v5007 = vsel %vm4124, %v4999, 0
      %5009 = vmatprep.subr.bf16.mxu0 %v4971
      %5010 = vmatpush1.bf16.msra.mxu0 %v4970
      %5011 = vmatprep.subr.bf16.mxu0 %v4976
      %5012 = vmatpush1.bf16.msra.mxu0 %v4975
      %5013 = vmatprep.subr.bf16.mxu0 %v4981
      %5014 = vmatpush1.bf16.msra.mxu0 %v4980
      %5015 = vmatprep.subr.bf16.mxu0 0
      %5016 = vmatpush1.bf16.msra.mxu0 0
      %5017 = vmatprep.subr.bf16.mxu0 0
      %5018 = vmatpush1.bf16.msra.mxu0 0
      %5019 = vmatprep.subr.bf16.mxu0 0
      %5020 = vmatpush1.bf16.msra.mxu0 0
      %5021 = vmatprep.subr.bf16.mxu0 0
      %5022 = vmatpush1.bf16.msra.mxu0 0
      %5023 = vmatprep.subr.bf16.mxu0 0
      %5024 = vmatpush1.bf16.msra.mxu0 0
      %5025 = vmatprep.subr.bf16.mxu0 0
      %5026 = vmatpush1.bf16.msra.mxu0 0
      %5027 = vmatprep.subr.bf16.mxu0 0
      %5028 = vmatpush1.bf16.msra.mxu0 0
      %5029 = vmatprep.subr.bf16.mxu0 0
      %5030 = vmatpush1.bf16.msra.mxu0 0
      %5031 = vmatprep.subr.bf16.mxu0 0
      %5032 = vmatpush1.bf16.msra.mxu0 0
      %5033 = vmatprep.subr.bf16.mxu0 0
      %5034 = vmatpush1.bf16.msra.mxu0 0
      %5035 = vmatprep.subr.bf16.mxu0 0
      %5036 = vmatpush1.bf16.msra.mxu0 0
      %5037 = vmatprep.subr.bf16.mxu0 0
      %5038 = vmatpush1.bf16.msra.mxu0 0
      %5039 = vmatprep.subr.bf16.mxu0 0
      %5040 = vmatpush1.bf16.msra.mxu0 0
      %5041 = vmatprep.mubr.bf16.mxu0 0
      %5042 = vmatmul.mubr.bf16.gmra.mrb[0].mxu0 %v5001
      %v5043 = vpop.f32.mrb[0].mxu0
      %v5044 = vadd.f32 0.0, %v5043
      %v5045 = vpop.f32.mrb[0].mxu0
      %v5046 = vadd.f32 0.0, %v5045
      %v5047 = vpop.f32.mrb[0].mxu0
      %v5048 = vadd.f32 0.0, %v5047
      %v5049 = vpop.f32.mrb[0].mxu0
      %v5050 = vadd.f32 0.0, %v5049
      %5051 = vmatprep.mubr.bf16.mxu0 0
      %5052 = vmatmul.mubr.bf16.gmra.mrb[0].mxu0 %v5004
      %v5053 = vpop.f32.mrb[0].mxu0
      %v5054 = vadd.f32 0.0, %v5053
      %v5055 = vpop.f32.mrb[0].mxu0
      %v5056 = vadd.f32 0.0, %v5055
      %v5057 = vpop.f32.mrb[0].mxu0
      %v5058 = vadd.f32 0.0, %v5057
      %v5059 = vpop.f32.mrb[0].mxu0
      %v5060 = vadd.f32 0.0, %v5059
      %5061 = vmatprep.mubr.bf16.mxu0 0
      %5062 = vmatmul.mubr.bf16.gmra.mrb[0].mxu0 %v5007
      %v5063 = vpop.f32.mrb[0].mxu0
      %v5064 = vadd.f32 0.0, %v5063
      %v5065 = vpop.f32.mrb[0].mxu0
      %v5066 = vadd.f32 0.0, %v5065
      %v5067 = vpop.f32.mrb[0].mxu0
      %v5068 = vadd.f32 0.0, %v5067
      %v5069 = vpop.f32.mrb[0].mxu0
      %v5070 = vadd.f32 0.0, %v5069
      %5071 = vdwg.mxu0
      %5072 = vmatprep.subr.bf16.mxu0 %v4973
      %5073 = vmatpush1.bf16.msra.mxu0 %v4972
      %5074 = vmatprep.subr.bf16.mxu0 %v4978
      %5075 = vmatpush1.bf16.msra.mxu0 %v4977
      %5076 = vmatprep.subr.bf16.mxu0 %v4983
      %5077 = vmatpush1.bf16.msra.mxu0 %v4982
      %5078 = vmatprep.subr.bf16.mxu0 0
      %5079 = vmatpush1.bf16.msra.mxu0 0
      %5080 = vmatprep.subr.bf16.mxu0 0
      %5081 = vmatpush1.bf16.msra.mxu0 0
      %5082 = vmatprep.subr.bf16.mxu0 0
      %5083 = vmatpush1.bf16.msra.mxu0 0
      %5084 = vmatprep.subr.bf16.mxu0 0
      %5085 = vmatpush1.bf16.msra.mxu0 0
      %5086 = vmatprep.subr.bf16.mxu0 0
      %5087 = vmatpush1.bf16.msra.mxu0 0
      %5088 = vmatprep.subr.bf16.mxu0 0
      %5089 = vmatpush1.bf16.msra.mxu0 0
      %5090 = vmatprep.subr.bf16.mxu0 0
      %5091 = vmatpush1.bf16.msra.mxu0 0
      %5092 = vmatprep.subr.bf16.mxu0 0
      %5093 = vmatpush1.bf16.msra.mxu0 0
      %5094 = vmatprep.subr.bf16.mxu0 0
      %5095 = vmatpush1.bf16.msra.mxu0 0
      %5096 = vmatprep.subr.bf16.mxu0 0
      %5097 = vmatpush1.bf16.msra.mxu0 0
      %5098 = vmatprep.subr.bf16.mxu0 0
      %5099 = vmatpush1.bf16.msra.mxu0 0
      %5100 = vmatprep.subr.bf16.mxu0 0
      %5101 = vmatpush1.bf16.msra.mxu0 0
      %5102 = vmatprep.subr.bf16.mxu0 0
      %5103 = vmatpush1.bf16.msra.mxu0 0
      %5104 = vmatprep.mubr.bf16.mxu0 0
      %5105 = vmatmul.mubr.bf16.gmra.mrb[0].mxu0 %v5001
      %v5106 = vpop.f32.mrb[0].mxu0
      %v5107 = vadd.f32 0.0, %v5106
      %v5108 = vpop.f32.mrb[0].mxu0
      %v5109 = vadd.f32 0.0, %v5108
      %v5110 = vpop.f32.mrb[0].mxu0
      %v5111 = vadd.f32 0.0, %v5110
      %v5112 = vpop.f32.mrb[0].mxu0
      %v5113 = vadd.f32 0.0, %v5112
      %5114 = vmatprep.mubr.bf16.mxu0 0
      %5115 = vmatmul.mubr.bf16.gmra.mrb[0].mxu0 %v5004
      %v5116 = vpop.f32.mrb[0].mxu0
      %v5117 = vadd.f32 0.0, %v5116
      %v5118 = vpop.f32.mrb[0].mxu0
      %v5119 = vadd.f32 0.0, %v5118
      %v5120 = vpop.f32.mrb[0].mxu0
      %v5121 = vadd.f32 0.0, %v5120
      %v5122 = vpop.f32.mrb[0].mxu0
      %v5123 = vadd.f32 0.0, %v5122
      %5124 = vmatprep.mubr.bf16.mxu0 0
      %5125 = vmatmul.mubr.bf16.gmra.mrb[0].mxu0 %v5007
      %v5126 = vpop.f32.mrb[0].mxu0
      %v5127 = vadd.f32 0.0, %v5126
      %v5128 = vpop.f32.mrb[0].mxu0
      %v5129 = vadd.f32 0.0, %v5128
      %v5130 = vpop.f32.mrb[0].mxu0
      %v5131 = vadd.f32 0.0, %v5130
      %v5132 = vpop.f32.mrb[0].mxu0
      %v5133 = vadd.f32 0.0, %v5132
      %5134 = vdwg.mxu0
      %5135 = vmatprep.subr.bf16.mxu0 0
      %5136 = vmatpush1.bf16.msra.mxu0 %v4974
      %5137 = vmatprep.subr.bf16.mxu0 0
      %5138 = vmatpush1.bf16.msra.mxu0 %v4979
      %5139 = vmatprep.subr.bf16.mxu0 0
      %5140 = vmatpush1.bf16.msra.mxu0 %v4984
      %5141 = vmatprep.subr.bf16.mxu0 0
      %5142 = vmatpush1.bf16.msra.mxu0 0
      %5143 = vmatprep.subr.bf16.mxu0 0
      %5144 = vmatpush1.bf16.msra.mxu0 0
      %5145 = vmatprep.subr.bf16.mxu0 0
      %5146 = vmatpush1.bf16.msra.mxu0 0
      %5147 = vmatprep.subr.bf16.mxu0 0
      %5148 = vmatpush1.bf16.msra.mxu0 0
      %5149 = vmatprep.subr.bf16.mxu0 0
      %5150 = vmatpush1.bf16.msra.mxu0 0
      %5151 = vmatprep.subr.bf16.mxu0 0
      %5152 = vmatpush1.bf16.msra.mxu0 0
      %5153 = vmatprep.subr.bf16.mxu0 0
      %5154 = vmatpush1.bf16.msra.mxu0 0
      %5155 = vmatprep.subr.bf16.mxu0 0
      %5156 = vmatpush1.bf16.msra.mxu0 0
      %5157 = vmatprep.subr.bf16.mxu0 0
      %5158 = vmatpush1.bf16.msra.mxu0 0
      %5159 = vmatprep.subr.bf16.mxu0 0
      %5160 = vmatpush1.bf16.msra.mxu0 0
      %5161 = vmatprep.subr.bf16.mxu0 0
      %5162 = vmatpush1.bf16.msra.mxu0 0
      %5163 = vmatprep.subr.bf16.mxu0 0
      %5164 = vmatpush1.bf16.msra.mxu0 0
      %5165 = vmatprep.subr.bf16.mxu0 0
      %5166 = vmatpush1.bf16.msra.mxu0 0
      %5167 = vmatprep.mubr.bf16.mxu0 0
      %5168 = vmatmul.mubr.bf16.gmra.mrb[0].mxu0 %v5001
      %v5169 = vpop.f32.mrb[0].mxu0
      %v5170 = vadd.f32 0.0, %v5169
      %v5171 = vpop.f32.mrb[0].mxu0
      %v5172 = vpop.f32.mrb[0].mxu0
      %v5173 = vadd.f32 0.0, %v5172
      %v5174 = vpop.f32.mrb[0].mxu0
      %5175 = vmatprep.mubr.bf16.mxu0 0
      %5176 = vmatmul.mubr.bf16.gmra.mrb[0].mxu0 %v5004
      %v5177 = vpop.f32.mrb[0].mxu0
      %v5178 = vadd.f32 0.0, %v5177
      %v5179 = vpop.f32.mrb[0].mxu0
      %v5180 = vpop.f32.mrb[0].mxu0
      %v5181 = vadd.f32 0.0, %v5180
      %v5182 = vpop.f32.mrb[0].mxu0
      %5183 = vmatprep.mubr.bf16.mxu0 0
      %5184 = vmatmul.mubr.bf16.gmra.mrb[0].mxu0 %v5007
      %v5185 = vpop.f32.mrb[0].mxu0
      %v5186 = vadd.f32 0.0, %v5185
      %v5187 = vpop.f32.mrb[0].mxu0
      %v5188 = vpop.f32.mrb[0].mxu0
      %v5189 = vadd.f32 0.0, %v5188
      %v5190 = vpop.f32.mrb[0].mxu0
      %5191 = vdwg.mxu0
      %v5192 = vadd.f32 %v4843, %v5044
      %v5193 = vadd.f32 %v4844, %v5046
      %v5194 = vadd.f32 %v4845, %v5107
      %v5195 = vadd.f32 %v4846, %v5109
      %v5196 = vadd.f32 %v4847, %v5170
      %v5197 = vadd.f32 %v4848, %v5048
      %v5198 = vadd.f32 %v4849, %v5050
      %v5199 = vadd.f32 %v4850, %v5111
      %v5200 = vadd.f32 %v4851, %v5113
      %v5201 = vadd.f32 %v4852, %v5173
      %v5202 = vadd.f32 %v4853, %v5054
      %v5203 = vadd.f32 %v4854, %v5056
      %v5204 = vadd.f32 %v4855, %v5117
      %v5205 = vadd.f32 %v4856, %v5119
      %v5206 = vadd.f32 %v4857, %v5178
      %v5207 = vadd.f32 %v4858, %v5058
      %v5208 = vadd.f32 %v4859, %v5060
      %v5209 = vadd.f32 %v4860, %v5121
      %v5210 = vadd.f32 %v4861, %v5123
      %v5211 = vadd.f32 %v4862, %v5181
      %v5212 = vadd.f32 %v4863, %v5064
      %v5213 = vadd.f32 %v4864, %v5066
      %v5214 = vadd.f32 %v4865, %v5127
      %v5215 = vadd.f32 %v4866, %v5129
      %v5216 = vadd.f32 %v4867, %v5186
      %v5217 = vadd.f32 %v4868, %v5068
      %v5218 = vadd.f32 %v4869, %v5070
      %v5219 = vadd.f32 %v4870, %v5131
      %v5220 = vadd.f32 %v4871, %v5133
      %v5221 = vadd.f32 %v4872, %v5189
      %s5222 = scalar_lea.vmem %s6, 96
      %v5223 = vld [vmem:[%s5222] sm:$0xf]
      %v5224 = vld [vmem:[%s5222 + $0x4] sm:$0xf]
      %v5225 = vld [vmem:[%s5222 + $0x8] sm:$0xf]
      %v5226 = vld [vmem:[%s5222 + $0xc] sm:$0xf]
      %v5227 = vld [vmem:[%s5222 + $0x10] sm:$0xf]
      %v5228 = vld [vmem:[%s5222 + $0x14] sm:$0xf]
      %v5229 = vpack.c.bf16 %v3861, %v3856
      %v5230 = vpack.c.bf16 %v3862, %v3857
      %v5231 = vpack.c.bf16 %v3863, %v3858
      %v5232 = vpack.c.bf16 %v3864, %v3859
      %v5233 = vpack.c.bf16 %v3865, %v3860
      %v5234 = vpack.c.bf16 %v3871, %v3866
      %v5235 = vpack.c.bf16 %v3872, %v3867
      %v5236 = vpack.c.bf16 %v3873, %v3868
      %v5237 = vpack.c.bf16 %v3874, %v3869
      %v5238 = vpack.c.bf16 %v3875, %v3870
      %v5239 = vpack.c.bf16 %v3881, %v3876
      %v5240 = vpack.c.bf16 %v3882, %v3877
      %v5241 = vpack.c.bf16 %v3883, %v3878
      %v5242 = vpack.c.bf16 %v3884, %v3879
      %v5243 = vpack.c.bf16 %v3885, %v3880
      %v5250 = vunpack.c.l.b16 %v5223
      %v5251 = vunpack.c.l.b16 %v5224
      %v5252 = vunpack.c.l.b16 %v5225
      %v5253 = vunpack.c.l.b16 %v5226
      %v5254 = vunpack.c.l.b16 %v5227
      %v5255 = vunpack.c.l.b16 %v5228
      %v5256 = vpack.c.b16 %v5251, %v5250
      %v5257 = vpack.c.b16 %v5253, %v5252
      %v5258 = vpack.c.b16 %v5255, %v5254
      %v5260 = vsel %vm4124, %v5256, 0
      %v5263 = vsel %vm4124, %v5257, 0
      %v5266 = vsel %vm4124, %v5258, 0
      %5268 = vmatprep.subr.bf16.mxu0 %v5230
      %5269 = vmatpush1.bf16.msra.mxu0 %v5229
      %5270 = vmatprep.subr.bf16.mxu0 %v5235
      %5271 = vmatpush1.bf16.msra.mxu0 %v5234
      %5272 = vmatprep.subr.bf16.mxu0 %v5240
      %5273 = vmatpush1.bf16.msra.mxu0 %v5239
      %5274 = vmatprep.subr.bf16.mxu0 0
      %5275 = vmatpush1.bf16.msra.mxu0 0
      %5276 = vmatprep.subr.bf16.mxu0 0
      %5277 = vmatpush1.bf16.msra.mxu0 0
      %5278 = vmatprep.subr.bf16.mxu0 0
      %5279 = vmatpush1.bf16.msra.mxu0 0
      %5280 = vmatprep.subr.bf16.mxu0 0
      %5281 = vmatpush1.bf16.msra.mxu0 0
      %5282 = vmatprep.subr.bf16.mxu0 0
      %5283 = vmatpush1.bf16.msra.mxu0 0
      %5284 = vmatprep.subr.bf16.mxu0 0
      %5285 = vmatpush1.bf16.msra.mxu0 0
      %5286 = vmatprep.subr.bf16.mxu0 0
      %5287 = vmatpush1.bf16.msra.mxu0 0
      %5288 = vmatprep.subr.bf16.mxu0 0
      %5289 = vmatpush1.bf16.msra.mxu0 0
      %5290 = vmatprep.subr.bf16.mxu0 0
      %5291 = vmatpush1.bf16.msra.mxu0 0
      %5292 = vmatprep.subr.bf16.mxu0 0
      %5293 = vmatpush1.bf16.msra.mxu0 0
      %5294 = vmatprep.subr.bf16.mxu0 0
      %5295 = vmatpush1.bf16.msra.mxu0 0
      %5296 = vmatprep.subr.bf16.mxu0 0
      %5297 = vmatpush1.bf16.msra.mxu0 0
      %5298 = vmatprep.subr.bf16.mxu0 0
      %5299 = vmatpush1.bf16.msra.mxu0 0
      %5300 = vmatprep.mubr.bf16.mxu0 0
      %5301 = vmatmul.mubr.bf16.gmra.mrb[0].mxu0 %v5260
      %v5302 = vpop.f32.mrb[0].mxu0
      %v5303 = vadd.f32 0.0, %v5302
      %v5304 = vpop.f32.mrb[0].mxu0
      %v5305 = vadd.f32 0.0, %v5304
      %v5306 = vpop.f32.mrb[0].mxu0
      %v5307 = vadd.f32 0.0, %v5306
      %v5308 = vpop.f32.mrb[0].mxu0
      %v5309 = vadd.f32 0.0, %v5308
      %5310 = vmatprep.mubr.bf16.mxu0 0
      %5311 = vmatmul.mubr.bf16.gmra.mrb[0].mxu0 %v5263
      %v5312 = vpop.f32.mrb[0].mxu0
      %v5313 = vadd.f32 0.0, %v5312
      %v5314 = vpop.f32.mrb[0].mxu0
      %v5315 = vadd.f32 0.0, %v5314
      %v5316 = vpop.f32.mrb[0].mxu0
      %v5317 = vadd.f32 0.0, %v5316
      %v5318 = vpop.f32.mrb[0].mxu0
      %v5319 = vadd.f32 0.0, %v5318
      %5320 = vmatprep.mubr.bf16.mxu0 0
      %5321 = vmatmul.mubr.bf16.gmra.mrb[0].mxu0 %v5266
      %v5322 = vpop.f32.mrb[0].mxu0
      %v5323 = vadd.f32 0.0, %v5322
      %v5324 = vpop.f32.mrb[0].mxu0
      %v5325 = vadd.f32 0.0, %v5324
      %v5326 = vpop.f32.mrb[0].mxu0
      %v5327 = vadd.f32 0.0, %v5326
      %v5328 = vpop.f32.mrb[0].mxu0
      %v5329 = vadd.f32 0.0, %v5328
      %5330 = vdwg.mxu0
      %5331 = vmatprep.subr.bf16.mxu0 %v5232
      %5332 = vmatpush1.bf16.msra.mxu0 %v5231
      %5333 = vmatprep.subr.bf16.mxu0 %v5237
      %5334 = vmatpush1.bf16.msra.mxu0 %v5236
      %5335 = vmatprep.subr.bf16.mxu0 %v5242
      %5336 = vmatpush1.bf16.msra.mxu0 %v5241
      %5337 = vmatprep.subr.bf16.mxu0 0
      %5338 = vmatpush1.bf16.msra.mxu0 0
      %5339 = vmatprep.subr.bf16.mxu0 0
      %5340 = vmatpush1.bf16.msra.mxu0 0
      %5341 = vmatprep.subr.bf16.mxu0 0
      %5342 = vmatpush1.bf16.msra.mxu0 0
      %5343 = vmatprep.subr.bf16.mxu0 0
      %5344 = vmatpush1.bf16.msra.mxu0 0
      %5345 = vmatprep.subr.bf16.mxu0 0
      %5346 = vmatpush1.bf16.msra.mxu0 0
      %5347 = vmatprep.subr.bf16.mxu0 0
      %5348 = vmatpush1.bf16.msra.mxu0 0
      %5349 = vmatprep.subr.bf16.mxu0 0
      %5350 = vmatpush1.bf16.msra.mxu0 0
      %5351 = vmatprep.subr.bf16.mxu0 0
      %5352 = vmatpush1.bf16.msra.mxu0 0
      %5353 = vmatprep.subr.bf16.mxu0 0
      %5354 = vmatpush1.bf16.msra.mxu0 0
      %5355 = vmatprep.subr.bf16.mxu0 0
      %5356 = vmatpush1.bf16.msra.mxu0 0
      %5357 = vmatprep.subr.bf16.mxu0 0
      %5358 = vmatpush1.bf16.msra.mxu0 0
      %5359 = vmatprep.subr.bf16.mxu0 0
      %5360 = vmatpush1.bf16.msra.mxu0 0
      %5361 = vmatprep.subr.bf16.mxu0 0
      %5362 = vmatpush1.bf16.msra.mxu0 0
      %5363 = vmatprep.mubr.bf16.mxu0 0
      %5364 = vmatmul.mubr.bf16.gmra.mrb[0].mxu0 %v5260
      %v5365 = vpop.f32.mrb[0].mxu0
      %v5366 = vadd.f32 0.0, %v5365
      %v5367 = vpop.f32.mrb[0].mxu0
      %v5368 = vadd.f32 0.0, %v5367
      %v5369 = vpop.f32.mrb[0].mxu0
      %v5370 = vadd.f32 0.0, %v5369
      %v5371 = vpop.f32.mrb[0].mxu0
      %v5372 = vadd.f32 0.0, %v5371
      %5373 = vmatprep.mubr.bf16.mxu0 0
      %5374 = vmatmul.mubr.bf16.gmra.mrb[0].mxu0 %v5263
      %v5375 = vpop.f32.mrb[0].mxu0
      %v5376 = vadd.f32 0.0, %v5375
      %v5377 = vpop.f32.mrb[0].mxu0
      %v5378 = vadd.f32 0.0, %v5377
      %v5379 = vpop.f32.mrb[0].mxu0
      %v5380 = vadd.f32 0.0, %v5379
      %v5381 = vpop.f32.mrb[0].mxu0
      %v5382 = vadd.f32 0.0, %v5381
      %5383 = vmatprep.mubr.bf16.mxu0 0
      %5384 = vmatmul.mubr.bf16.gmra.mrb[0].mxu0 %v5266
      %v5385 = vpop.f32.mrb[0].mxu0
      %v5386 = vadd.f32 0.0, %v5385
      %v5387 = vpop.f32.mrb[0].mxu0
      %v5388 = vadd.f32 0.0, %v5387
      %v5389 = vpop.f32.mrb[0].mxu0
      %v5390 = vadd.f32 0.0, %v5389
      %v5391 = vpop.f32.mrb[0].mxu0
      %v5392 = vadd.f32 0.0, %v5391
      %5393 = vdwg.mxu0
      %5394 = vmatprep.subr.bf16.mxu0 0
      %5395 = vmatpush1.bf16.msra.mxu0 %v5233
      %5396 = vmatprep.subr.bf16.mxu0 0
      %5397 = vmatpush1.bf16.msra.mxu0 %v5238
      %5398 = vmatprep.subr.bf16.mxu0 0
      %5399 = vmatpush1.bf16.msra.mxu0 %v5243
      %5400 = vmatprep.subr.bf16.mxu0 0
      %5401 = vmatpush1.bf16.msra.mxu0 0
      %5402 = vmatprep.subr.bf16.mxu0 0
      %5403 = vmatpush1.bf16.msra.mxu0 0
      %5404 = vmatprep.subr.bf16.mxu0 0
      %5405 = vmatpush1.bf16.msra.mxu0 0
      %5406 = vmatprep.subr.bf16.mxu0 0
      %5407 = vmatpush1.bf16.msra.mxu0 0
      %5408 = vmatprep.subr.bf16.mxu0 0
      %5409 = vmatpush1.bf16.msra.mxu0 0
      %5410 = vmatprep.subr.bf16.mxu0 0
      %5411 = vmatpush1.bf16.msra.mxu0 0
      %5412 = vmatprep.subr.bf16.mxu0 0
      %5413 = vmatpush1.bf16.msra.mxu0 0
      %5414 = vmatprep.subr.bf16.mxu0 0
      %5415 = vmatpush1.bf16.msra.mxu0 0
      %5416 = vmatprep.subr.bf16.mxu0 0
      %5417 = vmatpush1.bf16.msra.mxu0 0
      %5418 = vmatprep.subr.bf16.mxu0 0
      %5419 = vmatpush1.bf16.msra.mxu0 0
      %5420 = vmatprep.subr.bf16.mxu0 0
      %5421 = vmatpush1.bf16.msra.mxu0 0
      %5422 = vmatprep.subr.bf16.mxu0 0
      %5423 = vmatpush1.bf16.msra.mxu0 0
      %5424 = vmatprep.subr.bf16.mxu0 0
      %5425 = vmatpush1.bf16.msra.mxu0 0
      %5426 = vmatprep.mubr.bf16.mxu0 0
      %5427 = vmatmul.mubr.bf16.gmra.mrb[0].mxu0 %v5260
      %v5428 = vpop.f32.mrb[0].mxu0
      %v5429 = vadd.f32 0.0, %v5428
      %v5430 = vpop.f32.mrb[0].mxu0
      %v5431 = vpop.f32.mrb[0].mxu0
      %v5432 = vadd.f32 0.0, %v5431
      %v5433 = vpop.f32.mrb[0].mxu0
      %5434 = vmatprep.mubr.bf16.mxu0 0
      %5435 = vmatmul.mubr.bf16.gmra.mrb[0].mxu0 %v5263
      %v5436 = vpop.f32.mrb[0].mxu0
      %v5437 = vadd.f32 0.0, %v5436
      %v5438 = vpop.f32.mrb[0].mxu0
      %v5439 = vpop.f32.mrb[0].mxu0
      %v5440 = vadd.f32 0.0, %v5439
      %v5441 = vpop.f32.mrb[0].mxu0
      %5442 = vmatprep.mubr.bf16.mxu0 0
      %5443 = vmatmul.mubr.bf16.gmra.mrb[0].mxu0 %v5266
      %v5444 = vpop.f32.mrb[0].mxu0
      %v5445 = vadd.f32 0.0, %v5444
      %v5446 = vpop.f32.mrb[0].mxu0
      %v5447 = vpop.f32.mrb[0].mxu0
      %v5448 = vadd.f32 0.0, %v5447
      %v5449 = vpop.f32.mrb[0].mxu0
      %5450 = vdwg.mxu0
      %v5451 = vadd.f32 %v5192, %v5303
      %v5452 = vadd.f32 %v5193, %v5305
      %v5453 = vadd.f32 %v5194, %v5366
      %v5454 = vadd.f32 %v5195, %v5368
      %v5455 = vadd.f32 %v5196, %v5429
      %v5456 = vadd.f32 %v5197, %v5307
      %v5457 = vadd.f32 %v5198, %v5309
      %v5458 = vadd.f32 %v5199, %v5370
      %v5459 = vadd.f32 %v5200, %v5372
      %v5460 = vadd.f32 %v5201, %v5432
      %v5461 = vadd.f32 %v5202, %v5313
      %v5462 = vadd.f32 %v5203, %v5315
      %v5463 = vadd.f32 %v5204, %v5376
      %v5464 = vadd.f32 %v5205, %v5378
      %v5465 = vadd.f32 %v5206, %v5437
      %v5466 = vadd.f32 %v5207, %v5317
      %v5467 = vadd.f32 %v5208, %v5319
      %v5468 = vadd.f32 %v5209, %v5380
      %v5469 = vadd.f32 %v5210, %v5382
      %v5470 = vadd.f32 %v5211, %v5440
      %v5471 = vadd.f32 %v5212, %v5323
      %v5472 = vadd.f32 %v5213, %v5325
      %v5473 = vadd.f32 %v5214, %v5386
      %v5474 = vadd.f32 %v5215, %v5388
      %v5475 = vadd.f32 %v5216, %v5445
      %v5476 = vadd.f32 %v5217, %v5327
      %v5477 = vadd.f32 %v5218, %v5329
      %v5478 = vadd.f32 %v5219, %v5390
      %v5479 = vadd.f32 %v5220, %v5392
      %v5480 = vadd.f32 %v5221, %v5448
      %5481 = vrot.lane.b32.xlu0 %v3856, 127
      %v5482 = vpop.permute.xlu0 %5481
      %5483 = vrot.lane.b32.xlu0 %v3861, 127
      %v5484 = vpop.permute.xlu0 %5483
      %5485 = vrot.lane.b32.xlu0 %v3866, 127
      %v5486 = vpop.permute.xlu0 %5485
      %5487 = vrot.lane.b32.xlu0 %v3871, 127
      %v5488 = vpop.permute.xlu0 %5487
      %5489 = vrot.lane.b32.xlu0 %v3876, 127
      %v5490 = vpop.permute.xlu0 %5489
      %5491 = vrot.lane.b32.xlu0 %v3881, 127
      %v5492 = vpop.permute.xlu0 %5491
      %5493 = vrot.lane.b32.xlu0 %v3857, 127
      %v5494 = vpop.permute.xlu0 %5493
      %5495 = vrot.lane.b32.xlu0 %v3862, 127
      %v5496 = vpop.permute.xlu0 %5495
      %5497 = vrot.lane.b32.xlu0 %v3867, 127
      %v5498 = vpop.permute.xlu0 %5497
      %5499 = vrot.lane.b32.xlu0 %v3872, 127
      %v5500 = vpop.permute.xlu0 %5499
      %5501 = vrot.lane.b32.xlu0 %v3877, 127
      %v5502 = vpop.permute.xlu0 %5501
      %5503 = vrot.lane.b32.xlu0 %v3882, 127
      %v5504 = vpop.permute.xlu0 %5503
      %5505 = vrot.lane.b32.xlu0 %v3858, 127
      %v5506 = vpop.permute.xlu0 %5505
      %5507 = vrot.lane.b32.xlu0 %v3863, 127
      %v5508 = vpop.permute.xlu0 %5507
      %5509 = vrot.lane.b32.xlu0 %v3868, 127
      %v5510 = vpop.permute.xlu0 %5509
      %5511 = vrot.lane.b32.xlu0 %v3873, 127
      %v5512 = vpop.permute.xlu0 %5511
      %5513 = vrot.lane.b32.xlu0 %v3878, 127
      %v5514 = vpop.permute.xlu0 %5513
      %5515 = vrot.lane.b32.xlu0 %v3883, 127
      %v5516 = vpop.permute.xlu0 %5515
      %5517 = vrot.lane.b32.xlu0 %v3859, 127
      %v5518 = vpop.permute.xlu0 %5517
      %5519 = vrot.lane.b32.xlu0 %v3864, 127
      %v5520 = vpop.permute.xlu0 %5519
      %5521 = vrot.lane.b32.xlu0 %v3869, 127
      %v5522 = vpop.permute.xlu0 %5521
      %5523 = vrot.lane.b32.xlu0 %v3874, 127
      %v5524 = vpop.permute.xlu0 %5523
      %5525 = vrot.lane.b32.xlu0 %v3879, 127
      %v5526 = vpop.permute.xlu0 %5525
      %5527 = vrot.lane.b32.xlu0 %v3884, 127
      %v5528 = vpop.permute.xlu0 %5527
      %5529 = vrot.lane.b32.xlu0 %v3860, 127
      %v5530 = vpop.permute.xlu0 %5529
      %5531 = vrot.lane.b32.xlu0 %v3865, 127
      %v5532 = vpop.permute.xlu0 %5531
      %5533 = vrot.lane.b32.xlu0 %v3870, 127
      %v5534 = vpop.permute.xlu0 %5533
      %5535 = vrot.lane.b32.xlu0 %v3875, 127
      %v5536 = vpop.permute.xlu0 %5535
      %5537 = vrot.lane.b32.xlu0 %v3880, 127
      %v5538 = vpop.permute.xlu0 %5537
      %5539 = vrot.lane.b32.xlu0 %v3885, 127
      %v5540 = vpop.permute.xlu0 %5539
      %v5541 = vsel %vm2130, %v5518, %v5530
      %v5542 = vsel %vm2130, %v5520, %v5532
      %v5543 = vsel %vm2130, %v5522, %v5534
      %v5544 = vsel %vm2130, %v5524, %v5536
      %v5545 = vsel %vm2130, %v5526, %v5538
      %v5546 = vsel %vm2130, %v5528, %v5540
      %v5547 = vsel %vm2130, %v5506, %v5518
      %v5548 = vsel %vm2130, %v5508, %v5520
      %v5549 = vsel %vm2130, %v5510, %v5522
      %v5550 = vsel %vm2130, %v5512, %v5524
      %v5551 = vsel %vm2130, %v5514, %v5526
      %v5552 = vsel %vm2130, %v5516, %v5528
      %v5553 = vsel %vm2130, %v5494, %v5506
      %v5554 = vsel %vm2130, %v5496, %v5508
      %v5555 = vsel %vm2130, %v5498, %v5510
      %v5556 = vsel %vm2130, %v5500, %v5512
      %v5557 = vsel %vm2130, %v5502, %v5514
      %v5558 = vsel %vm2130, %v5504, %v5516
      %v5559 = vsel %vm2130, %v5482, %v5494
      %v5560 = vsel %vm2130, %v5484, %v5496
      %v5561 = vsel %vm2130, %v5486, %v5498
      %v5562 = vsel %vm2130, %v5488, %v5500
      %v5563 = vsel %vm2130, %v5490, %v5502
      %v5564 = vsel %vm2130, %v5492, %v5504
      %v5565 = vsel %vm2130, %v5530, %v5482
      %v5566 = vsel %vm2130, %v5532, %v5484
      %v5567 = vsel %vm2130, %v5534, %v5486
      %v5568 = vsel %vm2130, %v5536, %v5488
      %v5569 = vsel %vm2130, %v5538, %v5490
      %v5570 = vsel %vm2130, %v5540, %v5492
      %s5571 = scalar_lea.vmem %s6, 120
      %v5572 = vld [vmem:[%s5571] sm:$0xf]
      %v5573 = vld [vmem:[%s5571 + $0x4] sm:$0xf]
      %v5574 = vld [vmem:[%s5571 + $0x8] sm:$0xf]
      %v5575 = vld [vmem:[%s5571 + $0xc] sm:$0xf]
      %v5576 = vld [vmem:[%s5571 + $0x10] sm:$0xf]
      %v5577 = vld [vmem:[%s5571 + $0x14] sm:$0xf]
      %v5578 = vpack.c.bf16 %v5560, %v5559
      %v5579 = vpack.c.bf16 %v5554, %v5553
      %v5580 = vpack.c.bf16 %v5548, %v5547
      %v5581 = vpack.c.bf16 %v5542, %v5541
      %v5582 = vpack.c.bf16 %v5566, %v5565
      %v5583 = vpack.c.bf16 %v5562, %v5561
      %v5584 = vpack.c.bf16 %v5556, %v5555
      %v5585 = vpack.c.bf16 %v5550, %v5549
      %v5586 = vpack.c.bf16 %v5544, %v5543
      %v5587 = vpack.c.bf16 %v5568, %v5567
      %v5588 = vpack.c.bf16 %v5564, %v5563
      %v5589 = vpack.c.bf16 %v5558, %v5557
      %v5590 = vpack.c.bf16 %v5552, %v5551
      %v5591 = vpack.c.bf16 %v5546, %v5545
      %v5592 = vpack.c.bf16 %v5570, %v5569
      %v5599 = vunpack.c.l.b16 %v5572
      %v5600 = vunpack.c.l.b16 %v5573
      %v5601 = vunpack.c.l.b16 %v5574
      %v5602 = vunpack.c.l.b16 %v5575
      %v5603 = vunpack.c.l.b16 %v5576
      %v5604 = vunpack.c.l.b16 %v5577
      %v5605 = vpack.c.b16 %v5600, %v5599
      %v5606 = vpack.c.b16 %v5602, %v5601
      %v5607 = vpack.c.b16 %v5604, %v5603
      %v5609 = vsel %vm4124, %v5605, 0
      %v5612 = vsel %vm4124, %v5606, 0
      %v5615 = vsel %vm4124, %v5607, 0
      %5617 = vmatprep.subr.bf16.mxu0 %v5579
      %5618 = vmatpush1.bf16.msra.mxu0 %v5578
      %5619 = vmatprep.subr.bf16.mxu0 %v5584
      %5620 = vmatpush1.bf16.msra.mxu0 %v5583
      %5621 = vmatprep.subr.bf16.mxu0 %v5589
      %5622 = vmatpush1.bf16.msra.mxu0 %v5588
      %5623 = vmatprep.subr.bf16.mxu0 0
      %5624 = vmatpush1.bf16.msra.mxu0 0
      %5625 = vmatprep.subr.bf16.mxu0 0
      %5626 = vmatpush1.bf16.msra.mxu0 0
      %5627 = vmatprep.subr.bf16.mxu0 0
      %5628 = vmatpush1.bf16.msra.mxu0 0
      %5629 = vmatprep.subr.bf16.mxu0 0
      %5630 = vmatpush1.bf16.msra.mxu0 0
      %5631 = vmatprep.subr.bf16.mxu0 0
      %5632 = vmatpush1.bf16.msra.mxu0 0
      %5633 = vmatprep.subr.bf16.mxu0 0
      %5634 = vmatpush1.bf16.msra.mxu0 0
      %5635 = vmatprep.subr.bf16.mxu0 0
      %5636 = vmatpush1.bf16.msra.mxu0 0
      %5637 = vmatprep.subr.bf16.mxu0 0
      %5638 = vmatpush1.bf16.msra.mxu0 0
      %5639 = vmatprep.subr.bf16.mxu0 0
      %5640 = vmatpush1.bf16.msra.mxu0 0
      %5641 = vmatprep.subr.bf16.mxu0 0
      %5642 = vmatpush1.bf16.msra.mxu0 0
      %5643 = vmatprep.subr.bf16.mxu0 0
      %5644 = vmatpush1.bf16.msra.mxu0 0
      %5645 = vmatprep.subr.bf16.mxu0 0
      %5646 = vmatpush1.bf16.msra.mxu0 0
      %5647 = vmatprep.subr.bf16.mxu0 0
      %5648 = vmatpush1.bf16.msra.mxu0 0
      %5649 = vmatprep.mubr.bf16.mxu0 0
      %5650 = vmatmul.mubr.bf16.gmra.mrb[0].mxu0 %v5609
      %v5651 = vpop.f32.mrb[0].mxu0
      %v5652 = vadd.f32 0.0, %v5651
      %v5653 = vpop.f32.mrb[0].mxu0
      %v5654 = vadd.f32 0.0, %v5653
      %v5655 = vpop.f32.mrb[0].mxu0
      %v5656 = vadd.f32 0.0, %v5655
      %v5657 = vpop.f32.mrb[0].mxu0
      %v5658 = vadd.f32 0.0, %v5657
      %5659 = vmatprep.mubr.bf16.mxu0 0
      %5660 = vmatmul.mubr.bf16.gmra.mrb[0].mxu0 %v5612
      %v5661 = vpop.f32.mrb[0].mxu0
      %v5662 = vadd.f32 0.0, %v5661
      %v5663 = vpop.f32.mrb[0].mxu0
      %v5664 = vadd.f32 0.0, %v5663
      %v5665 = vpop.f32.mrb[0].mxu0
      %v5666 = vadd.f32 0.0, %v5665
      %v5667 = vpop.f32.mrb[0].mxu0
      %v5668 = vadd.f32 0.0, %v5667
      %5669 = vmatprep.mubr.bf16.mxu0 0
      %5670 = vmatmul.mubr.bf16.gmra.mrb[0].mxu0 %v5615
      %v5671 = vpop.f32.mrb[0].mxu0
      %v5672 = vadd.f32 0.0, %v5671
      %v5673 = vpop.f32.mrb[0].mxu0
      %v5674 = vadd.f32 0.0, %v5673
      %v5675 = vpop.f32.mrb[0].mxu0
      %v5676 = vadd.f32 0.0, %v5675
      %v5677 = vpop.f32.mrb[0].mxu0
      %v5678 = vadd.f32 0.0, %v5677
      %5679 = vdwg.mxu0
      %5680 = vmatprep.subr.bf16.mxu0 %v5581
      %5681 = vmatpush1.bf16.msra.mxu0 %v5580
      %5682 = vmatprep.subr.bf16.mxu0 %v5586
      %5683 = vmatpush1.bf16.msra.mxu0 %v5585
      %5684 = vmatprep.subr.bf16.mxu0 %v5591
      %5685 = vmatpush1.bf16.msra.mxu0 %v5590
      %5686 = vmatprep.subr.bf16.mxu0 0
      %5687 = vmatpush1.bf16.msra.mxu0 0
      %5688 = vmatprep.subr.bf16.mxu0 0
      %5689 = vmatpush1.bf16.msra.mxu0 0
      %5690 = vmatprep.subr.bf16.mxu0 0
      %5691 = vmatpush1.bf16.msra.mxu0 0
      %5692 = vmatprep.subr.bf16.mxu0 0
      %5693 = vmatpush1.bf16.msra.mxu0 0
      %5694 = vmatprep.subr.bf16.mxu0 0
      %5695 = vmatpush1.bf16.msra.mxu0 0
      %5696 = vmatprep.subr.bf16.mxu0 0
      %5697 = vmatpush1.bf16.msra.mxu0 0
      %5698 = vmatprep.subr.bf16.mxu0 0
      %5699 = vmatpush1.bf16.msra.mxu0 0
      %5700 = vmatprep.subr.bf16.mxu0 0
      %5701 = vmatpush1.bf16.msra.mxu0 0
      %5702 = vmatprep.subr.bf16.mxu0 0
      %5703 = vmatpush1.bf16.msra.mxu0 0
      %5704 = vmatprep.subr.bf16.mxu0 0
      %5705 = vmatpush1.bf16.msra.mxu0 0
      %5706 = vmatprep.subr.bf16.mxu0 0
      %5707 = vmatpush1.bf16.msra.mxu0 0
      %5708 = vmatprep.subr.bf16.mxu0 0
      %5709 = vmatpush1.bf16.msra.mxu0 0
      %5710 = vmatprep.subr.bf16.mxu0 0
      %5711 = vmatpush1.bf16.msra.mxu0 0
      %5712 = vmatprep.mubr.bf16.mxu0 0
      %5713 = vmatmul.mubr.bf16.gmra.mrb[0].mxu0 %v5609
      %v5714 = vpop.f32.mrb[0].mxu0
      %v5715 = vadd.f32 0.0, %v5714
      %v5716 = vpop.f32.mrb[0].mxu0
      %v5717 = vadd.f32 0.0, %v5716
      %v5718 = vpop.f32.mrb[0].mxu0
      %v5719 = vadd.f32 0.0, %v5718
      %v5720 = vpop.f32.mrb[0].mxu0
      %v5721 = vadd.f32 0.0, %v5720
      %5722 = vmatprep.mubr.bf16.mxu0 0
      %5723 = vmatmul.mubr.bf16.gmra.mrb[0].mxu0 %v5612
      %v5724 = vpop.f32.mrb[0].mxu0
      %v5725 = vadd.f32 0.0, %v5724
      %v5726 = vpop.f32.mrb[0].mxu0
      %v5727 = vadd.f32 0.0, %v5726
      %v5728 = vpop.f32.mrb[0].mxu0
      %v5729 = vadd.f32 0.0, %v5728
      %v5730 = vpop.f32.mrb[0].mxu0
      %v5731 = vadd.f32 0.0, %v5730
      %5732 = vmatprep.mubr.bf16.mxu0 0
      %5733 = vmatmul.mubr.bf16.gmra.mrb[0].mxu0 %v5615
      %v5734 = vpop.f32.mrb[0].mxu0
      %v5735 = vadd.f32 0.0, %v5734
      %v5736 = vpop.f32.mrb[0].mxu0
      %v5737 = vadd.f32 0.0, %v5736
      %v5738 = vpop.f32.mrb[0].mxu0
      %v5739 = vadd.f32 0.0, %v5738
      %v5740 = vpop.f32.mrb[0].mxu0
      %v5741 = vadd.f32 0.0, %v5740
      %5742 = vdwg.mxu0
      %5743 = vmatprep.subr.bf16.mxu0 0
      %5744 = vmatpush1.bf16.msra.mxu0 %v5582
      %5745 = vmatprep.subr.bf16.mxu0 0
      %5746 = vmatpush1.bf16.msra.mxu0 %v5587
      %5747 = vmatprep.subr.bf16.mxu0 0
      %5748 = vmatpush1.bf16.msra.mxu0 %v5592
      %5749 = vmatprep.subr.bf16.mxu0 0
      %5750 = vmatpush1.bf16.msra.mxu0 0
      %5751 = vmatprep.subr.bf16.mxu0 0
      %5752 = vmatpush1.bf16.msra.mxu0 0
      %5753 = vmatprep.subr.bf16.mxu0 0
      %5754 = vmatpush1.bf16.msra.mxu0 0
      %5755 = vmatprep.subr.bf16.mxu0 0
      %5756 = vmatpush1.bf16.msra.mxu0 0
      %5757 = vmatprep.subr.bf16.mxu0 0
      %5758 = vmatpush1.bf16.msra.mxu0 0
      %5759 = vmatprep.subr.bf16.mxu0 0
      %5760 = vmatpush1.bf16.msra.mxu0 0
      %5761 = vmatprep.subr.bf16.mxu0 0
      %5762 = vmatpush1.bf16.msra.mxu0 0
      %5763 = vmatprep.subr.bf16.mxu0 0
      %5764 = vmatpush1.bf16.msra.mxu0 0
      %5765 = vmatprep.subr.bf16.mxu0 0
      %5766 = vmatpush1.bf16.msra.mxu0 0
      %5767 = vmatprep.subr.bf16.mxu0 0
      %5768 = vmatpush1.bf16.msra.mxu0 0
      %5769 = vmatprep.subr.bf16.mxu0 0
      %5770 = vmatpush1.bf16.msra.mxu0 0
      %5771 = vmatprep.subr.bf16.mxu0 0
      %5772 = vmatpush1.bf16.msra.mxu0 0
      %5773 = vmatprep.subr.bf16.mxu0 0
      %5774 = vmatpush1.bf16.msra.mxu0 0
      %5775 = vmatprep.mubr.bf16.mxu0 0
      %5776 = vmatmul.mubr.bf16.gmra.mrb[0].mxu0 %v5609
      %v5777 = vpop.f32.mrb[0].mxu0
      %v5778 = vadd.f32 0.0, %v5777
      %v5779 = vpop.f32.mrb[0].mxu0
      %v5780 = vpop.f32.mrb[0].mxu0
      %v5781 = vadd.f32 0.0, %v5780
      %v5782 = vpop.f32.mrb[0].mxu0
      %5783 = vmatprep.mubr.bf16.mxu0 0
      %5784 = vmatmul.mubr.bf16.gmra.mrb[0].mxu0 %v5612
      %v5785 = vpop.f32.mrb[0].mxu0
      %v5786 = vadd.f32 0.0, %v5785
      %v5787 = vpop.f32.mrb[0].mxu0
      %v5788 = vpop.f32.mrb[0].mxu0
      %v5789 = vadd.f32 0.0, %v5788
      %v5790 = vpop.f32.mrb[0].mxu0
      %5791 = vmatprep.mubr.bf16.mxu0 0
      %5792 = vmatmul.mubr.bf16.gmra.mrb[0].mxu0 %v5615
      %v5793 = vpop.f32.mrb[0].mxu0
      %v5794 = vadd.f32 0.0, %v5793
      %v5795 = vpop.f32.mrb[0].mxu0
      %v5796 = vpop.f32.mrb[0].mxu0
      %v5797 = vadd.f32 0.0, %v5796
      %v5798 = vpop.f32.mrb[0].mxu0
      %5799 = vdwg.mxu0
      %v5800 = vadd.f32 %v5451, %v5652
      %v5801 = vadd.f32 %v5452, %v5654
      %v5802 = vadd.f32 %v5453, %v5715
      %v5803 = vadd.f32 %v5454, %v5717
      %v5804 = vadd.f32 %v5455, %v5778
      %v5805 = vadd.f32 %v5456, %v5656
      %v5806 = vadd.f32 %v5457, %v5658
      %v5807 = vadd.f32 %v5458, %v5719
      %v5808 = vadd.f32 %v5459, %v5721
      %v5809 = vadd.f32 %v5460, %v5781
      %v5810 = vadd.f32 %v5461, %v5662
      %v5811 = vadd.f32 %v5462, %v5664
      %v5812 = vadd.f32 %v5463, %v5725
      %v5813 = vadd.f32 %v5464, %v5727
      %v5814 = vadd.f32 %v5465, %v5786
      %v5815 = vadd.f32 %v5466, %v5666
      %v5816 = vadd.f32 %v5467, %v5668
      %v5817 = vadd.f32 %v5468, %v5729
      %v5818 = vadd.f32 %v5469, %v5731
      %v5819 = vadd.f32 %v5470, %v5789
      %v5820 = vadd.f32 %v5471, %v5672
      %v5821 = vadd.f32 %v5472, %v5674
      %v5822 = vadd.f32 %v5473, %v5735
      %v5823 = vadd.f32 %v5474, %v5737
      %v5824 = vadd.f32 %v5475, %v5794
      %v5825 = vadd.f32 %v5476, %v5676
      %v5826 = vadd.f32 %v5477, %v5678
      %v5827 = vadd.f32 %v5478, %v5739
      %v5828 = vadd.f32 %v5479, %v5741
      %v5829 = vadd.f32 %v5480, %v5797
      %5830 = vrot.lane.b32.xlu0 %v3856, 97
      %v5831 = vpop.permute.xlu0 %5830
      %5832 = vrot.lane.b32.xlu0 %v3861, 97
      %v5833 = vpop.permute.xlu0 %5832
      %5834 = vrot.lane.b32.xlu0 %v3866, 97
      %v5835 = vpop.permute.xlu0 %5834
      %5836 = vrot.lane.b32.xlu0 %v3871, 97
      %v5837 = vpop.permute.xlu0 %5836
      %5838 = vrot.lane.b32.xlu0 %v3876, 97
      %v5839 = vpop.permute.xlu0 %5838
      %5840 = vrot.lane.b32.xlu0 %v3881, 97
      %v5841 = vpop.permute.xlu0 %5840
      %5842 = vrot.lane.b32.xlu0 %v3857, 97
      %v5843 = vpop.permute.xlu0 %5842
      %5844 = vrot.lane.b32.xlu0 %v3862, 97
      %v5845 = vpop.permute.xlu0 %5844
      %5846 = vrot.lane.b32.xlu0 %v3867, 97
      %v5847 = vpop.permute.xlu0 %5846
      %5848 = vrot.lane.b32.xlu0 %v3872, 97
      %v5849 = vpop.permute.xlu0 %5848
      %5850 = vrot.lane.b32.xlu0 %v3877, 97
      %v5851 = vpop.permute.xlu0 %5850
      %5852 = vrot.lane.b32.xlu0 %v3882, 97
      %v5853 = vpop.permute.xlu0 %5852
      %5854 = vrot.lane.b32.xlu0 %v3858, 97
      %v5855 = vpop.permute.xlu0 %5854
      %5856 = vrot.lane.b32.xlu0 %v3863, 97
      %v5857 = vpop.permute.xlu0 %5856
      %5858 = vrot.lane.b32.xlu0 %v3868, 97
      %v5859 = vpop.permute.xlu0 %5858
      %5860 = vrot.lane.b32.xlu0 %v3873, 97
      %v5861 = vpop.permute.xlu0 %5860
      %5862 = vrot.lane.b32.xlu0 %v3878, 97
      %v5863 = vpop.permute.xlu0 %5862
      %5864 = vrot.lane.b32.xlu0 %v3883, 97
      %v5865 = vpop.permute.xlu0 %5864
      %5866 = vrot.lane.b32.xlu0 %v3859, 97
      %v5867 = vpop.permute.xlu0 %5866
      %5868 = vrot.lane.b32.xlu0 %v3864, 97
      %v5869 = vpop.permute.xlu0 %5868
      %5870 = vrot.lane.b32.xlu0 %v3869, 97
      %v5871 = vpop.permute.xlu0 %5870
      %5872 = vrot.lane.b32.xlu0 %v3874, 97
      %v5873 = vpop.permute.xlu0 %5872
      %5874 = vrot.lane.b32.xlu0 %v3879, 97
      %v5875 = vpop.permute.xlu0 %5874
      %5876 = vrot.lane.b32.xlu0 %v3884, 97
      %v5877 = vpop.permute.xlu0 %5876
      %5878 = vrot.lane.b32.xlu0 %v3860, 97
      %v5879 = vpop.permute.xlu0 %5878
      %5880 = vrot.lane.b32.xlu0 %v3865, 97
      %v5881 = vpop.permute.xlu0 %5880
      %5882 = vrot.lane.b32.xlu0 %v3870, 97
      %v5883 = vpop.permute.xlu0 %5882
      %5884 = vrot.lane.b32.xlu0 %v3875, 97
      %v5885 = vpop.permute.xlu0 %5884
      %5886 = vrot.lane.b32.xlu0 %v3880, 97
      %v5887 = vpop.permute.xlu0 %5886
      %5888 = vrot.lane.b32.xlu0 %v3885, 97
      %v5889 = vpop.permute.xlu0 %5888
      %v5890 = vsel %vm2458, %v5867, %v5879
      %v5891 = vsel %vm2458, %v5869, %v5881
      %v5892 = vsel %vm2458, %v5871, %v5883
      %v5893 = vsel %vm2458, %v5873, %v5885
      %v5894 = vsel %vm2458, %v5875, %v5887
      %v5895 = vsel %vm2458, %v5877, %v5889
      %v5896 = vsel %vm2458, %v5855, %v5867
      %v5897 = vsel %vm2458, %v5857, %v5869
      %v5898 = vsel %vm2458, %v5859, %v5871
      %v5899 = vsel %vm2458, %v5861, %v5873
      %v5900 = vsel %vm2458, %v5863, %v5875
      %v5901 = vsel %vm2458, %v5865, %v5877
      %v5902 = vsel %vm2458, %v5843, %v5855
      %v5903 = vsel %vm2458, %v5845, %v5857
      %v5904 = vsel %vm2458, %v5847, %v5859
      %v5905 = vsel %vm2458, %v5849, %v5861
      %v5906 = vsel %vm2458, %v5851, %v5863
      %v5907 = vsel %vm2458, %v5853, %v5865
      %v5908 = vsel %vm2458, %v5831, %v5843
      %v5909 = vsel %vm2458, %v5833, %v5845
      %v5910 = vsel %vm2458, %v5835, %v5847
      %v5911 = vsel %vm2458, %v5837, %v5849
      %v5912 = vsel %vm2458, %v5839, %v5851
      %v5913 = vsel %vm2458, %v5841, %v5853
      %v5914 = vsel %vm2458, %v5879, %v5831
      %v5915 = vsel %vm2458, %v5881, %v5833
      %v5916 = vsel %vm2458, %v5883, %v5835
      %v5917 = vsel %vm2458, %v5885, %v5837
      %v5918 = vsel %vm2458, %v5887, %v5839
      %v5919 = vsel %vm2458, %v5889, %v5841
      %s5920 = scalar_lea.vmem %s6, 144
      %v5921 = vld [vmem:[%s5920] sm:$0xf]
      %v5922 = vld [vmem:[%s5920 + $0x4] sm:$0xf]
      %v5923 = vld [vmem:[%s5920 + $0x8] sm:$0xf]
      %v5924 = vld [vmem:[%s5920 + $0xc] sm:$0xf]
      %v5925 = vld [vmem:[%s5920 + $0x10] sm:$0xf]
      %v5926 = vld [vmem:[%s5920 + $0x14] sm:$0xf]
      %v5927 = vpack.c.bf16 %v5909, %v5908
      %v5928 = vpack.c.bf16 %v5903, %v5902
      %v5929 = vpack.c.bf16 %v5897, %v5896
      %v5930 = vpack.c.bf16 %v5891, %v5890
      %v5931 = vpack.c.bf16 %v5915, %v5914
      %v5932 = vpack.c.bf16 %v5911, %v5910
      %v5933 = vpack.c.bf16 %v5905, %v5904
      %v5934 = vpack.c.bf16 %v5899, %v5898
      %v5935 = vpack.c.bf16 %v5893, %v5892
      %v5936 = vpack.c.bf16 %v5917, %v5916
      %v5937 = vpack.c.bf16 %v5913, %v5912
      %v5938 = vpack.c.bf16 %v5907, %v5906
      %v5939 = vpack.c.bf16 %v5901, %v5900
      %v5940 = vpack.c.bf16 %v5895, %v5894
      %v5941 = vpack.c.bf16 %v5919, %v5918
      %v5948 = vunpack.c.l.b16 %v5921
      %v5949 = vunpack.c.l.b16 %v5922
      %v5950 = vunpack.c.l.b16 %v5923
      %v5951 = vunpack.c.l.b16 %v5924
      %v5952 = vunpack.c.l.b16 %v5925
      %v5953 = vunpack.c.l.b16 %v5926
      %v5954 = vpack.c.b16 %v5949, %v5948
      %v5955 = vpack.c.b16 %v5951, %v5950
      %v5956 = vpack.c.b16 %v5953, %v5952
      %v5958 = vsel %vm4124, %v5954, 0
      %v5961 = vsel %vm4124, %v5955, 0
      %v5964 = vsel %vm4124, %v5956, 0
      %5966 = vmatprep.subr.bf16.mxu0 %v5928
      %5967 = vmatpush1.bf16.msra.mxu0 %v5927
      %5968 = vmatprep.subr.bf16.mxu0 %v5933
      %5969 = vmatpush1.bf16.msra.mxu0 %v5932
      %5970 = vmatprep.subr.bf16.mxu0 %v5938
      %5971 = vmatpush1.bf16.msra.mxu0 %v5937
      %5972 = vmatprep.subr.bf16.mxu0 0
      %5973 = vmatpush1.bf16.msra.mxu0 0
      %5974 = vmatprep.subr.bf16.mxu0 0
      %5975 = vmatpush1.bf16.msra.mxu0 0
      %5976 = vmatprep.subr.bf16.mxu0 0
      %5977 = vmatpush1.bf16.msra.mxu0 0
      %5978 = vmatprep.subr.bf16.mxu0 0
      %5979 = vmatpush1.bf16.msra.mxu0 0
      %5980 = vmatprep.subr.bf16.mxu0 0
      %5981 = vmatpush1.bf16.msra.mxu0 0
      %5982 = vmatprep.subr.bf16.mxu0 0
      %5983 = vmatpush1.bf16.msra.mxu0 0
      %5984 = vmatprep.subr.bf16.mxu0 0
      %5985 = vmatpush1.bf16.msra.mxu0 0
      %5986 = vmatprep.subr.bf16.mxu0 0
      %5987 = vmatpush1.bf16.msra.mxu0 0
      %5988 = vmatprep.subr.bf16.mxu0 0
      %5989 = vmatpush1.bf16.msra.mxu0 0
      %5990 = vmatprep.subr.bf16.mxu0 0
      %5991 = vmatpush1.bf16.msra.mxu0 0
      %5992 = vmatprep.subr.bf16.mxu0 0
      %5993 = vmatpush1.bf16.msra.mxu0 0
      %5994 = vmatprep.subr.bf16.mxu0 0
      %5995 = vmatpush1.bf16.msra.mxu0 0
      %5996 = vmatprep.subr.bf16.mxu0 0
      %5997 = vmatpush1.bf16.msra.mxu0 0
      %5998 = vmatprep.mubr.bf16.mxu0 0
      %5999 = vmatmul.mubr.bf16.gmra.mrb[0].mxu0 %v5958
      %v6000 = vpop.f32.mrb[0].mxu0
      %v6001 = vadd.f32 0.0, %v6000
      %v6002 = vpop.f32.mrb[0].mxu0
      %v6003 = vadd.f32 0.0, %v6002
      %v6004 = vpop.f32.mrb[0].mxu0
      %v6005 = vadd.f32 0.0, %v6004
      %v6006 = vpop.f32.mrb[0].mxu0
      %v6007 = vadd.f32 0.0, %v6006
      %6008 = vmatprep.mubr.bf16.mxu0 0
      %6009 = vmatmul.mubr.bf16.gmra.mrb[0].mxu0 %v5961
      %v6010 = vpop.f32.mrb[0].mxu0
      %v6011 = vadd.f32 0.0, %v6010
      %v6012 = vpop.f32.mrb[0].mxu0
      %v6013 = vadd.f32 0.0, %v6012
      %v6014 = vpop.f32.mrb[0].mxu0
      %v6015 = vadd.f32 0.0, %v6014
      %v6016 = vpop.f32.mrb[0].mxu0
      %v6017 = vadd.f32 0.0, %v6016
      %6018 = vmatprep.mubr.bf16.mxu0 0
      %6019 = vmatmul.mubr.bf16.gmra.mrb[0].mxu0 %v5964
      %v6020 = vpop.f32.mrb[0].mxu0
      %v6021 = vadd.f32 0.0, %v6020
      %v6022 = vpop.f32.mrb[0].mxu0
      %v6023 = vadd.f32 0.0, %v6022
      %v6024 = vpop.f32.mrb[0].mxu0
      %v6025 = vadd.f32 0.0, %v6024
      %v6026 = vpop.f32.mrb[0].mxu0
      %v6027 = vadd.f32 0.0, %v6026
      %6028 = vdwg.mxu0
      %6029 = vmatprep.subr.bf16.mxu0 %v5930
      %6030 = vmatpush1.bf16.msra.mxu0 %v5929
      %6031 = vmatprep.subr.bf16.mxu0 %v5935
      %6032 = vmatpush1.bf16.msra.mxu0 %v5934
      %6033 = vmatprep.subr.bf16.mxu0 %v5940
      %6034 = vmatpush1.bf16.msra.mxu0 %v5939
      %6035 = vmatprep.subr.bf16.mxu0 0
      %6036 = vmatpush1.bf16.msra.mxu0 0
      %6037 = vmatprep.subr.bf16.mxu0 0
      %6038 = vmatpush1.bf16.msra.mxu0 0
      %6039 = vmatprep.subr.bf16.mxu0 0
      %6040 = vmatpush1.bf16.msra.mxu0 0
      %6041 = vmatprep.subr.bf16.mxu0 0
      %6042 = vmatpush1.bf16.msra.mxu0 0
      %6043 = vmatprep.subr.bf16.mxu0 0
      %6044 = vmatpush1.bf16.msra.mxu0 0
      %6045 = vmatprep.subr.bf16.mxu0 0
      %6046 = vmatpush1.bf16.msra.mxu0 0
      %6047 = vmatprep.subr.bf16.mxu0 0
      %6048 = vmatpush1.bf16.msra.mxu0 0
      %6049 = vmatprep.subr.bf16.mxu0 0
      %6050 = vmatpush1.bf16.msra.mxu0 0
      %6051 = vmatprep.subr.bf16.mxu0 0
      %6052 = vmatpush1.bf16.msra.mxu0 0
      %6053 = vmatprep.subr.bf16.mxu0 0
      %6054 = vmatpush1.bf16.msra.mxu0 0
      %6055 = vmatprep.subr.bf16.mxu0 0
      %6056 = vmatpush1.bf16.msra.mxu0 0
      %6057 = vmatprep.subr.bf16.mxu0 0
      %6058 = vmatpush1.bf16.msra.mxu0 0
      %6059 = vmatprep.subr.bf16.mxu0 0
      %6060 = vmatpush1.bf16.msra.mxu0 0
      %6061 = vmatprep.mubr.bf16.mxu0 0
      %6062 = vmatmul.mubr.bf16.gmra.mrb[0].mxu0 %v5958
      %v6063 = vpop.f32.mrb[0].mxu0
      %v6064 = vadd.f32 0.0, %v6063
      %v6065 = vpop.f32.mrb[0].mxu0
      %v6066 = vadd.f32 0.0, %v6065
      %v6067 = vpop.f32.mrb[0].mxu0
      %v6068 = vadd.f32 0.0, %v6067
      %v6069 = vpop.f32.mrb[0].mxu0
      %v6070 = vadd.f32 0.0, %v6069
      %6071 = vmatprep.mubr.bf16.mxu0 0
      %6072 = vmatmul.mubr.bf16.gmra.mrb[0].mxu0 %v5961
      %v6073 = vpop.f32.mrb[0].mxu0
      %v6074 = vadd.f32 0.0, %v6073
      %v6075 = vpop.f32.mrb[0].mxu0
      %v6076 = vadd.f32 0.0, %v6075
      %v6077 = vpop.f32.mrb[0].mxu0
      %v6078 = vadd.f32 0.0, %v6077
      %v6079 = vpop.f32.mrb[0].mxu0
      %v6080 = vadd.f32 0.0, %v6079
      %6081 = vmatprep.mubr.bf16.mxu0 0
      %6082 = vmatmul.mubr.bf16.gmra.mrb[0].mxu0 %v5964
      %v6083 = vpop.f32.mrb[0].mxu0
      %v6084 = vadd.f32 0.0, %v6083
      %v6085 = vpop.f32.mrb[0].mxu0
      %v6086 = vadd.f32 0.0, %v6085
      %v6087 = vpop.f32.mrb[0].mxu0
      %v6088 = vadd.f32 0.0, %v6087
      %v6089 = vpop.f32.mrb[0].mxu0
      %v6090 = vadd.f32 0.0, %v6089
      %6091 = vdwg.mxu0
      %6092 = vmatprep.subr.bf16.mxu0 0
      %6093 = vmatpush1.bf16.msra.mxu0 %v5931
      %6094 = vmatprep.subr.bf16.mxu0 0
      %6095 = vmatpush1.bf16.msra.mxu0 %v5936
      %6096 = vmatprep.subr.bf16.mxu0 0
      %6097 = vmatpush1.bf16.msra.mxu0 %v5941
      %6098 = vmatprep.subr.bf16.mxu0 0
      %6099 = vmatpush1.bf16.msra.mxu0 0
      %6100 = vmatprep.subr.bf16.mxu0 0
      %6101 = vmatpush1.bf16.msra.mxu0 0
      %6102 = vmatprep.subr.bf16.mxu0 0
      %6103 = vmatpush1.bf16.msra.mxu0 0
      %6104 = vmatprep.subr.bf16.mxu0 0
      %6105 = vmatpush1.bf16.msra.mxu0 0
      %6106 = vmatprep.subr.bf16.mxu0 0
      %6107 = vmatpush1.bf16.msra.mxu0 0
      %6108 = vmatprep.subr.bf16.mxu0 0
      %6109 = vmatpush1.bf16.msra.mxu0 0
      %6110 = vmatprep.subr.bf16.mxu0 0
      %6111 = vmatpush1.bf16.msra.mxu0 0
      %6112 = vmatprep.subr.bf16.mxu0 0
      %6113 = vmatpush1.bf16.msra.mxu0 0
      %6114 = vmatprep.subr.bf16.mxu0 0
      %6115 = vmatpush1.bf16.msra.mxu0 0
      %6116 = vmatprep.subr.bf16.mxu0 0
      %6117 = vmatpush1.bf16.msra.mxu0 0
      %6118 = vmatprep.subr.bf16.mxu0 0
      %6119 = vmatpush1.bf16.msra.mxu0 0
      %6120 = vmatprep.subr.bf16.mxu0 0
      %6121 = vmatpush1.bf16.msra.mxu0 0
      %6122 = vmatprep.subr.bf16.mxu0 0
      %6123 = vmatpush1.bf16.msra.mxu0 0
      %6124 = vmatprep.mubr.bf16.mxu0 0
      %6125 = vmatmul.mubr.bf16.gmra.mrb[0].mxu0 %v5958
      %v6126 = vpop.f32.mrb[0].mxu0
      %v6127 = vadd.f32 0.0, %v6126
      %v6128 = vpop.f32.mrb[0].mxu0
      %v6129 = vpop.f32.mrb[0].mxu0
      %v6130 = vadd.f32 0.0, %v6129
      %v6131 = vpop.f32.mrb[0].mxu0
      %6132 = vmatprep.mubr.bf16.mxu0 0
      %6133 = vmatmul.mubr.bf16.gmra.mrb[0].mxu0 %v5961
      %v6134 = vpop.f32.mrb[0].mxu0
      %v6135 = vadd.f32 0.0, %v6134
      %v6136 = vpop.f32.mrb[0].mxu0
      %v6137 = vpop.f32.mrb[0].mxu0
      %v6138 = vadd.f32 0.0, %v6137
      %v6139 = vpop.f32.mrb[0].mxu0
      %6140 = vmatprep.mubr.bf16.mxu0 0
      %6141 = vmatmul.mubr.bf16.gmra.mrb[0].mxu0 %v5964
      %v6142 = vpop.f32.mrb[0].mxu0
      %v6143 = vadd.f32 0.0, %v6142
      %v6144 = vpop.f32.mrb[0].mxu0
      %v6145 = vpop.f32.mrb[0].mxu0
      %v6146 = vadd.f32 0.0, %v6145
      %v6147 = vpop.f32.mrb[0].mxu0
      %6148 = vdwg.mxu0
      %v6149 = vadd.f32 %v5800, %v6001
      %v6150 = vadd.f32 %v5801, %v6003
      %v6151 = vadd.f32 %v5802, %v6064
      %v6152 = vadd.f32 %v5803, %v6066
      %v6153 = vadd.f32 %v5804, %v6127
      %v6154 = vadd.f32 %v5805, %v6005
      %v6155 = vadd.f32 %v5806, %v6007
      %v6156 = vadd.f32 %v5807, %v6068
      %v6157 = vadd.f32 %v5808, %v6070
      %v6158 = vadd.f32 %v5809, %v6130
      %v6159 = vadd.f32 %v5810, %v6011
      %v6160 = vadd.f32 %v5811, %v6013
      %v6161 = vadd.f32 %v5812, %v6074
      %v6162 = vadd.f32 %v5813, %v6076
      %v6163 = vadd.f32 %v5814, %v6135
      %v6164 = vadd.f32 %v5815, %v6015
      %v6165 = vadd.f32 %v5816, %v6017
      %v6166 = vadd.f32 %v5817, %v6078
      %v6167 = vadd.f32 %v5818, %v6080
      %v6168 = vadd.f32 %v5819, %v6138
      %v6169 = vadd.f32 %v5820, %v6021
      %v6170 = vadd.f32 %v5821, %v6023
      %v6171 = vadd.f32 %v5822, %v6084
      %v6172 = vadd.f32 %v5823, %v6086
      %v6173 = vadd.f32 %v5824, %v6143
      %v6174 = vadd.f32 %v5825, %v6025
      %v6175 = vadd.f32 %v5826, %v6027
      %v6176 = vadd.f32 %v5827, %v6088
      %v6177 = vadd.f32 %v5828, %v6090
      %v6178 = vadd.f32 %v5829, %v6146
      %6179 = vrot.lane.b32.xlu0 %v3856, 96
      %v6180 = vpop.permute.xlu0 %6179
      %6181 = vrot.lane.b32.xlu0 %v3861, 96
      %v6182 = vpop.permute.xlu0 %6181
      %6183 = vrot.lane.b32.xlu0 %v3866, 96
      %v6184 = vpop.permute.xlu0 %6183
      %6185 = vrot.lane.b32.xlu0 %v3871, 96
      %v6186 = vpop.permute.xlu0 %6185
      %6187 = vrot.lane.b32.xlu0 %v3876, 96
      %v6188 = vpop.permute.xlu0 %6187
      %6189 = vrot.lane.b32.xlu0 %v3881, 96
      %v6190 = vpop.permute.xlu0 %6189
      %6191 = vrot.lane.b32.xlu0 %v3857, 96
      %v6192 = vpop.permute.xlu0 %6191
      %6193 = vrot.lane.b32.xlu0 %v3862, 96
      %v6194 = vpop.permute.xlu0 %6193
      %6195 = vrot.lane.b32.xlu0 %v3867, 96
      %v6196 = vpop.permute.xlu0 %6195
      %6197 = vrot.lane.b32.xlu0 %v3872, 96
      %v6198 = vpop.permute.xlu0 %6197
      %6199 = vrot.lane.b32.xlu0 %v3877, 96
      %v6200 = vpop.permute.xlu0 %6199
      %6201 = vrot.lane.b32.xlu0 %v3882, 96
      %v6202 = vpop.permute.xlu0 %6201
      %6203 = vrot.lane.b32.xlu0 %v3858, 96
      %v6204 = vpop.permute.xlu0 %6203
      %6205 = vrot.lane.b32.xlu0 %v3863, 96
      %v6206 = vpop.permute.xlu0 %6205
      %6207 = vrot.lane.b32.xlu0 %v3868, 96
      %v6208 = vpop.permute.xlu0 %6207
      %6209 = vrot.lane.b32.xlu0 %v3873, 96
      %v6210 = vpop.permute.xlu0 %6209
      %6211 = vrot.lane.b32.xlu0 %v3878, 96
      %v6212 = vpop.permute.xlu0 %6211
      %6213 = vrot.lane.b32.xlu0 %v3883, 96
      %v6214 = vpop.permute.xlu0 %6213
      %6215 = vrot.lane.b32.xlu0 %v3859, 96
      %v6216 = vpop.permute.xlu0 %6215
      %6217 = vrot.lane.b32.xlu0 %v3864, 96
      %v6218 = vpop.permute.xlu0 %6217
      %6219 = vrot.lane.b32.xlu0 %v3869, 96
      %v6220 = vpop.permute.xlu0 %6219
      %6221 = vrot.lane.b32.xlu0 %v3874, 96
      %v6222 = vpop.permute.xlu0 %6221
      %6223 = vrot.lane.b32.xlu0 %v3879, 96
      %v6224 = vpop.permute.xlu0 %6223
      %6225 = vrot.lane.b32.xlu0 %v3884, 96
      %v6226 = vpop.permute.xlu0 %6225
      %6227 = vrot.lane.b32.xlu0 %v3860, 96
      %v6228 = vpop.permute.xlu0 %6227
      %6229 = vrot.lane.b32.xlu0 %v3865, 96
      %v6230 = vpop.permute.xlu0 %6229
      %6231 = vrot.lane.b32.xlu0 %v3870, 96
      %v6232 = vpop.permute.xlu0 %6231
      %6233 = vrot.lane.b32.xlu0 %v3875, 96
      %v6234 = vpop.permute.xlu0 %6233
      %6235 = vrot.lane.b32.xlu0 %v3880, 96
      %v6236 = vpop.permute.xlu0 %6235
      %6237 = vrot.lane.b32.xlu0 %v3885, 96
      %v6238 = vpop.permute.xlu0 %6237
      %v6239 = vsel %vm2786, %v6216, %v6228
      %v6240 = vsel %vm2786, %v6218, %v6230
      %v6241 = vsel %vm2786, %v6220, %v6232
      %v6242 = vsel %vm2786, %v6222, %v6234
      %v6243 = vsel %vm2786, %v6224, %v6236
      %v6244 = vsel %vm2786, %v6226, %v6238
      %v6245 = vsel %vm2786, %v6204, %v6216
      %v6246 = vsel %vm2786, %v6206, %v6218
      %v6247 = vsel %vm2786, %v6208, %v6220
      %v6248 = vsel %vm2786, %v6210, %v6222
      %v6249 = vsel %vm2786, %v6212, %v6224
      %v6250 = vsel %vm2786, %v6214, %v6226
      %v6251 = vsel %vm2786, %v6192, %v6204
      %v6252 = vsel %vm2786, %v6194, %v6206
      %v6253 = vsel %vm2786, %v6196, %v6208
      %v6254 = vsel %vm2786, %v6198, %v6210
      %v6255 = vsel %vm2786, %v6200, %v6212
      %v6256 = vsel %vm2786, %v6202, %v6214
      %v6257 = vsel %vm2786, %v6180, %v6192
      %v6258 = vsel %vm2786, %v6182, %v6194
      %v6259 = vsel %vm2786, %v6184, %v6196
      %v6260 = vsel %vm2786, %v6186, %v6198
      %v6261 = vsel %vm2786, %v6188, %v6200
      %v6262 = vsel %vm2786, %v6190, %v6202
      %v6263 = vsel %vm2786, %v6228, %v6180
      %v6264 = vsel %vm2786, %v6230, %v6182
      %v6265 = vsel %vm2786, %v6232, %v6184
      %v6266 = vsel %vm2786, %v6234, %v6186
      %v6267 = vsel %vm2786, %v6236, %v6188
      %v6268 = vsel %vm2786, %v6238, %v6190
      %s6269 = scalar_lea.vmem %s6, 168
      %v6270 = vld [vmem:[%s6269] sm:$0xf]
      %v6271 = vld [vmem:[%s6269 + $0x4] sm:$0xf]
      %v6272 = vld [vmem:[%s6269 + $0x8] sm:$0xf]
      %v6273 = vld [vmem:[%s6269 + $0xc] sm:$0xf]
      %v6274 = vld [vmem:[%s6269 + $0x10] sm:$0xf]
      %v6275 = vld [vmem:[%s6269 + $0x14] sm:$0xf]
      %v6276 = vpack.c.bf16 %v6258, %v6257
      %v6277 = vpack.c.bf16 %v6252, %v6251
      %v6278 = vpack.c.bf16 %v6246, %v6245
      %v6279 = vpack.c.bf16 %v6240, %v6239
      %v6280 = vpack.c.bf16 %v6264, %v6263
      %v6281 = vpack.c.bf16 %v6260, %v6259
      %v6282 = vpack.c.bf16 %v6254, %v6253
      %v6283 = vpack.c.bf16 %v6248, %v6247
      %v6284 = vpack.c.bf16 %v6242, %v6241
      %v6285 = vpack.c.bf16 %v6266, %v6265
      %v6286 = vpack.c.bf16 %v6262, %v6261
      %v6287 = vpack.c.bf16 %v6256, %v6255
      %v6288 = vpack.c.bf16 %v6250, %v6249
      %v6289 = vpack.c.bf16 %v6244, %v6243
      %v6290 = vpack.c.bf16 %v6268, %v6267
      %v6297 = vunpack.c.l.b16 %v6270
      %v6298 = vunpack.c.l.b16 %v6271
      %v6299 = vunpack.c.l.b16 %v6272
      %v6300 = vunpack.c.l.b16 %v6273
      %v6301 = vunpack.c.l.b16 %v6274
      %v6302 = vunpack.c.l.b16 %v6275
      %v6303 = vpack.c.b16 %v6298, %v6297
      %v6304 = vpack.c.b16 %v6300, %v6299
      %v6305 = vpack.c.b16 %v6302, %v6301
      %v6307 = vsel %vm4124, %v6303, 0
      %v6310 = vsel %vm4124, %v6304, 0
      %v6313 = vsel %vm4124, %v6305, 0
      %6315 = vmatprep.subr.bf16.mxu0 %v6277
      %6316 = vmatpush1.bf16.msra.mxu0 %v6276
      %6317 = vmatprep.subr.bf16.mxu0 %v6282
      %6318 = vmatpush1.bf16.msra.mxu0 %v6281
      %6319 = vmatprep.subr.bf16.mxu0 %v6287
      %6320 = vmatpush1.bf16.msra.mxu0 %v6286
      %6321 = vmatprep.subr.bf16.mxu0 0
      %6322 = vmatpush1.bf16.msra.mxu0 0
      %6323 = vmatprep.subr.bf16.mxu0 0
      %6324 = vmatpush1.bf16.msra.mxu0 0
      %6325 = vmatprep.subr.bf16.mxu0 0
      %6326 = vmatpush1.bf16.msra.mxu0 0
      %6327 = vmatprep.subr.bf16.mxu0 0
      %6328 = vmatpush1.bf16.msra.mxu0 0
      %6329 = vmatprep.subr.bf16.mxu0 0
      %6330 = vmatpush1.bf16.msra.mxu0 0
      %6331 = vmatprep.subr.bf16.mxu0 0
      %6332 = vmatpush1.bf16.msra.mxu0 0
      %6333 = vmatprep.subr.bf16.mxu0 0
      %6334 = vmatpush1.bf16.msra.mxu0 0
      %6335 = vmatprep.subr.bf16.mxu0 0
      %6336 = vmatpush1.bf16.msra.mxu0 0
      %6337 = vmatprep.subr.bf16.mxu0 0
      %6338 = vmatpush1.bf16.msra.mxu0 0
      %6339 = vmatprep.subr.bf16.mxu0 0
      %6340 = vmatpush1.bf16.msra.mxu0 0
      %6341 = vmatprep.subr.bf16.mxu0 0
      %6342 = vmatpush1.bf16.msra.mxu0 0
      %6343 = vmatprep.subr.bf16.mxu0 0
      %6344 = vmatpush1.bf16.msra.mxu0 0
      %6345 = vmatprep.subr.bf16.mxu0 0
      %6346 = vmatpush1.bf16.msra.mxu0 0
      %6347 = vmatprep.mubr.bf16.mxu0 0
      %6348 = vmatmul.mubr.bf16.gmra.mrb[0].mxu0 %v6307
      %v6349 = vpop.f32.mrb[0].mxu0
      %v6350 = vadd.f32 0.0, %v6349
      %v6351 = vpop.f32.mrb[0].mxu0
      %v6352 = vadd.f32 0.0, %v6351
      %v6353 = vpop.f32.mrb[0].mxu0
      %v6354 = vadd.f32 0.0, %v6353
      %v6355 = vpop.f32.mrb[0].mxu0
      %v6356 = vadd.f32 0.0, %v6355
      %6357 = vmatprep.mubr.bf16.mxu0 0
      %6358 = vmatmul.mubr.bf16.gmra.mrb[0].mxu0 %v6310
      %v6359 = vpop.f32.mrb[0].mxu0
      %v6360 = vadd.f32 0.0, %v6359
      %v6361 = vpop.f32.mrb[0].mxu0
      %v6362 = vadd.f32 0.0, %v6361
      %v6363 = vpop.f32.mrb[0].mxu0
      %v6364 = vadd.f32 0.0, %v6363
      %v6365 = vpop.f32.mrb[0].mxu0
      %v6366 = vadd.f32 0.0, %v6365
      %6367 = vmatprep.mubr.bf16.mxu0 0
      %6368 = vmatmul.mubr.bf16.gmra.mrb[0].mxu0 %v6313
      %v6369 = vpop.f32.mrb[0].mxu0
      %v6370 = vadd.f32 0.0, %v6369
      %v6371 = vpop.f32.mrb[0].mxu0
      %v6372 = vadd.f32 0.0, %v6371
      %v6373 = vpop.f32.mrb[0].mxu0
      %v6374 = vadd.f32 0.0, %v6373
      %v6375 = vpop.f32.mrb[0].mxu0
      %v6376 = vadd.f32 0.0, %v6375
      %6377 = vdwg.mxu0
      %6378 = vmatprep.subr.bf16.mxu0 %v6279
      %6379 = vmatpush1.bf16.msra.mxu0 %v6278
      %6380 = vmatprep.subr.bf16.mxu0 %v6284
      %6381 = vmatpush1.bf16.msra.mxu0 %v6283
      %6382 = vmatprep.subr.bf16.mxu0 %v6289
      %6383 = vmatpush1.bf16.msra.mxu0 %v6288
      %6384 = vmatprep.subr.bf16.mxu0 0
      %6385 = vmatpush1.bf16.msra.mxu0 0
      %6386 = vmatprep.subr.bf16.mxu0 0
      %6387 = vmatpush1.bf16.msra.mxu0 0
      %6388 = vmatprep.subr.bf16.mxu0 0
      %6389 = vmatpush1.bf16.msra.mxu0 0
      %6390 = vmatprep.subr.bf16.mxu0 0
      %6391 = vmatpush1.bf16.msra.mxu0 0
      %6392 = vmatprep.subr.bf16.mxu0 0
      %6393 = vmatpush1.bf16.msra.mxu0 0
      %6394 = vmatprep.subr.bf16.mxu0 0
      %6395 = vmatpush1.bf16.msra.mxu0 0
      %6396 = vmatprep.subr.bf16.mxu0 0
      %6397 = vmatpush1.bf16.msra.mxu0 0
      %6398 = vmatprep.subr.bf16.mxu0 0
      %6399 = vmatpush1.bf16.msra.mxu0 0
      %6400 = vmatprep.subr.bf16.mxu0 0
      %6401 = vmatpush1.bf16.msra.mxu0 0
      %6402 = vmatprep.subr.bf16.mxu0 0
      %6403 = vmatpush1.bf16.msra.mxu0 0
      %6404 = vmatprep.subr.bf16.mxu0 0
      %6405 = vmatpush1.bf16.msra.mxu0 0
      %6406 = vmatprep.subr.bf16.mxu0 0
      %6407 = vmatpush1.bf16.msra.mxu0 0
      %6408 = vmatprep.subr.bf16.mxu0 0
      %6409 = vmatpush1.bf16.msra.mxu0 0
      %6410 = vmatprep.mubr.bf16.mxu0 0
      %6411 = vmatmul.mubr.bf16.gmra.mrb[0].mxu0 %v6307
      %v6412 = vpop.f32.mrb[0].mxu0
      %v6413 = vadd.f32 0.0, %v6412
      %v6414 = vpop.f32.mrb[0].mxu0
      %v6415 = vadd.f32 0.0, %v6414
      %v6416 = vpop.f32.mrb[0].mxu0
      %v6417 = vadd.f32 0.0, %v6416
      %v6418 = vpop.f32.mrb[0].mxu0
      %v6419 = vadd.f32 0.0, %v6418
      %6420 = vmatprep.mubr.bf16.mxu0 0
      %6421 = vmatmul.mubr.bf16.gmra.mrb[0].mxu0 %v6310
      %v6422 = vpop.f32.mrb[0].mxu0
      %v6423 = vadd.f32 0.0, %v6422
      %v6424 = vpop.f32.mrb[0].mxu0
      %v6425 = vadd.f32 0.0, %v6424
      %v6426 = vpop.f32.mrb[0].mxu0
      %v6427 = vadd.f32 0.0, %v6426
      %v6428 = vpop.f32.mrb[0].mxu0
      %v6429 = vadd.f32 0.0, %v6428
      %6430 = vmatprep.mubr.bf16.mxu0 0
      %6431 = vmatmul.mubr.bf16.gmra.mrb[0].mxu0 %v6313
      %v6432 = vpop.f32.mrb[0].mxu0
      %v6433 = vadd.f32 0.0, %v6432
      %v6434 = vpop.f32.mrb[0].mxu0
      %v6435 = vadd.f32 0.0, %v6434
      %v6436 = vpop.f32.mrb[0].mxu0
      %v6437 = vadd.f32 0.0, %v6436
      %v6438 = vpop.f32.mrb[0].mxu0
      %v6439 = vadd.f32 0.0, %v6438
      %6440 = vdwg.mxu0
      %6441 = vmatprep.subr.bf16.mxu0 0
      %6442 = vmatpush1.bf16.msra.mxu0 %v6280
      %6443 = vmatprep.subr.bf16.mxu0 0
      %6444 = vmatpush1.bf16.msra.mxu0 %v6285
      %6445 = vmatprep.subr.bf16.mxu0 0
      %6446 = vmatpush1.bf16.msra.mxu0 %v6290
      %6447 = vmatprep.subr.bf16.mxu0 0
      %6448 = vmatpush1.bf16.msra.mxu0 0
      %6449 = vmatprep.subr.bf16.mxu0 0
      %6450 = vmatpush1.bf16.msra.mxu0 0
      %6451 = vmatprep.subr.bf16.mxu0 0
      %6452 = vmatpush1.bf16.msra.mxu0 0
      %6453 = vmatprep.subr.bf16.mxu0 0
      %6454 = vmatpush1.bf16.msra.mxu0 0
      %6455 = vmatprep.subr.bf16.mxu0 0
      %6456 = vmatpush1.bf16.msra.mxu0 0
      %6457 = vmatprep.subr.bf16.mxu0 0
      %6458 = vmatpush1.bf16.msra.mxu0 0
      %6459 = vmatprep.subr.bf16.mxu0 0
      %6460 = vmatpush1.bf16.msra.mxu0 0
      %6461 = vmatprep.subr.bf16.mxu0 0
      %6462 = vmatpush1.bf16.msra.mxu0 0
      %6463 = vmatprep.subr.bf16.mxu0 0
      %6464 = vmatpush1.bf16.msra.mxu0 0
      %6465 = vmatprep.subr.bf16.mxu0 0
      %6466 = vmatpush1.bf16.msra.mxu0 0
      %6467 = vmatprep.subr.bf16.mxu0 0
      %6468 = vmatpush1.bf16.msra.mxu0 0
      %6469 = vmatprep.subr.bf16.mxu0 0
      %6470 = vmatpush1.bf16.msra.mxu0 0
      %6471 = vmatprep.subr.bf16.mxu0 0
      %6472 = vmatpush1.bf16.msra.mxu0 0
      %6473 = vmatprep.mubr.bf16.mxu0 0
      %6474 = vmatmul.mubr.bf16.gmra.mrb[0].mxu0 %v6307
      %v6475 = vpop.f32.mrb[0].mxu0
      %v6476 = vadd.f32 0.0, %v6475
      %v6477 = vpop.f32.mrb[0].mxu0
      %v6478 = vpop.f32.mrb[0].mxu0
      %v6479 = vadd.f32 0.0, %v6478
      %v6480 = vpop.f32.mrb[0].mxu0
      %6481 = vmatprep.mubr.bf16.mxu0 0
      %6482 = vmatmul.mubr.bf16.gmra.mrb[0].mxu0 %v6310
      %v6483 = vpop.f32.mrb[0].mxu0
      %v6484 = vadd.f32 0.0, %v6483
      %v6485 = vpop.f32.mrb[0].mxu0
      %v6486 = vpop.f32.mrb[0].mxu0
      %v6487 = vadd.f32 0.0, %v6486
      %v6488 = vpop.f32.mrb[0].mxu0
      %6489 = vmatprep.mubr.bf16.mxu0 0
      %6490 = vmatmul.mubr.bf16.gmra.mrb[0].mxu0 %v6313
      %v6491 = vpop.f32.mrb[0].mxu0
      %v6492 = vadd.f32 0.0, %v6491
      %v6493 = vpop.f32.mrb[0].mxu0
      %v6494 = vpop.f32.mrb[0].mxu0
      %v6495 = vadd.f32 0.0, %v6494
      %v6496 = vpop.f32.mrb[0].mxu0
      %6497 = vdwg.mxu0
      %v6498 = vadd.f32 %v6149, %v6350
      %v6499 = vadd.f32 %v6150, %v6352
      %v6500 = vadd.f32 %v6151, %v6413
      %v6501 = vadd.f32 %v6152, %v6415
      %v6502 = vadd.f32 %v6153, %v6476
      %v6503 = vadd.f32 %v6154, %v6354
      %v6504 = vadd.f32 %v6155, %v6356
      %v6505 = vadd.f32 %v6156, %v6417
      %v6506 = vadd.f32 %v6157, %v6419
      %v6507 = vadd.f32 %v6158, %v6479
      %v6508 = vadd.f32 %v6159, %v6360
      %v6509 = vadd.f32 %v6160, %v6362
      %v6510 = vadd.f32 %v6161, %v6423
      %v6511 = vadd.f32 %v6162, %v6425
      %v6512 = vadd.f32 %v6163, %v6484
      %v6513 = vadd.f32 %v6164, %v6364
      %v6514 = vadd.f32 %v6165, %v6366
      %v6515 = vadd.f32 %v6166, %v6427
      %v6516 = vadd.f32 %v6167, %v6429
      %v6517 = vadd.f32 %v6168, %v6487
      %v6518 = vadd.f32 %v6169, %v6370
      %v6519 = vadd.f32 %v6170, %v6372
      %v6520 = vadd.f32 %v6171, %v6433
      %v6521 = vadd.f32 %v6172, %v6435
      %v6522 = vadd.f32 %v6173, %v6492
      %v6523 = vadd.f32 %v6174, %v6374
      %v6524 = vadd.f32 %v6175, %v6376
      %v6525 = vadd.f32 %v6176, %v6437
      %v6526 = vadd.f32 %v6177, %v6439
      %v6527 = vadd.f32 %v6178, %v6495
      %6528 = vrot.lane.b32.xlu0 %v3856, 95
      %v6529 = vpop.permute.xlu0 %6528
      %6530 = vrot.lane.b32.xlu0 %v3861, 95
      %v6531 = vpop.permute.xlu0 %6530
      %6532 = vrot.lane.b32.xlu0 %v3866, 95
      %v6533 = vpop.permute.xlu0 %6532
      %6534 = vrot.lane.b32.xlu0 %v3871, 95
      %v6535 = vpop.permute.xlu0 %6534
      %6536 = vrot.lane.b32.xlu0 %v3876, 95
      %v6537 = vpop.permute.xlu0 %6536
      %6538 = vrot.lane.b32.xlu0 %v3881, 95
      %v6539 = vpop.permute.xlu0 %6538
      %6540 = vrot.lane.b32.xlu0 %v3857, 95
      %v6541 = vpop.permute.xlu0 %6540
      %6542 = vrot.lane.b32.xlu0 %v3862, 95
      %v6543 = vpop.permute.xlu0 %6542
      %6544 = vrot.lane.b32.xlu0 %v3867, 95
      %v6545 = vpop.permute.xlu0 %6544
      %6546 = vrot.lane.b32.xlu0 %v3872, 95
      %v6547 = vpop.permute.xlu0 %6546
      %6548 = vrot.lane.b32.xlu0 %v3877, 95
      %v6549 = vpop.permute.xlu0 %6548
      %6550 = vrot.lane.b32.xlu0 %v3882, 95
      %v6551 = vpop.permute.xlu0 %6550
      %6552 = vrot.lane.b32.xlu0 %v3858, 95
      %v6553 = vpop.permute.xlu0 %6552
      %6554 = vrot.lane.b32.xlu0 %v3863, 95
      %v6555 = vpop.permute.xlu0 %6554
      %6556 = vrot.lane.b32.xlu0 %v3868, 95
      %v6557 = vpop.permute.xlu0 %6556
      %6558 = vrot.lane.b32.xlu0 %v3873, 95
      %v6559 = vpop.permute.xlu0 %6558
      %6560 = vrot.lane.b32.xlu0 %v3878, 95
      %v6561 = vpop.permute.xlu0 %6560
      %6562 = vrot.lane.b32.xlu0 %v3883, 95
      %v6563 = vpop.permute.xlu0 %6562
      %6564 = vrot.lane.b32.xlu0 %v3859, 95
      %v6565 = vpop.permute.xlu0 %6564
      %6566 = vrot.lane.b32.xlu0 %v3864, 95
      %v6567 = vpop.permute.xlu0 %6566
      %6568 = vrot.lane.b32.xlu0 %v3869, 95
      %v6569 = vpop.permute.xlu0 %6568
      %6570 = vrot.lane.b32.xlu0 %v3874, 95
      %v6571 = vpop.permute.xlu0 %6570
      %6572 = vrot.lane.b32.xlu0 %v3879, 95
      %v6573 = vpop.permute.xlu0 %6572
      %6574 = vrot.lane.b32.xlu0 %v3884, 95
      %v6575 = vpop.permute.xlu0 %6574
      %6576 = vrot.lane.b32.xlu0 %v3860, 95
      %v6577 = vpop.permute.xlu0 %6576
      %6578 = vrot.lane.b32.xlu0 %v3865, 95
      %v6579 = vpop.permute.xlu0 %6578
      %6580 = vrot.lane.b32.xlu0 %v3870, 95
      %v6581 = vpop.permute.xlu0 %6580
      %6582 = vrot.lane.b32.xlu0 %v3875, 95
      %v6583 = vpop.permute.xlu0 %6582
      %6584 = vrot.lane.b32.xlu0 %v3880, 95
      %v6585 = vpop.permute.xlu0 %6584
      %6586 = vrot.lane.b32.xlu0 %v3885, 95
      %v6587 = vpop.permute.xlu0 %6586
      %v6588 = vsel %vm3114, %v6565, %v6577
      %v6589 = vsel %vm3114, %v6567, %v6579
      %v6590 = vsel %vm3114, %v6569, %v6581
      %v6591 = vsel %vm3114, %v6571, %v6583
      %v6592 = vsel %vm3114, %v6573, %v6585
      %v6593 = vsel %vm3114, %v6575, %v6587
      %v6594 = vsel %vm3114, %v6553, %v6565
      %v6595 = vsel %vm3114, %v6555, %v6567
      %v6596 = vsel %vm3114, %v6557, %v6569
      %v6597 = vsel %vm3114, %v6559, %v6571
      %v6598 = vsel %vm3114, %v6561, %v6573
      %v6599 = vsel %vm3114, %v6563, %v6575
      %v6600 = vsel %vm3114, %v6541, %v6553
      %v6601 = vsel %vm3114, %v6543, %v6555
      %v6602 = vsel %vm3114, %v6545, %v6557
      %v6603 = vsel %vm3114, %v6547, %v6559
      %v6604 = vsel %vm3114, %v6549, %v6561
      %v6605 = vsel %vm3114, %v6551, %v6563
      %v6606 = vsel %vm3114, %v6529, %v6541
      %v6607 = vsel %vm3114, %v6531, %v6543
      %v6608 = vsel %vm3114, %v6533, %v6545
      %v6609 = vsel %vm3114, %v6535, %v6547
      %v6610 = vsel %vm3114, %v6537, %v6549
      %v6611 = vsel %vm3114, %v6539, %v6551
      %v6612 = vsel %vm3114, %v6577, %v6529
      %v6613 = vsel %vm3114, %v6579, %v6531
      %v6614 = vsel %vm3114, %v6581, %v6533
      %v6615 = vsel %vm3114, %v6583, %v6535
      %v6616 = vsel %vm3114, %v6585, %v6537
      %v6617 = vsel %vm3114, %v6587, %v6539
      %s6618 = scalar_lea.vmem %s6, 192
      %v6619 = vld [vmem:[%s6618] sm:$0xf]
      %v6620 = vld [vmem:[%s6618 + $0x4] sm:$0xf]
      %v6621 = vld [vmem:[%s6618 + $0x8] sm:$0xf]
      %v6622 = vld [vmem:[%s6618 + $0xc] sm:$0xf]
      %v6623 = vld [vmem:[%s6618 + $0x10] sm:$0xf]
      %v6624 = vld [vmem:[%s6618 + $0x14] sm:$0xf]
      %v6625 = vpack.c.bf16 %v6607, %v6606
      %v6626 = vpack.c.bf16 %v6601, %v6600
      %v6627 = vpack.c.bf16 %v6595, %v6594
      %v6628 = vpack.c.bf16 %v6589, %v6588
      %v6629 = vpack.c.bf16 %v6613, %v6612
      %v6630 = vpack.c.bf16 %v6609, %v6608
      %v6631 = vpack.c.bf16 %v6603, %v6602
      %v6632 = vpack.c.bf16 %v6597, %v6596
      %v6633 = vpack.c.bf16 %v6591, %v6590
      %v6634 = vpack.c.bf16 %v6615, %v6614
      %v6635 = vpack.c.bf16 %v6611, %v6610
      %v6636 = vpack.c.bf16 %v6605, %v6604
      %v6637 = vpack.c.bf16 %v6599, %v6598
      %v6638 = vpack.c.bf16 %v6593, %v6592
      %v6639 = vpack.c.bf16 %v6617, %v6616
      %v6646 = vunpack.c.l.b16 %v6619
      %v6647 = vunpack.c.l.b16 %v6620
      %v6648 = vunpack.c.l.b16 %v6621
      %v6649 = vunpack.c.l.b16 %v6622
      %v6650 = vunpack.c.l.b16 %v6623
      %v6651 = vunpack.c.l.b16 %v6624
      %v6652 = vpack.c.b16 %v6647, %v6646
      %v6653 = vpack.c.b16 %v6649, %v6648
      %v6654 = vpack.c.b16 %v6651, %v6650
      %v6656 = vsel %vm4124, %v6652, 0
      %v6659 = vsel %vm4124, %v6653, 0
      %v6662 = vsel %vm4124, %v6654, 0
      %6664 = vmatprep.subr.bf16.mxu0 %v6626
      %6665 = vmatpush1.bf16.msra.mxu0 %v6625
      %6666 = vmatprep.subr.bf16.mxu0 %v6631
      %6667 = vmatpush1.bf16.msra.mxu0 %v6630
      %6668 = vmatprep.subr.bf16.mxu0 %v6636
      %6669 = vmatpush1.bf16.msra.mxu0 %v6635
      %6670 = vmatprep.subr.bf16.mxu0 0
      %6671 = vmatpush1.bf16.msra.mxu0 0
      %6672 = vmatprep.subr.bf16.mxu0 0
      %6673 = vmatpush1.bf16.msra.mxu0 0
      %6674 = vmatprep.subr.bf16.mxu0 0
      %6675 = vmatpush1.bf16.msra.mxu0 0
      %6676 = vmatprep.subr.bf16.mxu0 0
      %6677 = vmatpush1.bf16.msra.mxu0 0
      %6678 = vmatprep.subr.bf16.mxu0 0
      %6679 = vmatpush1.bf16.msra.mxu0 0
      %6680 = vmatprep.subr.bf16.mxu0 0
      %6681 = vmatpush1.bf16.msra.mxu0 0
      %6682 = vmatprep.subr.bf16.mxu0 0
      %6683 = vmatpush1.bf16.msra.mxu0 0
      %6684 = vmatprep.subr.bf16.mxu0 0
      %6685 = vmatpush1.bf16.msra.mxu0 0
      %6686 = vmatprep.subr.bf16.mxu0 0
      %6687 = vmatpush1.bf16.msra.mxu0 0
      %6688 = vmatprep.subr.bf16.mxu0 0
      %6689 = vmatpush1.bf16.msra.mxu0 0
      %6690 = vmatprep.subr.bf16.mxu0 0
      %6691 = vmatpush1.bf16.msra.mxu0 0
      %6692 = vmatprep.subr.bf16.mxu0 0
      %6693 = vmatpush1.bf16.msra.mxu0 0
      %6694 = vmatprep.subr.bf16.mxu0 0
      %6695 = vmatpush1.bf16.msra.mxu0 0
      %6696 = vmatprep.mubr.bf16.mxu0 0
      %6697 = vmatmul.mubr.bf16.gmra.mrb[0].mxu0 %v6656
      %v6698 = vpop.f32.mrb[0].mxu0
      %v6699 = vadd.f32 0.0, %v6698
      %v6700 = vpop.f32.mrb[0].mxu0
      %v6701 = vadd.f32 0.0, %v6700
      %v6702 = vpop.f32.mrb[0].mxu0
      %v6703 = vadd.f32 0.0, %v6702
      %v6704 = vpop.f32.mrb[0].mxu0
      %v6705 = vadd.f32 0.0, %v6704
      %6706 = vmatprep.mubr.bf16.mxu0 0
      %6707 = vmatmul.mubr.bf16.gmra.mrb[0].mxu0 %v6659
      %v6708 = vpop.f32.mrb[0].mxu0
      %v6709 = vadd.f32 0.0, %v6708
      %v6710 = vpop.f32.mrb[0].mxu0
      %v6711 = vadd.f32 0.0, %v6710
      %v6712 = vpop.f32.mrb[0].mxu0
      %v6713 = vadd.f32 0.0, %v6712
      %v6714 = vpop.f32.mrb[0].mxu0
      %v6715 = vadd.f32 0.0, %v6714
      %6716 = vmatprep.mubr.bf16.mxu0 0
      %6717 = vmatmul.mubr.bf16.gmra.mrb[0].mxu0 %v6662
      %v6718 = vpop.f32.mrb[0].mxu0
      %v6719 = vadd.f32 0.0, %v6718
      %v6720 = vpop.f32.mrb[0].mxu0
      %v6721 = vadd.f32 0.0, %v6720
      %v6722 = vpop.f32.mrb[0].mxu0
      %v6723 = vadd.f32 0.0, %v6722
      %v6724 = vpop.f32.mrb[0].mxu0
      %v6725 = vadd.f32 0.0, %v6724
      %6726 = vdwg.mxu0
      %6727 = vmatprep.subr.bf16.mxu0 %v6628
      %6728 = vmatpush1.bf16.msra.mxu0 %v6627
      %6729 = vmatprep.subr.bf16.mxu0 %v6633
      %6730 = vmatpush1.bf16.msra.mxu0 %v6632
      %6731 = vmatprep.subr.bf16.mxu0 %v6638
      %6732 = vmatpush1.bf16.msra.mxu0 %v6637
      %6733 = vmatprep.subr.bf16.mxu0 0
      %6734 = vmatpush1.bf16.msra.mxu0 0
      %6735 = vmatprep.subr.bf16.mxu0 0
      %6736 = vmatpush1.bf16.msra.mxu0 0
      %6737 = vmatprep.subr.bf16.mxu0 0
      %6738 = vmatpush1.bf16.msra.mxu0 0
      %6739 = vmatprep.subr.bf16.mxu0 0
      %6740 = vmatpush1.bf16.msra.mxu0 0
      %6741 = vmatprep.subr.bf16.mxu0 0
      %6742 = vmatpush1.bf16.msra.mxu0 0
      %6743 = vmatprep.subr.bf16.mxu0 0
      %6744 = vmatpush1.bf16.msra.mxu0 0
      %6745 = vmatprep.subr.bf16.mxu0 0
      %6746 = vmatpush1.bf16.msra.mxu0 0
      %6747 = vmatprep.subr.bf16.mxu0 0
      %6748 = vmatpush1.bf16.msra.mxu0 0
      %6749 = vmatprep.subr.bf16.mxu0 0
      %6750 = vmatpush1.bf16.msra.mxu0 0
      %6751 = vmatprep.subr.bf16.mxu0 0
      %6752 = vmatpush1.bf16.msra.mxu0 0
      %6753 = vmatprep.subr.bf16.mxu0 0
      %6754 = vmatpush1.bf16.msra.mxu0 0
      %6755 = vmatprep.subr.bf16.mxu0 0
      %6756 = vmatpush1.bf16.msra.mxu0 0
      %6757 = vmatprep.subr.bf16.mxu0 0
      %6758 = vmatpush1.bf16.msra.mxu0 0
      %6759 = vmatprep.mubr.bf16.mxu0 0
      %6760 = vmatmul.mubr.bf16.gmra.mrb[0].mxu0 %v6656
      %v6761 = vpop.f32.mrb[0].mxu0
      %v6762 = vadd.f32 0.0, %v6761
      %v6763 = vpop.f32.mrb[0].mxu0
      %v6764 = vadd.f32 0.0, %v6763
      %v6765 = vpop.f32.mrb[0].mxu0
      %v6766 = vadd.f32 0.0, %v6765
      %v6767 = vpop.f32.mrb[0].mxu0
      %v6768 = vadd.f32 0.0, %v6767
      %6769 = vmatprep.mubr.bf16.mxu0 0
      %6770 = vmatmul.mubr.bf16.gmra.mrb[0].mxu0 %v6659
      %v6771 = vpop.f32.mrb[0].mxu0
      %v6772 = vadd.f32 0.0, %v6771
      %v6773 = vpop.f32.mrb[0].mxu0
      %v6774 = vadd.f32 0.0, %v6773
      %v6775 = vpop.f32.mrb[0].mxu0
      %v6776 = vadd.f32 0.0, %v6775
      %v6777 = vpop.f32.mrb[0].mxu0
      %v6778 = vadd.f32 0.0, %v6777
      %6779 = vmatprep.mubr.bf16.mxu0 0
      %6780 = vmatmul.mubr.bf16.gmra.mrb[0].mxu0 %v6662
      %v6781 = vpop.f32.mrb[0].mxu0
      %v6782 = vadd.f32 0.0, %v6781
      %v6783 = vpop.f32.mrb[0].mxu0
      %v6784 = vadd.f32 0.0, %v6783
      %v6785 = vpop.f32.mrb[0].mxu0
      %v6786 = vadd.f32 0.0, %v6785
      %v6787 = vpop.f32.mrb[0].mxu0
      %v6788 = vadd.f32 0.0, %v6787
      %6789 = vdwg.mxu0
      %6790 = vmatprep.subr.bf16.mxu0 0
      %6791 = vmatpush1.bf16.msra.mxu0 %v6629
      %6792 = vmatprep.subr.bf16.mxu0 0
      %6793 = vmatpush1.bf16.msra.mxu0 %v6634
      %6794 = vmatprep.subr.bf16.mxu0 0
      %6795 = vmatpush1.bf16.msra.mxu0 %v6639
      %6796 = vmatprep.subr.bf16.mxu0 0
      %6797 = vmatpush1.bf16.msra.mxu0 0
      %6798 = vmatprep.subr.bf16.mxu0 0
      %6799 = vmatpush1.bf16.msra.mxu0 0
      %6800 = vmatprep.subr.bf16.mxu0 0
      %6801 = vmatpush1.bf16.msra.mxu0 0
      %6802 = vmatprep.subr.bf16.mxu0 0
      %6803 = vmatpush1.bf16.msra.mxu0 0
      %6804 = vmatprep.subr.bf16.mxu0 0
      %6805 = vmatpush1.bf16.msra.mxu0 0
      %6806 = vmatprep.subr.bf16.mxu0 0
      %6807 = vmatpush1.bf16.msra.mxu0 0
      %6808 = vmatprep.subr.bf16.mxu0 0
      %6809 = vmatpush1.bf16.msra.mxu0 0
      %6810 = vmatprep.subr.bf16.mxu0 0
      %6811 = vmatpush1.bf16.msra.mxu0 0
      %6812 = vmatprep.subr.bf16.mxu0 0
      %6813 = vmatpush1.bf16.msra.mxu0 0
      %6814 = vmatprep.subr.bf16.mxu0 0
      %6815 = vmatpush1.bf16.msra.mxu0 0
      %6816 = vmatprep.subr.bf16.mxu0 0
      %6817 = vmatpush1.bf16.msra.mxu0 0
      %6818 = vmatprep.subr.bf16.mxu0 0
      %6819 = vmatpush1.bf16.msra.mxu0 0
      %6820 = vmatprep.subr.bf16.mxu0 0
      %6821 = vmatpush1.bf16.msra.mxu0 0
      %6822 = vmatprep.mubr.bf16.mxu0 0
      %6823 = vmatmul.mubr.bf16.gmra.mrb[0].mxu0 %v6656
      %v6824 = vpop.f32.mrb[0].mxu0
      %v6825 = vadd.f32 0.0, %v6824
      %v6826 = vpop.f32.mrb[0].mxu0
      %v6827 = vpop.f32.mrb[0].mxu0
      %v6828 = vadd.f32 0.0, %v6827
      %v6829 = vpop.f32.mrb[0].mxu0
      %6830 = vmatprep.mubr.bf16.mxu0 0
      %6831 = vmatmul.mubr.bf16.gmra.mrb[0].mxu0 %v6659
      %v6832 = vpop.f32.mrb[0].mxu0
      %v6833 = vadd.f32 0.0, %v6832
      %v6834 = vpop.f32.mrb[0].mxu0
      %v6835 = vpop.f32.mrb[0].mxu0
      %v6836 = vadd.f32 0.0, %v6835
      %v6837 = vpop.f32.mrb[0].mxu0
      %6838 = vmatprep.mubr.bf16.mxu0 0
      %6839 = vmatmul.mubr.bf16.gmra.mrb[0].mxu0 %v6662
      %v6840 = vpop.f32.mrb[0].mxu0
      %v6841 = vadd.f32 0.0, %v6840
      %v6842 = vpop.f32.mrb[0].mxu0
      %v6843 = vpop.f32.mrb[0].mxu0
      %v6844 = vadd.f32 0.0, %v6843
      %v6845 = vpop.f32.mrb[0].mxu0
      %6846 = vdwg.mxu0
      %v6847 = vadd.f32 %v6498, %v6699
      %v6848 = vadd.f32 %v6499, %v6701
      %v6849 = vadd.f32 %v6500, %v6762
      %v6850 = vadd.f32 %v6501, %v6764
      %v6851 = vadd.f32 %v6502, %v6825
      %v6852 = vadd.f32 %v6503, %v6703
      %v6853 = vadd.f32 %v6504, %v6705
      %v6854 = vadd.f32 %v6505, %v6766
      %v6855 = vadd.f32 %v6506, %v6768
      %v6856 = vadd.f32 %v6507, %v6828
      %v6857 = vadd.f32 %v6508, %v6709
      %v6858 = vadd.f32 %v6509, %v6711
      %v6859 = vadd.f32 %v6510, %v6772
      %v6860 = vadd.f32 %v6511, %v6774
      %v6861 = vadd.f32 %v6512, %v6833
      %v6862 = vadd.f32 %v6513, %v6713
      %v6863 = vadd.f32 %v6514, %v6715
      %v6864 = vadd.f32 %v6515, %v6776
      %v6865 = vadd.f32 %v6516, %v6778
      %v6866 = vadd.f32 %v6517, %v6836
      %v6867 = vadd.f32 %v6518, %v6719
      %v6868 = vadd.f32 %v6519, %v6721
      %v6869 = vadd.f32 %v6520, %v6782
      %v6870 = vadd.f32 %v6521, %v6784
      %v6871 = vadd.f32 %v6522, %v6841
      %v6872 = vadd.f32 %v6523, %v6723
      %v6873 = vadd.f32 %v6524, %v6725
      %v6874 = vadd.f32 %v6525, %v6786
      %v6875 = vadd.f32 %v6526, %v6788
      %v6876 = vadd.f32 %v6527, %v6844
      %v6877 = vld [vmem:[%s7] sm:$0xff]
      %v6878 = vld [vmem:[%s7 + $0x8] sm:$0xff]
      %v6879 = vld [vmem:[%s7 + $0x10] sm:$0xff]
      %v6880 = vld [vmem:[%s7 + $0x18] sm:$0xff]
      %v6881 = vld [vmem:[%s7 + $0x20] sm:$0xff]
      %v6882 = vld [vmem:[%s7 + $0x28] sm:$0xff]
      %6884 = vset.pattern.permute.xlu0 0
      %6885 = vperm.xlu0 %6884, %v6877
      %v6886 = vpop.permute.xlu0 %6885
      %6889 = vset.pattern.permute.xlu0 0
      %6890 = vperm.xlu0 %6889, %v6878
      %v6891 = vpop.permute.xlu0 %6890
      %6894 = vset.pattern.permute.xlu0 0
      %6895 = vperm.xlu0 %6894, %v6879
      %v6896 = vpop.permute.xlu0 %6895
      %6899 = vset.pattern.permute.xlu0 0
      %6900 = vperm.xlu0 %6899, %v6880
      %v6901 = vpop.permute.xlu0 %6900
      %6904 = vset.pattern.permute.xlu0 0
      %6905 = vperm.xlu0 %6904, %v6881
      %v6906 = vpop.permute.xlu0 %6905
      %6909 = vset.pattern.permute.xlu0 0
      %6910 = vperm.xlu0 %6909, %v6882
      %v6911 = vpop.permute.xlu0 %6910
      %v6913 = vadd.f32 %v6847, %v6886
      %v6914 = vadd.f32 %v6848, %v6886
      %v6915 = vadd.f32 %v6849, %v6886
      %v6916 = vadd.f32 %v6850, %v6886
      %v6917 = vadd.f32 %v6851, %v6886
      %v6918 = vadd.f32 %v6852, %v6891
      %v6919 = vadd.f32 %v6853, %v6891
      %v6920 = vadd.f32 %v6854, %v6891
      %v6921 = vadd.f32 %v6855, %v6891
      %v6922 = vadd.f32 %v6856, %v6891
      %v6923 = vadd.f32 %v6857, %v6896
      %v6924 = vadd.f32 %v6858, %v6896
      %v6925 = vadd.f32 %v6859, %v6896
      %v6926 = vadd.f32 %v6860, %v6896
      %v6927 = vadd.f32 %v6861, %v6896
      %v6928 = vadd.f32 %v6862, %v6901
      %v6929 = vadd.f32 %v6863, %v6901
      %v6930 = vadd.f32 %v6864, %v6901
      %v6931 = vadd.f32 %v6865, %v6901
      %v6932 = vadd.f32 %v6866, %v6901
      %v6933 = vadd.f32 %v6867, %v6906
      %v6934 = vadd.f32 %v6868, %v6906
      %v6935 = vadd.f32 %v6869, %v6906
      %v6936 = vadd.f32 %v6870, %v6906
      %v6937 = vadd.f32 %v6871, %v6906
      %v6938 = vadd.f32 %v6872, %v6911
      %v6939 = vadd.f32 %v6873, %v6911
      %v6940 = vadd.f32 %v6874, %v6911
      %v6941 = vadd.f32 %v6875, %v6911
      %v6942 = vadd.f32 %v6876, %v6911
      %v6943 = vmax.f32 %v6913, 0.0
      %v6944 = vmax.f32 %v6914, 0.0
      %v6945 = vmax.f32 %v6915, 0.0
      %v6946 = vmax.f32 %v6916, 0.0
      %v6947 = vmax.f32 %v6917, 0.0
      %v6948 = vmax.f32 %v6918, 0.0
      %v6949 = vmax.f32 %v6919, 0.0
      %v6950 = vmax.f32 %v6920, 0.0
      %v6951 = vmax.f32 %v6921, 0.0
      %v6952 = vmax.f32 %v6922, 0.0
      %v6953 = vmax.f32 %v6923, 0.0
      %v6954 = vmax.f32 %v6924, 0.0
      %v6955 = vmax.f32 %v6925, 0.0
      %v6956 = vmax.f32 %v6926, 0.0
      %v6957 = vmax.f32 %v6927, 0.0
      %v6958 = vmax.f32 %v6928, 0.0
      %v6959 = vmax.f32 %v6929, 0.0
      %v6960 = vmax.f32 %v6930, 0.0
      %v6961 = vmax.f32 %v6931, 0.0
      %v6962 = vmax.f32 %v6932, 0.0
      %v6963 = vmax.f32 %v6933, 0.0
      %v6964 = vmax.f32 %v6934, 0.0
      %v6965 = vmax.f32 %v6935, 0.0
      %v6966 = vmax.f32 %v6936, 0.0
      %v6967 = vmax.f32 %v6937, 0.0
      %v6968 = vmax.f32 %v6938, 0.0
      %v6969 = vmax.f32 %v6939, 0.0
      %v6970 = vmax.f32 %v6940, 0.0
      %v6971 = vmax.f32 %v6941, 0.0
      %v6972 = vmax.f32 %v6942, 0.0
      %v6973 = vld [vmem:[%s8] sm:$0xf]
      %v6974 = vld [vmem:[%s8 + $0x4] sm:$0xf]
      %v6975 = vld [vmem:[%s8 + $0x8] sm:$0xf]
      %v6976 = vld [vmem:[%s8 + $0xc] sm:$0xf]
      %v6977 = vpack.c.bf16 %v6948, %v6943
      %v6978 = vpack.c.bf16 %v6949, %v6944
      %v6979 = vpack.c.bf16 %v6950, %v6945
      %v6980 = vpack.c.bf16 %v6951, %v6946
      %v6981 = vpack.c.bf16 %v6952, %v6947
      %v6982 = vpack.c.bf16 %v6958, %v6953
      %v6983 = vpack.c.bf16 %v6959, %v6954
      %v6984 = vpack.c.bf16 %v6960, %v6955
      %v6985 = vpack.c.bf16 %v6961, %v6956
      %v6986 = vpack.c.bf16 %v6962, %v6957
      %v6987 = vpack.c.bf16 %v6968, %v6963
      %v6988 = vpack.c.bf16 %v6969, %v6964
      %v6989 = vpack.c.bf16 %v6970, %v6965
      %v6990 = vpack.c.bf16 %v6971, %v6966
      %v6991 = vpack.c.bf16 %v6972, %v6967
      %v6992 = vld [vmem:[%s9] sm:$0xff]
      %v6993 = vld [vmem:[%s9 + $0x8] sm:$0xff]
      %v6994 = vld [vmem:[%s9 + $0x10] sm:$0xff]
      %v6995 = vld [vmem:[%s9 + $0x18] sm:$0xff]
      %6997 = vset.pattern.permute.xlu0 0
      %6998 = vperm.xlu0 %6997, %v6992
      %v6999 = vpop.permute.xlu0 %6998
      %7002 = vset.pattern.permute.xlu0 0
      %7003 = vperm.xlu0 %7002, %v6993
      %v7004 = vpop.permute.xlu0 %7003
      %7007 = vset.pattern.permute.xlu0 0
      %7008 = vperm.xlu0 %7007, %v6994
      %v7009 = vpop.permute.xlu0 %7008
      %7012 = vset.pattern.permute.xlu0 0
      %7013 = vperm.xlu0 %7012, %v6995
      %v7014 = vpop.permute.xlu0 %7013
      %v7020 = vunpack.c.l.b16 %v6973
      %v7021 = vunpack.c.l.b16 %v6974
      %v7022 = vunpack.c.l.b16 %v6975
      %v7023 = vunpack.c.l.b16 %v6976
      %v7024 = vpack.c.b16 %v7021, %v7020
      %v7025 = vpack.c.b16 %v7023, %v7022
      %v7027 = vsel %vm4124, %v7024, 0
      %v7030 = vsel %vm4124, %v7025, 0
      %7032 = vmatprep.subr.bf16.mxu0 %v6978
      %7033 = vmatpush1.bf16.msra.mxu0 %v6977
      %7034 = vmatprep.subr.bf16.mxu0 %v6983
      %7035 = vmatpush1.bf16.msra.mxu0 %v6982
      %7036 = vmatprep.subr.bf16.mxu0 %v6988
      %7037 = vmatpush1.bf16.msra.mxu0 %v6987
      %7038 = vmatprep.subr.bf16.mxu0 0
      %7039 = vmatpush1.bf16.msra.mxu0 0
      %7040 = vmatprep.subr.bf16.mxu0 0
      %7041 = vmatpush1.bf16.msra.mxu0 0
      %7042 = vmatprep.subr.bf16.mxu0 0
      %7043 = vmatpush1.bf16.msra.mxu0 0
      %7044 = vmatprep.subr.bf16.mxu0 0
      %7045 = vmatpush1.bf16.msra.mxu0 0
      %7046 = vmatprep.subr.bf16.mxu0 0
      %7047 = vmatpush1.bf16.msra.mxu0 0
      %7048 = vmatprep.subr.bf16.mxu0 0
      %7049 = vmatpush1.bf16.msra.mxu0 0
      %7050 = vmatprep.subr.bf16.mxu0 0
      %7051 = vmatpush1.bf16.msra.mxu0 0
      %7052 = vmatprep.subr.bf16.mxu0 0
      %7053 = vmatpush1.bf16.msra.mxu0 0
      %7054 = vmatprep.subr.bf16.mxu0 0
      %7055 = vmatpush1.bf16.msra.mxu0 0
      %7056 = vmatprep.subr.bf16.mxu0 0
      %7057 = vmatpush1.bf16.msra.mxu0 0
      %7058 = vmatprep.subr.bf16.mxu0 0
      %7059 = vmatpush1.bf16.msra.mxu0 0
      %7060 = vmatprep.subr.bf16.mxu0 0
      %7061 = vmatpush1.bf16.msra.mxu0 0
      %7062 = vmatprep.subr.bf16.mxu0 0
      %7063 = vmatpush1.bf16.msra.mxu0 0
      %7064 = vmatprep.mubr.bf16.mxu0 0
      %7065 = vmatmul.mubr.bf16.gmra.mrb[0].mxu0 %v7027
      %v7066 = vpop.f32.mrb[0].mxu0
      %v7067 = vadd.f32 %v6999, %v7066
      %v7068 = vpop.f32.mrb[0].mxu0
      %v7069 = vadd.f32 %v6999, %v7068
      %v7070 = vpop.f32.mrb[0].mxu0
      %v7071 = vadd.f32 %v7004, %v7070
      %v7072 = vpop.f32.mrb[0].mxu0
      %v7073 = vadd.f32 %v7004, %v7072
      %7074 = vmatprep.mubr.bf16.mxu0 0
      %7075 = vmatmul.mubr.bf16.gmra.mrb[0].mxu0 %v7030
      %v7076 = vpop.f32.mrb[0].mxu0
      %v7077 = vadd.f32 %v7009, %v7076
      %v7078 = vpop.f32.mrb[0].mxu0
      %v7079 = vadd.f32 %v7009, %v7078
      %v7080 = vpop.f32.mrb[0].mxu0
      %v7081 = vadd.f32 %v7014, %v7080
      %v7082 = vpop.f32.mrb[0].mxu0
      %v7083 = vadd.f32 %v7014, %v7082
      %7084 = vdwg.mxu0
      %7085 = vmatprep.subr.bf16.mxu0 %v6980
      %7086 = vmatpush1.bf16.msra.mxu0 %v6979
      %7087 = vmatprep.subr.bf16.mxu0 %v6985
      %7088 = vmatpush1.bf16.msra.mxu0 %v6984
      %7089 = vmatprep.subr.bf16.mxu0 %v6990
      %7090 = vmatpush1.bf16.msra.mxu0 %v6989
      %7091 = vmatprep.subr.bf16.mxu0 0
      %7092 = vmatpush1.bf16.msra.mxu0 0
      %7093 = vmatprep.subr.bf16.mxu0 0
      %7094 = vmatpush1.bf16.msra.mxu0 0
      %7095 = vmatprep.subr.bf16.mxu0 0
      %7096 = vmatpush1.bf16.msra.mxu0 0
      %7097 = vmatprep.subr.bf16.mxu0 0
      %7098 = vmatpush1.bf16.msra.mxu0 0
      %7099 = vmatprep.subr.bf16.mxu0 0
      %7100 = vmatpush1.bf16.msra.mxu0 0
      %7101 = vmatprep.subr.bf16.mxu0 0
      %7102 = vmatpush1.bf16.msra.mxu0 0
      %7103 = vmatprep.subr.bf16.mxu0 0
      %7104 = vmatpush1.bf16.msra.mxu0 0
      %7105 = vmatprep.subr.bf16.mxu0 0
      %7106 = vmatpush1.bf16.msra.mxu0 0
      %7107 = vmatprep.subr.bf16.mxu0 0
      %7108 = vmatpush1.bf16.msra.mxu0 0
      %7109 = vmatprep.subr.bf16.mxu0 0
      %7110 = vmatpush1.bf16.msra.mxu0 0
      %7111 = vmatprep.subr.bf16.mxu0 0
      %7112 = vmatpush1.bf16.msra.mxu0 0
      %7113 = vmatprep.subr.bf16.mxu0 0
      %7114 = vmatpush1.bf16.msra.mxu0 0
      %7115 = vmatprep.subr.bf16.mxu0 0
      %7116 = vmatpush1.bf16.msra.mxu0 0
      %7117 = vmatprep.mubr.bf16.mxu0 0
      %7118 = vmatmul.mubr.bf16.gmra.mrb[0].mxu0 %v7027
      %v7119 = vpop.f32.mrb[0].mxu0
      %v7120 = vadd.f32 %v6999, %v7119
      %v7121 = vpop.f32.mrb[0].mxu0
      %v7122 = vadd.f32 %v6999, %v7121
      %v7123 = vpop.f32.mrb[0].mxu0
      %v7124 = vadd.f32 %v7004, %v7123
      %v7125 = vpop.f32.mrb[0].mxu0
      %v7126 = vadd.f32 %v7004, %v7125
      %7127 = vmatprep.mubr.bf16.mxu0 0
      %7128 = vmatmul.mubr.bf16.gmra.mrb[0].mxu0 %v7030
      %v7129 = vpop.f32.mrb[0].mxu0
      %v7130 = vadd.f32 %v7009, %v7129
      %v7131 = vpop.f32.mrb[0].mxu0
      %v7132 = vadd.f32 %v7009, %v7131
      %v7133 = vpop.f32.mrb[0].mxu0
      %v7134 = vadd.f32 %v7014, %v7133
      %v7135 = vpop.f32.mrb[0].mxu0
      %v7136 = vadd.f32 %v7014, %v7135
      %7137 = vdwg.mxu0
      %7138 = vmatprep.subr.bf16.mxu0 0
      %7139 = vmatpush1.bf16.msra.mxu0 %v6981
      %7140 = vmatprep.subr.bf16.mxu0 0
      %7141 = vmatpush1.bf16.msra.mxu0 %v6986
      %7142 = vmatprep.subr.bf16.mxu0 0
      %7143 = vmatpush1.bf16.msra.mxu0 %v6991
      %7144 = vmatprep.subr.bf16.mxu0 0
      %7145 = vmatpush1.bf16.msra.mxu0 0
      %7146 = vmatprep.subr.bf16.mxu0 0
      %7147 = vmatpush1.bf16.msra.mxu0 0
      %7148 = vmatprep.subr.bf16.mxu0 0
      %7149 = vmatpush1.bf16.msra.mxu0 0
      %7150 = vmatprep.subr.bf16.mxu0 0
      %7151 = vmatpush1.bf16.msra.mxu0 0
      %7152 = vmatprep.subr.bf16.mxu0 0
      %7153 = vmatpush1.bf16.msra.mxu0 0
      %7154 = vmatprep.subr.bf16.mxu0 0
      %7155 = vmatpush1.bf16.msra.mxu0 0
      %7156 = vmatprep.subr.bf16.mxu0 0
      %7157 = vmatpush1.bf16.msra.mxu0 0
      %7158 = vmatprep.subr.bf16.mxu0 0
      %7159 = vmatpush1.bf16.msra.mxu0 0
      %7160 = vmatprep.subr.bf16.mxu0 0
      %7161 = vmatpush1.bf16.msra.mxu0 0
      %7162 = vmatprep.subr.bf16.mxu0 0
      %7163 = vmatpush1.bf16.msra.mxu0 0
      %7164 = vmatprep.subr.bf16.mxu0 0
      %7165 = vmatpush1.bf16.msra.mxu0 0
      %7166 = vmatprep.subr.bf16.mxu0 0
      %7167 = vmatpush1.bf16.msra.mxu0 0
      %7168 = vmatprep.subr.bf16.mxu0 0
      %7169 = vmatpush1.bf16.msra.mxu0 0
      %7170 = vmatprep.mubr.bf16.mxu0 0
      %7171 = vmatmul.mubr.bf16.gmra.mrb[0].mxu0 %v7027
      %v7172 = vpop.f32.mrb[0].mxu0
      %v7173 = vadd.f32 %v6999, %v7172
      %v7174 = vpop.f32.mrb[0].mxu0
      %v7175 = vpop.f32.mrb[0].mxu0
      %v7176 = vadd.f32 %v7004, %v7175
      %v7177 = vpop.f32.mrb[0].mxu0
      %7178 = vmatprep.mubr.bf16.mxu0 0
      %7179 = vmatmul.mubr.bf16.gmra.mrb[0].mxu0 %v7030
      %v7180 = vpop.f32.mrb[0].mxu0
      %v7181 = vadd.f32 %v7009, %v7180
      %v7182 = vpop.f32.mrb[0].mxu0
      %v7183 = vpop.f32.mrb[0].mxu0
      %v7184 = vadd.f32 %v7014, %v7183
      %v7185 = vpop.f32.mrb[0].mxu0
      %7186 = vdwg.mxu0
      %v7187 = vmax.f32 %v7067, 0.0
      %v7188 = vmax.f32 %v7069, 0.0
      %v7189 = vmax.f32 %v7120, 0.0
      %v7190 = vmax.f32 %v7122, 0.0
      %v7191 = vmax.f32 %v7173, 0.0
      %v7192 = vmax.f32 %v7071, 0.0
      %v7193 = vmax.f32 %v7073, 0.0
      %v7194 = vmax.f32 %v7124, 0.0
      %v7195 = vmax.f32 %v7126, 0.0
      %v7196 = vmax.f32 %v7176, 0.0
      %v7197 = vmax.f32 %v7077, 0.0
      %v7198 = vmax.f32 %v7079, 0.0
      %v7199 = vmax.f32 %v7130, 0.0
      %v7200 = vmax.f32 %v7132, 0.0
      %v7201 = vmax.f32 %v7181, 0.0
      %v7202 = vmax.f32 %v7081, 0.0
      %v7203 = vmax.f32 %v7083, 0.0
      %v7204 = vmax.f32 %v7134, 0.0
      %v7205 = vmax.f32 %v7136, 0.0
      %v7206 = vmax.f32 %v7184, 0.0
      %7207 = vst [vmem:[%s561] sm:$0xff] %v7187
      %7208 = vst [vmem:[%s561 + $0x8] sm:$0xff] %v7188
      %7209 = vst [vmem:[%s561 + $0x10] sm:$0xff] %v7189
      %7210 = vst [vmem:[%s561 + $0x18] sm:$0xff] %v7190
      %7211 = vst [vmem:[%s561 + $0x20] sm:$0xff] %v7191
      %7212 = vst [vmem:[%s561 + $0x28] sm:$0xff] %v7192
      %7213 = vst [vmem:[%s561 + $0x30] sm:$0xff] %v7193
      %7214 = vst [vmem:[%s561 + $0x38] sm:$0xff] %v7194
      %7215 = vst [vmem:[%s561 + $0x40] sm:$0xff] %v7195
      %7216 = vst [vmem:[%s561 + $0x48] sm:$0xff] %v7196
      %7217 = vst [vmem:[%s561 + $0x50] sm:$0xff] %v7197
      %7218 = vst [vmem:[%s561 + $0x58] sm:$0xff] %v7198
      %7219 = vst [vmem:[%s561 + $0x60] sm:$0xff] %v7199
      %7220 = vst [vmem:[%s561 + $0x68] sm:$0xff] %v7200
      %7221 = vst [vmem:[%s561 + $0x70] sm:$0xff] %v7201
      %7222 = vst [vmem:[%s561 + $0x78] sm:$0xff] %v7202
      %7223 = vst [vmem:[%s561 + $0x80] sm:$0xff] %v7203
      %7224 = vst [vmem:[%s561 + $0x88] sm:$0xff] %v7204
      %7225 = vst [vmem:[%s561 + $0x90] sm:$0xff] %v7205
      %7226 = vst [vmem:[%s561 + $0x98] sm:$0xff] %v7206
      %v7227 = vld [vmem:[%s10] sm:$0xff]
      %v7228 = vld [vmem:[%s10 + $0x8] sm:$0xff]
      %v7229 = vld [vmem:[%s10 + $0x10] sm:$0xff]
      %v7230 = vld [vmem:[%s10 + $0x18] sm:$0xff]
      %7232 = vset.pattern.permute.xlu0 0
      %7233 = vperm.xlu0 %7232, %v7227
      %v7234 = vpop.permute.xlu0 %7233
      %7237 = vset.pattern.permute.xlu0 0
      %7238 = vperm.xlu0 %7237, %v7228
      %v7239 = vpop.permute.xlu0 %7238
      %7242 = vset.pattern.permute.xlu0 0
      %7243 = vperm.xlu0 %7242, %v7229
      %v7244 = vpop.permute.xlu0 %7243
      %7247 = vset.pattern.permute.xlu0 0
      %7248 = vperm.xlu0 %7247, %v7230
      %v7249 = vpop.permute.xlu0 %7248
      %v7251 = vmul.f32 %v7187, %v7234
      %v7252 = vmul.f32 %v7188, %v7234
      %v7253 = vmul.f32 %v7189, %v7234
      %v7254 = vmul.f32 %v7190, %v7234
      %v7255 = vmul.f32 %v7191, %v7234
      %v7256 = vmul.f32 %v7192, %v7239
      %v7257 = vmul.f32 %v7193, %v7239
      %v7258 = vmul.f32 %v7194, %v7239
      %v7259 = vmul.f32 %v7195, %v7239
      %v7260 = vmul.f32 %v7196, %v7239
      %v7261 = vmul.f32 %v7197, %v7244
      %v7262 = vmul.f32 %v7198, %v7244
      %v7263 = vmul.f32 %v7199, %v7244
      %v7264 = vmul.f32 %v7200, %v7244
      %v7265 = vmul.f32 %v7201, %v7244
      %v7266 = vmul.f32 %v7202, %v7249
      %v7267 = vmul.f32 %v7203, %v7249
      %v7268 = vmul.f32 %v7204, %v7249
      %v7269 = vmul.f32 %v7205, %v7249
      %v7270 = vmul.f32 %v7206, %v7249
      %v7271 = vld [vmem:[%s11] sm:$0xff]
      %v7272 = vld [vmem:[%s11 + $0x8] sm:$0xff]
      %v7273 = vld [vmem:[%s11 + $0x10] sm:$0xff]
      %v7274 = vld [vmem:[%s11 + $0x18] sm:$0xff]
      %7276 = vset.pattern.permute.xlu0 0
      %7277 = vperm.xlu0 %7276, %v7271
      %v7278 = vpop.permute.xlu0 %7277
      %7281 = vset.pattern.permute.xlu0 0
      %7282 = vperm.xlu0 %7281, %v7272
      %v7283 = vpop.permute.xlu0 %7282
      %7286 = vset.pattern.permute.xlu0 0
      %7287 = vperm.xlu0 %7286, %v7273
      %v7288 = vpop.permute.xlu0 %7287
      %7291 = vset.pattern.permute.xlu0 0
      %7292 = vperm.xlu0 %7291, %v7274
      %v7293 = vpop.permute.xlu0 %7292
      %v7295 = vadd.f32 %v7251, %v7278
      %v7296 = vadd.f32 %v7252, %v7278
      %v7297 = vadd.f32 %v7253, %v7278
      %v7298 = vadd.f32 %v7254, %v7278
      %v7299 = vadd.f32 %v7255, %v7278
      %v7300 = vadd.f32 %v7256, %v7283
      %v7301 = vadd.f32 %v7257, %v7283
      %v7302 = vadd.f32 %v7258, %v7283
      %v7303 = vadd.f32 %v7259, %v7283
      %v7304 = vadd.f32 %v7260, %v7283
      %v7305 = vadd.f32 %v7261, %v7288
      %v7306 = vadd.f32 %v7262, %v7288
      %v7307 = vadd.f32 %v7263, %v7288
      %v7308 = vadd.f32 %v7264, %v7288
      %v7309 = vadd.f32 %v7265, %v7288
      %v7310 = vadd.f32 %v7266, %v7293
      %v7311 = vadd.f32 %v7267, %v7293
      %v7312 = vadd.f32 %v7268, %v7293
      %v7313 = vadd.f32 %v7269, %v7293
      %v7314 = vadd.f32 %v7270, %v7293
      %v7315 = vmul.f32 %v7295, %v3834
      %v7316 = vmul.f32 %v7296, %v3838
      %v7317 = vmul.f32 %v7297, %v3842
      %v7318 = vmul.f32 %v7298, %v3846
      %v7319 = vmul.f32 %v7299, %v3850
      %v7320 = vmul.f32 %v7300, %v3834
      %v7321 = vmul.f32 %v7301, %v3838
      %v7322 = vmul.f32 %v7302, %v3842
      %v7323 = vmul.f32 %v7303, %v3846
      %v7324 = vmul.f32 %v7304, %v3850
      %v7325 = vmul.f32 %v7305, %v3834
      %v7326 = vmul.f32 %v7306, %v3838
      %v7327 = vmul.f32 %v7307, %v3842
      %v7328 = vmul.f32 %v7308, %v3846
      %v7329 = vmul.f32 %v7309, %v3850
      %v7330 = vmul.f32 %v7310, %v3834
      %v7331 = vmul.f32 %v7311, %v3838
      %v7332 = vmul.f32 %v7312, %v3842
      %v7333 = vmul.f32 %v7313, %v3846
      %v7334 = vmul.f32 %v7314, %v3850
      %7335 = vrot.lane.b32.xlu0 %v7315, 33
      %v7336 = vpop.permute.xlu0 %7335
      %7337 = vrot.lane.b32.xlu0 %v7320, 33
      %v7338 = vpop.permute.xlu0 %7337
      %7339 = vrot.lane.b32.xlu0 %v7325, 33
      %v7340 = vpop.permute.xlu0 %7339
      %7341 = vrot.lane.b32.xlu0 %v7330, 33
      %v7342 = vpop.permute.xlu0 %7341
      %7343 = vrot.lane.b32.xlu0 %v7316, 33
      %v7344 = vpop.permute.xlu0 %7343
      %7345 = vrot.lane.b32.xlu0 %v7321, 33
      %v7346 = vpop.permute.xlu0 %7345
      %7347 = vrot.lane.b32.xlu0 %v7326, 33
      %v7348 = vpop.permute.xlu0 %7347
      %7349 = vrot.lane.b32.xlu0 %v7331, 33
      %v7350 = vpop.permute.xlu0 %7349
      %7351 = vrot.lane.b32.xlu0 %v7317, 33
      %v7352 = vpop.permute.xlu0 %7351
      %7353 = vrot.lane.b32.xlu0 %v7322, 33
      %v7354 = vpop.permute.xlu0 %7353
      %7355 = vrot.lane.b32.xlu0 %v7327, 33
      %v7356 = vpop.permute.xlu0 %7355
      %7357 = vrot.lane.b32.xlu0 %v7332, 33
      %v7358 = vpop.permute.xlu0 %7357
      %7359 = vrot.lane.b32.xlu0 %v7318, 33
      %v7360 = vpop.permute.xlu0 %7359
      %7361 = vrot.lane.b32.xlu0 %v7323, 33
      %v7362 = vpop.permute.xlu0 %7361
      %7363 = vrot.lane.b32.xlu0 %v7328, 33
      %v7364 = vpop.permute.xlu0 %7363
      %7365 = vrot.lane.b32.xlu0 %v7333, 33
      %v7366 = vpop.permute.xlu0 %7365
      %7367 = vrot.lane.b32.xlu0 %v7319, 33
      %v7368 = vpop.permute.xlu0 %7367
      %7369 = vrot.lane.b32.xlu0 %v7324, 33
      %v7370 = vpop.permute.xlu0 %7369
      %7371 = vrot.lane.b32.xlu0 %v7329, 33
      %v7372 = vpop.permute.xlu0 %7371
      %7373 = vrot.lane.b32.xlu0 %v7334, 33
      %v7374 = vpop.permute.xlu0 %7373
      %v7375 = vsel %vm585, %v7360, %v7368
      %v7376 = vsel %vm585, %v7362, %v7370
      %v7377 = vsel %vm585, %v7364, %v7372
      %v7378 = vsel %vm585, %v7366, %v7374
      %v7379 = vsel %vm585, %v7352, %v7360
      %v7380 = vsel %vm585, %v7354, %v7362
      %v7381 = vsel %vm585, %v7356, %v7364
      %v7382 = vsel %vm585, %v7358, %v7366
      %v7383 = vsel %vm585, %v7344, %v7352
      %v7384 = vsel %vm585, %v7346, %v7354
      %v7385 = vsel %vm585, %v7348, %v7356
      %v7386 = vsel %vm585, %v7350, %v7358
      %v7387 = vsel %vm585, %v7336, %v7344
      %v7388 = vsel %vm585, %v7338, %v7346
      %v7389 = vsel %vm585, %v7340, %v7348
      %v7390 = vsel %vm585, %v7342, %v7350
      %v7391 = vsel %vm585, %v7368, %v7336
      %v7392 = vsel %vm585, %v7370, %v7338
      %v7393 = vsel %vm585, %v7372, %v7340
      %v7394 = vsel %vm585, %v7374, %v7342
      %v7395 = vld [vmem:[%s12] sm:$0xf]
      %v7396 = vld [vmem:[%s12 + $0x4] sm:$0xf]
      %v7397 = vld [vmem:[%s12 + $0x8] sm:$0xf]
      %v7398 = vld [vmem:[%s12 + $0xc] sm:$0xf]
      %v7399 = vld [vmem:[%s12 + $0x10] sm:$0xf]
      %v7400 = vld [vmem:[%s12 + $0x14] sm:$0xf]
      %v7401 = vpack.c.bf16 %v7392, %v7391
      %v7402 = vpack.c.bf16 %v7388, %v7387
      %v7403 = vpack.c.bf16 %v7384, %v7383
      %v7404 = vpack.c.bf16 %v7380, %v7379
      %v7405 = vpack.c.bf16 %v7376, %v7375
      %v7406 = vpack.c.bf16 %v7394, %v7393
      %v7407 = vpack.c.bf16 %v7390, %v7389
      %v7408 = vpack.c.bf16 %v7386, %v7385
      %v7409 = vpack.c.bf16 %v7382, %v7381
      %v7410 = vpack.c.bf16 %v7378, %v7377
      %7411 = vrot.lane.b32.xlu0 %v7315, 32
      %v7412 = vpop.permute.xlu0 %7411
      %7413 = vrot.lane.b32.xlu0 %v7320, 32
      %v7414 = vpop.permute.xlu0 %7413
      %7415 = vrot.lane.b32.xlu0 %v7325, 32
      %v7416 = vpop.permute.xlu0 %7415
      %7417 = vrot.lane.b32.xlu0 %v7330, 32
      %v7418 = vpop.permute.xlu0 %7417
      %7419 = vrot.lane.b32.xlu0 %v7316, 32
      %v7420 = vpop.permute.xlu0 %7419
      %7421 = vrot.lane.b32.xlu0 %v7321, 32
      %v7422 = vpop.permute.xlu0 %7421
      %7423 = vrot.lane.b32.xlu0 %v7326, 32
      %v7424 = vpop.permute.xlu0 %7423
      %7425 = vrot.lane.b32.xlu0 %v7331, 32
      %v7426 = vpop.permute.xlu0 %7425
      %7427 = vrot.lane.b32.xlu0 %v7317, 32
      %v7428 = vpop.permute.xlu0 %7427
      %7429 = vrot.lane.b32.xlu0 %v7322, 32
      %v7430 = vpop.permute.xlu0 %7429
      %7431 = vrot.lane.b32.xlu0 %v7327, 32
      %v7432 = vpop.permute.xlu0 %7431
      %7433 = vrot.lane.b32.xlu0 %v7332, 32
      %v7434 = vpop.permute.xlu0 %7433
      %7435 = vrot.lane.b32.xlu0 %v7318, 32
      %v7436 = vpop.permute.xlu0 %7435
      %7437 = vrot.lane.b32.xlu0 %v7323, 32
      %v7438 = vpop.permute.xlu0 %7437
      %7439 = vrot.lane.b32.xlu0 %v7328, 32
      %v7440 = vpop.permute.xlu0 %7439
      %7441 = vrot.lane.b32.xlu0 %v7333, 32
      %v7442 = vpop.permute.xlu0 %7441
      %7443 = vrot.lane.b32.xlu0 %v7319, 32
      %v7444 = vpop.permute.xlu0 %7443
      %7445 = vrot.lane.b32.xlu0 %v7324, 32
      %v7446 = vpop.permute.xlu0 %7445
      %7447 = vrot.lane.b32.xlu0 %v7329, 32
      %v7448 = vpop.permute.xlu0 %7447
      %7449 = vrot.lane.b32.xlu0 %v7334, 32
      %v7450 = vpop.permute.xlu0 %7449
      %v7451 = vsel %vm614, %v7436, %v7444
      %v7452 = vsel %vm614, %v7438, %v7446
      %v7453 = vsel %vm614, %v7440, %v7448
      %v7454 = vsel %vm614, %v7442, %v7450
      %v7455 = vsel %vm614, %v7428, %v7436
      %v7456 = vsel %vm614, %v7430, %v7438
      %v7457 = vsel %vm614, %v7432, %v7440
      %v7458 = vsel %vm614, %v7434, %v7442
      %v7459 = vsel %vm614, %v7420, %v7428
      %v7460 = vsel %vm614, %v7422, %v7430
      %v7461 = vsel %vm614, %v7424, %v7432
      %v7462 = vsel %vm614, %v7426, %v7434
      %v7463 = vsel %vm614, %v7412, %v7420
      %v7464 = vsel %vm614, %v7414, %v7422
      %v7465 = vsel %vm614, %v7416, %v7424
      %v7466 = vsel %vm614, %v7418, %v7426
      %v7467 = vsel %vm614, %v7444, %v7412
      %v7468 = vsel %vm614, %v7446, %v7414
      %v7469 = vsel %vm614, %v7448, %v7416
      %v7470 = vsel %vm614, %v7450, %v7418
      %s7471 = scalar_lea.vmem %s12, 24
      %v7472 = vld [vmem:[%s7471] sm:$0xf]
      %v7473 = vld [vmem:[%s7471 + $0x4] sm:$0xf]
      %v7474 = vld [vmem:[%s7471 + $0x8] sm:$0xf]
      %v7475 = vld [vmem:[%s7471 + $0xc] sm:$0xf]
      %v7476 = vld [vmem:[%s7471 + $0x10] sm:$0xf]
      %v7477 = vld [vmem:[%s7471 + $0x14] sm:$0xf]
      %v7478 = vpack.c.bf16 %v7468, %v7467
      %v7479 = vpack.c.bf16 %v7464, %v7463
      %v7480 = vpack.c.bf16 %v7460, %v7459
      %v7481 = vpack.c.bf16 %v7456, %v7455
      %v7482 = vpack.c.bf16 %v7452, %v7451
      %v7483 = vpack.c.bf16 %v7470, %v7469
      %v7484 = vpack.c.bf16 %v7466, %v7465
      %v7485 = vpack.c.bf16 %v7462, %v7461
      %v7486 = vpack.c.bf16 %v7458, %v7457
      %v7487 = vpack.c.bf16 %v7454, %v7453
      %v7494 = vunpack.c.l.b16 %v7472
      %v7495 = vunpack.c.l.b16 %v7473
      %v7496 = vunpack.c.l.b16 %v7474
      %v7497 = vunpack.c.l.b16 %v7475
      %v7498 = vunpack.c.l.b16 %v7476
      %v7499 = vunpack.c.l.b16 %v7477
      %v7500 = vpack.c.b16 %v7495, %v7494
      %v7501 = vpack.c.b16 %v7497, %v7496
      %v7502 = vpack.c.b16 %v7499, %v7498
      %vm7503 = vcmask 261120
      %v7505 = vsel %vm7503, %v7500, 0
      %v7508 = vsel %vm7503, %v7501, 0
      %v7511 = vsel %vm7503, %v7502, 0
      %7513 = vmatprep.subr.bf16.mxu0 %v7479
      %7514 = vmatpush1.bf16.msra.mxu0 %v7478
      %7515 = vmatprep.subr.bf16.mxu0 %v7484
      %7516 = vmatpush1.bf16.msra.mxu0 %v7483
      %7517 = vmatprep.subr.bf16.mxu0 0
      %7518 = vmatpush1.bf16.msra.mxu0 0
      %7519 = vmatprep.subr.bf16.mxu0 0
      %7520 = vmatpush1.bf16.msra.mxu0 0
      %7521 = vmatprep.subr.bf16.mxu0 0
      %7522 = vmatpush1.bf16.msra.mxu0 0
      %7523 = vmatprep.subr.bf16.mxu0 0
      %7524 = vmatpush1.bf16.msra.mxu0 0
      %7525 = vmatprep.subr.bf16.mxu0 0
      %7526 = vmatpush1.bf16.msra.mxu0 0
      %7527 = vmatprep.subr.bf16.mxu0 0
      %7528 = vmatpush1.bf16.msra.mxu0 0
      %7529 = vmatprep.subr.bf16.mxu0 0
      %7530 = vmatpush1.bf16.msra.mxu0 0
      %7531 = vmatprep.subr.bf16.mxu0 0
      %7532 = vmatpush1.bf16.msra.mxu0 0
      %7533 = vmatprep.subr.bf16.mxu0 0
      %7534 = vmatpush1.bf16.msra.mxu0 0
      %7535 = vmatprep.subr.bf16.mxu0 0
      %7536 = vmatpush1.bf16.msra.mxu0 0
      %7537 = vmatprep.subr.bf16.mxu0 0
      %7538 = vmatpush1.bf16.msra.mxu0 0
      %7539 = vmatprep.subr.bf16.mxu0 0
      %7540 = vmatpush1.bf16.msra.mxu0 0
      %7541 = vmatprep.subr.bf16.mxu0 0
      %7542 = vmatpush1.bf16.msra.mxu0 0
      %7543 = vmatprep.subr.bf16.mxu0 0
      %7544 = vmatpush1.bf16.msra.mxu0 0
      %7545 = vmatprep.mubr.bf16.mxu0 0
      %7546 = vmatmul.mubr.bf16.gmra.mrb[0].mxu0 %v7505
      %v7547 = vpop.f32.mrb[0].mxu0
      %v7548 = vadd.f32 0.0, %v7547
      %v7549 = vpop.f32.mrb[0].mxu0
      %v7550 = vadd.f32 0.0, %v7549
      %v7551 = vpop.f32.mrb[0].mxu0
      %v7552 = vadd.f32 0.0, %v7551
      %v7553 = vpop.f32.mrb[0].mxu0
      %v7554 = vadd.f32 0.0, %v7553
      %7555 = vmatprep.mubr.bf16.mxu0 0
      %7556 = vmatmul.mubr.bf16.gmra.mrb[0].mxu0 %v7508
      %v7557 = vpop.f32.mrb[0].mxu0
      %v7558 = vadd.f32 0.0, %v7557
      %v7559 = vpop.f32.mrb[0].mxu0
      %v7560 = vadd.f32 0.0, %v7559
      %v7561 = vpop.f32.mrb[0].mxu0
      %v7562 = vadd.f32 0.0, %v7561
      %v7563 = vpop.f32.mrb[0].mxu0
      %v7564 = vadd.f32 0.0, %v7563
      %7565 = vmatprep.mubr.bf16.mxu0 0
      %7566 = vmatmul.mubr.bf16.gmra.mrb[0].mxu0 %v7511
      %v7567 = vpop.f32.mrb[0].mxu0
      %v7568 = vadd.f32 0.0, %v7567
      %v7569 = vpop.f32.mrb[0].mxu0
      %v7570 = vadd.f32 0.0, %v7569
      %v7571 = vpop.f32.mrb[0].mxu0
      %v7572 = vadd.f32 0.0, %v7571
      %v7573 = vpop.f32.mrb[0].mxu0
      %v7574 = vadd.f32 0.0, %v7573
      %7575 = vdwg.mxu0
      %7576 = vmatprep.subr.bf16.mxu0 %v7481
      %7577 = vmatpush1.bf16.msra.mxu0 %v7480
      %7578 = vmatprep.subr.bf16.mxu0 %v7486
      %7579 = vmatpush1.bf16.msra.mxu0 %v7485
      %7580 = vmatprep.subr.bf16.mxu0 0
      %7581 = vmatpush1.bf16.msra.mxu0 0
      %7582 = vmatprep.subr.bf16.mxu0 0
      %7583 = vmatpush1.bf16.msra.mxu0 0
      %7584 = vmatprep.subr.bf16.mxu0 0
      %7585 = vmatpush1.bf16.msra.mxu0 0
      %7586 = vmatprep.subr.bf16.mxu0 0
      %7587 = vmatpush1.bf16.msra.mxu0 0
      %7588 = vmatprep.subr.bf16.mxu0 0
      %7589 = vmatpush1.bf16.msra.mxu0 0
      %7590 = vmatprep.subr.bf16.mxu0 0
      %7591 = vmatpush1.bf16.msra.mxu0 0
      %7592 = vmatprep.subr.bf16.mxu0 0
      %7593 = vmatpush1.bf16.msra.mxu0 0
      %7594 = vmatprep.subr.bf16.mxu0 0
      %7595 = vmatpush1.bf16.msra.mxu0 0
      %7596 = vmatprep.subr.bf16.mxu0 0
      %7597 = vmatpush1.bf16.msra.mxu0 0
      %7598 = vmatprep.subr.bf16.mxu0 0
      %7599 = vmatpush1.bf16.msra.mxu0 0
      %7600 = vmatprep.subr.bf16.mxu0 0
      %7601 = vmatpush1.bf16.msra.mxu0 0
      %7602 = vmatprep.subr.bf16.mxu0 0
      %7603 = vmatpush1.bf16.msra.mxu0 0
      %7604 = vmatprep.subr.bf16.mxu0 0
      %7605 = vmatpush1.bf16.msra.mxu0 0
      %7606 = vmatprep.subr.bf16.mxu0 0
      %7607 = vmatpush1.bf16.msra.mxu0 0
      %7608 = vmatprep.mubr.bf16.mxu0 0
      %7609 = vmatmul.mubr.bf16.gmra.mrb[0].mxu0 %v7505
      %v7610 = vpop.f32.mrb[0].mxu0
      %v7611 = vadd.f32 0.0, %v7610
      %v7612 = vpop.f32.mrb[0].mxu0
      %v7613 = vadd.f32 0.0, %v7612
      %v7614 = vpop.f32.mrb[0].mxu0
      %v7615 = vadd.f32 0.0, %v7614
      %v7616 = vpop.f32.mrb[0].mxu0
      %v7617 = vadd.f32 0.0, %v7616
      %7618 = vmatprep.mubr.bf16.mxu0 0
      %7619 = vmatmul.mubr.bf16.gmra.mrb[0].mxu0 %v7508
      %v7620 = vpop.f32.mrb[0].mxu0
      %v7621 = vadd.f32 0.0, %v7620
      %v7622 = vpop.f32.mrb[0].mxu0
      %v7623 = vadd.f32 0.0, %v7622
      %v7624 = vpop.f32.mrb[0].mxu0
      %v7625 = vadd.f32 0.0, %v7624
      %v7626 = vpop.f32.mrb[0].mxu0
      %v7627 = vadd.f32 0.0, %v7626
      %7628 = vmatprep.mubr.bf16.mxu0 0
      %7629 = vmatmul.mubr.bf16.gmra.mrb[0].mxu0 %v7511
      %v7630 = vpop.f32.mrb[0].mxu0
      %v7631 = vadd.f32 0.0, %v7630
      %v7632 = vpop.f32.mrb[0].mxu0
      %v7633 = vadd.f32 0.0, %v7632
      %v7634 = vpop.f32.mrb[0].mxu0
      %v7635 = vadd.f32 0.0, %v7634
      %v7636 = vpop.f32.mrb[0].mxu0
      %v7637 = vadd.f32 0.0, %v7636
      %7638 = vdwg.mxu0
      %7639 = vmatprep.subr.bf16.mxu0 0
      %7640 = vmatpush1.bf16.msra.mxu0 %v7482
      %7641 = vmatprep.subr.bf16.mxu0 0
      %7642 = vmatpush1.bf16.msra.mxu0 %v7487
      %7643 = vmatprep.subr.bf16.mxu0 0
      %7644 = vmatpush1.bf16.msra.mxu0 0
      %7645 = vmatprep.subr.bf16.mxu0 0
      %7646 = vmatpush1.bf16.msra.mxu0 0
      %7647 = vmatprep.subr.bf16.mxu0 0
      %7648 = vmatpush1.bf16.msra.mxu0 0
      %7649 = vmatprep.subr.bf16.mxu0 0
      %7650 = vmatpush1.bf16.msra.mxu0 0
      %7651 = vmatprep.subr.bf16.mxu0 0
      %7652 = vmatpush1.bf16.msra.mxu0 0
      %7653 = vmatprep.subr.bf16.mxu0 0
      %7654 = vmatpush1.bf16.msra.mxu0 0
      %7655 = vmatprep.subr.bf16.mxu0 0
      %7656 = vmatpush1.bf16.msra.mxu0 0
      %7657 = vmatprep.subr.bf16.mxu0 0
      %7658 = vmatpush1.bf16.msra.mxu0 0
      %7659 = vmatprep.subr.bf16.mxu0 0
      %7660 = vmatpush1.bf16.msra.mxu0 0
      %7661 = vmatprep.subr.bf16.mxu0 0
      %7662 = vmatpush1.bf16.msra.mxu0 0
      %7663 = vmatprep.subr.bf16.mxu0 0
      %7664 = vmatpush1.bf16.msra.mxu0 0
      %7665 = vmatprep.subr.bf16.mxu0 0
      %7666 = vmatpush1.bf16.msra.mxu0 0
      %7667 = vmatprep.subr.bf16.mxu0 0
      %7668 = vmatpush1.bf16.msra.mxu0 0
      %7669 = vmatprep.subr.bf16.mxu0 0
      %7670 = vmatpush1.bf16.msra.mxu0 0
      %7671 = vmatprep.mubr.bf16.mxu0 0
      %7672 = vmatmul.mubr.bf16.gmra.mrb[0].mxu0 %v7505
      %v7673 = vpop.f32.mrb[0].mxu0
      %v7674 = vadd.f32 0.0, %v7673
      %v7675 = vpop.f32.mrb[0].mxu0
      %v7676 = vpop.f32.mrb[0].mxu0
      %v7677 = vadd.f32 0.0, %v7676
      %v7678 = vpop.f32.mrb[0].mxu0
      %7679 = vmatprep.mubr.bf16.mxu0 0
      %7680 = vmatmul.mubr.bf16.gmra.mrb[0].mxu0 %v7508
      %v7681 = vpop.f32.mrb[0].mxu0
      %v7682 = vadd.f32 0.0, %v7681
      %v7683 = vpop.f32.mrb[0].mxu0
      %v7684 = vpop.f32.mrb[0].mxu0
      %v7685 = vadd.f32 0.0, %v7684
      %v7686 = vpop.f32.mrb[0].mxu0
      %7687 = vmatprep.mubr.bf16.mxu0 0
      %7688 = vmatmul.mubr.bf16.gmra.mrb[0].mxu0 %v7511
      %v7689 = vpop.f32.mrb[0].mxu0
      %v7690 = vadd.f32 0.0, %v7689
      %v7691 = vpop.f32.mrb[0].mxu0
      %v7692 = vpop.f32.mrb[0].mxu0
      %v7693 = vadd.f32 0.0, %v7692
      %v7694 = vpop.f32.mrb[0].mxu0
      %7695 = vdwg.mxu0
      %v7702 = vunpack.c.l.b16 %v7395
      %v7703 = vunpack.c.l.b16 %v7396
      %v7704 = vunpack.c.l.b16 %v7397
      %v7705 = vunpack.c.l.b16 %v7398
      %v7706 = vunpack.c.l.b16 %v7399
      %v7707 = vunpack.c.l.b16 %v7400
      %v7708 = vpack.c.b16 %v7703, %v7702
      %v7709 = vpack.c.b16 %v7705, %v7704
      %v7710 = vpack.c.b16 %v7707, %v7706
      %v7712 = vsel %vm7503, %v7708, 0
      %v7715 = vsel %vm7503, %v7709, 0
      %v7718 = vsel %vm7503, %v7710, 0
      %7720 = vmatprep.subr.bf16.mxu0 %v7402
      %7721 = vmatpush1.bf16.msra.mxu0 %v7401
      %7722 = vmatprep.subr.bf16.mxu0 %v7407
      %7723 = vmatpush1.bf16.msra.mxu0 %v7406
      %7724 = vmatprep.subr.bf16.mxu0 0
      %7725 = vmatpush1.bf16.msra.mxu0 0
      %7726 = vmatprep.subr.bf16.mxu0 0
      %7727 = vmatpush1.bf16.msra.mxu0 0
      %7728 = vmatprep.subr.bf16.mxu0 0
      %7729 = vmatpush1.bf16.msra.mxu0 0
      %7730 = vmatprep.subr.bf16.mxu0 0
      %7731 = vmatpush1.bf16.msra.mxu0 0
      %7732 = vmatprep.subr.bf16.mxu0 0
      %7733 = vmatpush1.bf16.msra.mxu0 0
      %7734 = vmatprep.subr.bf16.mxu0 0
      %7735 = vmatpush1.bf16.msra.mxu0 0
      %7736 = vmatprep.subr.bf16.mxu0 0
      %7737 = vmatpush1.bf16.msra.mxu0 0
      %7738 = vmatprep.subr.bf16.mxu0 0
      %7739 = vmatpush1.bf16.msra.mxu0 0
      %7740 = vmatprep.subr.bf16.mxu0 0
      %7741 = vmatpush1.bf16.msra.mxu0 0
      %7742 = vmatprep.subr.bf16.mxu0 0
      %7743 = vmatpush1.bf16.msra.mxu0 0
      %7744 = vmatprep.subr.bf16.mxu0 0
      %7745 = vmatpush1.bf16.msra.mxu0 0
      %7746 = vmatprep.subr.bf16.mxu0 0
      %7747 = vmatpush1.bf16.msra.mxu0 0
      %7748 = vmatprep.subr.bf16.mxu0 0
      %7749 = vmatpush1.bf16.msra.mxu0 0
      %7750 = vmatprep.subr.bf16.mxu0 0
      %7751 = vmatpush1.bf16.msra.mxu0 0
      %7752 = vmatprep.mubr.bf16.mxu0 0
      %7753 = vmatmul.mubr.bf16.gmra.mrb[0].mxu0 %v7712
      %v7754 = vpop.f32.mrb[0].mxu0
      %v7755 = vadd.f32 %v7548, %v7754
      %v7756 = vpop.f32.mrb[0].mxu0
      %v7757 = vadd.f32 %v7550, %v7756
      %v7758 = vpop.f32.mrb[0].mxu0
      %v7759 = vadd.f32 %v7552, %v7758
      %v7760 = vpop.f32.mrb[0].mxu0
      %v7761 = vadd.f32 %v7554, %v7760
      %7762 = vmatprep.mubr.bf16.mxu0 0
      %7763 = vmatmul.mubr.bf16.gmra.mrb[0].mxu0 %v7715
      %v7764 = vpop.f32.mrb[0].mxu0
      %v7765 = vadd.f32 %v7558, %v7764
      %v7766 = vpop.f32.mrb[0].mxu0
      %v7767 = vadd.f32 %v7560, %v7766
      %v7768 = vpop.f32.mrb[0].mxu0
      %v7769 = vadd.f32 %v7562, %v7768
      %v7770 = vpop.f32.mrb[0].mxu0
      %v7771 = vadd.f32 %v7564, %v7770
      %7772 = vmatprep.mubr.bf16.mxu0 0
      %7773 = vmatmul.mubr.bf16.gmra.mrb[0].mxu0 %v7718
      %v7774 = vpop.f32.mrb[0].mxu0
      %v7775 = vadd.f32 %v7568, %v7774
      %v7776 = vpop.f32.mrb[0].mxu0
      %v7777 = vadd.f32 %v7570, %v7776
      %v7778 = vpop.f32.mrb[0].mxu0
      %v7779 = vadd.f32 %v7572, %v7778
      %v7780 = vpop.f32.mrb[0].mxu0
      %v7781 = vadd.f32 %v7574, %v7780
      %7782 = vdwg.mxu0
      %7783 = vmatprep.subr.bf16.mxu0 %v7404
      %7784 = vmatpush1.bf16.msra.mxu0 %v7403
      %7785 = vmatprep.subr.bf16.mxu0 %v7409
      %7786 = vmatpush1.bf16.msra.mxu0 %v7408
      %7787 = vmatprep.subr.bf16.mxu0 0
      %7788 = vmatpush1.bf16.msra.mxu0 0
      %7789 = vmatprep.subr.bf16.mxu0 0
      %7790 = vmatpush1.bf16.msra.mxu0 0
      %7791 = vmatprep.subr.bf16.mxu0 0
      %7792 = vmatpush1.bf16.msra.mxu0 0
      %7793 = vmatprep.subr.bf16.mxu0 0
      %7794 = vmatpush1.bf16.msra.mxu0 0
      %7795 = vmatprep.subr.bf16.mxu0 0
      %7796 = vmatpush1.bf16.msra.mxu0 0
      %7797 = vmatprep.subr.bf16.mxu0 0
      %7798 = vmatpush1.bf16.msra.mxu0 0
      %7799 = vmatprep.subr.bf16.mxu0 0
      %7800 = vmatpush1.bf16.msra.mxu0 0
      %7801 = vmatprep.subr.bf16.mxu0 0
      %7802 = vmatpush1.bf16.msra.mxu0 0
      %7803 = vmatprep.subr.bf16.mxu0 0
      %7804 = vmatpush1.bf16.msra.mxu0 0
      %7805 = vmatprep.subr.bf16.mxu0 0
      %7806 = vmatpush1.bf16.msra.mxu0 0
      %7807 = vmatprep.subr.bf16.mxu0 0
      %7808 = vmatpush1.bf16.msra.mxu0 0
      %7809 = vmatprep.subr.bf16.mxu0 0
      %7810 = vmatpush1.bf16.msra.mxu0 0
      %7811 = vmatprep.subr.bf16.mxu0 0
      %7812 = vmatpush1.bf16.msra.mxu0 0
      %7813 = vmatprep.subr.bf16.mxu0 0
      %7814 = vmatpush1.bf16.msra.mxu0 0
      %7815 = vmatprep.mubr.bf16.mxu0 0
      %7816 = vmatmul.mubr.bf16.gmra.mrb[0].mxu0 %v7712
      %v7817 = vpop.f32.mrb[0].mxu0
      %v7818 = vadd.f32 %v7611, %v7817
      %v7819 = vpop.f32.mrb[0].mxu0
      %v7820 = vadd.f32 %v7613, %v7819
      %v7821 = vpop.f32.mrb[0].mxu0
      %v7822 = vadd.f32 %v7615, %v7821
      %v7823 = vpop.f32.mrb[0].mxu0
      %v7824 = vadd.f32 %v7617, %v7823
      %7825 = vmatprep.mubr.bf16.mxu0 0
      %7826 = vmatmul.mubr.bf16.gmra.mrb[0].mxu0 %v7715
      %v7827 = vpop.f32.mrb[0].mxu0
      %v7828 = vadd.f32 %v7621, %v7827
      %v7829 = vpop.f32.mrb[0].mxu0
      %v7830 = vadd.f32 %v7623, %v7829
      %v7831 = vpop.f32.mrb[0].mxu0
      %v7832 = vadd.f32 %v7625, %v7831
      %v7833 = vpop.f32.mrb[0].mxu0
      %v7834 = vadd.f32 %v7627, %v7833
      %7835 = vmatprep.mubr.bf16.mxu0 0
      %7836 = vmatmul.mubr.bf16.gmra.mrb[0].mxu0 %v7718
      %v7837 = vpop.f32.mrb[0].mxu0
      %v7838 = vadd.f32 %v7631, %v7837
      %v7839 = vpop.f32.mrb[0].mxu0
      %v7840 = vadd.f32 %v7633, %v7839
      %v7841 = vpop.f32.mrb[0].mxu0
      %v7842 = vadd.f32 %v7635, %v7841
      %v7843 = vpop.f32.mrb[0].mxu0
      %v7844 = vadd.f32 %v7637, %v7843
      %7845 = vdwg.mxu0
      %7846 = vmatprep.subr.bf16.mxu0 0
      %7847 = vmatpush1.bf16.msra.mxu0 %v7405
      %7848 = vmatprep.subr.bf16.mxu0 0
      %7849 = vmatpush1.bf16.msra.mxu0 %v7410
      %7850 = vmatprep.subr.bf16.mxu0 0
      %7851 = vmatpush1.bf16.msra.mxu0 0
      %7852 = vmatprep.subr.bf16.mxu0 0
      %7853 = vmatpush1.bf16.msra.mxu0 0
      %7854 = vmatprep.subr.bf16.mxu0 0
      %7855 = vmatpush1.bf16.msra.mxu0 0
      %7856 = vmatprep.subr.bf16.mxu0 0
      %7857 = vmatpush1.bf16.msra.mxu0 0
      %7858 = vmatprep.subr.bf16.mxu0 0
      %7859 = vmatpush1.bf16.msra.mxu0 0
      %7860 = vmatprep.subr.bf16.mxu0 0
      %7861 = vmatpush1.bf16.msra.mxu0 0
      %7862 = vmatprep.subr.bf16.mxu0 0
      %7863 = vmatpush1.bf16.msra.mxu0 0
      %7864 = vmatprep.subr.bf16.mxu0 0
      %7865 = vmatpush1.bf16.msra.mxu0 0
      %7866 = vmatprep.subr.bf16.mxu0 0
      %7867 = vmatpush1.bf16.msra.mxu0 0
      %7868 = vmatprep.subr.bf16.mxu0 0
      %7869 = vmatpush1.bf16.msra.mxu0 0
      %7870 = vmatprep.subr.bf16.mxu0 0
      %7871 = vmatpush1.bf16.msra.mxu0 0
      %7872 = vmatprep.subr.bf16.mxu0 0
      %7873 = vmatpush1.bf16.msra.mxu0 0
      %7874 = vmatprep.subr.bf16.mxu0 0
      %7875 = vmatpush1.bf16.msra.mxu0 0
      %7876 = vmatprep.subr.bf16.mxu0 0
      %7877 = vmatpush1.bf16.msra.mxu0 0
      %7878 = vmatprep.mubr.bf16.mxu0 0
      %7879 = vmatmul.mubr.bf16.gmra.mrb[0].mxu0 %v7712
      %v7880 = vpop.f32.mrb[0].mxu0
      %v7881 = vadd.f32 %v7674, %v7880
      %v7882 = vpop.f32.mrb[0].mxu0
      %v7883 = vpop.f32.mrb[0].mxu0
      %v7884 = vadd.f32 %v7677, %v7883
      %v7885 = vpop.f32.mrb[0].mxu0
      %7886 = vmatprep.mubr.bf16.mxu0 0
      %7887 = vmatmul.mubr.bf16.gmra.mrb[0].mxu0 %v7715
      %v7888 = vpop.f32.mrb[0].mxu0
      %v7889 = vadd.f32 %v7682, %v7888
      %v7890 = vpop.f32.mrb[0].mxu0
      %v7891 = vpop.f32.mrb[0].mxu0
      %v7892 = vadd.f32 %v7685, %v7891
      %v7893 = vpop.f32.mrb[0].mxu0
      %7894 = vmatprep.mubr.bf16.mxu0 0
      %7895 = vmatmul.mubr.bf16.gmra.mrb[0].mxu0 %v7718
      %v7896 = vpop.f32.mrb[0].mxu0
      %v7897 = vadd.f32 %v7690, %v7896
      %v7898 = vpop.f32.mrb[0].mxu0
      %v7899 = vpop.f32.mrb[0].mxu0
      %v7900 = vadd.f32 %v7693, %v7899
      %v7901 = vpop.f32.mrb[0].mxu0
      %7902 = vdwg.mxu0
      %7903 = vrot.lane.b32.xlu0 %v7315, 31
      %v7904 = vpop.permute.xlu0 %7903
      %7905 = vrot.lane.b32.xlu0 %v7320, 31
      %v7906 = vpop.permute.xlu0 %7905
      %7907 = vrot.lane.b32.xlu0 %v7325, 31
      %v7908 = vpop.permute.xlu0 %7907
      %7909 = vrot.lane.b32.xlu0 %v7330, 31
      %v7910 = vpop.permute.xlu0 %7909
      %7911 = vrot.lane.b32.xlu0 %v7316, 31
      %v7912 = vpop.permute.xlu0 %7911
      %7913 = vrot.lane.b32.xlu0 %v7321, 31
      %v7914 = vpop.permute.xlu0 %7913
      %7915 = vrot.lane.b32.xlu0 %v7326, 31
      %v7916 = vpop.permute.xlu0 %7915
      %7917 = vrot.lane.b32.xlu0 %v7331, 31
      %v7918 = vpop.permute.xlu0 %7917
      %7919 = vrot.lane.b32.xlu0 %v7317, 31
      %v7920 = vpop.permute.xlu0 %7919
      %7921 = vrot.lane.b32.xlu0 %v7322, 31
      %v7922 = vpop.permute.xlu0 %7921
      %7923 = vrot.lane.b32.xlu0 %v7327, 31
      %v7924 = vpop.permute.xlu0 %7923
      %7925 = vrot.lane.b32.xlu0 %v7332, 31
      %v7926 = vpop.permute.xlu0 %7925
      %7927 = vrot.lane.b32.xlu0 %v7318, 31
      %v7928 = vpop.permute.xlu0 %7927
      %7929 = vrot.lane.b32.xlu0 %v7323, 31
      %v7930 = vpop.permute.xlu0 %7929
      %7931 = vrot.lane.b32.xlu0 %v7328, 31
      %v7932 = vpop.permute.xlu0 %7931
      %7933 = vrot.lane.b32.xlu0 %v7333, 31
      %v7934 = vpop.permute.xlu0 %7933
      %7935 = vrot.lane.b32.xlu0 %v7319, 31
      %v7936 = vpop.permute.xlu0 %7935
      %7937 = vrot.lane.b32.xlu0 %v7324, 31
      %v7938 = vpop.permute.xlu0 %7937
      %7939 = vrot.lane.b32.xlu0 %v7329, 31
      %v7940 = vpop.permute.xlu0 %7939
      %7941 = vrot.lane.b32.xlu0 %v7334, 31
      %v7942 = vpop.permute.xlu0 %7941
      %v7943 = vsel %vm1162, %v7928, %v7936
      %v7944 = vsel %vm1162, %v7930, %v7938
      %v7945 = vsel %vm1162, %v7932, %v7940
      %v7946 = vsel %vm1162, %v7934, %v7942
      %v7947 = vsel %vm1162, %v7920, %v7928
      %v7948 = vsel %vm1162, %v7922, %v7930
      %v7949 = vsel %vm1162, %v7924, %v7932
      %v7950 = vsel %vm1162, %v7926, %v7934
      %v7951 = vsel %vm1162, %v7912, %v7920
      %v7952 = vsel %vm1162, %v7914, %v7922
      %v7953 = vsel %vm1162, %v7916, %v7924
      %v7954 = vsel %vm1162, %v7918, %v7926
      %v7955 = vsel %vm1162, %v7904, %v7912
      %v7956 = vsel %vm1162, %v7906, %v7914
      %v7957 = vsel %vm1162, %v7908, %v7916
      %v7958 = vsel %vm1162, %v7910, %v7918
      %v7959 = vsel %vm1162, %v7936, %v7904
      %v7960 = vsel %vm1162, %v7938, %v7906
      %v7961 = vsel %vm1162, %v7940, %v7908
      %v7962 = vsel %vm1162, %v7942, %v7910
      %s7963 = scalar_lea.vmem %s12, 48
      %v7964 = vld [vmem:[%s7963] sm:$0xf]
      %v7965 = vld [vmem:[%s7963 + $0x4] sm:$0xf]
      %v7966 = vld [vmem:[%s7963 + $0x8] sm:$0xf]
      %v7967 = vld [vmem:[%s7963 + $0xc] sm:$0xf]
      %v7968 = vld [vmem:[%s7963 + $0x10] sm:$0xf]
      %v7969 = vld [vmem:[%s7963 + $0x14] sm:$0xf]
      %v7970 = vpack.c.bf16 %v7960, %v7959
      %v7971 = vpack.c.bf16 %v7956, %v7955
      %v7972 = vpack.c.bf16 %v7952, %v7951
      %v7973 = vpack.c.bf16 %v7948, %v7947
      %v7974 = vpack.c.bf16 %v7944, %v7943
      %v7975 = vpack.c.bf16 %v7962, %v7961
      %v7976 = vpack.c.bf16 %v7958, %v7957
      %v7977 = vpack.c.bf16 %v7954, %v7953
      %v7978 = vpack.c.bf16 %v7950, %v7949
      %v7979 = vpack.c.bf16 %v7946, %v7945
      %v7986 = vunpack.c.l.b16 %v7964
      %v7987 = vunpack.c.l.b16 %v7965
      %v7988 = vunpack.c.l.b16 %v7966
      %v7989 = vunpack.c.l.b16 %v7967
      %v7990 = vunpack.c.l.b16 %v7968
      %v7991 = vunpack.c.l.b16 %v7969
      %v7992 = vpack.c.b16 %v7987, %v7986
      %v7993 = vpack.c.b16 %v7989, %v7988
      %v7994 = vpack.c.b16 %v7991, %v7990
      %v7996 = vsel %vm7503, %v7992, 0
      %v7999 = vsel %vm7503, %v7993, 0
      %v8002 = vsel %vm7503, %v7994, 0
      %8004 = vmatprep.subr.bf16.mxu0 %v7971
      %8005 = vmatpush1.bf16.msra.mxu0 %v7970
      %8006 = vmatprep.subr.bf16.mxu0 %v7976
      %8007 = vmatpush1.bf16.msra.mxu0 %v7975
      %8008 = vmatprep.subr.bf16.mxu0 0
      %8009 = vmatpush1.bf16.msra.mxu0 0
      %8010 = vmatprep.subr.bf16.mxu0 0
      %8011 = vmatpush1.bf16.msra.mxu0 0
      %8012 = vmatprep.subr.bf16.mxu0 0
      %8013 = vmatpush1.bf16.msra.mxu0 0
      %8014 = vmatprep.subr.bf16.mxu0 0
      %8015 = vmatpush1.bf16.msra.mxu0 0
      %8016 = vmatprep.subr.bf16.mxu0 0
      %8017 = vmatpush1.bf16.msra.mxu0 0
      %8018 = vmatprep.subr.bf16.mxu0 0
      %8019 = vmatpush1.bf16.msra.mxu0 0
      %8020 = vmatprep.subr.bf16.mxu0 0
      %8021 = vmatpush1.bf16.msra.mxu0 0
      %8022 = vmatprep.subr.bf16.mxu0 0
      %8023 = vmatpush1.bf16.msra.mxu0 0
      %8024 = vmatprep.subr.bf16.mxu0 0
      %8025 = vmatpush1.bf16.msra.mxu0 0
      %8026 = vmatprep.subr.bf16.mxu0 0
      %8027 = vmatpush1.bf16.msra.mxu0 0
      %8028 = vmatprep.subr.bf16.mxu0 0
      %8029 = vmatpush1.bf16.msra.mxu0 0
      %8030 = vmatprep.subr.bf16.mxu0 0
      %8031 = vmatpush1.bf16.msra.mxu0 0
      %8032 = vmatprep.subr.bf16.mxu0 0
      %8033 = vmatpush1.bf16.msra.mxu0 0
      %8034 = vmatprep.subr.bf16.mxu0 0
      %8035 = vmatpush1.bf16.msra.mxu0 0
      %8036 = vmatprep.mubr.bf16.mxu0 0
      %8037 = vmatmul.mubr.bf16.gmra.mrb[0].mxu0 %v7996
      %v8038 = vpop.f32.mrb[0].mxu0
      %v8039 = vadd.f32 0.0, %v8038
      %v8040 = vpop.f32.mrb[0].mxu0
      %v8041 = vadd.f32 0.0, %v8040
      %v8042 = vpop.f32.mrb[0].mxu0
      %v8043 = vadd.f32 0.0, %v8042
      %v8044 = vpop.f32.mrb[0].mxu0
      %v8045 = vadd.f32 0.0, %v8044
      %8046 = vmatprep.mubr.bf16.mxu0 0
      %8047 = vmatmul.mubr.bf16.gmra.mrb[0].mxu0 %v7999
      %v8048 = vpop.f32.mrb[0].mxu0
      %v8049 = vadd.f32 0.0, %v8048
      %v8050 = vpop.f32.mrb[0].mxu0
      %v8051 = vadd.f32 0.0, %v8050
      %v8052 = vpop.f32.mrb[0].mxu0
      %v8053 = vadd.f32 0.0, %v8052
      %v8054 = vpop.f32.mrb[0].mxu0
      %v8055 = vadd.f32 0.0, %v8054
      %8056 = vmatprep.mubr.bf16.mxu0 0
      %8057 = vmatmul.mubr.bf16.gmra.mrb[0].mxu0 %v8002
      %v8058 = vpop.f32.mrb[0].mxu0
      %v8059 = vadd.f32 0.0, %v8058
      %v8060 = vpop.f32.mrb[0].mxu0
      %v8061 = vadd.f32 0.0, %v8060
      %v8062 = vpop.f32.mrb[0].mxu0
      %v8063 = vadd.f32 0.0, %v8062
      %v8064 = vpop.f32.mrb[0].mxu0
      %v8065 = vadd.f32 0.0, %v8064
      %8066 = vdwg.mxu0
      %8067 = vmatprep.subr.bf16.mxu0 %v7973
      %8068 = vmatpush1.bf16.msra.mxu0 %v7972
      %8069 = vmatprep.subr.bf16.mxu0 %v7978
      %8070 = vmatpush1.bf16.msra.mxu0 %v7977
      %8071 = vmatprep.subr.bf16.mxu0 0
      %8072 = vmatpush1.bf16.msra.mxu0 0
      %8073 = vmatprep.subr.bf16.mxu0 0
      %8074 = vmatpush1.bf16.msra.mxu0 0
      %8075 = vmatprep.subr.bf16.mxu0 0
      %8076 = vmatpush1.bf16.msra.mxu0 0
      %8077 = vmatprep.subr.bf16.mxu0 0
      %8078 = vmatpush1.bf16.msra.mxu0 0
      %8079 = vmatprep.subr.bf16.mxu0 0
      %8080 = vmatpush1.bf16.msra.mxu0 0
      %8081 = vmatprep.subr.bf16.mxu0 0
      %8082 = vmatpush1.bf16.msra.mxu0 0
      %8083 = vmatprep.subr.bf16.mxu0 0
      %8084 = vmatpush1.bf16.msra.mxu0 0
      %8085 = vmatprep.subr.bf16.mxu0 0
      %8086 = vmatpush1.bf16.msra.mxu0 0
      %8087 = vmatprep.subr.bf16.mxu0 0
      %8088 = vmatpush1.bf16.msra.mxu0 0
      %8089 = vmatprep.subr.bf16.mxu0 0
      %8090 = vmatpush1.bf16.msra.mxu0 0
      %8091 = vmatprep.subr.bf16.mxu0 0
      %8092 = vmatpush1.bf16.msra.mxu0 0
      %8093 = vmatprep.subr.bf16.mxu0 0
      %8094 = vmatpush1.bf16.msra.mxu0 0
      %8095 = vmatprep.subr.bf16.mxu0 0
      %8096 = vmatpush1.bf16.msra.mxu0 0
      %8097 = vmatprep.subr.bf16.mxu0 0
      %8098 = vmatpush1.bf16.msra.mxu0 0
      %8099 = vmatprep.mubr.bf16.mxu0 0
      %8100 = vmatmul.mubr.bf16.gmra.mrb[0].mxu0 %v7996
      %v8101 = vpop.f32.mrb[0].mxu0
      %v8102 = vadd.f32 0.0, %v8101
      %v8103 = vpop.f32.mrb[0].mxu0
      %v8104 = vadd.f32 0.0, %v8103
      %v8105 = vpop.f32.mrb[0].mxu0
      %v8106 = vadd.f32 0.0, %v8105
      %v8107 = vpop.f32.mrb[0].mxu0
      %v8108 = vadd.f32 0.0, %v8107
      %8109 = vmatprep.mubr.bf16.mxu0 0
      %8110 = vmatmul.mubr.bf16.gmra.mrb[0].mxu0 %v7999
      %v8111 = vpop.f32.mrb[0].mxu0
      %v8112 = vadd.f32 0.0, %v8111
      %v8113 = vpop.f32.mrb[0].mxu0
      %v8114 = vadd.f32 0.0, %v8113
      %v8115 = vpop.f32.mrb[0].mxu0
      %v8116 = vadd.f32 0.0, %v8115
      %v8117 = vpop.f32.mrb[0].mxu0
      %v8118 = vadd.f32 0.0, %v8117
      %8119 = vmatprep.mubr.bf16.mxu0 0
      %8120 = vmatmul.mubr.bf16.gmra.mrb[0].mxu0 %v8002
      %v8121 = vpop.f32.mrb[0].mxu0
      %v8122 = vadd.f32 0.0, %v8121
      %v8123 = vpop.f32.mrb[0].mxu0
      %v8124 = vadd.f32 0.0, %v8123
      %v8125 = vpop.f32.mrb[0].mxu0
      %v8126 = vadd.f32 0.0, %v8125
      %v8127 = vpop.f32.mrb[0].mxu0
      %v8128 = vadd.f32 0.0, %v8127
      %8129 = vdwg.mxu0
      %8130 = vmatprep.subr.bf16.mxu0 0
      %8131 = vmatpush1.bf16.msra.mxu0 %v7974
      %8132 = vmatprep.subr.bf16.mxu0 0
      %8133 = vmatpush1.bf16.msra.mxu0 %v7979
      %8134 = vmatprep.subr.bf16.mxu0 0
      %8135 = vmatpush1.bf16.msra.mxu0 0
      %8136 = vmatprep.subr.bf16.mxu0 0
      %8137 = vmatpush1.bf16.msra.mxu0 0
      %8138 = vmatprep.subr.bf16.mxu0 0
      %8139 = vmatpush1.bf16.msra.mxu0 0
      %8140 = vmatprep.subr.bf16.mxu0 0
      %8141 = vmatpush1.bf16.msra.mxu0 0
      %8142 = vmatprep.subr.bf16.mxu0 0
      %8143 = vmatpush1.bf16.msra.mxu0 0
      %8144 = vmatprep.subr.bf16.mxu0 0
      %8145 = vmatpush1.bf16.msra.mxu0 0
      %8146 = vmatprep.subr.bf16.mxu0 0
      %8147 = vmatpush1.bf16.msra.mxu0 0
      %8148 = vmatprep.subr.bf16.mxu0 0
      %8149 = vmatpush1.bf16.msra.mxu0 0
      %8150 = vmatprep.subr.bf16.mxu0 0
      %8151 = vmatpush1.bf16.msra.mxu0 0
      %8152 = vmatprep.subr.bf16.mxu0 0
      %8153 = vmatpush1.bf16.msra.mxu0 0
      %8154 = vmatprep.subr.bf16.mxu0 0
      %8155 = vmatpush1.bf16.msra.mxu0 0
      %8156 = vmatprep.subr.bf16.mxu0 0
      %8157 = vmatpush1.bf16.msra.mxu0 0
      %8158 = vmatprep.subr.bf16.mxu0 0
      %8159 = vmatpush1.bf16.msra.mxu0 0
      %8160 = vmatprep.subr.bf16.mxu0 0
      %8161 = vmatpush1.bf16.msra.mxu0 0
      %8162 = vmatprep.mubr.bf16.mxu0 0
      %8163 = vmatmul.mubr.bf16.gmra.mrb[0].mxu0 %v7996
      %v8164 = vpop.f32.mrb[0].mxu0
      %v8165 = vadd.f32 0.0, %v8164
      %v8166 = vpop.f32.mrb[0].mxu0
      %v8167 = vpop.f32.mrb[0].mxu0
      %v8168 = vadd.f32 0.0, %v8167
      %v8169 = vpop.f32.mrb[0].mxu0
      %8170 = vmatprep.mubr.bf16.mxu0 0
      %8171 = vmatmul.mubr.bf16.gmra.mrb[0].mxu0 %v7999
      %v8172 = vpop.f32.mrb[0].mxu0
      %v8173 = vadd.f32 0.0, %v8172
      %v8174 = vpop.f32.mrb[0].mxu0
      %v8175 = vpop.f32.mrb[0].mxu0
      %v8176 = vadd.f32 0.0, %v8175
      %v8177 = vpop.f32.mrb[0].mxu0
      %8178 = vmatprep.mubr.bf16.mxu0 0
      %8179 = vmatmul.mubr.bf16.gmra.mrb[0].mxu0 %v8002
      %v8180 = vpop.f32.mrb[0].mxu0
      %v8181 = vadd.f32 0.0, %v8180
      %v8182 = vpop.f32.mrb[0].mxu0
      %v8183 = vpop.f32.mrb[0].mxu0
      %v8184 = vadd.f32 0.0, %v8183
      %v8185 = vpop.f32.mrb[0].mxu0
      %8186 = vdwg.mxu0
      %v8187 = vadd.f32 %v7755, %v8039
      %v8188 = vadd.f32 %v7757, %v8041
      %v8189 = vadd.f32 %v7818, %v8102
      %v8190 = vadd.f32 %v7820, %v8104
      %v8191 = vadd.f32 %v7881, %v8165
      %v8192 = vadd.f32 %v7759, %v8043
      %v8193 = vadd.f32 %v7761, %v8045
      %v8194 = vadd.f32 %v7822, %v8106
      %v8195 = vadd.f32 %v7824, %v8108
      %v8196 = vadd.f32 %v7884, %v8168
      %v8197 = vadd.f32 %v7765, %v8049
      %v8198 = vadd.f32 %v7767, %v8051
      %v8199 = vadd.f32 %v7828, %v8112
      %v8200 = vadd.f32 %v7830, %v8114
      %v8201 = vadd.f32 %v7889, %v8173
      %v8202 = vadd.f32 %v7769, %v8053
      %v8203 = vadd.f32 %v7771, %v8055
      %v8204 = vadd.f32 %v7832, %v8116
      %v8205 = vadd.f32 %v7834, %v8118
      %v8206 = vadd.f32 %v7892, %v8176
      %v8207 = vadd.f32 %v7775, %v8059
      %v8208 = vadd.f32 %v7777, %v8061
      %v8209 = vadd.f32 %v7838, %v8122
      %v8210 = vadd.f32 %v7840, %v8124
      %v8211 = vadd.f32 %v7897, %v8181
      %v8212 = vadd.f32 %v7779, %v8063
      %v8213 = vadd.f32 %v7781, %v8065
      %v8214 = vadd.f32 %v7842, %v8126
      %v8215 = vadd.f32 %v7844, %v8128
      %v8216 = vadd.f32 %v7900, %v8184
      %8217 = vrot.lane.b32.xlu0 %v7315, 1
      %v8218 = vpop.permute.xlu0 %8217
      %8219 = vrot.lane.b32.xlu0 %v7320, 1
      %v8220 = vpop.permute.xlu0 %8219
      %8221 = vrot.lane.b32.xlu0 %v7325, 1
      %v8222 = vpop.permute.xlu0 %8221
      %8223 = vrot.lane.b32.xlu0 %v7330, 1
      %v8224 = vpop.permute.xlu0 %8223
      %8225 = vrot.lane.b32.xlu0 %v7316, 1
      %v8226 = vpop.permute.xlu0 %8225
      %8227 = vrot.lane.b32.xlu0 %v7321, 1
      %v8228 = vpop.permute.xlu0 %8227
      %8229 = vrot.lane.b32.xlu0 %v7326, 1
      %v8230 = vpop.permute.xlu0 %8229
      %8231 = vrot.lane.b32.xlu0 %v7331, 1
      %v8232 = vpop.permute.xlu0 %8231
      %8233 = vrot.lane.b32.xlu0 %v7317, 1
      %v8234 = vpop.permute.xlu0 %8233
      %8235 = vrot.lane.b32.xlu0 %v7322, 1
      %v8236 = vpop.permute.xlu0 %8235
      %8237 = vrot.lane.b32.xlu0 %v7327, 1
      %v8238 = vpop.permute.xlu0 %8237
      %8239 = vrot.lane.b32.xlu0 %v7332, 1
      %v8240 = vpop.permute.xlu0 %8239
      %8241 = vrot.lane.b32.xlu0 %v7318, 1
      %v8242 = vpop.permute.xlu0 %8241
      %8243 = vrot.lane.b32.xlu0 %v7323, 1
      %v8244 = vpop.permute.xlu0 %8243
      %8245 = vrot.lane.b32.xlu0 %v7328, 1
      %v8246 = vpop.permute.xlu0 %8245
      %8247 = vrot.lane.b32.xlu0 %v7333, 1
      %v8248 = vpop.permute.xlu0 %8247
      %8249 = vrot.lane.b32.xlu0 %v7319, 1
      %v8250 = vpop.permute.xlu0 %8249
      %8251 = vrot.lane.b32.xlu0 %v7324, 1
      %v8252 = vpop.permute.xlu0 %8251
      %8253 = vrot.lane.b32.xlu0 %v7329, 1
      %v8254 = vpop.permute.xlu0 %8253
      %8255 = vrot.lane.b32.xlu0 %v7334, 1
      %v8256 = vpop.permute.xlu0 %8255
      %v8257 = vsel %vm1490, %v8242, %v8250
      %v8258 = vsel %vm1490, %v8244, %v8252
      %v8259 = vsel %vm1490, %v8246, %v8254
      %v8260 = vsel %vm1490, %v8248, %v8256
      %v8261 = vsel %vm1490, %v8234, %v8242
      %v8262 = vsel %vm1490, %v8236, %v8244
      %v8263 = vsel %vm1490, %v8238, %v8246
      %v8264 = vsel %vm1490, %v8240, %v8248
      %v8265 = vsel %vm1490, %v8226, %v8234
      %v8266 = vsel %vm1490, %v8228, %v8236
      %v8267 = vsel %vm1490, %v8230, %v8238
      %v8268 = vsel %vm1490, %v8232, %v8240
      %v8269 = vsel %vm1490, %v8218, %v8226
      %v8270 = vsel %vm1490, %v8220, %v8228
      %v8271 = vsel %vm1490, %v8222, %v8230
      %v8272 = vsel %vm1490, %v8224, %v8232
      %v8273 = vsel %vm1490, %v8250, %v8218
      %v8274 = vsel %vm1490, %v8252, %v8220
      %v8275 = vsel %vm1490, %v8254, %v8222
      %v8276 = vsel %vm1490, %v8256, %v8224
      %s8277 = scalar_lea.vmem %s12, 72
      %v8278 = vld [vmem:[%s8277] sm:$0xf]
      %v8279 = vld [vmem:[%s8277 + $0x4] sm:$0xf]
      %v8280 = vld [vmem:[%s8277 + $0x8] sm:$0xf]
      %v8281 = vld [vmem:[%s8277 + $0xc] sm:$0xf]
      %v8282 = vld [vmem:[%s8277 + $0x10] sm:$0xf]
      %v8283 = vld [vmem:[%s8277 + $0x14] sm:$0xf]
      %v8284 = vpack.c.bf16 %v8274, %v8273
      %v8285 = vpack.c.bf16 %v8270, %v8269
      %v8286 = vpack.c.bf16 %v8266, %v8265
      %v8287 = vpack.c.bf16 %v8262, %v8261
      %v8288 = vpack.c.bf16 %v8258, %v8257
      %v8289 = vpack.c.bf16 %v8276, %v8275
      %v8290 = vpack.c.bf16 %v8272, %v8271
      %v8291 = vpack.c.bf16 %v8268, %v8267
      %v8292 = vpack.c.bf16 %v8264, %v8263
      %v8293 = vpack.c.bf16 %v8260, %v8259
      %v8300 = vunpack.c.l.b16 %v8278
      %v8301 = vunpack.c.l.b16 %v8279
      %v8302 = vunpack.c.l.b16 %v8280
      %v8303 = vunpack.c.l.b16 %v8281
      %v8304 = vunpack.c.l.b16 %v8282
      %v8305 = vunpack.c.l.b16 %v8283
      %v8306 = vpack.c.b16 %v8301, %v8300
      %v8307 = vpack.c.b16 %v8303, %v8302
      %v8308 = vpack.c.b16 %v8305, %v8304
      %v8310 = vsel %vm7503, %v8306, 0
      %v8313 = vsel %vm7503, %v8307, 0
      %v8316 = vsel %vm7503, %v8308, 0
      %8318 = vmatprep.subr.bf16.mxu0 %v8285
      %8319 = vmatpush1.bf16.msra.mxu0 %v8284
      %8320 = vmatprep.subr.bf16.mxu0 %v8290
      %8321 = vmatpush1.bf16.msra.mxu0 %v8289
      %8322 = vmatprep.subr.bf16.mxu0 0
      %8323 = vmatpush1.bf16.msra.mxu0 0
      %8324 = vmatprep.subr.bf16.mxu0 0
      %8325 = vmatpush1.bf16.msra.mxu0 0
      %8326 = vmatprep.subr.bf16.mxu0 0
      %8327 = vmatpush1.bf16.msra.mxu0 0
      %8328 = vmatprep.subr.bf16.mxu0 0
      %8329 = vmatpush1.bf16.msra.mxu0 0
      %8330 = vmatprep.subr.bf16.mxu0 0
      %8331 = vmatpush1.bf16.msra.mxu0 0
      %8332 = vmatprep.subr.bf16.mxu0 0
      %8333 = vmatpush1.bf16.msra.mxu0 0
      %8334 = vmatprep.subr.bf16.mxu0 0
      %8335 = vmatpush1.bf16.msra.mxu0 0
      %8336 = vmatprep.subr.bf16.mxu0 0
      %8337 = vmatpush1.bf16.msra.mxu0 0
      %8338 = vmatprep.subr.bf16.mxu0 0
      %8339 = vmatpush1.bf16.msra.mxu0 0
      %8340 = vmatprep.subr.bf16.mxu0 0
      %8341 = vmatpush1.bf16.msra.mxu0 0
      %8342 = vmatprep.subr.bf16.mxu0 0
      %8343 = vmatpush1.bf16.msra.mxu0 0
      %8344 = vmatprep.subr.bf16.mxu0 0
      %8345 = vmatpush1.bf16.msra.mxu0 0
      %8346 = vmatprep.subr.bf16.mxu0 0
      %8347 = vmatpush1.bf16.msra.mxu0 0
      %8348 = vmatprep.subr.bf16.mxu0 0
      %8349 = vmatpush1.bf16.msra.mxu0 0
      %8350 = vmatprep.mubr.bf16.mxu0 0
      %8351 = vmatmul.mubr.bf16.gmra.mrb[0].mxu0 %v8310
      %v8352 = vpop.f32.mrb[0].mxu0
      %v8353 = vadd.f32 0.0, %v8352
      %v8354 = vpop.f32.mrb[0].mxu0
      %v8355 = vadd.f32 0.0, %v8354
      %v8356 = vpop.f32.mrb[0].mxu0
      %v8357 = vadd.f32 0.0, %v8356
      %v8358 = vpop.f32.mrb[0].mxu0
      %v8359 = vadd.f32 0.0, %v8358
      %8360 = vmatprep.mubr.bf16.mxu0 0
      %8361 = vmatmul.mubr.bf16.gmra.mrb[0].mxu0 %v8313
      %v8362 = vpop.f32.mrb[0].mxu0
      %v8363 = vadd.f32 0.0, %v8362
      %v8364 = vpop.f32.mrb[0].mxu0
      %v8365 = vadd.f32 0.0, %v8364
      %v8366 = vpop.f32.mrb[0].mxu0
      %v8367 = vadd.f32 0.0, %v8366
      %v8368 = vpop.f32.mrb[0].mxu0
      %v8369 = vadd.f32 0.0, %v8368
      %8370 = vmatprep.mubr.bf16.mxu0 0
      %8371 = vmatmul.mubr.bf16.gmra.mrb[0].mxu0 %v8316
      %v8372 = vpop.f32.mrb[0].mxu0
      %v8373 = vadd.f32 0.0, %v8372
      %v8374 = vpop.f32.mrb[0].mxu0
      %v8375 = vadd.f32 0.0, %v8374
      %v8376 = vpop.f32.mrb[0].mxu0
      %v8377 = vadd.f32 0.0, %v8376
      %v8378 = vpop.f32.mrb[0].mxu0
      %v8379 = vadd.f32 0.0, %v8378
      %8380 = vdwg.mxu0
      %8381 = vmatprep.subr.bf16.mxu0 %v8287
      %8382 = vmatpush1.bf16.msra.mxu0 %v8286
      %8383 = vmatprep.subr.bf16.mxu0 %v8292
      %8384 = vmatpush1.bf16.msra.mxu0 %v8291
      %8385 = vmatprep.subr.bf16.mxu0 0
      %8386 = vmatpush1.bf16.msra.mxu0 0
      %8387 = vmatprep.subr.bf16.mxu0 0
      %8388 = vmatpush1.bf16.msra.mxu0 0
      %8389 = vmatprep.subr.bf16.mxu0 0
      %8390 = vmatpush1.bf16.msra.mxu0 0
      %8391 = vmatprep.subr.bf16.mxu0 0
      %8392 = vmatpush1.bf16.msra.mxu0 0
      %8393 = vmatprep.subr.bf16.mxu0 0
      %8394 = vmatpush1.bf16.msra.mxu0 0
      %8395 = vmatprep.subr.bf16.mxu0 0
      %8396 = vmatpush1.bf16.msra.mxu0 0
      %8397 = vmatprep.subr.bf16.mxu0 0
      %8398 = vmatpush1.bf16.msra.mxu0 0
      %8399 = vmatprep.subr.bf16.mxu0 0
      %8400 = vmatpush1.bf16.msra.mxu0 0
      %8401 = vmatprep.subr.bf16.mxu0 0
      %8402 = vmatpush1.bf16.msra.mxu0 0
      %8403 = vmatprep.subr.bf16.mxu0 0
      %8404 = vmatpush1.bf16.msra.mxu0 0
      %8405 = vmatprep.subr.bf16.mxu0 0
      %8406 = vmatpush1.bf16.msra.mxu0 0
      %8407 = vmatprep.subr.bf16.mxu0 0
      %8408 = vmatpush1.bf16.msra.mxu0 0
      %8409 = vmatprep.subr.bf16.mxu0 0
      %8410 = vmatpush1.bf16.msra.mxu0 0
      %8411 = vmatprep.subr.bf16.mxu0 0
      %8412 = vmatpush1.bf16.msra.mxu0 0
      %8413 = vmatprep.mubr.bf16.mxu0 0
      %8414 = vmatmul.mubr.bf16.gmra.mrb[0].mxu0 %v8310
      %v8415 = vpop.f32.mrb[0].mxu0
      %v8416 = vadd.f32 0.0, %v8415
      %v8417 = vpop.f32.mrb[0].mxu0
      %v8418 = vadd.f32 0.0, %v8417
      %v8419 = vpop.f32.mrb[0].mxu0
      %v8420 = vadd.f32 0.0, %v8419
      %v8421 = vpop.f32.mrb[0].mxu0
      %v8422 = vadd.f32 0.0, %v8421
      %8423 = vmatprep.mubr.bf16.mxu0 0
      %8424 = vmatmul.mubr.bf16.gmra.mrb[0].mxu0 %v8313
      %v8425 = vpop.f32.mrb[0].mxu0
      %v8426 = vadd.f32 0.0, %v8425
      %v8427 = vpop.f32.mrb[0].mxu0
      %v8428 = vadd.f32 0.0, %v8427
      %v8429 = vpop.f32.mrb[0].mxu0
      %v8430 = vadd.f32 0.0, %v8429
      %v8431 = vpop.f32.mrb[0].mxu0
      %v8432 = vadd.f32 0.0, %v8431
      %8433 = vmatprep.mubr.bf16.mxu0 0
      %8434 = vmatmul.mubr.bf16.gmra.mrb[0].mxu0 %v8316
      %v8435 = vpop.f32.mrb[0].mxu0
      %v8436 = vadd.f32 0.0, %v8435
      %v8437 = vpop.f32.mrb[0].mxu0
      %v8438 = vadd.f32 0.0, %v8437
      %v8439 = vpop.f32.mrb[0].mxu0
      %v8440 = vadd.f32 0.0, %v8439
      %v8441 = vpop.f32.mrb[0].mxu0
      %v8442 = vadd.f32 0.0, %v8441
      %8443 = vdwg.mxu0
      %8444 = vmatprep.subr.bf16.mxu0 0
      %8445 = vmatpush1.bf16.msra.mxu0 %v8288
      %8446 = vmatprep.subr.bf16.mxu0 0
      %8447 = vmatpush1.bf16.msra.mxu0 %v8293
      %8448 = vmatprep.subr.bf16.mxu0 0
      %8449 = vmatpush1.bf16.msra.mxu0 0
      %8450 = vmatprep.subr.bf16.mxu0 0
      %8451 = vmatpush1.bf16.msra.mxu0 0
      %8452 = vmatprep.subr.bf16.mxu0 0
      %8453 = vmatpush1.bf16.msra.mxu0 0
      %8454 = vmatprep.subr.bf16.mxu0 0
      %8455 = vmatpush1.bf16.msra.mxu0 0
      %8456 = vmatprep.subr.bf16.mxu0 0
      %8457 = vmatpush1.bf16.msra.mxu0 0
      %8458 = vmatprep.subr.bf16.mxu0 0
      %8459 = vmatpush1.bf16.msra.mxu0 0
      %8460 = vmatprep.subr.bf16.mxu0 0
      %8461 = vmatpush1.bf16.msra.mxu0 0
      %8462 = vmatprep.subr.bf16.mxu0 0
      %8463 = vmatpush1.bf16.msra.mxu0 0
      %8464 = vmatprep.subr.bf16.mxu0 0
      %8465 = vmatpush1.bf16.msra.mxu0 0
      %8466 = vmatprep.subr.bf16.mxu0 0
      %8467 = vmatpush1.bf16.msra.mxu0 0
      %8468 = vmatprep.subr.bf16.mxu0 0
      %8469 = vmatpush1.bf16.msra.mxu0 0
      %8470 = vmatprep.subr.bf16.mxu0 0
      %8471 = vmatpush1.bf16.msra.mxu0 0
      %8472 = vmatprep.subr.bf16.mxu0 0
      %8473 = vmatpush1.bf16.msra.mxu0 0
      %8474 = vmatprep.subr.bf16.mxu0 0
      %8475 = vmatpush1.bf16.msra.mxu0 0
      %8476 = vmatprep.mubr.bf16.mxu0 0
      %8477 = vmatmul.mubr.bf16.gmra.mrb[0].mxu0 %v8310
      %v8478 = vpop.f32.mrb[0].mxu0
      %v8479 = vadd.f32 0.0, %v8478
      %v8480 = vpop.f32.mrb[0].mxu0
      %v8481 = vpop.f32.mrb[0].mxu0
      %v8482 = vadd.f32 0.0, %v8481
      %v8483 = vpop.f32.mrb[0].mxu0
      %8484 = vmatprep.mubr.bf16.mxu0 0
      %8485 = vmatmul.mubr.bf16.gmra.mrb[0].mxu0 %v8313
      %v8486 = vpop.f32.mrb[0].mxu0
      %v8487 = vadd.f32 0.0, %v8486
      %v8488 = vpop.f32.mrb[0].mxu0
      %v8489 = vpop.f32.mrb[0].mxu0
      %v8490 = vadd.f32 0.0, %v8489
      %v8491 = vpop.f32.mrb[0].mxu0
      %8492 = vmatprep.mubr.bf16.mxu0 0
      %8493 = vmatmul.mubr.bf16.gmra.mrb[0].mxu0 %v8316
      %v8494 = vpop.f32.mrb[0].mxu0
      %v8495 = vadd.f32 0.0, %v8494
      %v8496 = vpop.f32.mrb[0].mxu0
      %v8497 = vpop.f32.mrb[0].mxu0
      %v8498 = vadd.f32 0.0, %v8497
      %v8499 = vpop.f32.mrb[0].mxu0
      %8500 = vdwg.mxu0
      %v8501 = vadd.f32 %v8187, %v8353
      %v8502 = vadd.f32 %v8188, %v8355
      %v8503 = vadd.f32 %v8189, %v8416
      %v8504 = vadd.f32 %v8190, %v8418
      %v8505 = vadd.f32 %v8191, %v8479
      %v8506 = vadd.f32 %v8192, %v8357
      %v8507 = vadd.f32 %v8193, %v8359
      %v8508 = vadd.f32 %v8194, %v8420
      %v8509 = vadd.f32 %v8195, %v8422
      %v8510 = vadd.f32 %v8196, %v8482
      %v8511 = vadd.f32 %v8197, %v8363
      %v8512 = vadd.f32 %v8198, %v8365
      %v8513 = vadd.f32 %v8199, %v8426
      %v8514 = vadd.f32 %v8200, %v8428
      %v8515 = vadd.f32 %v8201, %v8487
      %v8516 = vadd.f32 %v8202, %v8367
      %v8517 = vadd.f32 %v8203, %v8369
      %v8518 = vadd.f32 %v8204, %v8430
      %v8519 = vadd.f32 %v8205, %v8432
      %v8520 = vadd.f32 %v8206, %v8490
      %v8521 = vadd.f32 %v8207, %v8373
      %v8522 = vadd.f32 %v8208, %v8375
      %v8523 = vadd.f32 %v8209, %v8436
      %v8524 = vadd.f32 %v8210, %v8438
      %v8525 = vadd.f32 %v8211, %v8495
      %v8526 = vadd.f32 %v8212, %v8377
      %v8527 = vadd.f32 %v8213, %v8379
      %v8528 = vadd.f32 %v8214, %v8440
      %v8529 = vadd.f32 %v8215, %v8442
      %v8530 = vadd.f32 %v8216, %v8498
      %s8531 = scalar_lea.vmem %s12, 96
      %v8532 = vld [vmem:[%s8531] sm:$0xf]
      %v8533 = vld [vmem:[%s8531 + $0x4] sm:$0xf]
      %v8534 = vld [vmem:[%s8531 + $0x8] sm:$0xf]
      %v8535 = vld [vmem:[%s8531 + $0xc] sm:$0xf]
      %v8536 = vld [vmem:[%s8531 + $0x10] sm:$0xf]
      %v8537 = vld [vmem:[%s8531 + $0x14] sm:$0xf]
      %v8538 = vpack.c.bf16 %v7320, %v7315
      %v8539 = vpack.c.bf16 %v7321, %v7316
      %v8540 = vpack.c.bf16 %v7322, %v7317
      %v8541 = vpack.c.bf16 %v7323, %v7318
      %v8542 = vpack.c.bf16 %v7324, %v7319
      %v8543 = vpack.c.bf16 %v7330, %v7325
      %v8544 = vpack.c.bf16 %v7331, %v7326
      %v8545 = vpack.c.bf16 %v7332, %v7327
      %v8546 = vpack.c.bf16 %v7333, %v7328
      %v8547 = vpack.c.bf16 %v7334, %v7329
      %v8554 = vunpack.c.l.b16 %v8532
      %v8555 = vunpack.c.l.b16 %v8533
      %v8556 = vunpack.c.l.b16 %v8534
      %v8557 = vunpack.c.l.b16 %v8535
      %v8558 = vunpack.c.l.b16 %v8536
      %v8559 = vunpack.c.l.b16 %v8537
      %v8560 = vpack.c.b16 %v8555, %v8554
      %v8561 = vpack.c.b16 %v8557, %v8556
      %v8562 = vpack.c.b16 %v8559, %v8558
      %v8564 = vsel %vm7503, %v8560, 0
      %v8567 = vsel %vm7503, %v8561, 0
      %v8570 = vsel %vm7503, %v8562, 0
      %8572 = vmatprep.subr.bf16.mxu0 %v8539
      %8573 = vmatpush1.bf16.msra.mxu0 %v8538
      %8574 = vmatprep.subr.bf16.mxu0 %v8544
      %8575 = vmatpush1.bf16.msra.mxu0 %v8543
      %8576 = vmatprep.subr.bf16.mxu0 0
      %8577 = vmatpush1.bf16.msra.mxu0 0
      %8578 = vmatprep.subr.bf16.mxu0 0
      %8579 = vmatpush1.bf16.msra.mxu0 0
      %8580 = vmatprep.subr.bf16.mxu0 0
      %8581 = vmatpush1.bf16.msra.mxu0 0
      %8582 = vmatprep.subr.bf16.mxu0 0
      %8583 = vmatpush1.bf16.msra.mxu0 0
      %8584 = vmatprep.subr.bf16.mxu0 0
      %8585 = vmatpush1.bf16.msra.mxu0 0
      %8586 = vmatprep.subr.bf16.mxu0 0
      %8587 = vmatpush1.bf16.msra.mxu0 0
      %8588 = vmatprep.subr.bf16.mxu0 0
      %8589 = vmatpush1.bf16.msra.mxu0 0
      %8590 = vmatprep.subr.bf16.mxu0 0
      %8591 = vmatpush1.bf16.msra.mxu0 0
      %8592 = vmatprep.subr.bf16.mxu0 0
      %8593 = vmatpush1.bf16.msra.mxu0 0
      %8594 = vmatprep.subr.bf16.mxu0 0
      %8595 = vmatpush1.bf16.msra.mxu0 0
      %8596 = vmatprep.subr.bf16.mxu0 0
      %8597 = vmatpush1.bf16.msra.mxu0 0
      %8598 = vmatprep.subr.bf16.mxu0 0
      %8599 = vmatpush1.bf16.msra.mxu0 0
      %8600 = vmatprep.subr.bf16.mxu0 0
      %8601 = vmatpush1.bf16.msra.mxu0 0
      %8602 = vmatprep.subr.bf16.mxu0 0
      %8603 = vmatpush1.bf16.msra.mxu0 0
      %8604 = vmatprep.mubr.bf16.mxu0 0
      %8605 = vmatmul.mubr.bf16.gmra.mrb[0].mxu0 %v8564
      %v8606 = vpop.f32.mrb[0].mxu0
      %v8607 = vadd.f32 0.0, %v8606
      %v8608 = vpop.f32.mrb[0].mxu0
      %v8609 = vadd.f32 0.0, %v8608
      %v8610 = vpop.f32.mrb[0].mxu0
      %v8611 = vadd.f32 0.0, %v8610
      %v8612 = vpop.f32.mrb[0].mxu0
      %v8613 = vadd.f32 0.0, %v8612
      %8614 = vmatprep.mubr.bf16.mxu0 0
      %8615 = vmatmul.mubr.bf16.gmra.mrb[0].mxu0 %v8567
      %v8616 = vpop.f32.mrb[0].mxu0
      %v8617 = vadd.f32 0.0, %v8616
      %v8618 = vpop.f32.mrb[0].mxu0
      %v8619 = vadd.f32 0.0, %v8618
      %v8620 = vpop.f32.mrb[0].mxu0
      %v8621 = vadd.f32 0.0, %v8620
      %v8622 = vpop.f32.mrb[0].mxu0
      %v8623 = vadd.f32 0.0, %v8622
      %8624 = vmatprep.mubr.bf16.mxu0 0
      %8625 = vmatmul.mubr.bf16.gmra.mrb[0].mxu0 %v8570
      %v8626 = vpop.f32.mrb[0].mxu0
      %v8627 = vadd.f32 0.0, %v8626
      %v8628 = vpop.f32.mrb[0].mxu0
      %v8629 = vadd.f32 0.0, %v8628
      %v8630 = vpop.f32.mrb[0].mxu0
      %v8631 = vadd.f32 0.0, %v8630
      %v8632 = vpop.f32.mrb[0].mxu0
      %v8633 = vadd.f32 0.0, %v8632
      %8634 = vdwg.mxu0
      %8635 = vmatprep.subr.bf16.mxu0 %v8541
      %8636 = vmatpush1.bf16.msra.mxu0 %v8540
      %8637 = vmatprep.subr.bf16.mxu0 %v8546
      %8638 = vmatpush1.bf16.msra.mxu0 %v8545
      %8639 = vmatprep.subr.bf16.mxu0 0
      %8640 = vmatpush1.bf16.msra.mxu0 0
      %8641 = vmatprep.subr.bf16.mxu0 0
      %8642 = vmatpush1.bf16.msra.mxu0 0
      %8643 = vmatprep.subr.bf16.mxu0 0
      %8644 = vmatpush1.bf16.msra.mxu0 0
      %8645 = vmatprep.subr.bf16.mxu0 0
      %8646 = vmatpush1.bf16.msra.mxu0 0
      %8647 = vmatprep.subr.bf16.mxu0 0
      %8648 = vmatpush1.bf16.msra.mxu0 0
      %8649 = vmatprep.subr.bf16.mxu0 0
      %8650 = vmatpush1.bf16.msra.mxu0 0
      %8651 = vmatprep.subr.bf16.mxu0 0
      %8652 = vmatpush1.bf16.msra.mxu0 0
      %8653 = vmatprep.subr.bf16.mxu0 0
      %8654 = vmatpush1.bf16.msra.mxu0 0
      %8655 = vmatprep.subr.bf16.mxu0 0
      %8656 = vmatpush1.bf16.msra.mxu0 0
      %8657 = vmatprep.subr.bf16.mxu0 0
      %8658 = vmatpush1.bf16.msra.mxu0 0
      %8659 = vmatprep.subr.bf16.mxu0 0
      %8660 = vmatpush1.bf16.msra.mxu0 0
      %8661 = vmatprep.subr.bf16.mxu0 0
      %8662 = vmatpush1.bf16.msra.mxu0 0
      %8663 = vmatprep.subr.bf16.mxu0 0
      %8664 = vmatpush1.bf16.msra.mxu0 0
      %8665 = vmatprep.subr.bf16.mxu0 0
      %8666 = vmatpush1.bf16.msra.mxu0 0
      %8667 = vmatprep.mubr.bf16.mxu0 0
      %8668 = vmatmul.mubr.bf16.gmra.mrb[0].mxu0 %v8564
      %v8669 = vpop.f32.mrb[0].mxu0
      %v8670 = vadd.f32 0.0, %v8669
      %v8671 = vpop.f32.mrb[0].mxu0
      %v8672 = vadd.f32 0.0, %v8671
      %v8673 = vpop.f32.mrb[0].mxu0
      %v8674 = vadd.f32 0.0, %v8673
      %v8675 = vpop.f32.mrb[0].mxu0
      %v8676 = vadd.f32 0.0, %v8675
      %8677 = vmatprep.mubr.bf16.mxu0 0
      %8678 = vmatmul.mubr.bf16.gmra.mrb[0].mxu0 %v8567
      %v8679 = vpop.f32.mrb[0].mxu0
      %v8680 = vadd.f32 0.0, %v8679
      %v8681 = vpop.f32.mrb[0].mxu0
      %v8682 = vadd.f32 0.0, %v8681
      %v8683 = vpop.f32.mrb[0].mxu0
      %v8684 = vadd.f32 0.0, %v8683
      %v8685 = vpop.f32.mrb[0].mxu0
      %v8686 = vadd.f32 0.0, %v8685
      %8687 = vmatprep.mubr.bf16.mxu0 0
      %8688 = vmatmul.mubr.bf16.gmra.mrb[0].mxu0 %v8570
      %v8689 = vpop.f32.mrb[0].mxu0
      %v8690 = vadd.f32 0.0, %v8689
      %v8691 = vpop.f32.mrb[0].mxu0
      %v8692 = vadd.f32 0.0, %v8691
      %v8693 = vpop.f32.mrb[0].mxu0
      %v8694 = vadd.f32 0.0, %v8693
      %v8695 = vpop.f32.mrb[0].mxu0
      %v8696 = vadd.f32 0.0, %v8695
      %8697 = vdwg.mxu0
      %8698 = vmatprep.subr.bf16.mxu0 0
      %8699 = vmatpush1.bf16.msra.mxu0 %v8542
      %8700 = vmatprep.subr.bf16.mxu0 0
      %8701 = vmatpush1.bf16.msra.mxu0 %v8547
      %8702 = vmatprep.subr.bf16.mxu0 0
      %8703 = vmatpush1.bf16.msra.mxu0 0
      %8704 = vmatprep.subr.bf16.mxu0 0
      %8705 = vmatpush1.bf16.msra.mxu0 0
      %8706 = vmatprep.subr.bf16.mxu0 0
      %8707 = vmatpush1.bf16.msra.mxu0 0
      %8708 = vmatprep.subr.bf16.mxu0 0
      %8709 = vmatpush1.bf16.msra.mxu0 0
      %8710 = vmatprep.subr.bf16.mxu0 0
      %8711 = vmatpush1.bf16.msra.mxu0 0
      %8712 = vmatprep.subr.bf16.mxu0 0
      %8713 = vmatpush1.bf16.msra.mxu0 0
      %8714 = vmatprep.subr.bf16.mxu0 0
      %8715 = vmatpush1.bf16.msra.mxu0 0
      %8716 = vmatprep.subr.bf16.mxu0 0
      %8717 = vmatpush1.bf16.msra.mxu0 0
      %8718 = vmatprep.subr.bf16.mxu0 0
      %8719 = vmatpush1.bf16.msra.mxu0 0
      %8720 = vmatprep.subr.bf16.mxu0 0
      %8721 = vmatpush1.bf16.msra.mxu0 0
      %8722 = vmatprep.subr.bf16.mxu0 0
      %8723 = vmatpush1.bf16.msra.mxu0 0
      %8724 = vmatprep.subr.bf16.mxu0 0
      %8725 = vmatpush1.bf16.msra.mxu0 0
      %8726 = vmatprep.subr.bf16.mxu0 0
      %8727 = vmatpush1.bf16.msra.mxu0 0
      %8728 = vmatprep.subr.bf16.mxu0 0
      %8729 = vmatpush1.bf16.msra.mxu0 0
      %8730 = vmatprep.mubr.bf16.mxu0 0
      %8731 = vmatmul.mubr.bf16.gmra.mrb[0].mxu0 %v8564
      %v8732 = vpop.f32.mrb[0].mxu0
      %v8733 = vadd.f32 0.0, %v8732
      %v8734 = vpop.f32.mrb[0].mxu0
      %v8735 = vpop.f32.mrb[0].mxu0
      %v8736 = vadd.f32 0.0, %v8735
      %v8737 = vpop.f32.mrb[0].mxu0
      %8738 = vmatprep.mubr.bf16.mxu0 0
      %8739 = vmatmul.mubr.bf16.gmra.mrb[0].mxu0 %v8567
      %v8740 = vpop.f32.mrb[0].mxu0
      %v8741 = vadd.f32 0.0, %v8740
      %v8742 = vpop.f32.mrb[0].mxu0
      %v8743 = vpop.f32.mrb[0].mxu0
      %v8744 = vadd.f32 0.0, %v8743
      %v8745 = vpop.f32.mrb[0].mxu0
      %8746 = vmatprep.mubr.bf16.mxu0 0
      %8747 = vmatmul.mubr.bf16.gmra.mrb[0].mxu0 %v8570
      %v8748 = vpop.f32.mrb[0].mxu0
      %v8749 = vadd.f32 0.0, %v8748
      %v8750 = vpop.f32.mrb[0].mxu0
      %v8751 = vpop.f32.mrb[0].mxu0
      %v8752 = vadd.f32 0.0, %v8751
      %v8753 = vpop.f32.mrb[0].mxu0
      %8754 = vdwg.mxu0
      %v8755 = vadd.f32 %v8501, %v8607
      %v8756 = vadd.f32 %v8502, %v8609
      %v8757 = vadd.f32 %v8503, %v8670
      %v8758 = vadd.f32 %v8504, %v8672
      %v8759 = vadd.f32 %v8505, %v8733
      %v8760 = vadd.f32 %v8506, %v8611
      %v8761 = vadd.f32 %v8507, %v8613
      %v8762 = vadd.f32 %v8508, %v8674
      %v8763 = vadd.f32 %v8509, %v8676
      %v8764 = vadd.f32 %v8510, %v8736
      %v8765 = vadd.f32 %v8511, %v8617
      %v8766 = vadd.f32 %v8512, %v8619
      %v8767 = vadd.f32 %v8513, %v8680
      %v8768 = vadd.f32 %v8514, %v8682
      %v8769 = vadd.f32 %v8515, %v8741
      %v8770 = vadd.f32 %v8516, %v8621
      %v8771 = vadd.f32 %v8517, %v8623
      %v8772 = vadd.f32 %v8518, %v8684
      %v8773 = vadd.f32 %v8519, %v8686
      %v8774 = vadd.f32 %v8520, %v8744
      %v8775 = vadd.f32 %v8521, %v8627
      %v8776 = vadd.f32 %v8522, %v8629
      %v8777 = vadd.f32 %v8523, %v8690
      %v8778 = vadd.f32 %v8524, %v8692
      %v8779 = vadd.f32 %v8525, %v8749
      %v8780 = vadd.f32 %v8526, %v8631
      %v8781 = vadd.f32 %v8527, %v8633
      %v8782 = vadd.f32 %v8528, %v8694
      %v8783 = vadd.f32 %v8529, %v8696
      %v8784 = vadd.f32 %v8530, %v8752
      %8785 = vrot.lane.b32.xlu0 %v7315, 127
      %v8786 = vpop.permute.xlu0 %8785
      %8787 = vrot.lane.b32.xlu0 %v7320, 127
      %v8788 = vpop.permute.xlu0 %8787
      %8789 = vrot.lane.b32.xlu0 %v7325, 127
      %v8790 = vpop.permute.xlu0 %8789
      %8791 = vrot.lane.b32.xlu0 %v7330, 127
      %v8792 = vpop.permute.xlu0 %8791
      %8793 = vrot.lane.b32.xlu0 %v7316, 127
      %v8794 = vpop.permute.xlu0 %8793
      %8795 = vrot.lane.b32.xlu0 %v7321, 127
      %v8796 = vpop.permute.xlu0 %8795
      %8797 = vrot.lane.b32.xlu0 %v7326, 127
      %v8798 = vpop.permute.xlu0 %8797
      %8799 = vrot.lane.b32.xlu0 %v7331, 127
      %v8800 = vpop.permute.xlu0 %8799
      %8801 = vrot.lane.b32.xlu0 %v7317, 127
      %v8802 = vpop.permute.xlu0 %8801
      %8803 = vrot.lane.b32.xlu0 %v7322, 127
      %v8804 = vpop.permute.xlu0 %8803
      %8805 = vrot.lane.b32.xlu0 %v7327, 127
      %v8806 = vpop.permute.xlu0 %8805
      %8807 = vrot.lane.b32.xlu0 %v7332, 127
      %v8808 = vpop.permute.xlu0 %8807
      %8809 = vrot.lane.b32.xlu0 %v7318, 127
      %v8810 = vpop.permute.xlu0 %8809
      %8811 = vrot.lane.b32.xlu0 %v7323, 127
      %v8812 = vpop.permute.xlu0 %8811
      %8813 = vrot.lane.b32.xlu0 %v7328, 127
      %v8814 = vpop.permute.xlu0 %8813
      %8815 = vrot.lane.b32.xlu0 %v7333, 127
      %v8816 = vpop.permute.xlu0 %8815
      %8817 = vrot.lane.b32.xlu0 %v7319, 127
      %v8818 = vpop.permute.xlu0 %8817
      %8819 = vrot.lane.b32.xlu0 %v7324, 127
      %v8820 = vpop.permute.xlu0 %8819
      %8821 = vrot.lane.b32.xlu0 %v7329, 127
      %v8822 = vpop.permute.xlu0 %8821
      %8823 = vrot.lane.b32.xlu0 %v7334, 127
      %v8824 = vpop.permute.xlu0 %8823
      %v8825 = vsel %vm2130, %v8810, %v8818
      %v8826 = vsel %vm2130, %v8812, %v8820
      %v8827 = vsel %vm2130, %v8814, %v8822
      %v8828 = vsel %vm2130, %v8816, %v8824
      %v8829 = vsel %vm2130, %v8802, %v8810
      %v8830 = vsel %vm2130, %v8804, %v8812
      %v8831 = vsel %vm2130, %v8806, %v8814
      %v8832 = vsel %vm2130, %v8808, %v8816
      %v8833 = vsel %vm2130, %v8794, %v8802
      %v8834 = vsel %vm2130, %v8796, %v8804
      %v8835 = vsel %vm2130, %v8798, %v8806
      %v8836 = vsel %vm2130, %v8800, %v8808
      %v8837 = vsel %vm2130, %v8786, %v8794
      %v8838 = vsel %vm2130, %v8788, %v8796
      %v8839 = vsel %vm2130, %v8790, %v8798
      %v8840 = vsel %vm2130, %v8792, %v8800
      %v8841 = vsel %vm2130, %v8818, %v8786
      %v8842 = vsel %vm2130, %v8820, %v8788
      %v8843 = vsel %vm2130, %v8822, %v8790
      %v8844 = vsel %vm2130, %v8824, %v8792
      %s8845 = scalar_lea.vmem %s12, 120
      %v8846 = vld [vmem:[%s8845] sm:$0xf]
      %v8847 = vld [vmem:[%s8845 + $0x4] sm:$0xf]
      %v8848 = vld [vmem:[%s8845 + $0x8] sm:$0xf]
      %v8849 = vld [vmem:[%s8845 + $0xc] sm:$0xf]
      %v8850 = vld [vmem:[%s8845 + $0x10] sm:$0xf]
      %v8851 = vld [vmem:[%s8845 + $0x14] sm:$0xf]
      %v8852 = vpack.c.bf16 %v8838, %v8837
      %v8853 = vpack.c.bf16 %v8834, %v8833
      %v8854 = vpack.c.bf16 %v8830, %v8829
      %v8855 = vpack.c.bf16 %v8826, %v8825
      %v8856 = vpack.c.bf16 %v8842, %v8841
      %v8857 = vpack.c.bf16 %v8840, %v8839
      %v8858 = vpack.c.bf16 %v8836, %v8835
      %v8859 = vpack.c.bf16 %v8832, %v8831
      %v8860 = vpack.c.bf16 %v8828, %v8827
      %v8861 = vpack.c.bf16 %v8844, %v8843
      %v8868 = vunpack.c.l.b16 %v8846
      %v8869 = vunpack.c.l.b16 %v8847
      %v8870 = vunpack.c.l.b16 %v8848
      %v8871 = vunpack.c.l.b16 %v8849
      %v8872 = vunpack.c.l.b16 %v8850
      %v8873 = vunpack.c.l.b16 %v8851
      %v8874 = vpack.c.b16 %v8869, %v8868
      %v8875 = vpack.c.b16 %v8871, %v8870
      %v8876 = vpack.c.b16 %v8873, %v8872
      %v8878 = vsel %vm7503, %v8874, 0
      %v8881 = vsel %vm7503, %v8875, 0
      %v8884 = vsel %vm7503, %v8876, 0
      %8886 = vmatprep.subr.bf16.mxu0 %v8853
      %8887 = vmatpush1.bf16.msra.mxu0 %v8852
      %8888 = vmatprep.subr.bf16.mxu0 %v8858
      %8889 = vmatpush1.bf16.msra.mxu0 %v8857
      %8890 = vmatprep.subr.bf16.mxu0 0
      %8891 = vmatpush1.bf16.msra.mxu0 0
      %8892 = vmatprep.subr.bf16.mxu0 0
      %8893 = vmatpush1.bf16.msra.mxu0 0
      %8894 = vmatprep.subr.bf16.mxu0 0
      %8895 = vmatpush1.bf16.msra.mxu0 0
      %8896 = vmatprep.subr.bf16.mxu0 0
      %8897 = vmatpush1.bf16.msra.mxu0 0
      %8898 = vmatprep.subr.bf16.mxu0 0
      %8899 = vmatpush1.bf16.msra.mxu0 0
      %8900 = vmatprep.subr.bf16.mxu0 0
      %8901 = vmatpush1.bf16.msra.mxu0 0
      %8902 = vmatprep.subr.bf16.mxu0 0
      %8903 = vmatpush1.bf16.msra.mxu0 0
      %8904 = vmatprep.subr.bf16.mxu0 0
      %8905 = vmatpush1.bf16.msra.mxu0 0
      %8906 = vmatprep.subr.bf16.mxu0 0
      %8907 = vmatpush1.bf16.msra.mxu0 0
      %8908 = vmatprep.subr.bf16.mxu0 0
      %8909 = vmatpush1.bf16.msra.mxu0 0
      %8910 = vmatprep.subr.bf16.mxu0 0
      %8911 = vmatpush1.bf16.msra.mxu0 0
      %8912 = vmatprep.subr.bf16.mxu0 0
      %8913 = vmatpush1.bf16.msra.mxu0 0
      %8914 = vmatprep.subr.bf16.mxu0 0
      %8915 = vmatpush1.bf16.msra.mxu0 0
      %8916 = vmatprep.subr.bf16.mxu0 0
      %8917 = vmatpush1.bf16.msra.mxu0 0
      %8918 = vmatprep.mubr.bf16.mxu0 0
      %8919 = vmatmul.mubr.bf16.gmra.mrb[0].mxu0 %v8878
      %v8920 = vpop.f32.mrb[0].mxu0
      %v8921 = vadd.f32 0.0, %v8920
      %v8922 = vpop.f32.mrb[0].mxu0
      %v8923 = vadd.f32 0.0, %v8922
      %v8924 = vpop.f32.mrb[0].mxu0
      %v8925 = vadd.f32 0.0, %v8924
      %v8926 = vpop.f32.mrb[0].mxu0
      %v8927 = vadd.f32 0.0, %v8926
      %8928 = vmatprep.mubr.bf16.mxu0 0
      %8929 = vmatmul.mubr.bf16.gmra.mrb[0].mxu0 %v8881
      %v8930 = vpop.f32.mrb[0].mxu0
      %v8931 = vadd.f32 0.0, %v8930
      %v8932 = vpop.f32.mrb[0].mxu0
      %v8933 = vadd.f32 0.0, %v8932
      %v8934 = vpop.f32.mrb[0].mxu0
      %v8935 = vadd.f32 0.0, %v8934
      %v8936 = vpop.f32.mrb[0].mxu0
      %v8937 = vadd.f32 0.0, %v8936
      %8938 = vmatprep.mubr.bf16.mxu0 0
      %8939 = vmatmul.mubr.bf16.gmra.mrb[0].mxu0 %v8884
      %v8940 = vpop.f32.mrb[0].mxu0
      %v8941 = vadd.f32 0.0, %v8940
      %v8942 = vpop.f32.mrb[0].mxu0
      %v8943 = vadd.f32 0.0, %v8942
      %v8944 = vpop.f32.mrb[0].mxu0
      %v8945 = vadd.f32 0.0, %v8944
      %v8946 = vpop.f32.mrb[0].mxu0
      %v8947 = vadd.f32 0.0, %v8946
      %8948 = vdwg.mxu0
      %8949 = vmatprep.subr.bf16.mxu0 %v8855
      %8950 = vmatpush1.bf16.msra.mxu0 %v8854
      %8951 = vmatprep.subr.bf16.mxu0 %v8860
      %8952 = vmatpush1.bf16.msra.mxu0 %v8859
      %8953 = vmatprep.subr.bf16.mxu0 0
      %8954 = vmatpush1.bf16.msra.mxu0 0
      %8955 = vmatprep.subr.bf16.mxu0 0
      %8956 = vmatpush1.bf16.msra.mxu0 0
      %8957 = vmatprep.subr.bf16.mxu0 0
      %8958 = vmatpush1.bf16.msra.mxu0 0
      %8959 = vmatprep.subr.bf16.mxu0 0
      %8960 = vmatpush1.bf16.msra.mxu0 0
      %8961 = vmatprep.subr.bf16.mxu0 0
      %8962 = vmatpush1.bf16.msra.mxu0 0
      %8963 = vmatprep.subr.bf16.mxu0 0
      %8964 = vmatpush1.bf16.msra.mxu0 0
      %8965 = vmatprep.subr.bf16.mxu0 0
      %8966 = vmatpush1.bf16.msra.mxu0 0
      %8967 = vmatprep.subr.bf16.mxu0 0
      %8968 = vmatpush1.bf16.msra.mxu0 0
      %8969 = vmatprep.subr.bf16.mxu0 0
      %8970 = vmatpush1.bf16.msra.mxu0 0
      %8971 = vmatprep.subr.bf16.mxu0 0
      %8972 = vmatpush1.bf16.msra.mxu0 0
      %8973 = vmatprep.subr.bf16.mxu0 0
      %8974 = vmatpush1.bf16.msra.mxu0 0
      %8975 = vmatprep.subr.bf16.mxu0 0
      %8976 = vmatpush1.bf16.msra.mxu0 0
      %8977 = vmatprep.subr.bf16.mxu0 0
      %8978 = vmatpush1.bf16.msra.mxu0 0
      %8979 = vmatprep.subr.bf16.mxu0 0
      %8980 = vmatpush1.bf16.msra.mxu0 0
      %8981 = vmatprep.mubr.bf16.mxu0 0
      %8982 = vmatmul.mubr.bf16.gmra.mrb[0].mxu0 %v8878
      %v8983 = vpop.f32.mrb[0].mxu0
      %v8984 = vadd.f32 0.0, %v8983
      %v8985 = vpop.f32.mrb[0].mxu0
      %v8986 = vadd.f32 0.0, %v8985
      %v8987 = vpop.f32.mrb[0].mxu0
      %v8988 = vadd.f32 0.0, %v8987
      %v8989 = vpop.f32.mrb[0].mxu0
      %v8990 = vadd.f32 0.0, %v8989
      %8991 = vmatprep.mubr.bf16.mxu0 0
      %8992 = vmatmul.mubr.bf16.gmra.mrb[0].mxu0 %v8881
      %v8993 = vpop.f32.mrb[0].mxu0
      %v8994 = vadd.f32 0.0, %v8993
      %v8995 = vpop.f32.mrb[0].mxu0
      %v8996 = vadd.f32 0.0, %v8995
      %v8997 = vpop.f32.mrb[0].mxu0
      %v8998 = vadd.f32 0.0, %v8997
      %v8999 = vpop.f32.mrb[0].mxu0
      %v9000 = vadd.f32 0.0, %v8999
      %9001 = vmatprep.mubr.bf16.mxu0 0
      %9002 = vmatmul.mubr.bf16.gmra.mrb[0].mxu0 %v8884
      %v9003 = vpop.f32.mrb[0].mxu0
      %v9004 = vadd.f32 0.0, %v9003
      %v9005 = vpop.f32.mrb[0].mxu0
      %v9006 = vadd.f32 0.0, %v9005
      %v9007 = vpop.f32.mrb[0].mxu0
      %v9008 = vadd.f32 0.0, %v9007
      %v9009 = vpop.f32.mrb[0].mxu0
      %v9010 = vadd.f32 0.0, %v9009
      %9011 = vdwg.mxu0
      %9012 = vmatprep.subr.bf16.mxu0 0
      %9013 = vmatpush1.bf16.msra.mxu0 %v8856
      %9014 = vmatprep.subr.bf16.mxu0 0
      %9015 = vmatpush1.bf16.msra.mxu0 %v8861
      %9016 = vmatprep.subr.bf16.mxu0 0
      %9017 = vmatpush1.bf16.msra.mxu0 0
      %9018 = vmatprep.subr.bf16.mxu0 0
      %9019 = vmatpush1.bf16.msra.mxu0 0
      %9020 = vmatprep.subr.bf16.mxu0 0
      %9021 = vmatpush1.bf16.msra.mxu0 0
      %9022 = vmatprep.subr.bf16.mxu0 0
      %9023 = vmatpush1.bf16.msra.mxu0 0
      %9024 = vmatprep.subr.bf16.mxu0 0
      %9025 = vmatpush1.bf16.msra.mxu0 0
      %9026 = vmatprep.subr.bf16.mxu0 0
      %9027 = vmatpush1.bf16.msra.mxu0 0
      %9028 = vmatprep.subr.bf16.mxu0 0
      %9029 = vmatpush1.bf16.msra.mxu0 0
      %9030 = vmatprep.subr.bf16.mxu0 0
      %9031 = vmatpush1.bf16.msra.mxu0 0
      %9032 = vmatprep.subr.bf16.mxu0 0
      %9033 = vmatpush1.bf16.msra.mxu0 0
      %9034 = vmatprep.subr.bf16.mxu0 0
      %9035 = vmatpush1.bf16.msra.mxu0 0
      %9036 = vmatprep.subr.bf16.mxu0 0
      %9037 = vmatpush1.bf16.msra.mxu0 0
      %9038 = vmatprep.subr.bf16.mxu0 0
      %9039 = vmatpush1.bf16.msra.mxu0 0
      %9040 = vmatprep.subr.bf16.mxu0 0
      %9041 = vmatpush1.bf16.msra.mxu0 0
      %9042 = vmatprep.subr.bf16.mxu0 0
      %9043 = vmatpush1.bf16.msra.mxu0 0
      %9044 = vmatprep.mubr.bf16.mxu0 0
      %9045 = vmatmul.mubr.bf16.gmra.mrb[0].mxu0 %v8878
      %v9046 = vpop.f32.mrb[0].mxu0
      %v9047 = vadd.f32 0.0, %v9046
      %v9048 = vpop.f32.mrb[0].mxu0
      %v9049 = vpop.f32.mrb[0].mxu0
      %v9050 = vadd.f32 0.0, %v9049
      %v9051 = vpop.f32.mrb[0].mxu0
      %9052 = vmatprep.mubr.bf16.mxu0 0
      %9053 = vmatmul.mubr.bf16.gmra.mrb[0].mxu0 %v8881
      %v9054 = vpop.f32.mrb[0].mxu0
      %v9055 = vadd.f32 0.0, %v9054
      %v9056 = vpop.f32.mrb[0].mxu0
      %v9057 = vpop.f32.mrb[0].mxu0
      %v9058 = vadd.f32 0.0, %v9057
      %v9059 = vpop.f32.mrb[0].mxu0
      %9060 = vmatprep.mubr.bf16.mxu0 0
      %9061 = vmatmul.mubr.bf16.gmra.mrb[0].mxu0 %v8884
      %v9062 = vpop.f32.mrb[0].mxu0
      %v9063 = vadd.f32 0.0, %v9062
      %v9064 = vpop.f32.mrb[0].mxu0
      %v9065 = vpop.f32.mrb[0].mxu0
      %v9066 = vadd.f32 0.0, %v9065
      %v9067 = vpop.f32.mrb[0].mxu0
      %9068 = vdwg.mxu0
      %v9069 = vadd.f32 %v8755, %v8921
      %v9070 = vadd.f32 %v8756, %v8923
      %v9071 = vadd.f32 %v8757, %v8984
      %v9072 = vadd.f32 %v8758, %v8986
      %v9073 = vadd.f32 %v8759, %v9047
      %v9074 = vadd.f32 %v8760, %v8925
      %v9075 = vadd.f32 %v8761, %v8927
      %v9076 = vadd.f32 %v8762, %v8988
      %v9077 = vadd.f32 %v8763, %v8990
      %v9078 = vadd.f32 %v8764, %v9050
      %v9079 = vadd.f32 %v8765, %v8931
      %v9080 = vadd.f32 %v8766, %v8933
      %v9081 = vadd.f32 %v8767, %v8994
      %v9082 = vadd.f32 %v8768, %v8996
      %v9083 = vadd.f32 %v8769, %v9055
      %v9084 = vadd.f32 %v8770, %v8935
      %v9085 = vadd.f32 %v8771, %v8937
      %v9086 = vadd.f32 %v8772, %v8998
      %v9087 = vadd.f32 %v8773, %v9000
      %v9088 = vadd.f32 %v8774, %v9058
      %v9089 = vadd.f32 %v8775, %v8941
      %v9090 = vadd.f32 %v8776, %v8943
      %v9091 = vadd.f32 %v8777, %v9004
      %v9092 = vadd.f32 %v8778, %v9006
      %v9093 = vadd.f32 %v8779, %v9063
      %v9094 = vadd.f32 %v8780, %v8945
      %v9095 = vadd.f32 %v8781, %v8947
      %v9096 = vadd.f32 %v8782, %v9008
      %v9097 = vadd.f32 %v8783, %v9010
      %v9098 = vadd.f32 %v8784, %v9066
      %9099 = vrot.lane.b32.xlu0 %v7315, 97
      %v9100 = vpop.permute.xlu0 %9099
      %9101 = vrot.lane.b32.xlu0 %v7320, 97
      %v9102 = vpop.permute.xlu0 %9101
      %9103 = vrot.lane.b32.xlu0 %v7325, 97
      %v9104 = vpop.permute.xlu0 %9103
      %9105 = vrot.lane.b32.xlu0 %v7330, 97
      %v9106 = vpop.permute.xlu0 %9105
      %9107 = vrot.lane.b32.xlu0 %v7316, 97
      %v9108 = vpop.permute.xlu0 %9107
      %9109 = vrot.lane.b32.xlu0 %v7321, 97
      %v9110 = vpop.permute.xlu0 %9109
      %9111 = vrot.lane.b32.xlu0 %v7326, 97
      %v9112 = vpop.permute.xlu0 %9111
      %9113 = vrot.lane.b32.xlu0 %v7331, 97
      %v9114 = vpop.permute.xlu0 %9113
      %9115 = vrot.lane.b32.xlu0 %v7317, 97
      %v9116 = vpop.permute.xlu0 %9115
      %9117 = vrot.lane.b32.xlu0 %v7322, 97
      %v9118 = vpop.permute.xlu0 %9117
      %9119 = vrot.lane.b32.xlu0 %v7327, 97
      %v9120 = vpop.permute.xlu0 %9119
      %9121 = vrot.lane.b32.xlu0 %v7332, 97
      %v9122 = vpop.permute.xlu0 %9121
      %9123 = vrot.lane.b32.xlu0 %v7318, 97
      %v9124 = vpop.permute.xlu0 %9123
      %9125 = vrot.lane.b32.xlu0 %v7323, 97
      %v9126 = vpop.permute.xlu0 %9125
      %9127 = vrot.lane.b32.xlu0 %v7328, 97
      %v9128 = vpop.permute.xlu0 %9127
      %9129 = vrot.lane.b32.xlu0 %v7333, 97
      %v9130 = vpop.permute.xlu0 %9129
      %9131 = vrot.lane.b32.xlu0 %v7319, 97
      %v9132 = vpop.permute.xlu0 %9131
      %9133 = vrot.lane.b32.xlu0 %v7324, 97
      %v9134 = vpop.permute.xlu0 %9133
      %9135 = vrot.lane.b32.xlu0 %v7329, 97
      %v9136 = vpop.permute.xlu0 %9135
      %9137 = vrot.lane.b32.xlu0 %v7334, 97
      %v9138 = vpop.permute.xlu0 %9137
      %v9139 = vsel %vm2458, %v9124, %v9132
      %v9140 = vsel %vm2458, %v9126, %v9134
      %v9141 = vsel %vm2458, %v9128, %v9136
      %v9142 = vsel %vm2458, %v9130, %v9138
      %v9143 = vsel %vm2458, %v9116, %v9124
      %v9144 = vsel %vm2458, %v9118, %v9126
      %v9145 = vsel %vm2458, %v9120, %v9128
      %v9146 = vsel %vm2458, %v9122, %v9130
      %v9147 = vsel %vm2458, %v9108, %v9116
      %v9148 = vsel %vm2458, %v9110, %v9118
      %v9149 = vsel %vm2458, %v9112, %v9120
      %v9150 = vsel %vm2458, %v9114, %v9122
      %v9151 = vsel %vm2458, %v9100, %v9108
      %v9152 = vsel %vm2458, %v9102, %v9110
      %v9153 = vsel %vm2458, %v9104, %v9112
      %v9154 = vsel %vm2458, %v9106, %v9114
      %v9155 = vsel %vm2458, %v9132, %v9100
      %v9156 = vsel %vm2458, %v9134, %v9102
      %v9157 = vsel %vm2458, %v9136, %v9104
      %v9158 = vsel %vm2458, %v9138, %v9106
      %s9159 = scalar_lea.vmem %s12, 144
      %v9160 = vld [vmem:[%s9159] sm:$0xf]
      %v9161 = vld [vmem:[%s9159 + $0x4] sm:$0xf]
      %v9162 = vld [vmem:[%s9159 + $0x8] sm:$0xf]
      %v9163 = vld [vmem:[%s9159 + $0xc] sm:$0xf]
      %v9164 = vld [vmem:[%s9159 + $0x10] sm:$0xf]
      %v9165 = vld [vmem:[%s9159 + $0x14] sm:$0xf]
      %v9166 = vpack.c.bf16 %v9152, %v9151
      %v9167 = vpack.c.bf16 %v9148, %v9147
      %v9168 = vpack.c.bf16 %v9144, %v9143
      %v9169 = vpack.c.bf16 %v9140, %v9139
      %v9170 = vpack.c.bf16 %v9156, %v9155
      %v9171 = vpack.c.bf16 %v9154, %v9153
      %v9172 = vpack.c.bf16 %v9150, %v9149
      %v9173 = vpack.c.bf16 %v9146, %v9145
      %v9174 = vpack.c.bf16 %v9142, %v9141
      %v9175 = vpack.c.bf16 %v9158, %v9157
      %v9182 = vunpack.c.l.b16 %v9160
      %v9183 = vunpack.c.l.b16 %v9161
      %v9184 = vunpack.c.l.b16 %v9162
      %v9185 = vunpack.c.l.b16 %v9163
      %v9186 = vunpack.c.l.b16 %v9164
      %v9187 = vunpack.c.l.b16 %v9165
      %v9188 = vpack.c.b16 %v9183, %v9182
      %v9189 = vpack.c.b16 %v9185, %v9184
      %v9190 = vpack.c.b16 %v9187, %v9186
      %v9192 = vsel %vm7503, %v9188, 0
      %v9195 = vsel %vm7503, %v9189, 0
      %v9198 = vsel %vm7503, %v9190, 0
      %9200 = vmatprep.subr.bf16.mxu0 %v9167
      %9201 = vmatpush1.bf16.msra.mxu0 %v9166
      %9202 = vmatprep.subr.bf16.mxu0 %v9172
      %9203 = vmatpush1.bf16.msra.mxu0 %v9171
      %9204 = vmatprep.subr.bf16.mxu0 0
      %9205 = vmatpush1.bf16.msra.mxu0 0
      %9206 = vmatprep.subr.bf16.mxu0 0
      %9207 = vmatpush1.bf16.msra.mxu0 0
      %9208 = vmatprep.subr.bf16.mxu0 0
      %9209 = vmatpush1.bf16.msra.mxu0 0
      %9210 = vmatprep.subr.bf16.mxu0 0
      %9211 = vmatpush1.bf16.msra.mxu0 0
      %9212 = vmatprep.subr.bf16.mxu0 0
      %9213 = vmatpush1.bf16.msra.mxu0 0
      %9214 = vmatprep.subr.bf16.mxu0 0
      %9215 = vmatpush1.bf16.msra.mxu0 0
      %9216 = vmatprep.subr.bf16.mxu0 0
      %9217 = vmatpush1.bf16.msra.mxu0 0
      %9218 = vmatprep.subr.bf16.mxu0 0
      %9219 = vmatpush1.bf16.msra.mxu0 0
      %9220 = vmatprep.subr.bf16.mxu0 0
      %9221 = vmatpush1.bf16.msra.mxu0 0
      %9222 = vmatprep.subr.bf16.mxu0 0
      %9223 = vmatpush1.bf16.msra.mxu0 0
      %9224 = vmatprep.subr.bf16.mxu0 0
      %9225 = vmatpush1.bf16.msra.mxu0 0
      %9226 = vmatprep.subr.bf16.mxu0 0
      %9227 = vmatpush1.bf16.msra.mxu0 0
      %9228 = vmatprep.subr.bf16.mxu0 0
      %9229 = vmatpush1.bf16.msra.mxu0 0
      %9230 = vmatprep.subr.bf16.mxu0 0
      %9231 = vmatpush1.bf16.msra.mxu0 0
      %9232 = vmatprep.mubr.bf16.mxu0 0
      %9233 = vmatmul.mubr.bf16.gmra.mrb[0].mxu0 %v9192
      %v9234 = vpop.f32.mrb[0].mxu0
      %v9235 = vadd.f32 0.0, %v9234
      %v9236 = vpop.f32.mrb[0].mxu0
      %v9237 = vadd.f32 0.0, %v9236
      %v9238 = vpop.f32.mrb[0].mxu0
      %v9239 = vadd.f32 0.0, %v9238
      %v9240 = vpop.f32.mrb[0].mxu0
      %v9241 = vadd.f32 0.0, %v9240
      %9242 = vmatprep.mubr.bf16.mxu0 0
      %9243 = vmatmul.mubr.bf16.gmra.mrb[0].mxu0 %v9195
      %v9244 = vpop.f32.mrb[0].mxu0
      %v9245 = vadd.f32 0.0, %v9244
      %v9246 = vpop.f32.mrb[0].mxu0
      %v9247 = vadd.f32 0.0, %v9246
      %v9248 = vpop.f32.mrb[0].mxu0
      %v9249 = vadd.f32 0.0, %v9248
      %v9250 = vpop.f32.mrb[0].mxu0
      %v9251 = vadd.f32 0.0, %v9250
      %9252 = vmatprep.mubr.bf16.mxu0 0
      %9253 = vmatmul.mubr.bf16.gmra.mrb[0].mxu0 %v9198
      %v9254 = vpop.f32.mrb[0].mxu0
      %v9255 = vadd.f32 0.0, %v9254
      %v9256 = vpop.f32.mrb[0].mxu0
      %v9257 = vadd.f32 0.0, %v9256
      %v9258 = vpop.f32.mrb[0].mxu0
      %v9259 = vadd.f32 0.0, %v9258
      %v9260 = vpop.f32.mrb[0].mxu0
      %v9261 = vadd.f32 0.0, %v9260
      %9262 = vdwg.mxu0
      %9263 = vmatprep.subr.bf16.mxu0 %v9169
      %9264 = vmatpush1.bf16.msra.mxu0 %v9168
      %9265 = vmatprep.subr.bf16.mxu0 %v9174
      %9266 = vmatpush1.bf16.msra.mxu0 %v9173
      %9267 = vmatprep.subr.bf16.mxu0 0
      %9268 = vmatpush1.bf16.msra.mxu0 0
      %9269 = vmatprep.subr.bf16.mxu0 0
      %9270 = vmatpush1.bf16.msra.mxu0 0
      %9271 = vmatprep.subr.bf16.mxu0 0
      %9272 = vmatpush1.bf16.msra.mxu0 0
      %9273 = vmatprep.subr.bf16.mxu0 0
      %9274 = vmatpush1.bf16.msra.mxu0 0
      %9275 = vmatprep.subr.bf16.mxu0 0
      %9276 = vmatpush1.bf16.msra.mxu0 0
      %9277 = vmatprep.subr.bf16.mxu0 0
      %9278 = vmatpush1.bf16.msra.mxu0 0
      %9279 = vmatprep.subr.bf16.mxu0 0
      %9280 = vmatpush1.bf16.msra.mxu0 0
      %9281 = vmatprep.subr.bf16.mxu0 0
      %9282 = vmatpush1.bf16.msra.mxu0 0
      %9283 = vmatprep.subr.bf16.mxu0 0
      %9284 = vmatpush1.bf16.msra.mxu0 0
      %9285 = vmatprep.subr.bf16.mxu0 0
      %9286 = vmatpush1.bf16.msra.mxu0 0
      %9287 = vmatprep.subr.bf16.mxu0 0
      %9288 = vmatpush1.bf16.msra.mxu0 0
      %9289 = vmatprep.subr.bf16.mxu0 0
      %9290 = vmatpush1.bf16.msra.mxu0 0
      %9291 = vmatprep.subr.bf16.mxu0 0
      %9292 = vmatpush1.bf16.msra.mxu0 0
      %9293 = vmatprep.subr.bf16.mxu0 0
      %9294 = vmatpush1.bf16.msra.mxu0 0
      %9295 = vmatprep.mubr.bf16.mxu0 0
      %9296 = vmatmul.mubr.bf16.gmra.mrb[0].mxu0 %v9192
      %v9297 = vpop.f32.mrb[0].mxu0
      %v9298 = vadd.f32 0.0, %v9297
      %v9299 = vpop.f32.mrb[0].mxu0
      %v9300 = vadd.f32 0.0, %v9299
      %v9301 = vpop.f32.mrb[0].mxu0
      %v9302 = vadd.f32 0.0, %v9301
      %v9303 = vpop.f32.mrb[0].mxu0
      %v9304 = vadd.f32 0.0, %v9303
      %9305 = vmatprep.mubr.bf16.mxu0 0
      %9306 = vmatmul.mubr.bf16.gmra.mrb[0].mxu0 %v9195
      %v9307 = vpop.f32.mrb[0].mxu0
      %v9308 = vadd.f32 0.0, %v9307
      %v9309 = vpop.f32.mrb[0].mxu0
      %v9310 = vadd.f32 0.0, %v9309
      %v9311 = vpop.f32.mrb[0].mxu0
      %v9312 = vadd.f32 0.0, %v9311
      %v9313 = vpop.f32.mrb[0].mxu0
      %v9314 = vadd.f32 0.0, %v9313
      %9315 = vmatprep.mubr.bf16.mxu0 0
      %9316 = vmatmul.mubr.bf16.gmra.mrb[0].mxu0 %v9198
      %v9317 = vpop.f32.mrb[0].mxu0
      %v9318 = vadd.f32 0.0, %v9317
      %v9319 = vpop.f32.mrb[0].mxu0
      %v9320 = vadd.f32 0.0, %v9319
      %v9321 = vpop.f32.mrb[0].mxu0
      %v9322 = vadd.f32 0.0, %v9321
      %v9323 = vpop.f32.mrb[0].mxu0
      %v9324 = vadd.f32 0.0, %v9323
      %9325 = vdwg.mxu0
      %9326 = vmatprep.subr.bf16.mxu0 0
      %9327 = vmatpush1.bf16.msra.mxu0 %v9170
      %9328 = vmatprep.subr.bf16.mxu0 0
      %9329 = vmatpush1.bf16.msra.mxu0 %v9175
      %9330 = vmatprep.subr.bf16.mxu0 0
      %9331 = vmatpush1.bf16.msra.mxu0 0
      %9332 = vmatprep.subr.bf16.mxu0 0
      %9333 = vmatpush1.bf16.msra.mxu0 0
      %9334 = vmatprep.subr.bf16.mxu0 0
      %9335 = vmatpush1.bf16.msra.mxu0 0
      %9336 = vmatprep.subr.bf16.mxu0 0
      %9337 = vmatpush1.bf16.msra.mxu0 0
      %9338 = vmatprep.subr.bf16.mxu0 0
      %9339 = vmatpush1.bf16.msra.mxu0 0
      %9340 = vmatprep.subr.bf16.mxu0 0
      %9341 = vmatpush1.bf16.msra.mxu0 0
      %9342 = vmatprep.subr.bf16.mxu0 0
      %9343 = vmatpush1.bf16.msra.mxu0 0
      %9344 = vmatprep.subr.bf16.mxu0 0
      %9345 = vmatpush1.bf16.msra.mxu0 0
      %9346 = vmatprep.subr.bf16.mxu0 0
      %9347 = vmatpush1.bf16.msra.mxu0 0
      %9348 = vmatprep.subr.bf16.mxu0 0
      %9349 = vmatpush1.bf16.msra.mxu0 0
      %9350 = vmatprep.subr.bf16.mxu0 0
      %9351 = vmatpush1.bf16.msra.mxu0 0
      %9352 = vmatprep.subr.bf16.mxu0 0
      %9353 = vmatpush1.bf16.msra.mxu0 0
      %9354 = vmatprep.subr.bf16.mxu0 0
      %9355 = vmatpush1.bf16.msra.mxu0 0
      %9356 = vmatprep.subr.bf16.mxu0 0
      %9357 = vmatpush1.bf16.msra.mxu0 0
      %9358 = vmatprep.mubr.bf16.mxu0 0
      %9359 = vmatmul.mubr.bf16.gmra.mrb[0].mxu0 %v9192
      %v9360 = vpop.f32.mrb[0].mxu0
      %v9361 = vadd.f32 0.0, %v9360
      %v9362 = vpop.f32.mrb[0].mxu0
      %v9363 = vpop.f32.mrb[0].mxu0
      %v9364 = vadd.f32 0.0, %v9363
      %v9365 = vpop.f32.mrb[0].mxu0
      %9366 = vmatprep.mubr.bf16.mxu0 0
      %9367 = vmatmul.mubr.bf16.gmra.mrb[0].mxu0 %v9195
      %v9368 = vpop.f32.mrb[0].mxu0
      %v9369 = vadd.f32 0.0, %v9368
      %v9370 = vpop.f32.mrb[0].mxu0
      %v9371 = vpop.f32.mrb[0].mxu0
      %v9372 = vadd.f32 0.0, %v9371
      %v9373 = vpop.f32.mrb[0].mxu0
      %9374 = vmatprep.mubr.bf16.mxu0 0
      %9375 = vmatmul.mubr.bf16.gmra.mrb[0].mxu0 %v9198
      %v9376 = vpop.f32.mrb[0].mxu0
      %v9377 = vadd.f32 0.0, %v9376
      %v9378 = vpop.f32.mrb[0].mxu0
      %v9379 = vpop.f32.mrb[0].mxu0
      %v9380 = vadd.f32 0.0, %v9379
      %v9381 = vpop.f32.mrb[0].mxu0
      %9382 = vdwg.mxu0
      %v9383 = vadd.f32 %v9069, %v9235
      %v9384 = vadd.f32 %v9070, %v9237
      %v9385 = vadd.f32 %v9071, %v9298
      %v9386 = vadd.f32 %v9072, %v9300
      %v9387 = vadd.f32 %v9073, %v9361
      %v9388 = vadd.f32 %v9074, %v9239
      %v9389 = vadd.f32 %v9075, %v9241
      %v9390 = vadd.f32 %v9076, %v9302
      %v9391 = vadd.f32 %v9077, %v9304
      %v9392 = vadd.f32 %v9078, %v9364
      %v9393 = vadd.f32 %v9079, %v9245
      %v9394 = vadd.f32 %v9080, %v9247
      %v9395 = vadd.f32 %v9081, %v9308
      %v9396 = vadd.f32 %v9082, %v9310
      %v9397 = vadd.f32 %v9083, %v9369
      %v9398 = vadd.f32 %v9084, %v9249
      %v9399 = vadd.f32 %v9085, %v9251
      %v9400 = vadd.f32 %v9086, %v9312
      %v9401 = vadd.f32 %v9087, %v9314
      %v9402 = vadd.f32 %v9088, %v9372
      %v9403 = vadd.f32 %v9089, %v9255
      %v9404 = vadd.f32 %v9090, %v9257
      %v9405 = vadd.f32 %v9091, %v9318
      %v9406 = vadd.f32 %v9092, %v9320
      %v9407 = vadd.f32 %v9093, %v9377
      %v9408 = vadd.f32 %v9094, %v9259
      %v9409 = vadd.f32 %v9095, %v9261
      %v9410 = vadd.f32 %v9096, %v9322
      %v9411 = vadd.f32 %v9097, %v9324
      %v9412 = vadd.f32 %v9098, %v9380
      %9413 = vrot.lane.b32.xlu0 %v7315, 96
      %v9414 = vpop.permute.xlu0 %9413
      %9415 = vrot.lane.b32.xlu0 %v7320, 96
      %v9416 = vpop.permute.xlu0 %9415
      %9417 = vrot.lane.b32.xlu0 %v7325, 96
      %v9418 = vpop.permute.xlu0 %9417
      %9419 = vrot.lane.b32.xlu0 %v7330, 96
      %v9420 = vpop.permute.xlu0 %9419
      %9421 = vrot.lane.b32.xlu0 %v7316, 96
      %v9422 = vpop.permute.xlu0 %9421
      %9423 = vrot.lane.b32.xlu0 %v7321, 96
      %v9424 = vpop.permute.xlu0 %9423
      %9425 = vrot.lane.b32.xlu0 %v7326, 96
      %v9426 = vpop.permute.xlu0 %9425
      %9427 = vrot.lane.b32.xlu0 %v7331, 96
      %v9428 = vpop.permute.xlu0 %9427
      %9429 = vrot.lane.b32.xlu0 %v7317, 96
      %v9430 = vpop.permute.xlu0 %9429
      %9431 = vrot.lane.b32.xlu0 %v7322, 96
      %v9432 = vpop.permute.xlu0 %9431
      %9433 = vrot.lane.b32.xlu0 %v7327, 96
      %v9434 = vpop.permute.xlu0 %9433
      %9435 = vrot.lane.b32.xlu0 %v7332, 96
      %v9436 = vpop.permute.xlu0 %9435
      %9437 = vrot.lane.b32.xlu0 %v7318, 96
      %v9438 = vpop.permute.xlu0 %9437
      %9439 = vrot.lane.b32.xlu0 %v7323, 96
      %v9440 = vpop.permute.xlu0 %9439
      %9441 = vrot.lane.b32.xlu0 %v7328, 96
      %v9442 = vpop.permute.xlu0 %9441
      %9443 = vrot.lane.b32.xlu0 %v7333, 96
      %v9444 = vpop.permute.xlu0 %9443
      %9445 = vrot.lane.b32.xlu0 %v7319, 96
      %v9446 = vpop.permute.xlu0 %9445
      %9447 = vrot.lane.b32.xlu0 %v7324, 96
      %v9448 = vpop.permute.xlu0 %9447
      %9449 = vrot.lane.b32.xlu0 %v7329, 96
      %v9450 = vpop.permute.xlu0 %9449
      %9451 = vrot.lane.b32.xlu0 %v7334, 96
      %v9452 = vpop.permute.xlu0 %9451
      %v9453 = vsel %vm2786, %v9438, %v9446
      %v9454 = vsel %vm2786, %v9440, %v9448
      %v9455 = vsel %vm2786, %v9442, %v9450
      %v9456 = vsel %vm2786, %v9444, %v9452
      %v9457 = vsel %vm2786, %v9430, %v9438
      %v9458 = vsel %vm2786, %v9432, %v9440
      %v9459 = vsel %vm2786, %v9434, %v9442
      %v9460 = vsel %vm2786, %v9436, %v9444
      %v9461 = vsel %vm2786, %v9422, %v9430
      %v9462 = vsel %vm2786, %v9424, %v9432
      %v9463 = vsel %vm2786, %v9426, %v9434
      %v9464 = vsel %vm2786, %v9428, %v9436
      %v9465 = vsel %vm2786, %v9414, %v9422
      %v9466 = vsel %vm2786, %v9416, %v9424
      %v9467 = vsel %vm2786, %v9418, %v9426
      %v9468 = vsel %vm2786, %v9420, %v9428
      %v9469 = vsel %vm2786, %v9446, %v9414
      %v9470 = vsel %vm2786, %v9448, %v9416
      %v9471 = vsel %vm2786, %v9450, %v9418
      %v9472 = vsel %vm2786, %v9452, %v9420
      %s9473 = scalar_lea.vmem %s12, 168
      %v9474 = vld [vmem:[%s9473] sm:$0xf]
      %v9475 = vld [vmem:[%s9473 + $0x4] sm:$0xf]
      %v9476 = vld [vmem:[%s9473 + $0x8] sm:$0xf]
      %v9477 = vld [vmem:[%s9473 + $0xc] sm:$0xf]
      %v9478 = vld [vmem:[%s9473 + $0x10] sm:$0xf]
      %v9479 = vld [vmem:[%s9473 + $0x14] sm:$0xf]
      %v9480 = vpack.c.bf16 %v9466, %v9465
      %v9481 = vpack.c.bf16 %v9462, %v9461
      %v9482 = vpack.c.bf16 %v9458, %v9457
      %v9483 = vpack.c.bf16 %v9454, %v9453
      %v9484 = vpack.c.bf16 %v9470, %v9469
      %v9485 = vpack.c.bf16 %v9468, %v9467
      %v9486 = vpack.c.bf16 %v9464, %v9463
      %v9487 = vpack.c.bf16 %v9460, %v9459
      %v9488 = vpack.c.bf16 %v9456, %v9455
      %v9489 = vpack.c.bf16 %v9472, %v9471
      %v9496 = vunpack.c.l.b16 %v9474
      %v9497 = vunpack.c.l.b16 %v9475
      %v9498 = vunpack.c.l.b16 %v9476
      %v9499 = vunpack.c.l.b16 %v9477
      %v9500 = vunpack.c.l.b16 %v9478
      %v9501 = vunpack.c.l.b16 %v9479
      %v9502 = vpack.c.b16 %v9497, %v9496
      %v9503 = vpack.c.b16 %v9499, %v9498
      %v9504 = vpack.c.b16 %v9501, %v9500
      %v9506 = vsel %vm7503, %v9502, 0
      %v9509 = vsel %vm7503, %v9503, 0
      %v9512 = vsel %vm7503, %v9504, 0
      %9514 = vmatprep.subr.bf16.mxu0 %v9481
      %9515 = vmatpush1.bf16.msra.mxu0 %v9480
      %9516 = vmatprep.subr.bf16.mxu0 %v9486
      %9517 = vmatpush1.bf16.msra.mxu0 %v9485
      %9518 = vmatprep.subr.bf16.mxu0 0
      %9519 = vmatpush1.bf16.msra.mxu0 0
      %9520 = vmatprep.subr.bf16.mxu0 0
      %9521 = vmatpush1.bf16.msra.mxu0 0
      %9522 = vmatprep.subr.bf16.mxu0 0
      %9523 = vmatpush1.bf16.msra.mxu0 0
      %9524 = vmatprep.subr.bf16.mxu0 0
      %9525 = vmatpush1.bf16.msra.mxu0 0
      %9526 = vmatprep.subr.bf16.mxu0 0
      %9527 = vmatpush1.bf16.msra.mxu0 0
      %9528 = vmatprep.subr.bf16.mxu0 0
      %9529 = vmatpush1.bf16.msra.mxu0 0
      %9530 = vmatprep.subr.bf16.mxu0 0
      %9531 = vmatpush1.bf16.msra.mxu0 0
      %9532 = vmatprep.subr.bf16.mxu0 0
      %9533 = vmatpush1.bf16.msra.mxu0 0
      %9534 = vmatprep.subr.bf16.mxu0 0
      %9535 = vmatpush1.bf16.msra.mxu0 0
      %9536 = vmatprep.subr.bf16.mxu0 0
      %9537 = vmatpush1.bf16.msra.mxu0 0
      %9538 = vmatprep.subr.bf16.mxu0 0
      %9539 = vmatpush1.bf16.msra.mxu0 0
      %9540 = vmatprep.subr.bf16.mxu0 0
      %9541 = vmatpush1.bf16.msra.mxu0 0
      %9542 = vmatprep.subr.bf16.mxu0 0
      %9543 = vmatpush1.bf16.msra.mxu0 0
      %9544 = vmatprep.subr.bf16.mxu0 0
      %9545 = vmatpush1.bf16.msra.mxu0 0
      %9546 = vmatprep.mubr.bf16.mxu0 0
      %9547 = vmatmul.mubr.bf16.gmra.mrb[0].mxu0 %v9506
      %v9548 = vpop.f32.mrb[0].mxu0
      %v9549 = vadd.f32 0.0, %v9548
      %v9550 = vpop.f32.mrb[0].mxu0
      %v9551 = vadd.f32 0.0, %v9550
      %v9552 = vpop.f32.mrb[0].mxu0
      %v9553 = vadd.f32 0.0, %v9552
      %v9554 = vpop.f32.mrb[0].mxu0
      %v9555 = vadd.f32 0.0, %v9554
      %9556 = vmatprep.mubr.bf16.mxu0 0
      %9557 = vmatmul.mubr.bf16.gmra.mrb[0].mxu0 %v9509
      %v9558 = vpop.f32.mrb[0].mxu0
      %v9559 = vadd.f32 0.0, %v9558
      %v9560 = vpop.f32.mrb[0].mxu0
      %v9561 = vadd.f32 0.0, %v9560
      %v9562 = vpop.f32.mrb[0].mxu0
      %v9563 = vadd.f32 0.0, %v9562
      %v9564 = vpop.f32.mrb[0].mxu0
      %v9565 = vadd.f32 0.0, %v9564
      %9566 = vmatprep.mubr.bf16.mxu0 0
      %9567 = vmatmul.mubr.bf16.gmra.mrb[0].mxu0 %v9512
      %v9568 = vpop.f32.mrb[0].mxu0
      %v9569 = vadd.f32 0.0, %v9568
      %v9570 = vpop.f32.mrb[0].mxu0
      %v9571 = vadd.f32 0.0, %v9570
      %v9572 = vpop.f32.mrb[0].mxu0
      %v9573 = vadd.f32 0.0, %v9572
      %v9574 = vpop.f32.mrb[0].mxu0
      %v9575 = vadd.f32 0.0, %v9574
      %9576 = vdwg.mxu0
      %9577 = vmatprep.subr.bf16.mxu0 %v9483
      %9578 = vmatpush1.bf16.msra.mxu0 %v9482
      %9579 = vmatprep.subr.bf16.mxu0 %v9488
      %9580 = vmatpush1.bf16.msra.mxu0 %v9487
      %9581 = vmatprep.subr.bf16.mxu0 0
      %9582 = vmatpush1.bf16.msra.mxu0 0
      %9583 = vmatprep.subr.bf16.mxu0 0
      %9584 = vmatpush1.bf16.msra.mxu0 0
      %9585 = vmatprep.subr.bf16.mxu0 0
      %9586 = vmatpush1.bf16.msra.mxu0 0
      %9587 = vmatprep.subr.bf16.mxu0 0
      %9588 = vmatpush1.bf16.msra.mxu0 0
      %9589 = vmatprep.subr.bf16.mxu0 0
      %9590 = vmatpush1.bf16.msra.mxu0 0
      %9591 = vmatprep.subr.bf16.mxu0 0
      %9592 = vmatpush1.bf16.msra.mxu0 0
      %9593 = vmatprep.subr.bf16.mxu0 0
      %9594 = vmatpush1.bf16.msra.mxu0 0
      %9595 = vmatprep.subr.bf16.mxu0 0
      %9596 = vmatpush1.bf16.msra.mxu0 0
      %9597 = vmatprep.subr.bf16.mxu0 0
      %9598 = vmatpush1.bf16.msra.mxu0 0
      %9599 = vmatprep.subr.bf16.mxu0 0
      %9600 = vmatpush1.bf16.msra.mxu0 0
      %9601 = vmatprep.subr.bf16.mxu0 0
      %9602 = vmatpush1.bf16.msra.mxu0 0
      %9603 = vmatprep.subr.bf16.mxu0 0
      %9604 = vmatpush1.bf16.msra.mxu0 0
      %9605 = vmatprep.subr.bf16.mxu0 0
      %9606 = vmatpush1.bf16.msra.mxu0 0
      %9607 = vmatprep.subr.bf16.mxu0 0
      %9608 = vmatpush1.bf16.msra.mxu0 0
      %9609 = vmatprep.mubr.bf16.mxu0 0
      %9610 = vmatmul.mubr.bf16.gmra.mrb[0].mxu0 %v9506
      %v9611 = vpop.f32.mrb[0].mxu0
      %v9612 = vadd.f32 0.0, %v9611
      %v9613 = vpop.f32.mrb[0].mxu0
      %v9614 = vadd.f32 0.0, %v9613
      %v9615 = vpop.f32.mrb[0].mxu0
      %v9616 = vadd.f32 0.0, %v9615
      %v9617 = vpop.f32.mrb[0].mxu0
      %v9618 = vadd.f32 0.0, %v9617
      %9619 = vmatprep.mubr.bf16.mxu0 0
      %9620 = vmatmul.mubr.bf16.gmra.mrb[0].mxu0 %v9509
      %v9621 = vpop.f32.mrb[0].mxu0
      %v9622 = vadd.f32 0.0, %v9621
      %v9623 = vpop.f32.mrb[0].mxu0
      %v9624 = vadd.f32 0.0, %v9623
      %v9625 = vpop.f32.mrb[0].mxu0
      %v9626 = vadd.f32 0.0, %v9625
      %v9627 = vpop.f32.mrb[0].mxu0
      %v9628 = vadd.f32 0.0, %v9627
      %9629 = vmatprep.mubr.bf16.mxu0 0
      %9630 = vmatmul.mubr.bf16.gmra.mrb[0].mxu0 %v9512
      %v9631 = vpop.f32.mrb[0].mxu0
      %v9632 = vadd.f32 0.0, %v9631
      %v9633 = vpop.f32.mrb[0].mxu0
      %v9634 = vadd.f32 0.0, %v9633
      %v9635 = vpop.f32.mrb[0].mxu0
      %v9636 = vadd.f32 0.0, %v9635
      %v9637 = vpop.f32.mrb[0].mxu0
      %v9638 = vadd.f32 0.0, %v9637
      %9639 = vdwg.mxu0
      %9640 = vmatprep.subr.bf16.mxu0 0
      %9641 = vmatpush1.bf16.msra.mxu0 %v9484
      %9642 = vmatprep.subr.bf16.mxu0 0
      %9643 = vmatpush1.bf16.msra.mxu0 %v9489
      %9644 = vmatprep.subr.bf16.mxu0 0
      %9645 = vmatpush1.bf16.msra.mxu0 0
      %9646 = vmatprep.subr.bf16.mxu0 0
      %9647 = vmatpush1.bf16.msra.mxu0 0
      %9648 = vmatprep.subr.bf16.mxu0 0
      %9649 = vmatpush1.bf16.msra.mxu0 0
      %9650 = vmatprep.subr.bf16.mxu0 0
      %9651 = vmatpush1.bf16.msra.mxu0 0
      %9652 = vmatprep.subr.bf16.mxu0 0
      %9653 = vmatpush1.bf16.msra.mxu0 0
      %9654 = vmatprep.subr.bf16.mxu0 0
      %9655 = vmatpush1.bf16.msra.mxu0 0
      %9656 = vmatprep.subr.bf16.mxu0 0
      %9657 = vmatpush1.bf16.msra.mxu0 0
      %9658 = vmatprep.subr.bf16.mxu0 0
      %9659 = vmatpush1.bf16.msra.mxu0 0
      %9660 = vmatprep.subr.bf16.mxu0 0
      %9661 = vmatpush1.bf16.msra.mxu0 0
      %9662 = vmatprep.subr.bf16.mxu0 0
      %9663 = vmatpush1.bf16.msra.mxu0 0
      %9664 = vmatprep.subr.bf16.mxu0 0
      %9665 = vmatpush1.bf16.msra.mxu0 0
      %9666 = vmatprep.subr.bf16.mxu0 0
      %9667 = vmatpush1.bf16.msra.mxu0 0
      %9668 = vmatprep.subr.bf16.mxu0 0
      %9669 = vmatpush1.bf16.msra.mxu0 0
      %9670 = vmatprep.subr.bf16.mxu0 0
      %9671 = vmatpush1.bf16.msra.mxu0 0
      %9672 = vmatprep.mubr.bf16.mxu0 0
      %9673 = vmatmul.mubr.bf16.gmra.mrb[0].mxu0 %v9506
      %v9674 = vpop.f32.mrb[0].mxu0
      %v9675 = vadd.f32 0.0, %v9674
      %v9676 = vpop.f32.mrb[0].mxu0
      %v9677 = vpop.f32.mrb[0].mxu0
      %v9678 = vadd.f32 0.0, %v9677
      %v9679 = vpop.f32.mrb[0].mxu0
      %9680 = vmatprep.mubr.bf16.mxu0 0
      %9681 = vmatmul.mubr.bf16.gmra.mrb[0].mxu0 %v9509
      %v9682 = vpop.f32.mrb[0].mxu0
      %v9683 = vadd.f32 0.0, %v9682
      %v9684 = vpop.f32.mrb[0].mxu0
      %v9685 = vpop.f32.mrb[0].mxu0
      %v9686 = vadd.f32 0.0, %v9685
      %v9687 = vpop.f32.mrb[0].mxu0
      %9688 = vmatprep.mubr.bf16.mxu0 0
      %9689 = vmatmul.mubr.bf16.gmra.mrb[0].mxu0 %v9512
      %v9690 = vpop.f32.mrb[0].mxu0
      %v9691 = vadd.f32 0.0, %v9690
      %v9692 = vpop.f32.mrb[0].mxu0
      %v9693 = vpop.f32.mrb[0].mxu0
      %v9694 = vadd.f32 0.0, %v9693
      %v9695 = vpop.f32.mrb[0].mxu0
      %9696 = vdwg.mxu0
      %v9697 = vadd.f32 %v9383, %v9549
      %v9698 = vadd.f32 %v9384, %v9551
      %v9699 = vadd.f32 %v9385, %v9612
      %v9700 = vadd.f32 %v9386, %v9614
      %v9701 = vadd.f32 %v9387, %v9675
      %v9702 = vadd.f32 %v9388, %v9553
      %v9703 = vadd.f32 %v9389, %v9555
      %v9704 = vadd.f32 %v9390, %v9616
      %v9705 = vadd.f32 %v9391, %v9618
      %v9706 = vadd.f32 %v9392, %v9678
      %v9707 = vadd.f32 %v9393, %v9559
      %v9708 = vadd.f32 %v9394, %v9561
      %v9709 = vadd.f32 %v9395, %v9622
      %v9710 = vadd.f32 %v9396, %v9624
      %v9711 = vadd.f32 %v9397, %v9683
      %v9712 = vadd.f32 %v9398, %v9563
      %v9713 = vadd.f32 %v9399, %v9565
      %v9714 = vadd.f32 %v9400, %v9626
      %v9715 = vadd.f32 %v9401, %v9628
      %v9716 = vadd.f32 %v9402, %v9686
      %v9717 = vadd.f32 %v9403, %v9569
      %v9718 = vadd.f32 %v9404, %v9571
      %v9719 = vadd.f32 %v9405, %v9632
      %v9720 = vadd.f32 %v9406, %v9634
      %v9721 = vadd.f32 %v9407, %v9691
      %v9722 = vadd.f32 %v9408, %v9573
      %v9723 = vadd.f32 %v9409, %v9575
      %v9724 = vadd.f32 %v9410, %v9636
      %v9725 = vadd.f32 %v9411, %v9638
      %v9726 = vadd.f32 %v9412, %v9694
      %9727 = vrot.lane.b32.xlu0 %v7315, 95
      %v9728 = vpop.permute.xlu0 %9727
      %9729 = vrot.lane.b32.xlu0 %v7320, 95
      %v9730 = vpop.permute.xlu0 %9729
      %9731 = vrot.lane.b32.xlu0 %v7325, 95
      %v9732 = vpop.permute.xlu0 %9731
      %9733 = vrot.lane.b32.xlu0 %v7330, 95
      %v9734 = vpop.permute.xlu0 %9733
      %9735 = vrot.lane.b32.xlu0 %v7316, 95
      %v9736 = vpop.permute.xlu0 %9735
      %9737 = vrot.lane.b32.xlu0 %v7321, 95
      %v9738 = vpop.permute.xlu0 %9737
      %9739 = vrot.lane.b32.xlu0 %v7326, 95
      %v9740 = vpop.permute.xlu0 %9739
      %9741 = vrot.lane.b32.xlu0 %v7331, 95
      %v9742 = vpop.permute.xlu0 %9741
      %9743 = vrot.lane.b32.xlu0 %v7317, 95
      %v9744 = vpop.permute.xlu0 %9743
      %9745 = vrot.lane.b32.xlu0 %v7322, 95
      %v9746 = vpop.permute.xlu0 %9745
      %9747 = vrot.lane.b32.xlu0 %v7327, 95
      %v9748 = vpop.permute.xlu0 %9747
      %9749 = vrot.lane.b32.xlu0 %v7332, 95
      %v9750 = vpop.permute.xlu0 %9749
      %9751 = vrot.lane.b32.xlu0 %v7318, 95
      %v9752 = vpop.permute.xlu0 %9751
      %9753 = vrot.lane.b32.xlu0 %v7323, 95
      %v9754 = vpop.permute.xlu0 %9753
      %9755 = vrot.lane.b32.xlu0 %v7328, 95
      %v9756 = vpop.permute.xlu0 %9755
      %9757 = vrot.lane.b32.xlu0 %v7333, 95
      %v9758 = vpop.permute.xlu0 %9757
      %9759 = vrot.lane.b32.xlu0 %v7319, 95
      %v9760 = vpop.permute.xlu0 %9759
      %9761 = vrot.lane.b32.xlu0 %v7324, 95
      %v9762 = vpop.permute.xlu0 %9761
      %9763 = vrot.lane.b32.xlu0 %v7329, 95
      %v9764 = vpop.permute.xlu0 %9763
      %9765 = vrot.lane.b32.xlu0 %v7334, 95
      %v9766 = vpop.permute.xlu0 %9765
      %v9767 = vsel %vm3114, %v9752, %v9760
      %v9768 = vsel %vm3114, %v9754, %v9762
      %v9769 = vsel %vm3114, %v9756, %v9764
      %v9770 = vsel %vm3114, %v9758, %v9766
      %v9771 = vsel %vm3114, %v9744, %v9752
      %v9772 = vsel %vm3114, %v9746, %v9754
      %v9773 = vsel %vm3114, %v9748, %v9756
      %v9774 = vsel %vm3114, %v9750, %v9758
      %v9775 = vsel %vm3114, %v9736, %v9744
      %v9776 = vsel %vm3114, %v9738, %v9746
      %v9777 = vsel %vm3114, %v9740, %v9748
      %v9778 = vsel %vm3114, %v9742, %v9750
      %v9779 = vsel %vm3114, %v9728, %v9736
      %v9780 = vsel %vm3114, %v9730, %v9738
      %v9781 = vsel %vm3114, %v9732, %v9740
      %v9782 = vsel %vm3114, %v9734, %v9742
      %v9783 = vsel %vm3114, %v9760, %v9728
      %v9784 = vsel %vm3114, %v9762, %v9730
      %v9785 = vsel %vm3114, %v9764, %v9732
      %v9786 = vsel %vm3114, %v9766, %v9734
      %s9787 = scalar_lea.vmem %s12, 192
      %v9788 = vld [vmem:[%s9787] sm:$0xf]
      %v9789 = vld [vmem:[%s9787 + $0x4] sm:$0xf]
      %v9790 = vld [vmem:[%s9787 + $0x8] sm:$0xf]
      %v9791 = vld [vmem:[%s9787 + $0xc] sm:$0xf]
      %v9792 = vld [vmem:[%s9787 + $0x10] sm:$0xf]
      %v9793 = vld [vmem:[%s9787 + $0x14] sm:$0xf]
      %v9794 = vpack.c.bf16 %v9780, %v9779
      %v9795 = vpack.c.bf16 %v9776, %v9775
      %v9796 = vpack.c.bf16 %v9772, %v9771
      %v9797 = vpack.c.bf16 %v9768, %v9767
      %v9798 = vpack.c.bf16 %v9784, %v9783
      %v9799 = vpack.c.bf16 %v9782, %v9781
      %v9800 = vpack.c.bf16 %v9778, %v9777
      %v9801 = vpack.c.bf16 %v9774, %v9773
      %v9802 = vpack.c.bf16 %v9770, %v9769
      %v9803 = vpack.c.bf16 %v9786, %v9785
      %v9810 = vunpack.c.l.b16 %v9788
      %v9811 = vunpack.c.l.b16 %v9789
      %v9812 = vunpack.c.l.b16 %v9790
      %v9813 = vunpack.c.l.b16 %v9791
      %v9814 = vunpack.c.l.b16 %v9792
      %v9815 = vunpack.c.l.b16 %v9793
      %v9816 = vpack.c.b16 %v9811, %v9810
      %v9817 = vpack.c.b16 %v9813, %v9812
      %v9818 = vpack.c.b16 %v9815, %v9814
      %v9820 = vsel %vm7503, %v9816, 0
      %v9823 = vsel %vm7503, %v9817, 0
      %v9826 = vsel %vm7503, %v9818, 0
      %9828 = vmatprep.subr.bf16.mxu0 %v9795
      %9829 = vmatpush1.bf16.msra.mxu0 %v9794
      %9830 = vmatprep.subr.bf16.mxu0 %v9800
      %9831 = vmatpush1.bf16.msra.mxu0 %v9799
      %9832 = vmatprep.subr.bf16.mxu0 0
      %9833 = vmatpush1.bf16.msra.mxu0 0
      %9834 = vmatprep.subr.bf16.mxu0 0
      %9835 = vmatpush1.bf16.msra.mxu0 0
      %9836 = vmatprep.subr.bf16.mxu0 0
      %9837 = vmatpush1.bf16.msra.mxu0 0
      %9838 = vmatprep.subr.bf16.mxu0 0
      %9839 = vmatpush1.bf16.msra.mxu0 0
      %9840 = vmatprep.subr.bf16.mxu0 0
      %9841 = vmatpush1.bf16.msra.mxu0 0
      %9842 = vmatprep.subr.bf16.mxu0 0
      %9843 = vmatpush1.bf16.msra.mxu0 0
      %9844 = vmatprep.subr.bf16.mxu0 0
      %9845 = vmatpush1.bf16.msra.mxu0 0
      %9846 = vmatprep.subr.bf16.mxu0 0
      %9847 = vmatpush1.bf16.msra.mxu0 0
      %9848 = vmatprep.subr.bf16.mxu0 0
      %9849 = vmatpush1.bf16.msra.mxu0 0
      %9850 = vmatprep.subr.bf16.mxu0 0
      %9851 = vmatpush1.bf16.msra.mxu0 0
      %9852 = vmatprep.subr.bf16.mxu0 0
      %9853 = vmatpush1.bf16.msra.mxu0 0
      %9854 = vmatprep.subr.bf16.mxu0 0
      %9855 = vmatpush1.bf16.msra.mxu0 0
      %9856 = vmatprep.subr.bf16.mxu0 0
      %9857 = vmatpush1.bf16.msra.mxu0 0
      %9858 = vmatprep.subr.bf16.mxu0 0
      %9859 = vmatpush1.bf16.msra.mxu0 0
      %9860 = vmatprep.mubr.bf16.mxu0 0
      %9861 = vmatmul.mubr.bf16.gmra.mrb[0].mxu0 %v9820
      %v9862 = vpop.f32.mrb[0].mxu0
      %v9863 = vadd.f32 0.0, %v9862
      %v9864 = vpop.f32.mrb[0].mxu0
      %v9865 = vadd.f32 0.0, %v9864
      %v9866 = vpop.f32.mrb[0].mxu0
      %v9867 = vadd.f32 0.0, %v9866
      %v9868 = vpop.f32.mrb[0].mxu0
      %v9869 = vadd.f32 0.0, %v9868
      %9870 = vmatprep.mubr.bf16.mxu0 0
      %9871 = vmatmul.mubr.bf16.gmra.mrb[0].mxu0 %v9823
      %v9872 = vpop.f32.mrb[0].mxu0
      %v9873 = vadd.f32 0.0, %v9872
      %v9874 = vpop.f32.mrb[0].mxu0
      %v9875 = vadd.f32 0.0, %v9874
      %v9876 = vpop.f32.mrb[0].mxu0
      %v9877 = vadd.f32 0.0, %v9876
      %v9878 = vpop.f32.mrb[0].mxu0
      %v9879 = vadd.f32 0.0, %v9878
      %9880 = vmatprep.mubr.bf16.mxu0 0
      %9881 = vmatmul.mubr.bf16.gmra.mrb[0].mxu0 %v9826
      %v9882 = vpop.f32.mrb[0].mxu0
      %v9883 = vadd.f32 0.0, %v9882
      %v9884 = vpop.f32.mrb[0].mxu0
      %v9885 = vadd.f32 0.0, %v9884
      %v9886 = vpop.f32.mrb[0].mxu0
      %v9887 = vadd.f32 0.0, %v9886
      %v9888 = vpop.f32.mrb[0].mxu0
      %v9889 = vadd.f32 0.0, %v9888
      %9890 = vdwg.mxu0
      %9891 = vmatprep.subr.bf16.mxu0 %v9797
      %9892 = vmatpush1.bf16.msra.mxu0 %v9796
      %9893 = vmatprep.subr.bf16.mxu0 %v9802
      %9894 = vmatpush1.bf16.msra.mxu0 %v9801
      %9895 = vmatprep.subr.bf16.mxu0 0
      %9896 = vmatpush1.bf16.msra.mxu0 0
      %9897 = vmatprep.subr.bf16.mxu0 0
      %9898 = vmatpush1.bf16.msra.mxu0 0
      %9899 = vmatprep.subr.bf16.mxu0 0
      %9900 = vmatpush1.bf16.msra.mxu0 0
      %9901 = vmatprep.subr.bf16.mxu0 0
      %9902 = vmatpush1.bf16.msra.mxu0 0
      %9903 = vmatprep.subr.bf16.mxu0 0
      %9904 = vmatpush1.bf16.msra.mxu0 0
      %9905 = vmatprep.subr.bf16.mxu0 0
      %9906 = vmatpush1.bf16.msra.mxu0 0
      %9907 = vmatprep.subr.bf16.mxu0 0
      %9908 = vmatpush1.bf16.msra.mxu0 0
      %9909 = vmatprep.subr.bf16.mxu0 0
      %9910 = vmatpush1.bf16.msra.mxu0 0
      %9911 = vmatprep.subr.bf16.mxu0 0
      %9912 = vmatpush1.bf16.msra.mxu0 0
      %9913 = vmatprep.subr.bf16.mxu0 0
      %9914 = vmatpush1.bf16.msra.mxu0 0
      %9915 = vmatprep.subr.bf16.mxu0 0
      %9916 = vmatpush1.bf16.msra.mxu0 0
      %9917 = vmatprep.subr.bf16.mxu0 0
      %9918 = vmatpush1.bf16.msra.mxu0 0
      %9919 = vmatprep.subr.bf16.mxu0 0
      %9920 = vmatpush1.bf16.msra.mxu0 0
      %9921 = vmatprep.subr.bf16.mxu0 0
      %9922 = vmatpush1.bf16.msra.mxu0 0
      %9923 = vmatprep.mubr.bf16.mxu0 0
      %9924 = vmatmul.mubr.bf16.gmra.mrb[0].mxu0 %v9820
      %v9925 = vpop.f32.mrb[0].mxu0
      %v9926 = vadd.f32 0.0, %v9925
      %v9927 = vpop.f32.mrb[0].mxu0
      %v9928 = vadd.f32 0.0, %v9927
      %v9929 = vpop.f32.mrb[0].mxu0
      %v9930 = vadd.f32 0.0, %v9929
      %v9931 = vpop.f32.mrb[0].mxu0
      %v9932 = vadd.f32 0.0, %v9931
      %9933 = vmatprep.mubr.bf16.mxu0 0
      %9934 = vmatmul.mubr.bf16.gmra.mrb[0].mxu0 %v9823
      %v9935 = vpop.f32.mrb[0].mxu0
      %v9936 = vadd.f32 0.0, %v9935
      %v9937 = vpop.f32.mrb[0].mxu0
      %v9938 = vadd.f32 0.0, %v9937
      %v9939 = vpop.f32.mrb[0].mxu0
      %v9940 = vadd.f32 0.0, %v9939
      %v9941 = vpop.f32.mrb[0].mxu0
      %v9942 = vadd.f32 0.0, %v9941
      %9943 = vmatprep.mubr.bf16.mxu0 0
      %9944 = vmatmul.mubr.bf16.gmra.mrb[0].mxu0 %v9826
      %v9945 = vpop.f32.mrb[0].mxu0
      %v9946 = vadd.f32 0.0, %v9945
      %v9947 = vpop.f32.mrb[0].mxu0
      %v9948 = vadd.f32 0.0, %v9947
      %v9949 = vpop.f32.mrb[0].mxu0
      %v9950 = vadd.f32 0.0, %v9949
      %v9951 = vpop.f32.mrb[0].mxu0
      %v9952 = vadd.f32 0.0, %v9951
      %9953 = vdwg.mxu0
      %9954 = vmatprep.subr.bf16.mxu0 0
      %9955 = vmatpush1.bf16.msra.mxu0 %v9798
      %9956 = vmatprep.subr.bf16.mxu0 0
      %9957 = vmatpush1.bf16.msra.mxu0 %v9803
      %9958 = vmatprep.subr.bf16.mxu0 0
      %9959 = vmatpush1.bf16.msra.mxu0 0
      %9960 = vmatprep.subr.bf16.mxu0 0
      %9961 = vmatpush1.bf16.msra.mxu0 0
      %9962 = vmatprep.subr.bf16.mxu0 0
      %9963 = vmatpush1.bf16.msra.mxu0 0
      %9964 = vmatprep.subr.bf16.mxu0 0
      %9965 = vmatpush1.bf16.msra.mxu0 0
      %9966 = vmatprep.subr.bf16.mxu0 0
      %9967 = vmatpush1.bf16.msra.mxu0 0
      %9968 = vmatprep.subr.bf16.mxu0 0
      %9969 = vmatpush1.bf16.msra.mxu0 0
      %9970 = vmatprep.subr.bf16.mxu0 0
      %9971 = vmatpush1.bf16.msra.mxu0 0
      %9972 = vmatprep.subr.bf16.mxu0 0
      %9973 = vmatpush1.bf16.msra.mxu0 0
      %9974 = vmatprep.subr.bf16.mxu0 0
      %9975 = vmatpush1.bf16.msra.mxu0 0
      %9976 = vmatprep.subr.bf16.mxu0 0
      %9977 = vmatpush1.bf16.msra.mxu0 0
      %9978 = vmatprep.subr.bf16.mxu0 0
      %9979 = vmatpush1.bf16.msra.mxu0 0
      %9980 = vmatprep.subr.bf16.mxu0 0
      %9981 = vmatpush1.bf16.msra.mxu0 0
      %9982 = vmatprep.subr.bf16.mxu0 0
      %9983 = vmatpush1.bf16.msra.mxu0 0
      %9984 = vmatprep.subr.bf16.mxu0 0
      %9985 = vmatpush1.bf16.msra.mxu0 0
      %9986 = vmatprep.mubr.bf16.mxu0 0
      %9987 = vmatmul.mubr.bf16.gmra.mrb[0].mxu0 %v9820
      %v9988 = vpop.f32.mrb[0].mxu0
      %v9989 = vadd.f32 0.0, %v9988
      %v9990 = vpop.f32.mrb[0].mxu0
      %v9991 = vpop.f32.mrb[0].mxu0
      %v9992 = vadd.f32 0.0, %v9991
      %v9993 = vpop.f32.mrb[0].mxu0
      %9994 = vmatprep.mubr.bf16.mxu0 0
      %9995 = vmatmul.mubr.bf16.gmra.mrb[0].mxu0 %v9823
      %v9996 = vpop.f32.mrb[0].mxu0
      %v9997 = vadd.f32 0.0, %v9996
      %v9998 = vpop.f32.mrb[0].mxu0
      %v9999 = vpop.f32.mrb[0].mxu0
      %v10000 = vadd.f32 0.0, %v9999
      %v10001 = vpop.f32.mrb[0].mxu0
      %10002 = vmatprep.mubr.bf16.mxu0 0
      %10003 = vmatmul.mubr.bf16.gmra.mrb[0].mxu0 %v9826
      %v10004 = vpop.f32.mrb[0].mxu0
      %v10005 = vadd.f32 0.0, %v10004
      %v10006 = vpop.f32.mrb[0].mxu0
      %v10007 = vpop.f32.mrb[0].mxu0
      %v10008 = vadd.f32 0.0, %v10007
      %v10009 = vpop.f32.mrb[0].mxu0
      %10010 = vdwg.mxu0
      %v10011 = vadd.f32 %v9697, %v9863
      %v10012 = vadd.f32 %v9698, %v9865
      %v10013 = vadd.f32 %v9699, %v9926
      %v10014 = vadd.f32 %v9700, %v9928
      %v10015 = vadd.f32 %v9701, %v9989
      %v10016 = vadd.f32 %v9702, %v9867
      %v10017 = vadd.f32 %v9703, %v9869
      %v10018 = vadd.f32 %v9704, %v9930
      %v10019 = vadd.f32 %v9705, %v9932
      %v10020 = vadd.f32 %v9706, %v9992
      %v10021 = vadd.f32 %v9707, %v9873
      %v10022 = vadd.f32 %v9708, %v9875
      %v10023 = vadd.f32 %v9709, %v9936
      %v10024 = vadd.f32 %v9710, %v9938
      %v10025 = vadd.f32 %v9711, %v9997
      %v10026 = vadd.f32 %v9712, %v9877
      %v10027 = vadd.f32 %v9713, %v9879
      %v10028 = vadd.f32 %v9714, %v9940
      %v10029 = vadd.f32 %v9715, %v9942
      %v10030 = vadd.f32 %v9716, %v10000
      %v10031 = vadd.f32 %v9717, %v9883
      %v10032 = vadd.f32 %v9718, %v9885
      %v10033 = vadd.f32 %v9719, %v9946
      %v10034 = vadd.f32 %v9720, %v9948
      %v10035 = vadd.f32 %v9721, %v10005
      %v10036 = vadd.f32 %v9722, %v9887
      %v10037 = vadd.f32 %v9723, %v9889
      %v10038 = vadd.f32 %v9724, %v9950
      %v10039 = vadd.f32 %v9725, %v9952
      %v10040 = vadd.f32 %v9726, %v10008
      %v10041 = vld [vmem:[%s13] sm:$0xff]
      %v10042 = vld [vmem:[%s13 + $0x8] sm:$0xff]
      %v10043 = vld [vmem:[%s13 + $0x10] sm:$0xff]
      %v10044 = vld [vmem:[%s13 + $0x18] sm:$0xff]
      %v10045 = vld [vmem:[%s13 + $0x20] sm:$0xff]
      %v10046 = vld [vmem:[%s13 + $0x28] sm:$0xff]
      %10048 = vset.pattern.permute.xlu0 0
      %10049 = vperm.xlu0 %10048, %v10041
      %v10050 = vpop.permute.xlu0 %10049
      %10053 = vset.pattern.permute.xlu0 0
      %10054 = vperm.xlu0 %10053, %v10042
      %v10055 = vpop.permute.xlu0 %10054
      %10058 = vset.pattern.permute.xlu0 0
      %10059 = vperm.xlu0 %10058, %v10043
      %v10060 = vpop.permute.xlu0 %10059
      %10063 = vset.pattern.permute.xlu0 0
      %10064 = vperm.xlu0 %10063, %v10044
      %v10065 = vpop.permute.xlu0 %10064
      %10068 = vset.pattern.permute.xlu0 0
      %10069 = vperm.xlu0 %10068, %v10045
      %v10070 = vpop.permute.xlu0 %10069
      %10073 = vset.pattern.permute.xlu0 0
      %10074 = vperm.xlu0 %10073, %v10046
      %v10075 = vpop.permute.xlu0 %10074
      %v10077 = vadd.f32 %v10011, %v10050
      %v10078 = vadd.f32 %v10012, %v10050
      %v10079 = vadd.f32 %v10013, %v10050
      %v10080 = vadd.f32 %v10014, %v10050
      %v10081 = vadd.f32 %v10015, %v10050
      %v10082 = vadd.f32 %v10016, %v10055
      %v10083 = vadd.f32 %v10017, %v10055
      %v10084 = vadd.f32 %v10018, %v10055
      %v10085 = vadd.f32 %v10019, %v10055
      %v10086 = vadd.f32 %v10020, %v10055
      %v10087 = vadd.f32 %v10021, %v10060
      %v10088 = vadd.f32 %v10022, %v10060
      %v10089 = vadd.f32 %v10023, %v10060
      %v10090 = vadd.f32 %v10024, %v10060
      %v10091 = vadd.f32 %v10025, %v10060
      %v10092 = vadd.f32 %v10026, %v10065
      %v10093 = vadd.f32 %v10027, %v10065
      %v10094 = vadd.f32 %v10028, %v10065
      %v10095 = vadd.f32 %v10029, %v10065
      %v10096 = vadd.f32 %v10030, %v10065
      %v10097 = vadd.f32 %v10031, %v10070
      %v10098 = vadd.f32 %v10032, %v10070
      %v10099 = vadd.f32 %v10033, %v10070
      %v10100 = vadd.f32 %v10034, %v10070
      %v10101 = vadd.f32 %v10035, %v10070
      %v10102 = vadd.f32 %v10036, %v10075
      %v10103 = vadd.f32 %v10037, %v10075
      %v10104 = vadd.f32 %v10038, %v10075
      %v10105 = vadd.f32 %v10039, %v10075
      %v10106 = vadd.f32 %v10040, %v10075
      %v10107 = vmax.f32 %v10077, 0.0
      %v10108 = vmax.f32 %v10078, 0.0
      %v10109 = vmax.f32 %v10079, 0.0
      %v10110 = vmax.f32 %v10080, 0.0
      %v10111 = vmax.f32 %v10081, 0.0
      %v10112 = vmax.f32 %v10082, 0.0
      %v10113 = vmax.f32 %v10083, 0.0
      %v10114 = vmax.f32 %v10084, 0.0
      %v10115 = vmax.f32 %v10085, 0.0
      %v10116 = vmax.f32 %v10086, 0.0
      %v10117 = vmax.f32 %v10087, 0.0
      %v10118 = vmax.f32 %v10088, 0.0
      %v10119 = vmax.f32 %v10089, 0.0
      %v10120 = vmax.f32 %v10090, 0.0
      %v10121 = vmax.f32 %v10091, 0.0
      %v10122 = vmax.f32 %v10092, 0.0
      %v10123 = vmax.f32 %v10093, 0.0
      %v10124 = vmax.f32 %v10094, 0.0
      %v10125 = vmax.f32 %v10095, 0.0
      %v10126 = vmax.f32 %v10096, 0.0
      %v10127 = vmax.f32 %v10097, 0.0
      %v10128 = vmax.f32 %v10098, 0.0
      %v10129 = vmax.f32 %v10099, 0.0
      %v10130 = vmax.f32 %v10100, 0.0
      %v10131 = vmax.f32 %v10101, 0.0
      %v10132 = vmax.f32 %v10102, 0.0
      %v10133 = vmax.f32 %v10103, 0.0
      %v10134 = vmax.f32 %v10104, 0.0
      %v10135 = vmax.f32 %v10105, 0.0
      %v10136 = vmax.f32 %v10106, 0.0
      %v10137 = vld [vmem:[%s14] sm:$0xf]
      %v10138 = vld [vmem:[%s14 + $0x4] sm:$0xf]
      %v10139 = vld [vmem:[%s14 + $0x8] sm:$0xf]
      %v10140 = vld [vmem:[%s14 + $0xc] sm:$0xf]
      %v10141 = vld [vmem:[%s14 + $0x10] sm:$0xf]
      %v10142 = vld [vmem:[%s14 + $0x14] sm:$0xf]
      %v10143 = vpack.c.bf16 %v10112, %v10107
      %v10144 = vpack.c.bf16 %v10113, %v10108
      %v10145 = vpack.c.bf16 %v10114, %v10109
      %v10146 = vpack.c.bf16 %v10115, %v10110
      %v10147 = vpack.c.bf16 %v10116, %v10111
      %v10148 = vpack.c.bf16 %v10122, %v10117
      %v10149 = vpack.c.bf16 %v10123, %v10118
      %v10150 = vpack.c.bf16 %v10124, %v10119
      %v10151 = vpack.c.bf16 %v10125, %v10120
      %v10152 = vpack.c.bf16 %v10126, %v10121
      %v10153 = vpack.c.bf16 %v10132, %v10127
      %v10154 = vpack.c.bf16 %v10133, %v10128
      %v10155 = vpack.c.bf16 %v10134, %v10129
      %v10156 = vpack.c.bf16 %v10135, %v10130
      %v10157 = vpack.c.bf16 %v10136, %v10131
      %v10158 = vld [vmem:[%s15] sm:$0xff]
      %v10159 = vld [vmem:[%s15 + $0x8] sm:$0xff]
      %v10160 = vld [vmem:[%s15 + $0x10] sm:$0xff]
      %v10161 = vld [vmem:[%s15 + $0x18] sm:$0xff]
      %v10162 = vld [vmem:[%s15 + $0x20] sm:$0xff]
      %v10163 = vld [vmem:[%s15 + $0x28] sm:$0xff]
      %10165 = vset.pattern.permute.xlu0 0
      %10166 = vperm.xlu0 %10165, %v10158
      %v10167 = vpop.permute.xlu0 %10166
      %10170 = vset.pattern.permute.xlu0 0
      %10171 = vperm.xlu0 %10170, %v10159
      %v10172 = vpop.permute.xlu0 %10171
      %10175 = vset.pattern.permute.xlu0 0
      %10176 = vperm.xlu0 %10175, %v10160
      %v10177 = vpop.permute.xlu0 %10176
      %10180 = vset.pattern.permute.xlu0 0
      %10181 = vperm.xlu0 %10180, %v10161
      %v10182 = vpop.permute.xlu0 %10181
      %10185 = vset.pattern.permute.xlu0 0
      %10186 = vperm.xlu0 %10185, %v10162
      %v10187 = vpop.permute.xlu0 %10186
      %10190 = vset.pattern.permute.xlu0 0
      %10191 = vperm.xlu0 %10190, %v10163
      %v10192 = vpop.permute.xlu0 %10191
      %v10200 = vunpack.c.l.b16 %v10137
      %v10201 = vunpack.c.l.b16 %v10138
      %v10202 = vunpack.c.l.b16 %v10139
      %v10203 = vunpack.c.l.b16 %v10140
      %v10204 = vunpack.c.l.b16 %v10141
      %v10205 = vunpack.c.l.b16 %v10142
      %v10206 = vpack.c.b16 %v10201, %v10200
      %v10207 = vpack.c.b16 %v10203, %v10202
      %v10208 = vpack.c.b16 %v10205, %v10204
      %v10210 = vsel %vm4124, %v10206, 0
      %v10213 = vsel %vm4124, %v10207, 0
      %v10216 = vsel %vm4124, %v10208, 0
      %10218 = vmatprep.subr.bf16.mxu0 %v10144
      %10219 = vmatpush1.bf16.msra.mxu0 %v10143
      %10220 = vmatprep.subr.bf16.mxu0 %v10149
      %10221 = vmatpush1.bf16.msra.mxu0 %v10148
      %10222 = vmatprep.subr.bf16.mxu0 %v10154
      %10223 = vmatpush1.bf16.msra.mxu0 %v10153
      %10224 = vmatprep.subr.bf16.mxu0 0
      %10225 = vmatpush1.bf16.msra.mxu0 0
      %10226 = vmatprep.subr.bf16.mxu0 0
      %10227 = vmatpush1.bf16.msra.mxu0 0
      %10228 = vmatprep.subr.bf16.mxu0 0
      %10229 = vmatpush1.bf16.msra.mxu0 0
      %10230 = vmatprep.subr.bf16.mxu0 0
      %10231 = vmatpush1.bf16.msra.mxu0 0
      %10232 = vmatprep.subr.bf16.mxu0 0
      %10233 = vmatpush1.bf16.msra.mxu0 0
      %10234 = vmatprep.subr.bf16.mxu0 0
      %10235 = vmatpush1.bf16.msra.mxu0 0
      %10236 = vmatprep.subr.bf16.mxu0 0
      %10237 = vmatpush1.bf16.msra.mxu0 0
      %10238 = vmatprep.subr.bf16.mxu0 0
      %10239 = vmatpush1.bf16.msra.mxu0 0
      %10240 = vmatprep.subr.bf16.mxu0 0
      %10241 = vmatpush1.bf16.msra.mxu0 0
      %10242 = vmatprep.subr.bf16.mxu0 0
      %10243 = vmatpush1.bf16.msra.mxu0 0
      %10244 = vmatprep.subr.bf16.mxu0 0
      %10245 = vmatpush1.bf16.msra.mxu0 0
      %10246 = vmatprep.subr.bf16.mxu0 0
      %10247 = vmatpush1.bf16.msra.mxu0 0
      %10248 = vmatprep.subr.bf16.mxu0 0
      %10249 = vmatpush1.bf16.msra.mxu0 0
      %10250 = vmatprep.mubr.bf16.mxu0 0
      %10251 = vmatmul.mubr.bf16.gmra.mrb[0].mxu0 %v10210
      %v10252 = vpop.f32.mrb[0].mxu0
      %v10253 = vadd.f32 %v10167, %v10252
      %v10254 = vpop.f32.mrb[0].mxu0
      %v10255 = vadd.f32 %v10167, %v10254
      %v10256 = vpop.f32.mrb[0].mxu0
      %v10257 = vadd.f32 %v10172, %v10256
      %v10258 = vpop.f32.mrb[0].mxu0
      %v10259 = vadd.f32 %v10172, %v10258
      %10260 = vmatprep.mubr.bf16.mxu0 0
      %10261 = vmatmul.mubr.bf16.gmra.mrb[0].mxu0 %v10213
      %v10262 = vpop.f32.mrb[0].mxu0
      %v10263 = vadd.f32 %v10177, %v10262
      %v10264 = vpop.f32.mrb[0].mxu0
      %v10265 = vadd.f32 %v10177, %v10264
      %v10266 = vpop.f32.mrb[0].mxu0
      %v10267 = vadd.f32 %v10182, %v10266
      %v10268 = vpop.f32.mrb[0].mxu0
      %v10269 = vadd.f32 %v10182, %v10268
      %10270 = vmatprep.mubr.bf16.mxu0 0
      %10271 = vmatmul.mubr.bf16.gmra.mrb[0].mxu0 %v10216
      %v10272 = vpop.f32.mrb[0].mxu0
      %v10273 = vadd.f32 %v10187, %v10272
      %v10274 = vpop.f32.mrb[0].mxu0
      %v10275 = vadd.f32 %v10187, %v10274
      %v10276 = vpop.f32.mrb[0].mxu0
      %v10277 = vadd.f32 %v10192, %v10276
      %v10278 = vpop.f32.mrb[0].mxu0
      %v10279 = vadd.f32 %v10192, %v10278
      %10280 = vdwg.mxu0
      %10281 = vmatprep.subr.bf16.mxu0 %v10146
      %10282 = vmatpush1.bf16.msra.mxu0 %v10145
      %10283 = vmatprep.subr.bf16.mxu0 %v10151
      %10284 = vmatpush1.bf16.msra.mxu0 %v10150
      %10285 = vmatprep.subr.bf16.mxu0 %v10156
      %10286 = vmatpush1.bf16.msra.mxu0 %v10155
      %10287 = vmatprep.subr.bf16.mxu0 0
      %10288 = vmatpush1.bf16.msra.mxu0 0
      %10289 = vmatprep.subr.bf16.mxu0 0
      %10290 = vmatpush1.bf16.msra.mxu0 0
      %10291 = vmatprep.subr.bf16.mxu0 0
      %10292 = vmatpush1.bf16.msra.mxu0 0
      %10293 = vmatprep.subr.bf16.mxu0 0
      %10294 = vmatpush1.bf16.msra.mxu0 0
      %10295 = vmatprep.subr.bf16.mxu0 0
      %10296 = vmatpush1.bf16.msra.mxu0 0
      %10297 = vmatprep.subr.bf16.mxu0 0
      %10298 = vmatpush1.bf16.msra.mxu0 0
      %10299 = vmatprep.subr.bf16.mxu0 0
      %10300 = vmatpush1.bf16.msra.mxu0 0
      %10301 = vmatprep.subr.bf16.mxu0 0
      %10302 = vmatpush1.bf16.msra.mxu0 0
      %10303 = vmatprep.subr.bf16.mxu0 0
      %10304 = vmatpush1.bf16.msra.mxu0 0
      %10305 = vmatprep.subr.bf16.mxu0 0
      %10306 = vmatpush1.bf16.msra.mxu0 0
      %10307 = vmatprep.subr.bf16.mxu0 0
      %10308 = vmatpush1.bf16.msra.mxu0 0
      %10309 = vmatprep.subr.bf16.mxu0 0
      %10310 = vmatpush1.bf16.msra.mxu0 0
      %10311 = vmatprep.subr.bf16.mxu0 0
      %10312 = vmatpush1.bf16.msra.mxu0 0
      %10313 = vmatprep.mubr.bf16.mxu0 0
      %10314 = vmatmul.mubr.bf16.gmra.mrb[0].mxu0 %v10210
      %v10315 = vpop.f32.mrb[0].mxu0
      %v10316 = vadd.f32 %v10167, %v10315
      %v10317 = vpop.f32.mrb[0].mxu0
      %v10318 = vadd.f32 %v10167, %v10317
      %v10319 = vpop.f32.mrb[0].mxu0
      %v10320 = vadd.f32 %v10172, %v10319
      %v10321 = vpop.f32.mrb[0].mxu0
      %v10322 = vadd.f32 %v10172, %v10321
      %10323 = vmatprep.mubr.bf16.mxu0 0
      %10324 = vmatmul.mubr.bf16.gmra.mrb[0].mxu0 %v10213
      %v10325 = vpop.f32.mrb[0].mxu0
      %v10326 = vadd.f32 %v10177, %v10325
      %v10327 = vpop.f32.mrb[0].mxu0
      %v10328 = vadd.f32 %v10177, %v10327
      %v10329 = vpop.f32.mrb[0].mxu0
      %v10330 = vadd.f32 %v10182, %v10329
      %v10331 = vpop.f32.mrb[0].mxu0
      %v10332 = vadd.f32 %v10182, %v10331
      %10333 = vmatprep.mubr.bf16.mxu0 0
      %10334 = vmatmul.mubr.bf16.gmra.mrb[0].mxu0 %v10216
      %v10335 = vpop.f32.mrb[0].mxu0
      %v10336 = vadd.f32 %v10187, %v10335
      %v10337 = vpop.f32.mrb[0].mxu0
      %v10338 = vadd.f32 %v10187, %v10337
      %v10339 = vpop.f32.mrb[0].mxu0
      %v10340 = vadd.f32 %v10192, %v10339
      %v10341 = vpop.f32.mrb[0].mxu0
      %v10342 = vadd.f32 %v10192, %v10341
      %10343 = vdwg.mxu0
      %10344 = vmatprep.subr.bf16.mxu0 0
      %10345 = vmatpush1.bf16.msra.mxu0 %v10147
      %10346 = vmatprep.subr.bf16.mxu0 0
      %10347 = vmatpush1.bf16.msra.mxu0 %v10152
      %10348 = vmatprep.subr.bf16.mxu0 0
      %10349 = vmatpush1.bf16.msra.mxu0 %v10157
      %10350 = vmatprep.subr.bf16.mxu0 0
      %10351 = vmatpush1.bf16.msra.mxu0 0
      %10352 = vmatprep.subr.bf16.mxu0 0
      %10353 = vmatpush1.bf16.msra.mxu0 0
      %10354 = vmatprep.subr.bf16.mxu0 0
      %10355 = vmatpush1.bf16.msra.mxu0 0
      %10356 = vmatprep.subr.bf16.mxu0 0
      %10357 = vmatpush1.bf16.msra.mxu0 0
      %10358 = vmatprep.subr.bf16.mxu0 0
      %10359 = vmatpush1.bf16.msra.mxu0 0
      %10360 = vmatprep.subr.bf16.mxu0 0
      %10361 = vmatpush1.bf16.msra.mxu0 0
      %10362 = vmatprep.subr.bf16.mxu0 0
      %10363 = vmatpush1.bf16.msra.mxu0 0
      %10364 = vmatprep.subr.bf16.mxu0 0
      %10365 = vmatpush1.bf16.msra.mxu0 0
      %10366 = vmatprep.subr.bf16.mxu0 0
      %10367 = vmatpush1.bf16.msra.mxu0 0
      %10368 = vmatprep.subr.bf16.mxu0 0
      %10369 = vmatpush1.bf16.msra.mxu0 0
      %10370 = vmatprep.subr.bf16.mxu0 0
      %10371 = vmatpush1.bf16.msra.mxu0 0
      %10372 = vmatprep.subr.bf16.mxu0 0
      %10373 = vmatpush1.bf16.msra.mxu0 0
      %10374 = vmatprep.subr.bf16.mxu0 0
      %10375 = vmatpush1.bf16.msra.mxu0 0
      %10376 = vmatprep.mubr.bf16.mxu0 0
      %10377 = vmatmul.mubr.bf16.gmra.mrb[0].mxu0 %v10210
      %v10378 = vpop.f32.mrb[0].mxu0
      %v10379 = vadd.f32 %v10167, %v10378
      %v10380 = vpop.f32.mrb[0].mxu0
      %v10381 = vpop.f32.mrb[0].mxu0
      %v10382 = vadd.f32 %v10172, %v10381
      %v10383 = vpop.f32.mrb[0].mxu0
      %10384 = vmatprep.mubr.bf16.mxu0 0
      %10385 = vmatmul.mubr.bf16.gmra.mrb[0].mxu0 %v10213
      %v10386 = vpop.f32.mrb[0].mxu0
      %v10387 = vadd.f32 %v10177, %v10386
      %v10388 = vpop.f32.mrb[0].mxu0
      %v10389 = vpop.f32.mrb[0].mxu0
      %v10390 = vadd.f32 %v10182, %v10389
      %v10391 = vpop.f32.mrb[0].mxu0
      %10392 = vmatprep.mubr.bf16.mxu0 0
      %10393 = vmatmul.mubr.bf16.gmra.mrb[0].mxu0 %v10216
      %v10394 = vpop.f32.mrb[0].mxu0
      %v10395 = vadd.f32 %v10187, %v10394
      %v10396 = vpop.f32.mrb[0].mxu0
      %v10397 = vpop.f32.mrb[0].mxu0
      %v10398 = vadd.f32 %v10192, %v10397
      %v10399 = vpop.f32.mrb[0].mxu0
      %10400 = vdwg.mxu0
      %v10401 = vmax.f32 %v10253, 0.0
      %v10402 = vmax.f32 %v10255, 0.0
      %v10403 = vmax.f32 %v10316, 0.0
      %v10404 = vmax.f32 %v10318, 0.0
      %v10405 = vmax.f32 %v10379, 0.0
      %v10406 = vmax.f32 %v10257, 0.0
      %v10407 = vmax.f32 %v10259, 0.0
      %v10408 = vmax.f32 %v10320, 0.0
      %v10409 = vmax.f32 %v10322, 0.0
      %v10410 = vmax.f32 %v10382, 0.0
      %v10411 = vmax.f32 %v10263, 0.0
      %v10412 = vmax.f32 %v10265, 0.0
      %v10413 = vmax.f32 %v10326, 0.0
      %v10414 = vmax.f32 %v10328, 0.0
      %v10415 = vmax.f32 %v10387, 0.0
      %v10416 = vmax.f32 %v10267, 0.0
      %v10417 = vmax.f32 %v10269, 0.0
      %v10418 = vmax.f32 %v10330, 0.0
      %v10419 = vmax.f32 %v10332, 0.0
      %v10420 = vmax.f32 %v10390, 0.0
      %v10421 = vmax.f32 %v10273, 0.0
      %v10422 = vmax.f32 %v10275, 0.0
      %v10423 = vmax.f32 %v10336, 0.0
      %v10424 = vmax.f32 %v10338, 0.0
      %v10425 = vmax.f32 %v10395, 0.0
      %v10426 = vmax.f32 %v10277, 0.0
      %v10427 = vmax.f32 %v10279, 0.0
      %v10428 = vmax.f32 %v10340, 0.0
      %v10429 = vmax.f32 %v10342, 0.0
      %v10430 = vmax.f32 %v10398, 0.0
      %10431 = vst [vmem:[%s556] sm:$0xff] %v10401
      %10432 = vst [vmem:[%s556 + $0x8] sm:$0xff] %v10402
      %10433 = vst [vmem:[%s556 + $0x10] sm:$0xff] %v10403
      %10434 = vst [vmem:[%s556 + $0x18] sm:$0xff] %v10404
      %10435 = vst [vmem:[%s556 + $0x20] sm:$0xff] %v10405
      %10436 = vst [vmem:[%s556 + $0x28] sm:$0xff] %v10406
      %10437 = vst [vmem:[%s556 + $0x30] sm:$0xff] %v10407
      %10438 = vst [vmem:[%s556 + $0x38] sm:$0xff] %v10408
      %10439 = vst [vmem:[%s556 + $0x40] sm:$0xff] %v10409
      %10440 = vst [vmem:[%s556 + $0x48] sm:$0xff] %v10410
      %10441 = vst [vmem:[%s556 + $0x50] sm:$0xff] %v10411
      %10442 = vst [vmem:[%s556 + $0x58] sm:$0xff] %v10412
      %10443 = vst [vmem:[%s556 + $0x60] sm:$0xff] %v10413
      %10444 = vst [vmem:[%s556 + $0x68] sm:$0xff] %v10414
      %10445 = vst [vmem:[%s556 + $0x70] sm:$0xff] %v10415
      %10446 = vst [vmem:[%s556 + $0x78] sm:$0xff] %v10416
      %10447 = vst [vmem:[%s556 + $0x80] sm:$0xff] %v10417
      %10448 = vst [vmem:[%s556 + $0x88] sm:$0xff] %v10418
      %10449 = vst [vmem:[%s556 + $0x90] sm:$0xff] %v10419
      %10450 = vst [vmem:[%s556 + $0x98] sm:$0xff] %v10420
      %10451 = vst [vmem:[%s556 + $0xa0] sm:$0xff] %v10421
      %10452 = vst [vmem:[%s556 + $0xa8] sm:$0xff] %v10422
      %10453 = vst [vmem:[%s556 + $0xb0] sm:$0xff] %v10423
      %10454 = vst [vmem:[%s556 + $0xb8] sm:$0xff] %v10424
      %10455 = vst [vmem:[%s556 + $0xc0] sm:$0xff] %v10425
      %10456 = vst [vmem:[%s556 + $0xc8] sm:$0xff] %v10426
      %10457 = vst [vmem:[%s556 + $0xd0] sm:$0xff] %v10427
      %10458 = vst [vmem:[%s556 + $0xd8] sm:$0xff] %v10428
      %10459 = vst [vmem:[%s556 + $0xe0] sm:$0xff] %v10429
      %10460 = vst [vmem:[%s556 + $0xe8] sm:$0xff] %v10430
      %p10461 = scmp.lt.s32.totalorder %s29, 1
      %s10462 = scalar_select %p10461, %s29, 1
      %s10463 = smul.addr %s10462, 30
      %s10464 = smul.addr %s10463, 8
      %s10465 = scalar_lea.vmem %s16, %s10464
      %p10466 = scmp.lt.s32.totalorder %s29, 1
      %s10467 = scalar_select %p10466, %s29, 1
      %s10468 = smul.addr %s10467, 20
      %s10469 = smul.addr %s10468, 8
      %s10470 = scalar_lea.vmem %s17, %s10469
      // Predicated region
      $region85: #{simulated_module_forward.1} parent=83 // pred_check
        %p10471 = pneg %p388
      $region86: #{simulated_module_forward.1} parent=83 // pred_check_branch
        %10473 = sbr.rel (%p10471) target = $region88
      $region87: #{simulated_module_forward.1} parent=83 // pred_region
        _
      $region88: #{simulated_module_forward.1} parent=83 // pred_fallthru
        _
      // Predicated region
      $region89: #{simulated_module_forward.1} parent=83 // pred_check
        %p10474 = pneg %p414
      $region90: #{simulated_module_forward.1} parent=83 // pred_check_branch
        %10476 = sbr.rel (%p10474) target = $region92
      $region91: #{simulated_module_forward.1} parent=83 // pred_region
        _
      $region92: #{simulated_module_forward.1} parent=83 // pred_fallthru
        _
    $region84: #{simulated_module_forward.1} parent=5 // pred_fallthru
      _
    %p10477 = scmp.le.s32.totalorder 2, %s24
    // Predicated region
    $region93: #{simulated_module_forward.1} parent=5 // pred_check
      %p10478 = pneg %p10477
    $region94: #{simulated_module_forward.1} parent=5 // pred_check_branch
      %10480 = sbr.rel (%p10478) target = $region96
    $region95: #{simulated_module_forward.1} parent=5 // pred_region
      %s10481 = ssub.s32 %s24, 2
      // Predicated region
      $region97: #{simulated_module_forward.1} parent=95 // pred_check
        %p10482 = pneg %p394
      $region98: #{simulated_module_forward.1} parent=95 // pred_check_branch
        %10484 = sbr.rel (%p10482) target = $region100
      $region99: #{simulated_module_forward.1} parent=95 // pred_region
        %p10485 = scmp.lt.s32.totalorder %s30, 1
        %s10486 = scalar_select %p10485, %s30, 1
        %s10487 = smul.addr %s10486, 30
        %s10488 = smul.addr %s10487, 8
        %s10489 = scalar_lea.vmem %s16, %s10488
      $region100: #{simulated_module_forward.1} parent=95 // pred_fallthru
        _
      // Predicated region
      $region101: #{simulated_module_forward.1} parent=95 // pred_check
        %p10490 = pneg %p420
      $region102: #{simulated_module_forward.1} parent=95 // pred_check_branch
        %10492 = sbr.rel (%p10490) target = $region104
      $region103: #{simulated_module_forward.1} parent=95 // pred_region
        %p10493 = scmp.lt.s32.totalorder %s30, 1
        %s10494 = scalar_select %p10493, %s30, 1
        %s10495 = smul.addr %s10494, 20
        %s10496 = smul.addr %s10495, 8
        %s10497 = scalar_lea.vmem %s17, %s10496
      $region104: #{simulated_module_forward.1} parent=95 // pred_fallthru
        _
    $region96: #{simulated_module_forward.1} parent=5 // pred_fallthru
      _
  $region6: #{simulated_module_forward.1} parent=0 // loop_footer
    %s28 = sadd.s32 1, %s24
  $region7: #{simulated_module_forward.1} parent=0 // loop_footer_branch
    %23 = sbr.rel target = $region3
  $region8: #{simulated_module_forward.1} parent=0 // loop_exit
    _

</llo_original>
